<compile_context>
chip_gen: v5e
topology: v5e:2x2
jax: 0.10.0
libtpu: 0.0.40
codegen_flags: <defaults>
</compile_context>

<pallas_src>
import math
import functools

import jax
import jax.numpy as jnp
from jax.experimental import pallas as pl
from jax.experimental.pallas import tpu as pltpu

# ----------------------- configuration (small, consistent) -------------------
NUM_CHANNELS = 1
IMG_SIZE     = 32        # original default 304
PATCH_SIZE   = 8         # original default 16
NUM_BLOCKS   = 2         # original default 16
NUM_EDGES    = 9
N_CLASSES    = 1
BATCH        = 2

N_PATCHES   = (IMG_SIZE // PATCH_SIZE) ** 2            # 16
IN_FEATURES = NUM_CHANNELS * PATCH_SIZE * PATCH_SIZE   # 64
OUT_FEATURE = PATCH_SIZE * PATCH_SIZE                  # 64

_NEG = -3.0e38           # finite "minus infinity" (avoids NaN/Inf propagation)


# ------------------------ generation-aware VMEM budget ------------------------
@functools.lru_cache(maxsize=None)
def _vmem_limit():
    # v5e/v6e have 128 MiB physical VMEM, v7x has 64 MiB per TC; only matters at
    # the real 304/16 config but keep the budget generation-aware.
    try:
        cap = pltpu.get_tpu_info().vmem_capacity_bytes
        return int(min(cap * 0.45, 100 * 1024 * 1024))
    except Exception:
        return None


# --------------------------- in-kernel math helpers ---------------------------
def _erf(x):
    # Abramowitz & Stegun 7.1.26 rational approximation, |err| < 1.5e-7.
    # Only uses exp / mul / add / EUP-reciprocal, which always lower in Mosaic.
    a1, a2, a3 = 0.254829592, -0.284496736, 1.421413741
    a4, a5, p = -1.453152027, 1.061405429, 0.3275911
    ax = jnp.abs(x)
    t = pl.reciprocal(1.0 + p * ax, approx=True)       # EUP slot, not VALU divide
    poly = ((((a5 * t + a4) * t + a3) * t + a2) * t + a1) * t
    y = 1.0 - poly * jnp.exp(-ax * ax)
    return jnp.where(x >= 0, y, -y)


def _gelu(x):
    return 0.5 * x * (1.0 + _erf(x * 0.7071067811865476))


def _relu(x):
    return jnp.maximum(x, 0.0)


def _sigmoid(x):
    return 1.0 / (1.0 + jnp.exp(-x))


def _mm(a, w_ref, b_ref):
    """bf16 x bf16 matmul with f32 accumulation + f32 bias."""
    return (jnp.dot(a.astype(jnp.bfloat16), w_ref[...],
                    preferred_element_type=jnp.float32) + b_ref[...])


# --------------------------- fused MLP-chain kernels --------------------------
def _mlp_chain_kernel(x_ref, *refs, n_layers, act):
    """y = Ln(act(...L1(x))); rows on sublanes, features on lanes."""
    o_ref = refs[-1]
    wb = refs[:-1]
    y = x_ref[...]
    for i in range(n_layers):
        w = wb[2 * i][...]
        b = wb[2 * i + 1][...]
        y = jnp.dot(y.astype(w.dtype), w, preferred_element_type=jnp.float32) + b
        if i < n_layers - 1:
            y = act(y)
    o_ref[...] = y.astype(o_ref.dtype)


def _mlp_chain_t_kernel(x_ref, *refs, n_layers, act):
    """Transposed chain: channels on sublanes, spatial on lanes (lane-dense out)."""
    o_ref = refs[-1]
    wb = refs[:-1]
    y = x_ref[...]                                      # (C0, tn)
    for i in range(n_layers):
        w = wb[2 * i][...]                              # (C_out, C_in)
        b = wb[2 * i + 1][...]                          # (C_out, 1)
        y = jnp.dot(w, y.astype(w.dtype), preferred_element_type=jnp.float32) + b
        if i < n_layers - 1:
            y = act(y)
    o_ref[...] = y.astype(o_ref.dtype)


def _pick_row_tile(m, row_bytes, budget):
    """Largest multiple-of-8 row tile dividing m, bounded by a VMEM row budget,
    but prefer >= 2 grid steps so v7x megacore can use both TensorCores."""
    cap = max(8, budget // max(row_bytes, 1))
    tm = m
    for cand in (1024, 512, 256, 128, 64, 32, 16, 8):
        if cand <= cap and m % cand == 0:
            tm = cand
            break
    if tm == m and m >= 16 and (m // 2) % 8 == 0 and (m // 2) <= cap:
        tm = m // 2
    return tm


def _pick_lane_tile(m):
    """Lane tile (multiple of 128) giving >= 2 grid steps when m allows."""
    for tn in (4096, 2048, 1024, 512, 256, 128):
        if tn <= m // 2 and m % tn == 0:
            return tn
    return m


def mlp_chain_pallas(x, weights, biases, act):
    """Fused stack of (linear + folded BN [+ act]) layers; x:(M,K0)."""
    M, k0 = x.shape
    n_layers = len(weights)
    widths = [k0] + [w.shape[1] for w in weights]
    row_bytes = 2 * 4 * sum(widths)                     # double-buffered activations/row
    budget = max(4 << 20, (_vmem_limit() or (32 << 20)) // 3)
    tm = _pick_row_tile(M, row_bytes, budget)
    kernel = functools.partial(_mlp_chain_kernel, n_layers=n_layers, act=act)

    in_specs = [pl.BlockSpec((tm, k0), lambda i: (i, 0))]
    args = [x]
    for w, b in zip(weights, biases):
        kin, kout = w.shape
        in_specs.append(pl.BlockSpec((kin, kout), lambda i: (0, 0)))
        in_specs.append(pl.BlockSpec((1, kout), lambda i: (0, 0)))
        args += [w, b.reshape(1, kout)]
    n_out = widths[-1]
    return pl.pallas_call(
        kernel,
        out_shape=jax.ShapeDtypeStruct((M, n_out), jnp.float32),
        grid=(M // tm,),
        in_specs=in_specs,
        out_specs=pl.BlockSpec((tm, n_out), lambda i: (i, 0)),
        compiler_params=pltpu.CompilerParams(
            dimension_semantics=("parallel",), vmem_limit_bytes=_vmem_limit()),
    )(*args)


def mlp_chain_t_pallas(x_t, weights, biases, act):
    """Transposed fused chain; x_t:(C0, M) with the spatial dim M on lanes.
    weights[i] is (C_out_i, C_in_i) (already transposed)."""
    c0, m = x_t.shape
    n_layers = len(weights)
    tn = _pick_lane_tile(m)
    kernel = functools.partial(_mlp_chain_t_kernel, n_layers=n_layers, act=act)

    in_specs = [pl.BlockSpec((c0, tn), lambda j: (0, j))]
    args = [x_t]
    for w, b in zip(weights, biases):
        cout, cin = w.shape
        in_specs.append(pl.BlockSpec((cout, cin), lambda j: (0, 0)))
        in_specs.append(pl.BlockSpec((cout, 1), lambda j: (0, 0)))
        args += [w, b.reshape(cout, 1)]
    c_last = weights[-1].shape[0]
    return pl.pallas_call(
        kernel,
        out_shape=jax.ShapeDtypeStruct((c_last, m), jnp.float32),
        grid=(m // tn,),
        in_specs=in_specs,
        out_specs=pl.BlockSpec((c_last, tn), lambda j: (0, j)),
        compiler_params=pltpu.CompilerParams(
            dimension_semantics=("parallel",), vmem_limit_bytes=_vmem_limit()),
    )(*args)


# --------------------- fully fused ViG block (one pallas_call) ----------------
def _vig_block_kernel(x_ref, *refs, k, add_pose):
    idx = 1 if add_pose else 0
    (w1a, b1a, w2a, b2a,                 # in_layer1
     fwh, fwm, fb,                       # multi_head_fc (de-interleaved halves)
     w1o, b1o, w2o, b2o,                 # out_layer1
     w1i, b1i, w2i, b2i,                 # in_layer2 (hidden 4C)
     w1p, b1p, w2p, b2p) = refs[idx:idx + 19]
    o_ref = refs[-1]

    x = x_ref[0]                                         # (N, C) f32
    if add_pose:
        x = x + refs[0][...]                             # pose embedding folded in

    # -- graph similarity, f32 (stable top-k selection) ------------------------
    sim = jax.lax.dot_general(x, x, (((1,), (1,)), ((), ())),
                              preferred_element_type=jnp.float32)   # (N, N)

    # -- in_layer1 (TwoLayerNN, residual inside) -------------------------------
    y = _mm(x, w1a, b1a)
    y = _gelu(y)
    y = _mm(y, w2a, b2a)
    h = y + x                                            # (N, C)

    # -- in-kernel top-k: k rounds of row-max + equality mask (pure VPU) -------
    # ties (probability ~0 with float data) may select >k neighbours, which only
    # affects the max-reduction set; selection is always non-empty so no -inf
    # survives the neighbour max below.
    work = sim
    selected = jnp.zeros(sim.shape, dtype=jnp.bool_)
    for _ in range(k):
        rmax = jnp.max(work, axis=-1, keepdims=True)
        sel = work >= rmax
        selected = jnp.logical_or(selected, sel)
        work = jnp.where(sel, _NEG, work)

    # -- masked neighbour max (maxdiff) over the N candidate rows --------------
    # TODO(synk): at the real 304/16 config (N=361) replace this unrolled loop
    # with a 3D masked max / batched adjacency matmul and tile N over the grid.
    n_rows = h.shape[0]
    nb_max = jnp.full(h.shape, _NEG, dtype=jnp.float32)
    for j in range(n_rows):
        m_j = selected[:, j:j + 1]                       # (N, 1) bool
        nb_max = jnp.maximum(nb_max, jnp.where(m_j, h[j:j + 1, :], _NEG))
    maxdiff = nb_max - h

    # -- multi_head_fc: Conv1d over interleaved [h, maxdiff] channels ----------
    t = (jnp.dot(h.astype(jnp.bfloat16), fwh[...], preferred_element_type=jnp.float32)
         + jnp.dot(maxdiff.astype(jnp.bfloat16), fwm[...],
                   preferred_element_type=jnp.float32)
         + fb[...])
    t = _gelu(t)

    # -- out_layer1 (+t residual inside TwoLayerNN) + block shortcut -----------
    y = _mm(t, w1o, b1o)
    y = _gelu(y)
    y = _mm(y, w2o, b2o)
    xm = y + t + x

    # -- in_layer2 (hidden 4C, residual inside) --------------------------------
    u = _mm(xm, w1i, b1i)
    u = _gelu(u)
    u = _mm(u, w2i, b2i)
    u = u + xm
    g = _gelu(u)

    # -- out_layer2 (hidden 4C, residual inside) + residual back to xm ---------
    v = _mm(g, w1p, b1p)
    v = _gelu(v)
    v = _mm(v, w2p, b2p)
    o_ref[0] = v + g + xm


def vig_block_pallas(x, p, pose=None):
    B, N, C = x.shape
    k = p["k"]
    add_pose = pose is not None

    def tl_args(d):
        hid = d["w1"].shape[1]
        return [d["w1"], d["b1"].reshape(1, hid), d["w2"], d["b2"].reshape(1, C)]

    weights = (tl_args(p["in_layer1"])
               + [p["fc_w_h"], p["fc_w_m"], p["fc_b"].reshape(1, C)]
               + tl_args(p["out_layer1"])
               + tl_args(p["in_layer2"])
               + tl_args(p["out_layer2"]))

    args = [x] + ([pose] if add_pose else []) + weights
    in_specs = ([pl.BlockSpec((1, N, C), lambda b: (b, 0, 0))]
                + ([pl.BlockSpec((N, C), lambda b: (0, 0))] if add_pose else [])
                + [pl.BlockSpec(w.shape, lambda b: (0, 0)) for w in weights])

    kernel = functools.partial(_vig_block_kernel, k=k, add_pose=add_pose)
    return pl.pallas_call(
        kernel,
        out_shape=jax.ShapeDtypeStruct((B, N, C), jnp.float32),
        grid=(B,),
        in_specs=in_specs,
        out_specs=pl.BlockSpec((1, N, C), lambda b: (b, 0, 0)),
        compiler_params=pltpu.CompilerParams(
            dimension_semantics=("parallel",), vmem_limit_bytes=_vmem_limit()),
    )(*args)


# --------- final head: sigmoid -> concat(input) -> 1x1 conv -> sigmoid ---------
def _final_kernel(y_ref, x_ref, w_ref, b_ref, o_ref, *, n_cls, c_in):
    ys = _sigmoid(y_ref[0])                              # (n_cls, HW) lane-dense
    xi = x_ref[0]                                        # (c_in,  HW)
    rows = []
    for oc in range(n_cls):
        acc = jnp.zeros_like(ys[0:1])
        for ic in range(n_cls):
            acc = acc + w_ref[ic, oc] * ys[ic:ic + 1]
        for ic in range(c_in):
            acc = acc + w_ref[n_cls + ic, oc] * xi[ic:ic + 1]
        rows.append(_sigmoid(acc + b_ref[oc]))
    o_ref[0] = rows[0] if n_cls == 1 else jnp.concatenate(rows, axis=0)


def final_pallas(y, x, w, b):
    """sigmoid(conv1x1(concat([sigmoid(y), x], ch))) with spatial flat on lanes."""
    B, n_cls, H, W = y.shape
    c_in = x.shape[1]
    HW = H * W
    kernel = functools.partial(_final_kernel, n_cls=n_cls, c_in=c_in)
    out = pl.pallas_call(
        kernel,
        out_shape=jax.ShapeDtypeStruct((B, n_cls, HW), jnp.float32),
        grid=(B,),
        in_specs=[
            pl.BlockSpec((1, n_cls, HW), lambda bb: (bb, 0, 0)),
            pl.BlockSpec((1, c_in, HW), lambda bb: (bb, 0, 0)),
            pl.BlockSpec(memory_space=pltpu.MemorySpace.SMEM),   # tiny conv weights
            pl.BlockSpec(memory_space=pltpu.MemorySpace.SMEM),   # bias
        ],
        out_specs=pl.BlockSpec((1, n_cls, HW), lambda bb: (bb, 0, 0)),
        compiler_params=pltpu.CompilerParams(
            dimension_semantics=("parallel",), vmem_limit_bytes=_vmem_limit()),
    )(y.reshape(B, n_cls, HW), x.reshape(B, c_in, HW), w, b)
    return out.reshape(B, n_cls, H, W)


# ------------------------------- parameters ----------------------------------
class KeyGen:
    def __init__(self, seed=0):
        self.key = jax.random.PRNGKey(seed)

    def __call__(self):
        self.key, sub = jax.random.split(self.key)
        return sub


def init_linear(kg, fan_in, fan_out):
    bound = 1.0 / math.sqrt(fan_in)
    w = jax.random.uniform(kg(), (fan_in, fan_out), jnp.float32, -bound, bound)
    b = jax.random.uniform(kg(), (fan_out,), jnp.float32, -bound, bound)
    return w, b


def init_bn(kg, n):
    gamma = 1.0 + 0.05 * jax.random.normal(kg(), (n,), jnp.float32)
    beta = 0.05 * jax.random.normal(kg(), (n,), jnp.float32)
    mean = 0.05 * jax.random.normal(kg(), (n,), jnp.float32)
    var = 1.0 + 0.05 * jax.random.uniform(kg(), (n,), jnp.float32)
    return gamma, beta, mean, var


def fold_bn(w, b, gamma, beta, mean, var, eps=1e-5):
    # inference-mode BatchNorm folded into the preceding linear / 1x1 conv
    s = gamma / jnp.sqrt(var + eps)
    return w * s[None, :], (b - mean) * s + beta


def init_linear_bn(kg, fan_in, fan_out):
    w, b = init_linear(kg, fan_in, fan_out)
    return fold_bn(w, b, *init_bn(kg, fan_out))


def _bf16(w):
    # MXU operands in bf16 (v6e/v7x native; also wins on v5e); biases stay f32.
    return w.astype(jnp.bfloat16)


def init_two_layer(kg, in_f, hidden=None):
    hidden = hidden or in_f
    w1, b1 = init_linear_bn(kg, in_f, hidden)
    w2, b2 = init_linear(kg, hidden, in_f)
    return {"w1": _bf16(w1), "b1": b1, "w2": _bf16(w2), "b2": b2}


def init_vig_block(kg, c, k):
    fc_w, fc_b = init_linear(kg, 2 * c, c)   # Conv1d(2C, C, 1) over interleaved channels
    return {
        "k": k,
        "in_layer1": init_two_layer(kg, c),
        "out_layer1": init_two_layer(kg, c),
        "in_layer2": init_two_layer(kg, c, c * 4),
        "out_layer2": init_two_layer(kg, c, c * 4),
        # de-interleave conv rows once at init (even rows act on h, odd on maxdiff)
        # so the kernel uses two lane-contiguous matmuls, no stack/relayout.
        "fc_w_h": _bf16(fc_w[0::2]), "fc_w_m": _bf16(fc_w[1::2]), "fc_b": fc_b,
    }


def init_params(kg):
    p = {}
    dims = [IN_FEATURES, OUT_FEATURE // 2, OUT_FEATURE // 4, OUT_FEATURE // 8,
            OUT_FEATURE // 4, OUT_FEATURE // 2, OUT_FEATURE]
    p["patch_embedding"] = [
        tuple(map(lambda a: a, init_linear_bn(kg, dims[i], dims[i + 1])))
        for i in range(6)
    ]
    p["patch_embedding"] = [(_bf16(w), b) for (w, b) in p["patch_embedding"]]
    p["pose_embedding"] = jax.random.uniform(kg(), (N_PATCHES, OUT_FEATURE), jnp.float32)
    p["blocks"] = [init_vig_block(kg, OUT_FEATURE, NUM_EDGES) for _ in range(NUM_BLOCKS)]
    # original hard-codes 576 input channels (only valid for img_size=384);
    # scaled here to N_PATCHES so the forward is well defined at small shapes.
    chans = [N_PATCHES, 8, 4, 2, N_CLASSES]
    pred = []
    for i in range(4):
        if i < 3:
            w, b = init_linear_bn(kg, chans[i], chans[i + 1])
        else:
            w, b = init_linear(kg, chans[i], chans[i + 1])
        pred.append((_bf16(w), b))
    p["predictor"] = pred
    p["final_w"], p["final_b"] = init_linear(kg, N_CLASSES + NUM_CHANNELS, N_CLASSES)
    return p


# ------------------------------- forward pass --------------------------------
def bilinear_resize(x, out_h, out_w):
    """F.interpolate(mode='bilinear', align_corners=False) on NCHW (XLA glue)."""
    # TODO(synk): bilinear upsampling stays in plain JAX/XLA (gather-heavy, tiny).
    B, C, H, W = x.shape

    def src_idx(out_size, in_size):
        scale = in_size / out_size
        i = jnp.arange(out_size, dtype=jnp.float32)
        src = jnp.maximum((i + 0.5) * scale - 0.5, 0.0)
        i0 = jnp.minimum(jnp.floor(src).astype(jnp.int32), in_size - 1)
        i1 = jnp.minimum(i0 + 1, in_size - 1)
        w1 = src - i0.astype(jnp.float32)
        return i0, i1, 1.0 - w1, w1

    y0, y1, wy0, wy1 = src_idx(out_h, H)
    x0, x1, wx0, wx1 = src_idx(out_w, W)
    rows = (x[:, :, y0, :] * wy0[None, None, :, None]
            + x[:, :, y1, :] * wy1[None, None, :, None])
    return rows[:, :, :, x0] * wx0 + rows[:, :, :, x1] * wx1


def vig_seg_forward(params, x):
    B, C, H, W = x.shape
    ps = PATCH_SIZE
    hp, wp = H // ps, W // ps
    N = hp * wp

    # SimplePatchifier: (B,C,H,W) -> (B*N, C*ps*ps)
    feat = (x.reshape(B, C, hp, ps, wp, ps)
             .transpose(0, 2, 4, 1, 3, 5)
             .reshape(B * N, C * ps * ps))

    # fused 6-layer patch-embedding MLP (Linear + folded BN, GELU between layers)
    pe_w = [w for (w, _) in params["patch_embedding"]]
    pe_b = [b for (_, b) in params["patch_embedding"]]
    feat = mlp_chain_pallas(feat, pe_w, pe_b, act=_gelu)
    feat = feat.reshape(B, N, OUT_FEATURE)

    # ViG blocks: one fully fused pallas_call per block; pose add folded into block 0
    for i, blk in enumerate(params["blocks"]):
        feat = vig_block_pallas(feat, blk,
                                pose=params["pose_embedding"] if i == 0 else None)

    # predictor (1x1-conv stack) channels-first: spatial on lanes -> lane-dense out
    xt = feat.transpose(1, 0, 2).reshape(N, B * ps * ps)          # (N, B*ps*ps)
    pr_w = [w.T for (w, _) in params["predictor"]]                 # (C_out, C_in)
    pr_b = [b for (_, b) in params["predictor"]]
    y = mlp_chain_t_pallas(xt, pr_w, pr_b, act=_relu)              # (n_cls, B*ps*ps)
    y = y.reshape(N_CLASSES, B, ps, ps).transpose(1, 0, 2, 3)

    # progressive bilinear upsampling (XLA glue); skip the trailing identity resize
    for i in range(int(math.log2(IMG_SIZE / ps))):
        t = ps << 1 << i
        y = bilinear_resize(y, t, t)
    if y.shape[-2:] != (H, W):
        y = bilinear_resize(y, H, W)

    # fused: sigmoid -> concat with input -> 1x1 conv -> sigmoid (spatial on lanes)
    return final_pallas(y, x, params["final_w"], params["final_b"])


# ----------------------------------- main -------------------------------------
if __name__ == "__main__":
    kg = KeyGen(0)
    params = init_params(kg)
    x = jax.random.normal(jax.random.PRNGKey(0),
                          (BATCH, NUM_CHANNELS, IMG_SIZE, IMG_SIZE), jnp.float32)
    fwd = jax.jit(lambda inp: vig_seg_forward(params, inp))
    out = jax.block_until_ready(fwd(x))
    assert out.shape == (BATCH, N_CLASSES, IMG_SIZE, IMG_SIZE), out.shape
    assert bool(jnp.all(jnp.isfinite(out)))
    print("KERNEL_OK")
</pallas_src>

<mosaic_0001>
module attributes {stable_mosaic.version = 11 : i64} {
  func.func @_mlp_chain_kernel(%arg0: i32, %arg1: memref<16x64xf32, #tpu.memory_space<vmem>>, %arg2: memref<64x32xbf16, #tpu.memory_space<vmem>>, %arg3: memref<1x32xf32, #tpu.memory_space<vmem>>, %arg4: memref<32x16xbf16, #tpu.memory_space<vmem>>, %arg5: memref<1x16xf32, #tpu.memory_space<vmem>>, %arg6: memref<16x8xbf16, #tpu.memory_space<vmem>>, %arg7: memref<1x8xf32, #tpu.memory_space<vmem>>, %arg8: memref<8x16xbf16, #tpu.memory_space<vmem>>, %arg9: memref<1x16xf32, #tpu.memory_space<vmem>>, %arg10: memref<16x32xbf16, #tpu.memory_space<vmem>>, %arg11: memref<1x32xf32, #tpu.memory_space<vmem>>, %arg12: memref<32x64xbf16, #tpu.memory_space<vmem>>, %arg13: memref<1x64xf32, #tpu.memory_space<vmem>>, %arg14: memref<16x64xf32, #tpu.memory_space<vmem>>) attributes {dimension_semantics = [#tpu.dimension_semantics<parallel>], iteration_bounds = array<i64: 2>, scalar_prefetch = 0 : i64, scratch_operands = 0 : i64, tpu.core_type = #tpu.core_type<tc>, window_params = [{transform_indices = @transform_0, window_bounds = array<i64: 16, 64>}, {pipeline_mode = #tpu.pipeline_mode<synchronous>, transform_indices = @transform_1, window_bounds = array<i64: 64, 32>}, {pipeline_mode = #tpu.pipeline_mode<synchronous>, transform_indices = @transform_2, window_bounds = array<i64: 1, 32>}, {pipeline_mode = #tpu.pipeline_mode<synchronous>, transform_indices = @transform_3, window_bounds = array<i64: 32, 16>}, {pipeline_mode = #tpu.pipeline_mode<synchronous>, transform_indices = @transform_4, window_bounds = array<i64: 1, 16>}, {pipeline_mode = #tpu.pipeline_mode<synchronous>, transform_indices = @transform_5, window_bounds = array<i64: 16, 8>}, {pipeline_mode = #tpu.pipeline_mode<synchronous>, transform_indices = @transform_6, window_bounds = array<i64: 1, 8>}, {pipeline_mode = #tpu.pipeline_mode<synchronous>, transform_indices = @transform_7, window_bounds = array<i64: 8, 16>}, {pipeline_mode = #tpu.pipeline_mode<synchronous>, transform_indices = @transform_8, window_bounds = array<i64: 1, 16>}, {pipeline_mode = #tpu.pipeline_mode<synchronous>, transform_indices = @transform_9, window_bounds = array<i64: 16, 32>}, {pipeline_mode = #tpu.pipeline_mode<synchronous>, transform_indices = @transform_10, window_bounds = array<i64: 1, 32>}, {pipeline_mode = #tpu.pipeline_mode<synchronous>, transform_indices = @transform_11, window_bounds = array<i64: 32, 64>}, {pipeline_mode = #tpu.pipeline_mode<synchronous>, transform_indices = @transform_12, window_bounds = array<i64: 1, 64>}, {transform_indices = @transform_13, window_bounds = array<i64: 16, 64>}]} {
    %c0 = arith.constant 0 : index
    %c0_0 = arith.constant 0 : index
    %0 = vector.load %arg1[%c0, %c0_0] : memref<16x64xf32, #tpu.memory_space<vmem>>, vector<16x64xf32>
    %c0_1 = arith.constant 0 : index
    %c0_2 = arith.constant 0 : index
    %1 = vector.load %arg2[%c0_1, %c0_2] : memref<64x32xbf16, #tpu.memory_space<vmem>>, vector<64x32xbf16>
    %c0_3 = arith.constant 0 : index
    %c0_4 = arith.constant 0 : index
    %2 = vector.load %arg3[%c0_3, %c0_4] : memref<1x32xf32, #tpu.memory_space<vmem>>, vector<1x32xf32>
    %3 = arith.truncf %0 : vector<16x64xf32> to vector<16x64xbf16>
    %cst = arith.constant dense<0.000000e+00> : vector<16x32xf32>
    %4 = tpu.matmul %3, %1, %cst {dimension_numbers = #tpu.dot_dimension_numbers<[1], [0], [0], [1], [0, 0, 1, 1], [], []>} : vector<16x64xbf16>, vector<64x32xbf16>, vector<16x32xf32> -> vector<16x32xf32>
    %5 = vector.broadcast %2 : vector<1x32xf32> to vector<16x32xf32>
    %6 = arith.addf %4, %5 : vector<16x32xf32>
    %cst_5 = arith.constant 5.000000e-01 : f32
    %7 = vector.broadcast %cst_5 : f32 to vector<16x32xf32>
    %8 = arith.mulf %7, %6 : vector<16x32xf32>
    %cst_6 = arith.constant 0.707106769 : f32
    %9 = vector.broadcast %cst_6 : f32 to vector<16x32xf32>
    %10 = arith.mulf %6, %9 : vector<16x32xf32>
    %11 = math.absf %10 : vector<16x32xf32>
    %cst_7 = arith.constant 0.327591091 : f32
    %12 = vector.broadcast %cst_7 : f32 to vector<16x32xf32>
    %13 = arith.mulf %12, %11 : vector<16x32xf32>
    %cst_8 = arith.constant 1.000000e+00 : f32
    %14 = vector.broadcast %cst_8 : f32 to vector<16x32xf32>
    %15 = arith.addf %14, %13 : vector<16x32xf32>
    %16 = tpu.reciprocal %15 {approx = true} : vector<16x32xf32> -> vector<16x32xf32>
    %cst_9 = arith.constant 1.06140542 : f32
    %17 = vector.broadcast %cst_9 : f32 to vector<16x32xf32>
    %18 = arith.mulf %17, %16 : vector<16x32xf32>
    %cst_10 = arith.constant -1.45315206 : f32
    %19 = vector.broadcast %cst_10 : f32 to vector<16x32xf32>
    %20 = arith.addf %18, %19 : vector<16x32xf32>
    %21 = arith.mulf %20, %16 : vector<16x32xf32>
    %cst_11 = arith.constant 1.42141378 : f32
    %22 = vector.broadcast %cst_11 : f32 to vector<16x32xf32>
    %23 = arith.addf %21, %22 : vector<16x32xf32>
    %24 = arith.mulf %23, %16 : vector<16x32xf32>
    %cst_12 = arith.constant -0.284496725 : f32
    %25 = vector.broadcast %cst_12 : f32 to vector<16x32xf32>
    %26 = arith.addf %24, %25 : vector<16x32xf32>
    %27 = arith.mulf %26, %16 : vector<16x32xf32>
    %cst_13 = arith.constant 0.254829586 : f32
    %28 = vector.broadcast %cst_13 : f32 to vector<16x32xf32>
    %29 = arith.addf %27, %28 : vector<16x32xf32>
    %30 = arith.mulf %29, %16 : vector<16x32xf32>
    %cst_14 = arith.constant 0.000000e+00 : f32
    %31 = vector.broadcast %cst_14 : f32 to vector<16x32xf32>
    %32 = arith.subf %31, %11 : vector<16x32xf32>
    %33 = arith.mulf %32, %11 : vector<16x32xf32>
    %34 = math.exp %33 : vector<16x32xf32>
    %35 = arith.mulf %30, %34 : vector<16x32xf32>
    %cst_15 = arith.constant 1.000000e+00 : f32
    %36 = vector.broadcast %cst_15 : f32 to vector<16x32xf32>
    %37 = arith.subf %36, %35 : vector<16x32xf32>
    %cst_16 = arith.constant 0.000000e+00 : f32
    %38 = vector.broadcast %cst_16 : f32 to vector<16x32xf32>
    %39 = arith.cmpf oge, %10, %38 : vector<16x32xf32>
    %cst_17 = arith.constant 0.000000e+00 : f32
    %40 = vector.broadcast %cst_17 : f32 to vector<16x32xf32>
    %41 = arith.subf %40, %37 : vector<16x32xf32>
    %42 = arith.select %39, %37, %41 : vector<16x32xi1>, vector<16x32xf32>
    %cst_18 = arith.constant 1.000000e+00 : f32
    %43 = vector.broadcast %cst_18 : f32 to vector<16x32xf32>
    %44 = arith.addf %43, %42 : vector<16x32xf32>
    %45 = arith.mulf %8, %44 : vector<16x32xf32>
    %c0_19 = arith.constant 0 : index
    %c0_20 = arith.constant 0 : index
    %46 = vector.load %arg4[%c0_19, %c0_20] : memref<32x16xbf16, #tpu.memory_space<vmem>>, vector<32x16xbf16>
    %c0_21 = arith.constant 0 : index
    %c0_22 = arith.constant 0 : index
    %47 = vector.load %arg5[%c0_21, %c0_22] : memref<1x16xf32, #tpu.memory_space<vmem>>, vector<1x16xf32>
    %48 = arith.truncf %45 : vector<16x32xf32> to vector<16x32xbf16>
    %cst_23 = arith.constant dense<0.000000e+00> : vector<16x16xf32>
    %49 = tpu.matmul %48, %46, %cst_23 {dimension_numbers = #tpu.dot_dimension_numbers<[1], [0], [0], [1], [0, 0, 1, 1], [], []>} : vector<16x32xbf16>, vector<32x16xbf16>, vector<16x16xf32> -> vector<16x16xf32>
    %50 = vector.broadcast %47 : vector<1x16xf32> to vector<16x16xf32>
    %51 = arith.addf %49, %50 : vector<16x16xf32>
    %cst_24 = arith.constant 5.000000e-01 : f32
    %52 = vector.broadcast %cst_24 : f32 to vector<16x16xf32>
    %53 = arith.mulf %52, %51 : vector<16x16xf32>
    %cst_25 = arith.constant 0.707106769 : f32
    %54 = vector.broadcast %cst_25 : f32 to vector<16x16xf32>
    %55 = arith.mulf %51, %54 : vector<16x16xf32>
    %56 = math.absf %55 : vector<16x16xf32>
    %cst_26 = arith.constant 0.327591091 : f32
    %57 = vector.broadcast %cst_26 : f32 to vector<16x16xf32>
    %58 = arith.mulf %57, %56 : vector<16x16xf32>
    %cst_27 = arith.constant 1.000000e+00 : f32
    %59 = vector.broadcast %cst_27 : f32 to vector<16x16xf32>
    %60 = arith.addf %59, %58 : vector<16x16xf32>
    %61 = tpu.reciprocal %60 {approx = true} : vector<16x16xf32> -> vector<16x16xf32>
    %cst_28 = arith.constant 1.06140542 : f32
    %62 = vector.broadcast %cst_28 : f32 to vector<16x16xf32>
    %63 = arith.mulf %62, %61 : vector<16x16xf32>
    %cst_29 = arith.constant -1.45315206 : f32
    %64 = vector.broadcast %cst_29 : f32 to vector<16x16xf32>
    %65 = arith.addf %63, %64 : vector<16x16xf32>
    %66 = arith.mulf %65, %61 : vector<16x16xf32>
    %cst_30 = arith.constant 1.42141378 : f32
    %67 = vector.broadcast %cst_30 : f32 to vector<16x16xf32>
    %68 = arith.addf %66, %67 : vector<16x16xf32>
    %69 = arith.mulf %68, %61 : vector<16x16xf32>
    %cst_31 = arith.constant -0.284496725 : f32
    %70 = vector.broadcast %cst_31 : f32 to vector<16x16xf32>
    %71 = arith.addf %69, %70 : vector<16x16xf32>
    %72 = arith.mulf %71, %61 : vector<16x16xf32>
    %cst_32 = arith.constant 0.254829586 : f32
    %73 = vector.broadcast %cst_32 : f32 to vector<16x16xf32>
    %74 = arith.addf %72, %73 : vector<16x16xf32>
    %75 = arith.mulf %74, %61 : vector<16x16xf32>
    %cst_33 = arith.constant 0.000000e+00 : f32
    %76 = vector.broadcast %cst_33 : f32 to vector<16x16xf32>
    %77 = arith.subf %76, %56 : vector<16x16xf32>
    %78 = arith.mulf %77, %56 : vector<16x16xf32>
    %79 = math.exp %78 : vector<16x16xf32>
    %80 = arith.mulf %75, %79 : vector<16x16xf32>
    %cst_34 = arith.constant 1.000000e+00 : f32
    %81 = vector.broadcast %cst_34 : f32 to vector<16x16xf32>
    %82 = arith.subf %81, %80 : vector<16x16xf32>
    %cst_35 = arith.constant 0.000000e+00 : f32
    %83 = vector.broadcast %cst_35 : f32 to vector<16x16xf32>
    %84 = arith.cmpf oge, %55, %83 : vector<16x16xf32>
    %cst_36 = arith.constant 0.000000e+00 : f32
    %85 = vector.broadcast %cst_36 : f32 to vector<16x16xf32>
    %86 = arith.subf %85, %82 : vector<16x16xf32>
    %87 = arith.select %84, %82, %86 : vector<16x16xi1>, vector<16x16xf32>
    %cst_37 = arith.constant 1.000000e+00 : f32
    %88 = vector.broadcast %cst_37 : f32 to vector<16x16xf32>
    %89 = arith.addf %88, %87 : vector<16x16xf32>
    %90 = arith.mulf %53, %89 : vector<16x16xf32>
    %c0_38 = arith.constant 0 : index
    %c0_39 = arith.constant 0 : index
    %91 = vector.load %arg6[%c0_38, %c0_39] : memref<16x8xbf16, #tpu.memory_space<vmem>>, vector<16x8xbf16>
    %c0_40 = arith.constant 0 : index
    %c0_41 = arith.constant 0 : index
    %92 = vector.load %arg7[%c0_40, %c0_41] : memref<1x8xf32, #tpu.memory_space<vmem>>, vector<1x8xf32>
    %93 = arith.truncf %90 : vector<16x16xf32> to vector<16x16xbf16>
    %cst_42 = arith.constant dense<0.000000e+00> : vector<16x8xf32>
    %94 = tpu.matmul %93, %91, %cst_42 {dimension_numbers = #tpu.dot_dimension_numbers<[1], [0], [0], [1], [0, 0, 1, 1], [], []>} : vector<16x16xbf16>, vector<16x8xbf16>, vector<16x8xf32> -> vector<16x8xf32>
    %95 = vector.broadcast %92 : vector<1x8xf32> to vector<16x8xf32>
    %96 = arith.addf %94, %95 : vector<16x8xf32>
    %cst_43 = arith.constant 5.000000e-01 : f32
    %97 = vector.broadcast %cst_43 : f32 to vector<16x8xf32>
    %98 = arith.mulf %97, %96 : vector<16x8xf32>
    %cst_44 = arith.constant 0.707106769 : f32
    %99 = vector.broadcast %cst_44 : f32 to vector<16x8xf32>
    %100 = arith.mulf %96, %99 : vector<16x8xf32>
    %101 = math.absf %100 : vector<16x8xf32>
    %cst_45 = arith.constant 0.327591091 : f32
    %102 = vector.broadcast %cst_45 : f32 to vector<16x8xf32>
    %103 = arith.mulf %102, %101 : vector<16x8xf32>
    %cst_46 = arith.constant 1.000000e+00 : f32
    %104 = vector.broadcast %cst_46 : f32 to vector<16x8xf32>
    %105 = arith.addf %104, %103 : vector<16x8xf32>
    %106 = tpu.reciprocal %105 {approx = true} : vector<16x8xf32> -> vector<16x8xf32>
    %cst_47 = arith.constant 1.06140542 : f32
    %107 = vector.broadcast %cst_47 : f32 to vector<16x8xf32>
    %108 = arith.mulf %107, %106 : vector<16x8xf32>
    %cst_48 = arith.constant -1.45315206 : f32
    %109 = vector.broadcast %cst_48 : f32 to vector<16x8xf32>
    %110 = arith.addf %108, %109 : vector<16x8xf32>
    %111 = arith.mulf %110, %106 : vector<16x8xf32>
    %cst_49 = arith.constant 1.42141378 : f32
    %112 = vector.broadcast %cst_49 : f32 to vector<16x8xf32>
    %113 = arith.addf %111, %112 : vector<16x8xf32>
    %114 = arith.mulf %113, %106 : vector<16x8xf32>
    %cst_50 = arith.constant -0.284496725 : f32
    %115 = vector.broadcast %cst_50 : f32 to vector<16x8xf32>
    %116 = arith.addf %114, %115 : vector<16x8xf32>
    %117 = arith.mulf %116, %106 : vector<16x8xf32>
    %cst_51 = arith.constant 0.254829586 : f32
    %118 = vector.broadcast %cst_51 : f32 to vector<16x8xf32>
    %119 = arith.addf %117, %118 : vector<16x8xf32>
    %120 = arith.mulf %119, %106 : vector<16x8xf32>
    %cst_52 = arith.constant 0.000000e+00 : f32
    %121 = vector.broadcast %cst_52 : f32 to vector<16x8xf32>
    %122 = arith.subf %121, %101 : vector<16x8xf32>
    %123 = arith.mulf %122, %101 : vector<16x8xf32>
    %124 = math.exp %123 : vector<16x8xf32>
    %125 = arith.mulf %120, %124 : vector<16x8xf32>
    %cst_53 = arith.constant 1.000000e+00 : f32
    %126 = vector.broadcast %cst_53 : f32 to vector<16x8xf32>
    %127 = arith.subf %126, %125 : vector<16x8xf32>
    %cst_54 = arith.constant 0.000000e+00 : f32
    %128 = vector.broadcast %cst_54 : f32 to vector<16x8xf32>
    %129 = arith.cmpf oge, %100, %128 : vector<16x8xf32>
    %cst_55 = arith.constant 0.000000e+00 : f32
    %130 = vector.broadcast %cst_55 : f32 to vector<16x8xf32>
    %131 = arith.subf %130, %127 : vector<16x8xf32>
    %132 = arith.select %129, %127, %131 : vector<16x8xi1>, vector<16x8xf32>
    %cst_56 = arith.constant 1.000000e+00 : f32
    %133 = vector.broadcast %cst_56 : f32 to vector<16x8xf32>
    %134 = arith.addf %133, %132 : vector<16x8xf32>
    %135 = arith.mulf %98, %134 : vector<16x8xf32>
    %c0_57 = arith.constant 0 : index
    %c0_58 = arith.constant 0 : index
    %136 = vector.load %arg8[%c0_57, %c0_58] : memref<8x16xbf16, #tpu.memory_space<vmem>>, vector<8x16xbf16>
    %c0_59 = arith.constant 0 : index
    %c0_60 = arith.constant 0 : index
    %137 = vector.load %arg9[%c0_59, %c0_60] : memref<1x16xf32, #tpu.memory_space<vmem>>, vector<1x16xf32>
    %138 = arith.truncf %135 : vector<16x8xf32> to vector<16x8xbf16>
    %cst_61 = arith.constant dense<0.000000e+00> : vector<16x16xf32>
    %139 = tpu.matmul %138, %136, %cst_61 {dimension_numbers = #tpu.dot_dimension_numbers<[1], [0], [0], [1], [0, 0, 1, 1], [], []>} : vector<16x8xbf16>, vector<8x16xbf16>, vector<16x16xf32> -> vector<16x16xf32>
    %140 = vector.broadcast %137 : vector<1x16xf32> to vector<16x16xf32>
    %141 = arith.addf %139, %140 : vector<16x16xf32>
    %cst_62 = arith.constant 5.000000e-01 : f32
    %142 = vector.broadcast %cst_62 : f32 to vector<16x16xf32>
    %143 = arith.mulf %142, %141 : vector<16x16xf32>
    %cst_63 = arith.constant 0.707106769 : f32
    %144 = vector.broadcast %cst_63 : f32 to vector<16x16xf32>
    %145 = arith.mulf %141, %144 : vector<16x16xf32>
    %146 = math.absf %145 : vector<16x16xf32>
    %cst_64 = arith.constant 0.327591091 : f32
    %147 = vector.broadcast %cst_64 : f32 to vector<16x16xf32>
    %148 = arith.mulf %147, %146 : vector<16x16xf32>
    %cst_65 = arith.constant 1.000000e+00 : f32
    %149 = vector.broadcast %cst_65 : f32 to vector<16x16xf32>
    %150 = arith.addf %149, %148 : vector<16x16xf32>
    %151 = tpu.reciprocal %150 {approx = true} : vector<16x16xf32> -> vector<16x16xf32>
    %cst_66 = arith.constant 1.06140542 : f32
    %152 = vector.broadcast %cst_66 : f32 to vector<16x16xf32>
    %153 = arith.mulf %152, %151 : vector<16x16xf32>
    %cst_67 = arith.constant -1.45315206 : f32
    %154 = vector.broadcast %cst_67 : f32 to vector<16x16xf32>
    %155 = arith.addf %153, %154 : vector<16x16xf32>
    %156 = arith.mulf %155, %151 : vector<16x16xf32>
    %cst_68 = arith.constant 1.42141378 : f32
    %157 = vector.broadcast %cst_68 : f32 to vector<16x16xf32>
    %158 = arith.addf %156, %157 : vector<16x16xf32>
    %159 = arith.mulf %158, %151 : vector<16x16xf32>
    %cst_69 = arith.constant -0.284496725 : f32
    %160 = vector.broadcast %cst_69 : f32 to vector<16x16xf32>
    %161 = arith.addf %159, %160 : vector<16x16xf32>
    %162 = arith.mulf %161, %151 : vector<16x16xf32>
    %cst_70 = arith.constant 0.254829586 : f32
    %163 = vector.broadcast %cst_70 : f32 to vector<16x16xf32>
    %164 = arith.addf %162, %163 : vector<16x16xf32>
    %165 = arith.mulf %164, %151 : vector<16x16xf32>
    %cst_71 = arith.constant 0.000000e+00 : f32
    %166 = vector.broadcast %cst_71 : f32 to vector<16x16xf32>
    %167 = arith.subf %166, %146 : vector<16x16xf32>
    %168 = arith.mulf %167, %146 : vector<16x16xf32>
    %169 = math.exp %168 : vector<16x16xf32>
    %170 = arith.mulf %165, %169 : vector<16x16xf32>
    %cst_72 = arith.constant 1.000000e+00 : f32
    %171 = vector.broadcast %cst_72 : f32 to vector<16x16xf32>
    %172 = arith.subf %171, %170 : vector<16x16xf32>
    %cst_73 = arith.constant 0.000000e+00 : f32
    %173 = vector.broadcast %cst_73 : f32 to vector<16x16xf32>
    %174 = arith.cmpf oge, %145, %173 : vector<16x16xf32>
    %cst_74 = arith.constant 0.000000e+00 : f32
    %175 = vector.broadcast %cst_74 : f32 to vector<16x16xf32>
    %176 = arith.subf %175, %172 : vector<16x16xf32>
    %177 = arith.select %174, %172, %176 : vector<16x16xi1>, vector<16x16xf32>
    %cst_75 = arith.constant 1.000000e+00 : f32
    %178 = vector.broadcast %cst_75 : f32 to vector<16x16xf32>
    %179 = arith.addf %178, %177 : vector<16x16xf32>
    %180 = arith.mulf %143, %179 : vector<16x16xf32>
    %c0_76 = arith.constant 0 : index
    %c0_77 = arith.constant 0 : index
    %181 = vector.load %arg10[%c0_76, %c0_77] : memref<16x32xbf16, #tpu.memory_space<vmem>>, vector<16x32xbf16>
    %c0_78 = arith.constant 0 : index
    %c0_79 = arith.constant 0 : index
    %182 = vector.load %arg11[%c0_78, %c0_79] : memref<1x32xf32, #tpu.memory_space<vmem>>, vector<1x32xf32>
    %183 = arith.truncf %180 : vector<16x16xf32> to vector<16x16xbf16>
    %cst_80 = arith.constant dense<0.000000e+00> : vector<16x32xf32>
    %184 = tpu.matmul %183, %181, %cst_80 {dimension_numbers = #tpu.dot_dimension_numbers<[1], [0], [0], [1], [0, 0, 1, 1], [], []>} : vector<16x16xbf16>, vector<16x32xbf16>, vector<16x32xf32> -> vector<16x32xf32>
    %185 = vector.broadcast %182 : vector<1x32xf32> to vector<16x32xf32>
    %186 = arith.addf %184, %185 : vector<16x32xf32>
    %cst_81 = arith.constant 5.000000e-01 : f32
    %187 = vector.broadcast %cst_81 : f32 to vector<16x32xf32>
    %188 = arith.mulf %187, %186 : vector<16x32xf32>
    %cst_82 = arith.constant 0.707106769 : f32
    %189 = vector.broadcast %cst_82 : f32 to vector<16x32xf32>
    %190 = arith.mulf %186, %189 : vector<16x32xf32>
    %191 = math.absf %190 : vector<16x32xf32>
    %cst_83 = arith.constant 0.327591091 : f32
    %192 = vector.broadcast %cst_83 : f32 to vector<16x32xf32>
    %193 = arith.mulf %192, %191 : vector<16x32xf32>
    %cst_84 = arith.constant 1.000000e+00 : f32
    %194 = vector.broadcast %cst_84 : f32 to vector<16x32xf32>
    %195 = arith.addf %194, %193 : vector<16x32xf32>
    %196 = tpu.reciprocal %195 {approx = true} : vector<16x32xf32> -> vector<16x32xf32>
    %cst_85 = arith.constant 1.06140542 : f32
    %197 = vector.broadcast %cst_85 : f32 to vector<16x32xf32>
    %198 = arith.mulf %197, %196 : vector<16x32xf32>
    %cst_86 = arith.constant -1.45315206 : f32
    %199 = vector.broadcast %cst_86 : f32 to vector<16x32xf32>
    %200 = arith.addf %198, %199 : vector<16x32xf32>
    %201 = arith.mulf %200, %196 : vector<16x32xf32>
    %cst_87 = arith.constant 1.42141378 : f32
    %202 = vector.broadcast %cst_87 : f32 to vector<16x32xf32>
    %203 = arith.addf %201, %202 : vector<16x32xf32>
    %204 = arith.mulf %203, %196 : vector<16x32xf32>
    %cst_88 = arith.constant -0.284496725 : f32
    %205 = vector.broadcast %cst_88 : f32 to vector<16x32xf32>
    %206 = arith.addf %204, %205 : vector<16x32xf32>
    %207 = arith.mulf %206, %196 : vector<16x32xf32>
    %cst_89 = arith.constant 0.254829586 : f32
    %208 = vector.broadcast %cst_89 : f32 to vector<16x32xf32>
    %209 = arith.addf %207, %208 : vector<16x32xf32>
    %210 = arith.mulf %209, %196 : vector<16x32xf32>
    %cst_90 = arith.constant 0.000000e+00 : f32
    %211 = vector.broadcast %cst_90 : f32 to vector<16x32xf32>
    %212 = arith.subf %211, %191 : vector<16x32xf32>
    %213 = arith.mulf %212, %191 : vector<16x32xf32>
    %214 = math.exp %213 : vector<16x32xf32>
    %215 = arith.mulf %210, %214 : vector<16x32xf32>
    %cst_91 = arith.constant 1.000000e+00 : f32
    %216 = vector.broadcast %cst_91 : f32 to vector<16x32xf32>
    %217 = arith.subf %216, %215 : vector<16x32xf32>
    %cst_92 = arith.constant 0.000000e+00 : f32
    %218 = vector.broadcast %cst_92 : f32 to vector<16x32xf32>
    %219 = arith.cmpf oge, %190, %218 : vector<16x32xf32>
    %cst_93 = arith.constant 0.000000e+00 : f32
    %220 = vector.broadcast %cst_93 : f32 to vector<16x32xf32>
    %221 = arith.subf %220, %217 : vector<16x32xf32>
    %222 = arith.select %219, %217, %221 : vector<16x32xi1>, vector<16x32xf32>
    %cst_94 = arith.constant 1.000000e+00 : f32
    %223 = vector.broadcast %cst_94 : f32 to vector<16x32xf32>
    %224 = arith.addf %223, %222 : vector<16x32xf32>
    %225 = arith.mulf %188, %224 : vector<16x32xf32>
    %c0_95 = arith.constant 0 : index
    %c0_96 = arith.constant 0 : index
    %226 = vector.load %arg12[%c0_95, %c0_96] : memref<32x64xbf16, #tpu.memory_space<vmem>>, vector<32x64xbf16>
    %c0_97 = arith.constant 0 : index
    %c0_98 = arith.constant 0 : index
    %227 = vector.load %arg13[%c0_97, %c0_98] : memref<1x64xf32, #tpu.memory_space<vmem>>, vector<1x64xf32>
    %228 = arith.truncf %225 : vector<16x32xf32> to vector<16x32xbf16>
    %cst_99 = arith.constant dense<0.000000e+00> : vector<16x64xf32>
    %229 = tpu.matmul %228, %226, %cst_99 {dimension_numbers = #tpu.dot_dimension_numbers<[1], [0], [0], [1], [0, 0, 1, 1], [], []>} : vector<16x32xbf16>, vector<32x64xbf16>, vector<16x64xf32> -> vector<16x64xf32>
    %230 = vector.broadcast %227 : vector<1x64xf32> to vector<16x64xf32>
    %231 = arith.addf %229, %230 : vector<16x64xf32>
    %c0_100 = arith.constant 0 : index
    %c0_101 = arith.constant 0 : index
    %232 = vector.load %arg14[%c0_100, %c0_101] : memref<16x64xf32, #tpu.memory_space<vmem>>, vector<16x64xf32>
    tpu.vector_store %arg14[%c0_100, %c0_101], %231 {strides = array<i32>} : memref<16x64xf32, #tpu.memory_space<vmem>>, vector<16x64xf32>,
    return
  }
  func.func @transform_0(%arg0: i32) -> (i32, i32) {
    %c0_i32 = arith.constant 0 : i32
    %c0_i32_0 = arith.constant 0 : i32
    return %arg0, %c0_i32 : i32, i32
  }
  func.func @transform_1(%arg0: i32) -> (i32, i32) {
    %c0_i32 = arith.constant 0 : i32
    %c0_i32_0 = arith.constant 0 : i32
    %c0_i32_1 = arith.constant 0 : i32
    return %c0_i32, %c0_i32_0 : i32, i32
  }
  func.func @transform_2(%arg0: i32) -> (i32, i32) {
    %c0_i32 = arith.constant 0 : i32
    %c0_i32_0 = arith.constant 0 : i32
    %c0_i32_1 = arith.constant 0 : i32
    return %c0_i32, %c0_i32_0 : i32, i32
  }
  func.func @transform_3(%arg0: i32) -> (i32, i32) {
    %c0_i32 = arith.constant 0 : i32
    %c0_i32_0 = arith.constant 0 : i32
    %c0_i32_1 = arith.constant 0 : i32
    return %c0_i32, %c0_i32_0 : i32, i32
  }
  func.func @transform_4(%arg0: i32) -> (i32, i32) {
    %c0_i32 = arith.constant 0 : i32
    %c0_i32_0 = arith.constant 0 : i32
    %c0_i32_1 = arith.constant 0 : i32
    return %c0_i32, %c0_i32_0 : i32, i32
  }
  func.func @transform_5(%arg0: i32) -> (i32, i32) {
    %c0_i32 = arith.constant 0 : i32
    %c0_i32_0 = arith.constant 0 : i32
    %c0_i32_1 = arith.constant 0 : i32
    return %c0_i32, %c0_i32_0 : i32, i32
  }
  func.func @transform_6(%arg0: i32) -> (i32, i32) {
    %c0_i32 = arith.constant 0 : i32
    %c0_i32_0 = arith.constant 0 : i32
    %c0_i32_1 = arith.constant 0 : i32
    return %c0_i32, %c0_i32_0 : i32, i32
  }
  func.func @transform_7(%arg0: i32) -> (i32, i32) {
    %c0_i32 = arith.constant 0 : i32
    %c0_i32_0 = arith.constant 0 : i32
    %c0_i32_1 = arith.constant 0 : i32
    return %c0_i32, %c0_i32_0 : i32, i32
  }
  func.func @transform_8(%arg0: i32) -> (i32, i32) {
    %c0_i32 = arith.constant 0 : i32
    %c0_i32_0 = arith.constant 0 : i32
    %c0_i32_1 = arith.constant 0 : i32
    return %c0_i32, %c0_i32_0 : i32, i32
  }
  func.func @transform_9(%arg0: i32) -> (i32, i32) {
    %c0_i32 = arith.constant 0 : i32
    %c0_i32_0 = arith.constant 0 : i32
    %c0_i32_1 = arith.constant 0 : i32
    return %c0_i32, %c0_i32_0 : i32, i32
  }
  func.func @transform_10(%arg0: i32) -> (i32, i32) {
    %c0_i32 = arith.constant 0 : i32
    %c0_i32_0 = arith.constant 0 : i32
    %c0_i32_1 = arith.constant 0 : i32
    return %c0_i32, %c0_i32_0 : i32, i32
  }
  func.func @transform_11(%arg0: i32) -> (i32, i32) {
    %c0_i32 = arith.constant 0 : i32
    %c0_i32_0 = arith.constant 0 : i32
    %c0_i32_1 = arith.constant 0 : i32
    return %c0_i32, %c0_i32_0 : i32, i32
  }
  func.func @transform_12(%arg0: i32) -> (i32, i32) {
    %c0_i32 = arith.constant 0 : i32
    %c0_i32_0 = arith.constant 0 : i32
    %c0_i32_1 = arith.constant 0 : i32
    return %c0_i32, %c0_i32_0 : i32, i32
  }
  func.func @transform_13(%arg0: i32) -> (i32, i32) {
    %c0_i32 = arith.constant 0 : i32
    %c0_i32_0 = arith.constant 0 : i32
    return %arg0, %c0_i32 : i32, i32
  }
}

module attributes {stable_mosaic.version = 11 : i64} {
  func.func @_mlp_chain_t_kernel(%arg0: i32, %arg1: memref<16x128xf32, #tpu.memory_space<vmem>>, %arg2: memref<8x16xbf16, #tpu.memory_space<vmem>>, %arg3: memref<8x1xf32, #tpu.memory_space<vmem>>, %arg4: memref<4x8xbf16, #tpu.memory_space<vmem>>, %arg5: memref<4x1xf32, #tpu.memory_space<vmem>>, %arg6: memref<2x4xbf16, #tpu.memory_space<vmem>>, %arg7: memref<2x1xf32, #tpu.memory_space<vmem>>, %arg8: memref<1x2xbf16, #tpu.memory_space<vmem>>, %arg9: memref<1x1xf32, #tpu.memory_space<vmem>>, %arg10: memref<1x128xf32, #tpu.memory_space<vmem>>) attributes {dimension_semantics = [#tpu.dimension_semantics<parallel>], iteration_bounds = array<i64: 1>, scalar_prefetch = 0 : i64, scratch_operands = 0 : i64, tpu.core_type = #tpu.core_type<tc>, window_params = [{transform_indices = @transform_0, window_bounds = array<i64: 16, 128>}, {pipeline_mode = #tpu.pipeline_mode<synchronous>, transform_indices = @transform_1, window_bounds = array<i64: 8, 16>}, {pipeline_mode = #tpu.pipeline_mode<synchronous>, transform_indices = @transform_2, window_bounds = array<i64: 8, 1>}, {pipeline_mode = #tpu.pipeline_mode<synchronous>, transform_indices = @transform_3, window_bounds = array<i64: 4, 8>}, {pipeline_mode = #tpu.pipeline_mode<synchronous>, transform_indices = @transform_4, window_bounds = array<i64: 4, 1>}, {pipeline_mode = #tpu.pipeline_mode<synchronous>, transform_indices = @transform_5, window_bounds = array<i64: 2, 4>}, {pipeline_mode = #tpu.pipeline_mode<synchronous>, transform_indices = @transform_6, window_bounds = array<i64: 2, 1>}, {pipeline_mode = #tpu.pipeline_mode<synchronous>, transform_indices = @transform_7, window_bounds = array<i64: 1, 2>}, {pipeline_mode = #tpu.pipeline_mode<synchronous>, transform_indices = @transform_8, window_bounds = array<i64: 1, 1>}, {transform_indices = @transform_9, window_bounds = array<i64: 1, 128>}]} {
    %c0 = arith.constant 0 : index
    %c0_0 = arith.constant 0 : index
    %0 = vector.load %arg1[%c0, %c0_0] : memref<16x128xf32, #tpu.memory_space<vmem>>, vector<16x128xf32>
    %c0_1 = arith.constant 0 : index
    %c0_2 = arith.constant 0 : index
    %1 = vector.load %arg2[%c0_1, %c0_2] : memref<8x16xbf16, #tpu.memory_space<vmem>>, vector<8x16xbf16>
    %c0_3 = arith.constant 0 : index
    %c0_4 = arith.constant 0 : index
    %2 = vector.load %arg3[%c0_3, %c0_4] : memref<8x1xf32, #tpu.memory_space<vmem>>, vector<8x1xf32>
    %3 = arith.truncf %0 : vector<16x128xf32> to vector<16x128xbf16>
    %cst = arith.constant dense<0.000000e+00> : vector<8x128xf32>
    %4 = tpu.matmul %1, %3, %cst {dimension_numbers = #tpu.dot_dimension_numbers<[1], [0], [0], [1], [0, 0, 1, 1], [], []>} : vector<8x16xbf16>, vector<16x128xbf16>, vector<8x128xf32> -> vector<8x128xf32>
    %5 = vector.broadcast %2 : vector<8x1xf32> to vector<8x128xf32>
    %6 = arith.addf %4, %5 : vector<8x128xf32>
    %cst_5 = arith.constant 0.000000e+00 : f32
    %7 = vector.broadcast %cst_5 : f32 to vector<8x128xf32>
    %8 = arith.maximumf %6, %7 : vector<8x128xf32>
    %c0_6 = arith.constant 0 : index
    %c0_7 = arith.constant 0 : index
    %9 = vector.load %arg4[%c0_6, %c0_7] : memref<4x8xbf16, #tpu.memory_space<vmem>>, vector<4x8xbf16>
    %c0_8 = arith.constant 0 : index
    %c0_9 = arith.constant 0 : index
    %10 = vector.load %arg5[%c0_8, %c0_9] : memref<4x1xf32, #tpu.memory_space<vmem>>, vector<4x1xf32>
    %11 = arith.truncf %8 : vector<8x128xf32> to vector<8x128xbf16>
    %cst_10 = arith.constant dense<0.000000e+00> : vector<4x128xf32>
    %12 = tpu.matmul %9, %11, %cst_10 {dimension_numbers = #tpu.dot_dimension_numbers<[1], [0], [0], [1], [0, 0, 1, 1], [], []>} : vector<4x8xbf16>, vector<8x128xbf16>, vector<4x128xf32> -> vector<4x128xf32>
    %13 = vector.broadcast %10 : vector<4x1xf32> to vector<4x128xf32>
    %14 = arith.addf %12, %13 : vector<4x128xf32>
    %cst_11 = arith.constant 0.000000e+00 : f32
    %15 = vector.broadcast %cst_11 : f32 to vector<4x128xf32>
    %16 = arith.maximumf %14, %15 : vector<4x128xf32>
    %c0_12 = arith.constant 0 : index
    %c0_13 = arith.constant 0 : index
    %17 = vector.load %arg6[%c0_12, %c0_13] : memref<2x4xbf16, #tpu.memory_space<vmem>>, vector<2x4xbf16>
    %c0_14 = arith.constant 0 : index
    %c0_15 = arith.constant 0 : index
    %18 = vector.load %arg7[%c0_14, %c0_15] : memref<2x1xf32, #tpu.memory_space<vmem>>, vector<2x1xf32>
    %19 = arith.truncf %16 : vector<4x128xf32> to vector<4x128xbf16>
    %cst_16 = arith.constant dense<0.000000e+00> : vector<2x128xf32>
    %20 = tpu.matmul %17, %19, %cst_16 {dimension_numbers = #tpu.dot_dimension_numbers<[1], [0], [0], [1], [0, 0, 1, 1], [], []>} : vector<2x4xbf16>, vector<4x128xbf16>, vector<2x128xf32> -> vector<2x128xf32>
    %21 = vector.broadcast %18 : vector<2x1xf32> to vector<2x128xf32>
    %22 = arith.addf %20, %21 : vector<2x128xf32>
    %cst_17 = arith.constant 0.000000e+00 : f32
    %23 = vector.broadcast %cst_17 : f32 to vector<2x128xf32>
    %24 = arith.maximumf %22, %23 : vector<2x128xf32>
    %c0_18 = arith.constant 0 : index
    %c0_19 = arith.constant 0 : index
    %25 = vector.load %arg8[%c0_18, %c0_19] : memref<1x2xbf16, #tpu.memory_space<vmem>>, vector<1x2xbf16>
    %c0_20 = arith.constant 0 : index
    %c0_21 = arith.constant 0 : index
    %26 = vector.load %arg9[%c0_20, %c0_21] : memref<1x1xf32, #tpu.memory_space<vmem>>, vector<1x1xf32>
    %27 = arith.truncf %24 : vector<2x128xf32> to vector<2x128xbf16>
    %cst_22 = arith.constant dense<0.000000e+00> : vector<1x128xf32>
    %28 = tpu.matmul %25, %27, %cst_22 {dimension_numbers = #tpu.dot_dimension_numbers<[1], [0], [0], [1], [0, 0, 1, 1], [], []>} : vector<1x2xbf16>, vector<2x128xbf16>, vector<1x128xf32> -> vector<1x128xf32>
    %29 = vector.broadcast %26 : vector<1x1xf32> to vector<1x128xf32>
    %30 = arith.addf %28, %29 : vector<1x128xf32>
    %c0_23 = arith.constant 0 : index
    %c0_24 = arith.constant 0 : index
    %31 = vector.load %arg10[%c0_23, %c0_24] : memref<1x128xf32, #tpu.memory_space<vmem>>, vector<1x128xf32>
    tpu.vector_store %arg10[%c0_23, %c0_24], %30 {strides = array<i32>} : memref<1x128xf32, #tpu.memory_space<vmem>>, vector<1x128xf32>,
    return
  }
  func.func @transform_0(%arg0: i32) -> (i32, i32) {
    %c0_i32 = arith.constant 0 : i32
    %c0_i32_0 = arith.constant 0 : i32
    return %c0_i32, %arg0 : i32, i32
  }
  func.func @transform_1(%arg0: i32) -> (i32, i32) {
    %c0_i32 = arith.constant 0 : i32
    %c0_i32_0 = arith.constant 0 : i32
    %c0_i32_1 = arith.constant 0 : i32
    return %c0_i32, %c0_i32_0 : i32, i32
  }
  func.func @transform_2(%arg0: i32) -> (i32, i32) {
    %c0_i32 = arith.constant 0 : i32
    %c0_i32_0 = arith.constant 0 : i32
    %c0_i32_1 = arith.constant 0 : i32
    return %c0_i32, %c0_i32_0 : i32, i32
  }
  func.func @transform_3(%arg0: i32) -> (i32, i32) {
    %c0_i32 = arith.constant 0 : i32
    %c0_i32_0 = arith.constant 0 : i32
    %c0_i32_1 = arith.constant 0 : i32
    return %c0_i32, %c0_i32_0 : i32, i32
  }
  func.func @transform_4(%arg0: i32) -> (i32, i32) {
    %c0_i32 = arith.constant 0 : i32
    %c0_i32_0 = arith.constant 0 : i32
    %c0_i32_1 = arith.constant 0 : i32
    return %c0_i32, %c0_i32_0 : i32, i32
  }
  func.func @transform_5(%arg0: i32) -> (i32, i32) {
    %c0_i32 = arith.constant 0 : i32
    %c0_i32_0 = arith.constant 0 : i32
    %c0_i32_1 = arith.constant 0 : i32
    return %c0_i32, %c0_i32_0 : i32, i32
  }
  func.func @transform_6(%arg0: i32) -> (i32, i32) {
    %c0_i32 = arith.constant 0 : i32
    %c0_i32_0 = arith.constant 0 : i32
    %c0_i32_1 = arith.constant 0 : i32
    return %c0_i32, %c0_i32_0 : i32, i32
  }
  func.func @transform_7(%arg0: i32) -> (i32, i32) {
    %c0_i32 = arith.constant 0 : i32
    %c0_i32_0 = arith.constant 0 : i32
    %c0_i32_1 = arith.constant 0 : i32
    return %c0_i32, %c0_i32_0 : i32, i32
  }
  func.func @transform_8(%arg0: i32) -> (i32, i32) {
    %c0_i32 = arith.constant 0 : i32
    %c0_i32_0 = arith.constant 0 : i32
    %c0_i32_1 = arith.constant 0 : i32
    return %c0_i32, %c0_i32_0 : i32, i32
  }
  func.func @transform_9(%arg0: i32) -> (i32, i32) {
    %c0_i32 = arith.constant 0 : i32
    %c0_i32_0 = arith.constant 0 : i32
    return %c0_i32, %arg0 : i32, i32
  }
}

module attributes {stable_mosaic.version = 11 : i64} {
  func.func @_vig_block_kernel(%arg0: i32, %arg1: memref<1x16x64xf32, #tpu.memory_space<vmem>>, %arg2: memref<16x64xf32, #tpu.memory_space<vmem>>, %arg3: memref<64x64xbf16, #tpu.memory_space<vmem>>, %arg4: memref<1x64xf32, #tpu.memory_space<vmem>>, %arg5: memref<64x64xbf16, #tpu.memory_space<vmem>>, %arg6: memref<1x64xf32, #tpu.memory_space<vmem>>, %arg7: memref<64x64xbf16, #tpu.memory_space<vmem>>, %arg8: memref<64x64xbf16, #tpu.memory_space<vmem>>, %arg9: memref<1x64xf32, #tpu.memory_space<vmem>>, %arg10: memref<64x64xbf16, #tpu.memory_space<vmem>>, %arg11: memref<1x64xf32, #tpu.memory_space<vmem>>, %arg12: memref<64x64xbf16, #tpu.memory_space<vmem>>, %arg13: memref<1x64xf32, #tpu.memory_space<vmem>>, %arg14: memref<64x256xbf16, #tpu.memory_space<vmem>>, %arg15: memref<1x256xf32, #tpu.memory_space<vmem>>, %arg16: memref<256x64xbf16, #tpu.memory_space<vmem>>, %arg17: memref<1x64xf32, #tpu.memory_space<vmem>>, %arg18: memref<64x256xbf16, #tpu.memory_space<vmem>>, %arg19: memref<1x256xf32, #tpu.memory_space<vmem>>, %arg20: memref<256x64xbf16, #tpu.memory_space<vmem>>, %arg21: memref<1x64xf32, #tpu.memory_space<vmem>>, %arg22: memref<1x16x64xf32, #tpu.memory_space<vmem>>) attributes {dimension_semantics = [#tpu.dimension_semantics<parallel>], iteration_bounds = array<i64: 2>, scalar_prefetch = 0 : i64, scratch_operands = 0 : i64, tpu.core_type = #tpu.core_type<tc>, window_params = [{transform_indices = @transform_0, window_bounds = array<i64: 1, 16, 64>}, {pipeline_mode = #tpu.pipeline_mode<synchronous>, transform_indices = @transform_1, window_bounds = array<i64: 16, 64>}, {pipeline_mode = #tpu.pipeline_mode<synchronous>, transform_indices = @transform_2, window_bounds = array<i64: 64, 64>}, {pipeline_mode = #tpu.pipeline_mode<synchronous>, transform_indices = @transform_3, window_bounds = array<i64: 1, 64>}, {pipeline_mode = #tpu.pipeline_mode<synchronous>, transform_indices = @transform_4, window_bounds = array<i64: 64, 64>}, {pipeline_mode = #tpu.pipeline_mode<synchronous>, transform_indices = @transform_5, window_bounds = array<i64: 1, 64>}, {pipeline_mode = #tpu.pipeline_mode<synchronous>, transform_indices = @transform_6, window_bounds = array<i64: 64, 64>}, {pipeline_mode = #tpu.pipeline_mode<synchronous>, transform_indices = @transform_7, window_bounds = array<i64: 64, 64>}, {pipeline_mode = #tpu.pipeline_mode<synchronous>, transform_indices = @transform_8, window_bounds = array<i64: 1, 64>}, {pipeline_mode = #tpu.pipeline_mode<synchronous>, transform_indices = @transform_9, window_bounds = array<i64: 64, 64>}, {pipeline_mode = #tpu.pipeline_mode<synchronous>, transform_indices = @transform_10, window_bounds = array<i64: 1, 64>}, {pipeline_mode = #tpu.pipeline_mode<synchronous>, transform_indices = @transform_11, window_bounds = array<i64: 64, 64>}, {pipeline_mode = #tpu.pipeline_mode<synchronous>, transform_indices = @transform_12, window_bounds = array<i64: 1, 64>}, {pipeline_mode = #tpu.pipeline_mode<synchronous>, transform_indices = @transform_13, window_bounds = array<i64: 64, 256>}, {pipeline_mode = #tpu.pipeline_mode<synchronous>, transform_indices = @transform_14, window_bounds = array<i64: 1, 256>}, {pipeline_mode = #tpu.pipeline_mode<synchronous>, transform_indices = @transform_15, window_bounds = array<i64: 256, 64>}, {pipeline_mode = #tpu.pipeline_mode<synchronous>, transform_indices = @transform_16, window_bounds = array<i64: 1, 64>}, {pipeline_mode = #tpu.pipeline_mode<synchronous>, transform_indices = @transform_17, window_bounds = array<i64: 64, 256>}, {pipeline_mode = #tpu.pipeline_mode<synchronous>, transform_indices = @transform_18, window_bounds = array<i64: 1, 256>}, {pipeline_mode = #tpu.pipeline_mode<synchronous>, transform_indices = @transform_19, window_bounds = array<i64: 256, 64>}, {pipeline_mode = #tpu.pipeline_mode<synchronous>, transform_indices = @transform_20, window_bounds = array<i64: 1, 64>}, {transform_indices = @transform_21, window_bounds = array<i64: 1, 16, 64>}]} {
    %c0 = arith.constant 0 : index
    %c0_0 = arith.constant 0 : index
    %c0_1 = arith.constant 0 : index
    %0 = vector.load %arg1[%c0, %c0_0, %c0_1] : memref<1x16x64xf32, #tpu.memory_space<vmem>>, vector<1x16x64xf32>
    %1 = vector.shape_cast %0 : vector<1x16x64xf32> to vector<16x64xf32>
    %c0_2 = arith.constant 0 : index
    %c0_3 = arith.constant 0 : index
    %2 = vector.load %arg2[%c0_2, %c0_3] : memref<16x64xf32, #tpu.memory_space<vmem>>, vector<16x64xf32>
    %3 = arith.addf %1, %2 : vector<16x64xf32>
    %cst = arith.constant dense<0.000000e+00> : vector<16x16xf32>
    %4 = tpu.matmul %3, %3, %cst {dimension_numbers = #tpu.dot_dimension_numbers<[1], [1], [0], [0], [0, 0, 1, 0], [], []>} : vector<16x64xf32>, vector<16x64xf32>, vector<16x16xf32> -> vector<16x16xf32>
    %5 = arith.truncf %3 : vector<16x64xf32> to vector<16x64xbf16>
    %c0_4 = arith.constant 0 : index
    %c0_5 = arith.constant 0 : index
    %6 = vector.load %arg3[%c0_4, %c0_5] : memref<64x64xbf16, #tpu.memory_space<vmem>>, vector<64x64xbf16>
    %cst_6 = arith.constant dense<0.000000e+00> : vector<16x64xf32>
    %7 = tpu.matmul %5, %6, %cst_6 {dimension_numbers = #tpu.dot_dimension_numbers<[1], [0], [0], [1], [0, 0, 1, 1], [], []>} : vector<16x64xbf16>, vector<64x64xbf16>, vector<16x64xf32> -> vector<16x64xf32>
    %c0_7 = arith.constant 0 : index
    %c0_8 = arith.constant 0 : index
    %8 = vector.load %arg4[%c0_7, %c0_8] : memref<1x64xf32, #tpu.memory_space<vmem>>, vector<1x64xf32>
    %9 = vector.broadcast %8 : vector<1x64xf32> to vector<16x64xf32>
    %10 = arith.addf %7, %9 : vector<16x64xf32>
    %cst_9 = arith.constant 5.000000e-01 : f32
    %11 = vector.broadcast %cst_9 : f32 to vector<16x64xf32>
    %12 = arith.mulf %11, %10 : vector<16x64xf32>
    %cst_10 = arith.constant 0.707106769 : f32
    %13 = vector.broadcast %cst_10 : f32 to vector<16x64xf32>
    %14 = arith.mulf %10, %13 : vector<16x64xf32>
    %15 = math.absf %14 : vector<16x64xf32>
    %cst_11 = arith.constant 0.327591091 : f32
    %16 = vector.broadcast %cst_11 : f32 to vector<16x64xf32>
    %17 = arith.mulf %16, %15 : vector<16x64xf32>
    %cst_12 = arith.constant 1.000000e+00 : f32
    %18 = vector.broadcast %cst_12 : f32 to vector<16x64xf32>
    %19 = arith.addf %18, %17 : vector<16x64xf32>
    %20 = tpu.reciprocal %19 {approx = true} : vector<16x64xf32> -> vector<16x64xf32>
    %cst_13 = arith.constant 1.06140542 : f32
    %21 = vector.broadcast %cst_13 : f32 to vector<16x64xf32>
    %22 = arith.mulf %21, %20 : vector<16x64xf32>
    %cst_14 = arith.constant -1.45315206 : f32
    %23 = vector.broadcast %cst_14 : f32 to vector<16x64xf32>
    %24 = arith.addf %22, %23 : vector<16x64xf32>
    %25 = arith.mulf %24, %20 : vector<16x64xf32>
    %cst_15 = arith.constant 1.42141378 : f32
    %26 = vector.broadcast %cst_15 : f32 to vector<16x64xf32>
    %27 = arith.addf %25, %26 : vector<16x64xf32>
    %28 = arith.mulf %27, %20 : vector<16x64xf32>
    %cst_16 = arith.constant -0.284496725 : f32
    %29 = vector.broadcast %cst_16 : f32 to vector<16x64xf32>
    %30 = arith.addf %28, %29 : vector<16x64xf32>
    %31 = arith.mulf %30, %20 : vector<16x64xf32>
    %cst_17 = arith.constant 0.254829586 : f32
    %32 = vector.broadcast %cst_17 : f32 to vector<16x64xf32>
    %33 = arith.addf %31, %32 : vector<16x64xf32>
    %34 = arith.mulf %33, %20 : vector<16x64xf32>
    %cst_18 = arith.constant 0.000000e+00 : f32
    %35 = vector.broadcast %cst_18 : f32 to vector<16x64xf32>
    %36 = arith.subf %35, %15 : vector<16x64xf32>
    %37 = arith.mulf %36, %15 : vector<16x64xf32>
    %38 = math.exp %37 : vector<16x64xf32>
    %39 = arith.mulf %34, %38 : vector<16x64xf32>
    %cst_19 = arith.constant 1.000000e+00 : f32
    %40 = vector.broadcast %cst_19 : f32 to vector<16x64xf32>
    %41 = arith.subf %40, %39 : vector<16x64xf32>
    %cst_20 = arith.constant 0.000000e+00 : f32
    %42 = vector.broadcast %cst_20 : f32 to vector<16x64xf32>
    %43 = arith.cmpf oge, %14, %42 : vector<16x64xf32>
    %cst_21 = arith.constant 0.000000e+00 : f32
    %44 = vector.broadcast %cst_21 : f32 to vector<16x64xf32>
    %45 = arith.subf %44, %41 : vector<16x64xf32>
    %46 = arith.select %43, %41, %45 : vector<16x64xi1>, vector<16x64xf32>
    %cst_22 = arith.constant 1.000000e+00 : f32
    %47 = vector.broadcast %cst_22 : f32 to vector<16x64xf32>
    %48 = arith.addf %47, %46 : vector<16x64xf32>
    %49 = arith.mulf %12, %48 : vector<16x64xf32>
    %50 = arith.truncf %49 : vector<16x64xf32> to vector<16x64xbf16>
    %c0_23 = arith.constant 0 : index
    %c0_24 = arith.constant 0 : index
    %51 = vector.load %arg5[%c0_23, %c0_24] : memref<64x64xbf16, #tpu.memory_space<vmem>>, vector<64x64xbf16>
    %cst_25 = arith.constant dense<0.000000e+00> : vector<16x64xf32>
    %52 = tpu.matmul %50, %51, %cst_25 {dimension_numbers = #tpu.dot_dimension_numbers<[1], [0], [0], [1], [0, 0, 1, 1], [], []>} : vector<16x64xbf16>, vector<64x64xbf16>, vector<16x64xf32> -> vector<16x64xf32>
    %c0_26 = arith.constant 0 : index
    %c0_27 = arith.constant 0 : index
    %53 = vector.load %arg6[%c0_26, %c0_27] : memref<1x64xf32, #tpu.memory_space<vmem>>, vector<1x64xf32>
    %54 = vector.broadcast %53 : vector<1x64xf32> to vector<16x64xf32>
    %55 = arith.addf %52, %54 : vector<16x64xf32>
    %56 = arith.addf %55, %3 : vector<16x64xf32>
    %false = arith.constant false
    %57 = vector.broadcast %false : i1 to vector<16x16xi1>
    %cst_28 = arith.constant dense<0xFF800000> : vector<16xf32>
    %58 = vector.multi_reduction <maximumf>, %4, %cst_28 [1] : vector<16x16xf32> to vector<16xf32>
    %59 = vector.shape_cast %58 : vector<16xf32> to vector<16x1xf32>
    %60 = vector.broadcast %59 : vector<16x1xf32> to vector<16x16xf32>
    %61 = arith.cmpf oge, %4, %60 : vector<16x16xf32>
    %62 = arith.ori %57, %61 : vector<16x16xi1>
    %cst_29 = arith.constant -3.000000e+38 : f32
    %63 = vector.broadcast %cst_29 : f32 to vector<16x16xf32>
    %64 = arith.select %61, %63, %4 : vector<16x16xi1>, vector<16x16xf32>
    %cst_30 = arith.constant dense<0xFF800000> : vector<16xf32>
    %65 = vector.multi_reduction <maximumf>, %64, %cst_30 [1] : vector<16x16xf32> to vector<16xf32>
    %66 = vector.shape_cast %65 : vector<16xf32> to vector<16x1xf32>
    %67 = vector.broadcast %66 : vector<16x1xf32> to vector<16x16xf32>
    %68 = arith.cmpf oge, %64, %67 : vector<16x16xf32>
    %69 = arith.ori %62, %68 : vector<16x16xi1>
    %cst_31 = arith.constant -3.000000e+38 : f32
    %70 = vector.broadcast %cst_31 : f32 to vector<16x16xf32>
    %71 = arith.select %68, %70, %64 : vector<16x16xi1>, vector<16x16xf32>
    %cst_32 = arith.constant dense<0xFF800000> : vector<16xf32>
    %72 = vector.multi_reduction <maximumf>, %71, %cst_32 [1] : vector<16x16xf32> to vector<16xf32>
    %73 = vector.shape_cast %72 : vector<16xf32> to vector<16x1xf32>
    %74 = vector.broadcast %73 : vector<16x1xf32> to vector<16x16xf32>
    %75 = arith.cmpf oge, %71, %74 : vector<16x16xf32>
    %76 = arith.ori %69, %75 : vector<16x16xi1>
    %cst_33 = arith.constant -3.000000e+38 : f32
    %77 = vector.broadcast %cst_33 : f32 to vector<16x16xf32>
    %78 = arith.select %75, %77, %71 : vector<16x16xi1>, vector<16x16xf32>
    %cst_34 = arith.constant dense<0xFF800000> : vector<16xf32>
    %79 = vector.multi_reduction <maximumf>, %78, %cst_34 [1] : vector<16x16xf32> to vector<16xf32>
    %80 = vector.shape_cast %79 : vector<16xf32> to vector<16x1xf32>
    %81 = vector.broadcast %80 : vector<16x1xf32> to vector<16x16xf32>
    %82 = arith.cmpf oge, %78, %81 : vector<16x16xf32>
    %83 = arith.ori %76, %82 : vector<16x16xi1>
    %cst_35 = arith.constant -3.000000e+38 : f32
    %84 = vector.broadcast %cst_35 : f32 to vector<16x16xf32>
    %85 = arith.select %82, %84, %78 : vector<16x16xi1>, vector<16x16xf32>
    %cst_36 = arith.constant dense<0xFF800000> : vector<16xf32>
    %86 = vector.multi_reduction <maximumf>, %85, %cst_36 [1] : vector<16x16xf32> to vector<16xf32>
    %87 = vector.shape_cast %86 : vector<16xf32> to vector<16x1xf32>
    %88 = vector.broadcast %87 : vector<16x1xf32> to vector<16x16xf32>
    %89 = arith.cmpf oge, %85, %88 : vector<16x16xf32>
    %90 = arith.ori %83, %89 : vector<16x16xi1>
    %cst_37 = arith.constant -3.000000e+38 : f32
    %91 = vector.broadcast %cst_37 : f32 to vector<16x16xf32>
    %92 = arith.select %89, %91, %85 : vector<16x16xi1>, vector<16x16xf32>
    %cst_38 = arith.constant dense<0xFF800000> : vector<16xf32>
    %93 = vector.multi_reduction <maximumf>, %92, %cst_38 [1] : vector<16x16xf32> to vector<16xf32>
    %94 = vector.shape_cast %93 : vector<16xf32> to vector<16x1xf32>
    %95 = vector.broadcast %94 : vector<16x1xf32> to vector<16x16xf32>
    %96 = arith.cmpf oge, %92, %95 : vector<16x16xf32>
    %97 = arith.ori %90, %96 : vector<16x16xi1>
    %cst_39 = arith.constant -3.000000e+38 : f32
    %98 = vector.broadcast %cst_39 : f32 to vector<16x16xf32>
    %99 = arith.select %96, %98, %92 : vector<16x16xi1>, vector<16x16xf32>
    %cst_40 = arith.constant dense<0xFF800000> : vector<16xf32>
    %100 = vector.multi_reduction <maximumf>, %99, %cst_40 [1] : vector<16x16xf32> to vector<16xf32>
    %101 = vector.shape_cast %100 : vector<16xf32> to vector<16x1xf32>
    %102 = vector.broadcast %101 : vector<16x1xf32> to vector<16x16xf32>
    %103 = arith.cmpf oge, %99, %102 : vector<16x16xf32>
    %104 = arith.ori %97, %103 : vector<16x16xi1>
    %cst_41 = arith.constant -3.000000e+38 : f32
    %105 = vector.broadcast %cst_41 : f32 to vector<16x16xf32>
    %106 = arith.select %103, %105, %99 : vector<16x16xi1>, vector<16x16xf32>
    %cst_42 = arith.constant dense<0xFF800000> : vector<16xf32>
    %107 = vector.multi_reduction <maximumf>, %106, %cst_42 [1] : vector<16x16xf32> to vector<16xf32>
    %108 = vector.shape_cast %107 : vector<16xf32> to vector<16x1xf32>
    %109 = vector.broadcast %108 : vector<16x1xf32> to vector<16x16xf32>
    %110 = arith.cmpf oge, %106, %109 : vector<16x16xf32>
    %111 = arith.ori %104, %110 : vector<16x16xi1>
    %cst_43 = arith.constant -3.000000e+38 : f32
    %112 = vector.broadcast %cst_43 : f32 to vector<16x16xf32>
    %113 = arith.select %110, %112, %106 : vector<16x16xi1>, vector<16x16xf32>
    %cst_44 = arith.constant dense<0xFF800000> : vector<16xf32>
    %114 = vector.multi_reduction <maximumf>, %113, %cst_44 [1] : vector<16x16xf32> to vector<16xf32>
    %115 = vector.shape_cast %114 : vector<16xf32> to vector<16x1xf32>
    %116 = vector.broadcast %115 : vector<16x1xf32> to vector<16x16xf32>
    %117 = arith.cmpf oge, %113, %116 : vector<16x16xf32>
    %118 = arith.ori %111, %117 : vector<16x16xi1>
    %cst_45 = arith.constant -3.000000e+38 : f32
    %119 = vector.broadcast %cst_45 : f32 to vector<16x64xf32>
    %120 = vector.extract_strided_slice %118 {offsets = [0, 0], sizes = [16, 1], strides = [1, 1]} : vector<16x16xi1> to vector<16x1xi1>
    %121 = vector.extract_strided_slice %56 {offsets = [0, 0], sizes = [1, 64], strides = [1, 1]} : vector<16x64xf32> to vector<1x64xf32>
    %cst_46 = arith.constant -3.000000e+38 : f32
    %122 = vector.shape_cast %120 : vector<16x1xi1> to vector<16x1xi1>
    %123 = vector.broadcast %122 : vector<16x1xi1> to vector<16x64xi1>
    %124 = vector.shape_cast %121 : vector<1x64xf32> to vector<1x64xf32>
    %125 = vector.broadcast %124 : vector<1x64xf32> to vector<16x64xf32>
    %126 = vector.broadcast %cst_46 : f32 to vector<16x64xf32>
    %127 = arith.select %123, %125, %126 : vector<16x64xi1>, vector<16x64xf32>
    %128 = arith.maximumf %119, %127 : vector<16x64xf32>
    %129 = vector.extract_strided_slice %118 {offsets = [0, 1], sizes = [16, 1], strides = [1, 1]} : vector<16x16xi1> to vector<16x1xi1>
    %130 = vector.extract_strided_slice %56 {offsets = [1, 0], sizes = [1, 64], strides = [1, 1]} : vector<16x64xf32> to vector<1x64xf32>
    %cst_47 = arith.constant -3.000000e+38 : f32
    %131 = vector.shape_cast %129 : vector<16x1xi1> to vector<16x1xi1>
    %132 = vector.broadcast %131 : vector<16x1xi1> to vector<16x64xi1>
    %133 = vector.shape_cast %130 : vector<1x64xf32> to vector<1x64xf32>
    %134 = vector.broadcast %133 : vector<1x64xf32> to vector<16x64xf32>
    %135 = vector.broadcast %cst_47 : f32 to vector<16x64xf32>
    %136 = arith.select %132, %134, %135 : vector<16x64xi1>, vector<16x64xf32>
    %137 = arith.maximumf %128, %136 : vector<16x64xf32>
    %138 = vector.extract_strided_slice %118 {offsets = [0, 2], sizes = [16, 1], strides = [1, 1]} : vector<16x16xi1> to vector<16x1xi1>
    %139 = vector.extract_strided_slice %56 {offsets = [2, 0], sizes = [1, 64], strides = [1, 1]} : vector<16x64xf32> to vector<1x64xf32>
    %cst_48 = arith.constant -3.000000e+38 : f32
    %140 = vector.shape_cast %138 : vector<16x1xi1> to vector<16x1xi1>
    %141 = vector.broadcast %140 : vector<16x1xi1> to vector<16x64xi1>
    %142 = vector.shape_cast %139 : vector<1x64xf32> to vector<1x64xf32>
    %143 = vector.broadcast %142 : vector<1x64xf32> to vector<16x64xf32>
    %144 = vector.broadcast %cst_48 : f32 to vector<16x64xf32>
    %145 = arith.select %141, %143, %144 : vector<16x64xi1>, vector<16x64xf32>
    %146 = arith.maximumf %137, %145 : vector<16x64xf32>
    %147 = vector.extract_strided_slice %118 {offsets = [0, 3], sizes = [16, 1], strides = [1, 1]} : vector<16x16xi1> to vector<16x1xi1>
    %148 = vector.extract_strided_slice %56 {offsets = [3, 0], sizes = [1, 64], strides = [1, 1]} : vector<16x64xf32> to vector<1x64xf32>
    %cst_49 = arith.constant -3.000000e+38 : f32
    %149 = vector.shape_cast %147 : vector<16x1xi1> to vector<16x1xi1>
    %150 = vector.broadcast %149 : vector<16x1xi1> to vector<16x64xi1>
    %151 = vector.shape_cast %148 : vector<1x64xf32> to vector<1x64xf32>
    %152 = vector.broadcast %151 : vector<1x64xf32> to vector<16x64xf32>
    %153 = vector.broadcast %cst_49 : f32 to vector<16x64xf32>
    %154 = arith.select %150, %152, %153 : vector<16x64xi1>, vector<16x64xf32>
    %155 = arith.maximumf %146, %154 : vector<16x64xf32>
    %156 = vector.extract_strided_slice %118 {offsets = [0, 4], sizes = [16, 1], strides = [1, 1]} : vector<16x16xi1> to vector<16x1xi1>
    %157 = vector.extract_strided_slice %56 {offsets = [4, 0], sizes = [1, 64], strides = [1, 1]} : vector<16x64xf32> to vector<1x64xf32>
    %cst_50 = arith.constant -3.000000e+38 : f32
    %158 = vector.shape_cast %156 : vector<16x1xi1> to vector<16x1xi1>
    %159 = vector.broadcast %158 : vector<16x1xi1> to vector<16x64xi1>
    %160 = vector.shape_cast %157 : vector<1x64xf32> to vector<1x64xf32>
    %161 = vector.broadcast %160 : vector<1x64xf32> to vector<16x64xf32>
    %162 = vector.broadcast %cst_50 : f32 to vector<16x64xf32>
    %163 = arith.select %159, %161, %162 : vector<16x64xi1>, vector<16x64xf32>
    %164 = arith.maximumf %155, %163 : vector<16x64xf32>
    %165 = vector.extract_strided_slice %118 {offsets = [0, 5], sizes = [16, 1], strides = [1, 1]} : vector<16x16xi1> to vector<16x1xi1>
    %166 = vector.extract_strided_slice %56 {offsets = [5, 0], sizes = [1, 64], strides = [1, 1]} : vector<16x64xf32> to vector<1x64xf32>
    %cst_51 = arith.constant -3.000000e+38 : f32
    %167 = vector.shape_cast %165 : vector<16x1xi1> to vector<16x1xi1>
    %168 = vector.broadcast %167 : vector<16x1xi1> to vector<16x64xi1>
    %169 = vector.shape_cast %166 : vector<1x64xf32> to vector<1x64xf32>
    %170 = vector.broadcast %169 : vector<1x64xf32> to vector<16x64xf32>
    %171 = vector.broadcast %cst_51 : f32 to vector<16x64xf32>
    %172 = arith.select %168, %170, %171 : vector<16x64xi1>, vector<16x64xf32>
    %173 = arith.maximumf %164, %172 : vector<16x64xf32>
    %174 = vector.extract_strided_slice %118 {offsets = [0, 6], sizes = [16, 1], strides = [1, 1]} : vector<16x16xi1> to vector<16x1xi1>
    %175 = vector.extract_strided_slice %56 {offsets = [6, 0], sizes = [1, 64], strides = [1, 1]} : vector<16x64xf32> to vector<1x64xf32>
    %cst_52 = arith.constant -3.000000e+38 : f32
    %176 = vector.shape_cast %174 : vector<16x1xi1> to vector<16x1xi1>
    %177 = vector.broadcast %176 : vector<16x1xi1> to vector<16x64xi1>
    %178 = vector.shape_cast %175 : vector<1x64xf32> to vector<1x64xf32>
    %179 = vector.broadcast %178 : vector<1x64xf32> to vector<16x64xf32>
    %180 = vector.broadcast %cst_52 : f32 to vector<16x64xf32>
    %181 = arith.select %177, %179, %180 : vector<16x64xi1>, vector<16x64xf32>
    %182 = arith.maximumf %173, %181 : vector<16x64xf32>
    %183 = vector.extract_strided_slice %118 {offsets = [0, 7], sizes = [16, 1], strides = [1, 1]} : vector<16x16xi1> to vector<16x1xi1>
    %184 = vector.extract_strided_slice %56 {offsets = [7, 0], sizes = [1, 64], strides = [1, 1]} : vector<16x64xf32> to vector<1x64xf32>
    %cst_53 = arith.constant -3.000000e+38 : f32
    %185 = vector.shape_cast %183 : vector<16x1xi1> to vector<16x1xi1>
    %186 = vector.broadcast %185 : vector<16x1xi1> to vector<16x64xi1>
    %187 = vector.shape_cast %184 : vector<1x64xf32> to vector<1x64xf32>
    %188 = vector.broadcast %187 : vector<1x64xf32> to vector<16x64xf32>
    %189 = vector.broadcast %cst_53 : f32 to vector<16x64xf32>
    %190 = arith.select %186, %188, %189 : vector<16x64xi1>, vector<16x64xf32>
    %191 = arith.maximumf %182, %190 : vector<16x64xf32>
    %192 = vector.extract_strided_slice %118 {offsets = [0, 8], sizes = [16, 1], strides = [1, 1]} : vector<16x16xi1> to vector<16x1xi1>
    %193 = vector.extract_strided_slice %56 {offsets = [8, 0], sizes = [1, 64], strides = [1, 1]} : vector<16x64xf32> to vector<1x64xf32>
    %cst_54 = arith.constant -3.000000e+38 : f32
    %194 = vector.shape_cast %192 : vector<16x1xi1> to vector<16x1xi1>
    %195 = vector.broadcast %194 : vector<16x1xi1> to vector<16x64xi1>
    %196 = vector.shape_cast %193 : vector<1x64xf32> to vector<1x64xf32>
    %197 = vector.broadcast %196 : vector<1x64xf32> to vector<16x64xf32>
    %198 = vector.broadcast %cst_54 : f32 to vector<16x64xf32>
    %199 = arith.select %195, %197, %198 : vector<16x64xi1>, vector<16x64xf32>
    %200 = arith.maximumf %191, %199 : vector<16x64xf32>
    %201 = vector.extract_strided_slice %118 {offsets = [0, 9], sizes = [16, 1], strides = [1, 1]} : vector<16x16xi1> to vector<16x1xi1>
    %202 = vector.extract_strided_slice %56 {offsets = [9, 0], sizes = [1, 64], strides = [1, 1]} : vector<16x64xf32> to vector<1x64xf32>
    %cst_55 = arith.constant -3.000000e+38 : f32
    %203 = vector.shape_cast %201 : vector<16x1xi1> to vector<16x1xi1>
    %204 = vector.broadcast %203 : vector<16x1xi1> to vector<16x64xi1>
    %205 = vector.shape_cast %202 : vector<1x64xf32> to vector<1x64xf32>
    %206 = vector.broadcast %205 : vector<1x64xf32> to vector<16x64xf32>
    %207 = vector.broadcast %cst_55 : f32 to vector<16x64xf32>
    %208 = arith.select %204, %206, %207 : vector<16x64xi1>, vector<16x64xf32>
    %209 = arith.maximumf %200, %208 : vector<16x64xf32>
    %210 = vector.extract_strided_slice %118 {offsets = [0, 10], sizes = [16, 1], strides = [1, 1]} : vector<16x16xi1> to vector<16x1xi1>
    %211 = vector.extract_strided_slice %56 {offsets = [10, 0], sizes = [1, 64], strides = [1, 1]} : vector<16x64xf32> to vector<1x64xf32>
    %cst_56 = arith.constant -3.000000e+38 : f32
    %212 = vector.shape_cast %210 : vector<16x1xi1> to vector<16x1xi1>
    %213 = vector.broadcast %212 : vector<16x1xi1> to vector<16x64xi1>
    %214 = vector.shape_cast %211 : vector<1x64xf32> to vector<1x64xf32>
    %215 = vector.broadcast %214 : vector<1x64xf32> to vector<16x64xf32>
    %216 = vector.broadcast %cst_56 : f32 to vector<16x64xf32>
    %217 = arith.select %213, %215, %216 : vector<16x64xi1>, vector<16x64xf32>
    %218 = arith.maximumf %209, %217 : vector<16x64xf32>
    %219 = vector.extract_strided_slice %118 {offsets = [0, 11], sizes = [16, 1], strides = [1, 1]} : vector<16x16xi1> to vector<16x1xi1>
    %220 = vector.extract_strided_slice %56 {offsets = [11, 0], sizes = [1, 64], strides = [1, 1]} : vector<16x64xf32> to vector<1x64xf32>
    %cst_57 = arith.constant -3.000000e+38 : f32
    %221 = vector.shape_cast %219 : vector<16x1xi1> to vector<16x1xi1>
    %222 = vector.broadcast %221 : vector<16x1xi1> to vector<16x64xi1>
    %223 = vector.shape_cast %220 : vector<1x64xf32> to vector<1x64xf32>
    %224 = vector.broadcast %223 : vector<1x64xf32> to vector<16x64xf32>
    %225 = vector.broadcast %cst_57 : f32 to vector<16x64xf32>
    %226 = arith.select %222, %224, %225 : vector<16x64xi1>, vector<16x64xf32>
    %227 = arith.maximumf %218, %226 : vector<16x64xf32>
    %228 = vector.extract_strided_slice %118 {offsets = [0, 12], sizes = [16, 1], strides = [1, 1]} : vector<16x16xi1> to vector<16x1xi1>
    %229 = vector.extract_strided_slice %56 {offsets = [12, 0], sizes = [1, 64], strides = [1, 1]} : vector<16x64xf32> to vector<1x64xf32>
    %cst_58 = arith.constant -3.000000e+38 : f32
    %230 = vector.shape_cast %228 : vector<16x1xi1> to vector<16x1xi1>
    %231 = vector.broadcast %230 : vector<16x1xi1> to vector<16x64xi1>
    %232 = vector.shape_cast %229 : vector<1x64xf32> to vector<1x64xf32>
    %233 = vector.broadcast %232 : vector<1x64xf32> to vector<16x64xf32>
    %234 = vector.broadcast %cst_58 : f32 to vector<16x64xf32>
    %235 = arith.select %231, %233, %234 : vector<16x64xi1>, vector<16x64xf32>
    %236 = arith.maximumf %227, %235 : vector<16x64xf32>
    %237 = vector.extract_strided_slice %118 {offsets = [0, 13], sizes = [16, 1], strides = [1, 1]} : vector<16x16xi1> to vector<16x1xi1>
    %238 = vector.extract_strided_slice %56 {offsets = [13, 0], sizes = [1, 64], strides = [1, 1]} : vector<16x64xf32> to vector<1x64xf32>
    %cst_59 = arith.constant -3.000000e+38 : f32
    %239 = vector.shape_cast %237 : vector<16x1xi1> to vector<16x1xi1>
    %240 = vector.broadcast %239 : vector<16x1xi1> to vector<16x64xi1>
    %241 = vector.shape_cast %238 : vector<1x64xf32> to vector<1x64xf32>
    %242 = vector.broadcast %241 : vector<1x64xf32> to vector<16x64xf32>
    %243 = vector.broadcast %cst_59 : f32 to vector<16x64xf32>
    %244 = arith.select %240, %242, %243 : vector<16x64xi1>, vector<16x64xf32>
    %245 = arith.maximumf %236, %244 : vector<16x64xf32>
    %246 = vector.extract_strided_slice %118 {offsets = [0, 14], sizes = [16, 1], strides = [1, 1]} : vector<16x16xi1> to vector<16x1xi1>
    %247 = vector.extract_strided_slice %56 {offsets = [14, 0], sizes = [1, 64], strides = [1, 1]} : vector<16x64xf32> to vector<1x64xf32>
    %cst_60 = arith.constant -3.000000e+38 : f32
    %248 = vector.shape_cast %246 : vector<16x1xi1> to vector<16x1xi1>
    %249 = vector.broadcast %248 : vector<16x1xi1> to vector<16x64xi1>
    %250 = vector.shape_cast %247 : vector<1x64xf32> to vector<1x64xf32>
    %251 = vector.broadcast %250 : vector<1x64xf32> to vector<16x64xf32>
    %252 = vector.broadcast %cst_60 : f32 to vector<16x64xf32>
    %253 = arith.select %249, %251, %252 : vector<16x64xi1>, vector<16x64xf32>
    %254 = arith.maximumf %245, %253 : vector<16x64xf32>
    %255 = vector.extract_strided_slice %118 {offsets = [0, 15], sizes = [16, 1], strides = [1, 1]} : vector<16x16xi1> to vector<16x1xi1>
    %256 = vector.extract_strided_slice %56 {offsets = [15, 0], sizes = [1, 64], strides = [1, 1]} : vector<16x64xf32> to vector<1x64xf32>
    %cst_61 = arith.constant -3.000000e+38 : f32
    %257 = vector.shape_cast %255 : vector<16x1xi1> to vector<16x1xi1>
    %258 = vector.broadcast %257 : vector<16x1xi1> to vector<16x64xi1>
    %259 = vector.shape_cast %256 : vector<1x64xf32> to vector<1x64xf32>
    %260 = vector.broadcast %259 : vector<1x64xf32> to vector<16x64xf32>
    %261 = vector.broadcast %cst_61 : f32 to vector<16x64xf32>
    %262 = arith.select %258, %260, %261 : vector<16x64xi1>, vector<16x64xf32>
    %263 = arith.maximumf %254, %262 : vector<16x64xf32>
    %264 = arith.subf %263, %56 : vector<16x64xf32>
    %265 = arith.truncf %56 : vector<16x64xf32> to vector<16x64xbf16>
    %c0_62 = arith.constant 0 : index
    %c0_63 = arith.constant 0 : index
    %266 = vector.load %arg7[%c0_62, %c0_63] : memref<64x64xbf16, #tpu.memory_space<vmem>>, vector<64x64xbf16>
    %cst_64 = arith.constant dense<0.000000e+00> : vector<16x64xf32>
    %267 = tpu.matmul %265, %266, %cst_64 {dimension_numbers = #tpu.dot_dimension_numbers<[1], [0], [0], [1], [0, 0, 1, 1], [], []>} : vector<16x64xbf16>, vector<64x64xbf16>, vector<16x64xf32> -> vector<16x64xf32>
    %268 = arith.truncf %264 : vector<16x64xf32> to vector<16x64xbf16>
    %c0_65 = arith.constant 0 : index
    %c0_66 = arith.constant 0 : index
    %269 = vector.load %arg8[%c0_65, %c0_66] : memref<64x64xbf16, #tpu.memory_space<vmem>>, vector<64x64xbf16>
    %cst_67 = arith.constant dense<0.000000e+00> : vector<16x64xf32>
    %270 = tpu.matmul %268, %269, %cst_67 {dimension_numbers = #tpu.dot_dimension_numbers<[1], [0], [0], [1], [0, 0, 1, 1], [], []>} : vector<16x64xbf16>, vector<64x64xbf16>, vector<16x64xf32> -> vector<16x64xf32>
    %271 = arith.addf %267, %270 : vector<16x64xf32>
    %c0_68 = arith.constant 0 : index
    %c0_69 = arith.constant 0 : index
    %272 = vector.load %arg9[%c0_68, %c0_69] : memref<1x64xf32, #tpu.memory_space<vmem>>, vector<1x64xf32>
    %273 = vector.broadcast %272 : vector<1x64xf32> to vector<16x64xf32>
    %274 = arith.addf %271, %273 : vector<16x64xf32>
    %cst_70 = arith.constant 5.000000e-01 : f32
    %275 = vector.broadcast %cst_70 : f32 to vector<16x64xf32>
    %276 = arith.mulf %275, %274 : vector<16x64xf32>
    %cst_71 = arith.constant 0.707106769 : f32
    %277 = vector.broadcast %cst_71 : f32 to vector<16x64xf32>
    %278 = arith.mulf %274, %277 : vector<16x64xf32>
    %279 = math.absf %278 : vector<16x64xf32>
    %cst_72 = arith.constant 0.327591091 : f32
    %280 = vector.broadcast %cst_72 : f32 to vector<16x64xf32>
    %281 = arith.mulf %280, %279 : vector<16x64xf32>
    %cst_73 = arith.constant 1.000000e+00 : f32
    %282 = vector.broadcast %cst_73 : f32 to vector<16x64xf32>
    %283 = arith.addf %282, %281 : vector<16x64xf32>
    %284 = tpu.reciprocal %283 {approx = true} : vector<16x64xf32> -> vector<16x64xf32>
    %cst_74 = arith.constant 1.06140542 : f32
    %285 = vector.broadcast %cst_74 : f32 to vector<16x64xf32>
    %286 = arith.mulf %285, %284 : vector<16x64xf32>
    %cst_75 = arith.constant -1.45315206 : f32
    %287 = vector.broadcast %cst_75 : f32 to vector<16x64xf32>
    %288 = arith.addf %286, %287 : vector<16x64xf32>
    %289 = arith.mulf %288, %284 : vector<16x64xf32>
    %cst_76 = arith.constant 1.42141378 : f32
    %290 = vector.broadcast %cst_76 : f32 to vector<16x64xf32>
    %291 = arith.addf %289, %290 : vector<16x64xf32>
    %292 = arith.mulf %291, %284 : vector<16x64xf32>
    %cst_77 = arith.constant -0.284496725 : f32
    %293 = vector.broadcast %cst_77 : f32 to vector<16x64xf32>
    %294 = arith.addf %292, %293 : vector<16x64xf32>
    %295 = arith.mulf %294, %284 : vector<16x64xf32>
    %cst_78 = arith.constant 0.254829586 : f32
    %296 = vector.broadcast %cst_78 : f32 to vector<16x64xf32>
    %297 = arith.addf %295, %296 : vector<16x64xf32>
    %298 = arith.mulf %297, %284 : vector<16x64xf32>
    %cst_79 = arith.constant 0.000000e+00 : f32
    %299 = vector.broadcast %cst_79 : f32 to vector<16x64xf32>
    %300 = arith.subf %299, %279 : vector<16x64xf32>
    %301 = arith.mulf %300, %279 : vector<16x64xf32>
    %302 = math.exp %301 : vector<16x64xf32>
    %303 = arith.mulf %298, %302 : vector<16x64xf32>
    %cst_80 = arith.constant 1.000000e+00 : f32
    %304 = vector.broadcast %cst_80 : f32 to vector<16x64xf32>
    %305 = arith.subf %304, %303 : vector<16x64xf32>
    %cst_81 = arith.constant 0.000000e+00 : f32
    %306 = vector.broadcast %cst_81 : f32 to vector<16x64xf32>
    %307 = arith.cmpf oge, %278, %306 : vector<16x64xf32>
    %cst_82 = arith.constant 0.000000e+00 : f32
    %308 = vector.broadcast %cst_82 : f32 to vector<16x64xf32>
    %309 = arith.subf %308, %305 : vector<16x64xf32>
    %310 = arith.select %307, %305, %309 : vector<16x64xi1>, vector<16x64xf32>
    %cst_83 = arith.constant 1.000000e+00 : f32
    %311 = vector.broadcast %cst_83 : f32 to vector<16x64xf32>
    %312 = arith.addf %311, %310 : vector<16x64xf32>
    %313 = arith.mulf %276, %312 : vector<16x64xf32>
    %314 = arith.truncf %313 : vector<16x64xf32> to vector<16x64xbf16>
    %c0_84 = arith.constant 0 : index
    %c0_85 = arith.constant 0 : index
    %315 = vector.load %arg10[%c0_84, %c0_85] : memref<64x64xbf16, #tpu.memory_space<vmem>>, vector<64x64xbf16>
    %cst_86 = arith.constant dense<0.000000e+00> : vector<16x64xf32>
    %316 = tpu.matmul %314, %315, %cst_86 {dimension_numbers = #tpu.dot_dimension_numbers<[1], [0], [0], [1], [0, 0, 1, 1], [], []>} : vector<16x64xbf16>, vector<64x64xbf16>, vector<16x64xf32> -> vector<16x64xf32>
    %c0_87 = arith.constant 0 : index
    %c0_88 = arith.constant 0 : index
    %317 = vector.load %arg11[%c0_87, %c0_88] : memref<1x64xf32, #tpu.memory_space<vmem>>, vector<1x64xf32>
    %318 = vector.broadcast %317 : vector<1x64xf32> to vector<16x64xf32>
    %319 = arith.addf %316, %318 : vector<16x64xf32>
    %cst_89 = arith.constant 5.000000e-01 : f32
    %320 = vector.broadcast %cst_89 : f32 to vector<16x64xf32>
    %321 = arith.mulf %320, %319 : vector<16x64xf32>
    %cst_90 = arith.constant 0.707106769 : f32
    %322 = vector.broadcast %cst_90 : f32 to vector<16x64xf32>
    %323 = arith.mulf %319, %322 : vector<16x64xf32>
    %324 = math.absf %323 : vector<16x64xf32>
    %cst_91 = arith.constant 0.327591091 : f32
    %325 = vector.broadcast %cst_91 : f32 to vector<16x64xf32>
    %326 = arith.mulf %325, %324 : vector<16x64xf32>
    %cst_92 = arith.constant 1.000000e+00 : f32
    %327 = vector.broadcast %cst_92 : f32 to vector<16x64xf32>
    %328 = arith.addf %327, %326 : vector<16x64xf32>
    %329 = tpu.reciprocal %328 {approx = true} : vector<16x64xf32> -> vector<16x64xf32>
    %cst_93 = arith.constant 1.06140542 : f32
    %330 = vector.broadcast %cst_93 : f32 to vector<16x64xf32>
    %331 = arith.mulf %330, %329 : vector<16x64xf32>
    %cst_94 = arith.constant -1.45315206 : f32
    %332 = vector.broadcast %cst_94 : f32 to vector<16x64xf32>
    %333 = arith.addf %331, %332 : vector<16x64xf32>
    %334 = arith.mulf %333, %329 : vector<16x64xf32>
    %cst_95 = arith.constant 1.42141378 : f32
    %335 = vector.broadcast %cst_95 : f32 to vector<16x64xf32>
    %336 = arith.addf %334, %335 : vector<16x64xf32>
    %337 = arith.mulf %336, %329 : vector<16x64xf32>
    %cst_96 = arith.constant -0.284496725 : f32
    %338 = vector.broadcast %cst_96 : f32 to vector<16x64xf32>
    %339 = arith.addf %337, %338 : vector<16x64xf32>
    %340 = arith.mulf %339, %329 : vector<16x64xf32>
    %cst_97 = arith.constant 0.254829586 : f32
    %341 = vector.broadcast %cst_97 : f32 to vector<16x64xf32>
    %342 = arith.addf %340, %341 : vector<16x64xf32>
    %343 = arith.mulf %342, %329 : vector<16x64xf32>
    %cst_98 = arith.constant 0.000000e+00 : f32
    %344 = vector.broadcast %cst_98 : f32 to vector<16x64xf32>
    %345 = arith.subf %344, %324 : vector<16x64xf32>
    %346 = arith.mulf %345, %324 : vector<16x64xf32>
    %347 = math.exp %346 : vector<16x64xf32>
    %348 = arith.mulf %343, %347 : vector<16x64xf32>
    %cst_99 = arith.constant 1.000000e+00 : f32
    %349 = vector.broadcast %cst_99 : f32 to vector<16x64xf32>
    %350 = arith.subf %349, %348 : vector<16x64xf32>
    %cst_100 = arith.constant 0.000000e+00 : f32
    %351 = vector.broadcast %cst_100 : f32 to vector<16x64xf32>
    %352 = arith.cmpf oge, %323, %351 : vector<16x64xf32>
    %cst_101 = arith.constant 0.000000e+00 : f32
    %353 = vector.broadcast %cst_101 : f32 to vector<16x64xf32>
    %354 = arith.subf %353, %350 : vector<16x64xf32>
    %355 = arith.select %352, %350, %354 : vector<16x64xi1>, vector<16x64xf32>
    %cst_102 = arith.constant 1.000000e+00 : f32
    %356 = vector.broadcast %cst_102 : f32 to vector<16x64xf32>
    %357 = arith.addf %356, %355 : vector<16x64xf32>
    %358 = arith.mulf %321, %357 : vector<16x64xf32>
    %359 = arith.truncf %358 : vector<16x64xf32> to vector<16x64xbf16>
    %c0_103 = arith.constant 0 : index
    %c0_104 = arith.constant 0 : index
    %360 = vector.load %arg12[%c0_103, %c0_104] : memref<64x64xbf16, #tpu.memory_space<vmem>>, vector<64x64xbf16>
    %cst_105 = arith.constant dense<0.000000e+00> : vector<16x64xf32>
    %361 = tpu.matmul %359, %360, %cst_105 {dimension_numbers = #tpu.dot_dimension_numbers<[1], [0], [0], [1], [0, 0, 1, 1], [], []>} : vector<16x64xbf16>, vector<64x64xbf16>, vector<16x64xf32> -> vector<16x64xf32>
    %c0_106 = arith.constant 0 : index
    %c0_107 = arith.constant 0 : index
    %362 = vector.load %arg13[%c0_106, %c0_107] : memref<1x64xf32, #tpu.memory_space<vmem>>, vector<1x64xf32>
    %363 = vector.broadcast %362 : vector<1x64xf32> to vector<16x64xf32>
    %364 = arith.addf %361, %363 : vector<16x64xf32>
    %365 = arith.addf %364, %313 : vector<16x64xf32>
    %366 = arith.addf %365, %3 : vector<16x64xf32>
    %367 = arith.truncf %366 : vector<16x64xf32> to vector<16x64xbf16>
    %c0_108 = arith.constant 0 : index
    %c0_109 = arith.constant 0 : index
    %368 = vector.load %arg14[%c0_108, %c0_109] : memref<64x256xbf16, #tpu.memory_space<vmem>>, vector<64x256xbf16>
    %cst_110 = arith.constant dense<0.000000e+00> : vector<16x256xf32>
    %369 = tpu.matmul %367, %368, %cst_110 {dimension_numbers = #tpu.dot_dimension_numbers<[1], [0], [0], [1], [0, 0, 1, 1], [], []>} : vector<16x64xbf16>, vector<64x256xbf16>, vector<16x256xf32> -> vector<16x256xf32>
    %c0_111 = arith.constant 0 : index
    %c0_112 = arith.constant 0 : index
    %370 = vector.load %arg15[%c0_111, %c0_112] : memref<1x256xf32, #tpu.memory_space<vmem>>, vector<1x256xf32>
    %371 = vector.broadcast %370 : vector<1x256xf32> to vector<16x256xf32>
    %372 = arith.addf %369, %371 : vector<16x256xf32>
    %cst_113 = arith.constant 5.000000e-01 : f32
    %373 = vector.broadcast %cst_113 : f32 to vector<16x256xf32>
    %374 = arith.mulf %373, %372 : vector<16x256xf32>
    %cst_114 = arith.constant 0.707106769 : f32
    %375 = vector.broadcast %cst_114 : f32 to vector<16x256xf32>
    %376 = arith.mulf %372, %375 : vector<16x256xf32>
    %377 = math.absf %376 : vector<16x256xf32>
    %cst_115 = arith.constant 0.327591091 : f32
    %378 = vector.broadcast %cst_115 : f32 to vector<16x256xf32>
    %379 = arith.mulf %378, %377 : vector<16x256xf32>
    %cst_116 = arith.constant 1.000000e+00 : f32
    %380 = vector.broadcast %cst_116 : f32 to vector<16x256xf32>
    %381 = arith.addf %380, %379 : vector<16x256xf32>
    %382 = tpu.reciprocal %381 {approx = true} : vector<16x256xf32> -> vector<16x256xf32>
    %cst_117 = arith.constant 1.06140542 : f32
    %383 = vector.broadcast %cst_117 : f32 to vector<16x256xf32>
    %384 = arith.mulf %383, %382 : vector<16x256xf32>
    %cst_118 = arith.constant -1.45315206 : f32
    %385 = vector.broadcast %cst_118 : f32 to vector<16x256xf32>
    %386 = arith.addf %384, %385 : vector<16x256xf32>
    %387 = arith.mulf %386, %382 : vector<16x256xf32>
    %cst_119 = arith.constant 1.42141378 : f32
    %388 = vector.broadcast %cst_119 : f32 to vector<16x256xf32>
    %389 = arith.addf %387, %388 : vector<16x256xf32>
    %390 = arith.mulf %389, %382 : vector<16x256xf32>
    %cst_120 = arith.constant -0.284496725 : f32
    %391 = vector.broadcast %cst_120 : f32 to vector<16x256xf32>
    %392 = arith.addf %390, %391 : vector<16x256xf32>
    %393 = arith.mulf %392, %382 : vector<16x256xf32>
    %cst_121 = arith.constant 0.254829586 : f32
    %394 = vector.broadcast %cst_121 : f32 to vector<16x256xf32>
    %395 = arith.addf %393, %394 : vector<16x256xf32>
    %396 = arith.mulf %395, %382 : vector<16x256xf32>
    %cst_122 = arith.constant 0.000000e+00 : f32
    %397 = vector.broadcast %cst_122 : f32 to vector<16x256xf32>
    %398 = arith.subf %397, %377 : vector<16x256xf32>
    %399 = arith.mulf %398, %377 : vector<16x256xf32>
    %400 = math.exp %399 : vector<16x256xf32>
    %401 = arith.mulf %396, %400 : vector<16x256xf32>
    %cst_123 = arith.constant 1.000000e+00 : f32
    %402 = vector.broadcast %cst_123 : f32 to vector<16x256xf32>
    %403 = arith.subf %402, %401 : vector<16x256xf32>
    %cst_124 = arith.constant 0.000000e+00 : f32
    %404 = vector.broadcast %cst_124 : f32 to vector<16x256xf32>
    %405 = arith.cmpf oge, %376, %404 : vector<16x256xf32>
    %cst_125 = arith.constant 0.000000e+00 : f32
    %406 = vector.broadcast %cst_125 : f32 to vector<16x256xf32>
    %407 = arith.subf %406, %403 : vector<16x256xf32>
    %408 = arith.select %405, %403, %407 : vector<16x256xi1>, vector<16x256xf32>
    %cst_126 = arith.constant 1.000000e+00 : f32
    %409 = vector.broadcast %cst_126 : f32 to vector<16x256xf32>
    %410 = arith.addf %409, %408 : vector<16x256xf32>
    %411 = arith.mulf %374, %410 : vector<16x256xf32>
    %412 = arith.truncf %411 : vector<16x256xf32> to vector<16x256xbf16>
    %c0_127 = arith.constant 0 : index
    %c0_128 = arith.constant 0 : index
    %413 = vector.load %arg16[%c0_127, %c0_128] : memref<256x64xbf16, #tpu.memory_space<vmem>>, vector<256x64xbf16>
    %cst_129 = arith.constant dense<0.000000e+00> : vector<16x64xf32>
    %414 = tpu.matmul %412, %413, %cst_129 {dimension_numbers = #tpu.dot_dimension_numbers<[1], [0], [0], [1], [0, 0, 1, 1], [], []>} : vector<16x256xbf16>, vector<256x64xbf16>, vector<16x64xf32> -> vector<16x64xf32>
    %c0_130 = arith.constant 0 : index
    %c0_131 = arith.constant 0 : index
    %415 = vector.load %arg17[%c0_130, %c0_131] : memref<1x64xf32, #tpu.memory_space<vmem>>, vector<1x64xf32>
    %416 = vector.broadcast %415 : vector<1x64xf32> to vector<16x64xf32>
    %417 = arith.addf %414, %416 : vector<16x64xf32>
    %418 = arith.addf %417, %366 : vector<16x64xf32>
    %cst_132 = arith.constant 5.000000e-01 : f32
    %419 = vector.broadcast %cst_132 : f32 to vector<16x64xf32>
    %420 = arith.mulf %419, %418 : vector<16x64xf32>
    %cst_133 = arith.constant 0.707106769 : f32
    %421 = vector.broadcast %cst_133 : f32 to vector<16x64xf32>
    %422 = arith.mulf %418, %421 : vector<16x64xf32>
    %423 = math.absf %422 : vector<16x64xf32>
    %cst_134 = arith.constant 0.327591091 : f32
    %424 = vector.broadcast %cst_134 : f32 to vector<16x64xf32>
    %425 = arith.mulf %424, %423 : vector<16x64xf32>
    %cst_135 = arith.constant 1.000000e+00 : f32
    %426 = vector.broadcast %cst_135 : f32 to vector<16x64xf32>
    %427 = arith.addf %426, %425 : vector<16x64xf32>
    %428 = tpu.reciprocal %427 {approx = true} : vector<16x64xf32> -> vector<16x64xf32>
    %cst_136 = arith.constant 1.06140542 : f32
    %429 = vector.broadcast %cst_136 : f32 to vector<16x64xf32>
    %430 = arith.mulf %429, %428 : vector<16x64xf32>
    %cst_137 = arith.constant -1.45315206 : f32
    %431 = vector.broadcast %cst_137 : f32 to vector<16x64xf32>
    %432 = arith.addf %430, %431 : vector<16x64xf32>
    %433 = arith.mulf %432, %428 : vector<16x64xf32>
    %cst_138 = arith.constant 1.42141378 : f32
    %434 = vector.broadcast %cst_138 : f32 to vector<16x64xf32>
    %435 = arith.addf %433, %434 : vector<16x64xf32>
    %436 = arith.mulf %435, %428 : vector<16x64xf32>
    %cst_139 = arith.constant -0.284496725 : f32
    %437 = vector.broadcast %cst_139 : f32 to vector<16x64xf32>
    %438 = arith.addf %436, %437 : vector<16x64xf32>
    %439 = arith.mulf %438, %428 : vector<16x64xf32>
    %cst_140 = arith.constant 0.254829586 : f32
    %440 = vector.broadcast %cst_140 : f32 to vector<16x64xf32>
    %441 = arith.addf %439, %440 : vector<16x64xf32>
    %442 = arith.mulf %441, %428 : vector<16x64xf32>
    %cst_141 = arith.constant 0.000000e+00 : f32
    %443 = vector.broadcast %cst_141 : f32 to vector<16x64xf32>
    %444 = arith.subf %443, %423 : vector<16x64xf32>
    %445 = arith.mulf %444, %423 : vector<16x64xf32>
    %446 = math.exp %445 : vector<16x64xf32>
    %447 = arith.mulf %442, %446 : vector<16x64xf32>
    %cst_142 = arith.constant 1.000000e+00 : f32
    %448 = vector.broadcast %cst_142 : f32 to vector<16x64xf32>
    %449 = arith.subf %448, %447 : vector<16x64xf32>
    %cst_143 = arith.constant 0.000000e+00 : f32
    %450 = vector.broadcast %cst_143 : f32 to vector<16x64xf32>
    %451 = arith.cmpf oge, %422, %450 : vector<16x64xf32>
    %cst_144 = arith.constant 0.000000e+00 : f32
    %452 = vector.broadcast %cst_144 : f32 to vector<16x64xf32>
    %453 = arith.subf %452, %449 : vector<16x64xf32>
    %454 = arith.select %451, %449, %453 : vector<16x64xi1>, vector<16x64xf32>
    %cst_145 = arith.constant 1.000000e+00 : f32
    %455 = vector.broadcast %cst_145 : f32 to vector<16x64xf32>
    %456 = arith.addf %455, %454 : vector<16x64xf32>
    %457 = arith.mulf %420, %456 : vector<16x64xf32>
    %458 = arith.truncf %457 : vector<16x64xf32> to vector<16x64xbf16>
    %c0_146 = arith.constant 0 : index
    %c0_147 = arith.constant 0 : index
    %459 = vector.load %arg18[%c0_146, %c0_147] : memref<64x256xbf16, #tpu.memory_space<vmem>>, vector<64x256xbf16>
    %cst_148 = arith.constant dense<0.000000e+00> : vector<16x256xf32>
    %460 = tpu.matmul %458, %459, %cst_148 {dimension_numbers = #tpu.dot_dimension_numbers<[1], [0], [0], [1], [0, 0, 1, 1], [], []>} : vector<16x64xbf16>, vector<64x256xbf16>, vector<16x256xf32> -> vector<16x256xf32>
    %c0_149 = arith.constant 0 : index
    %c0_150 = arith.constant 0 : index
    %461 = vector.load %arg19[%c0_149, %c0_150] : memref<1x256xf32, #tpu.memory_space<vmem>>, vector<1x256xf32>
    %462 = vector.broadcast %461 : vector<1x256xf32> to vector<16x256xf32>
    %463 = arith.addf %460, %462 : vector<16x256xf32>
    %cst_151 = arith.constant 5.000000e-01 : f32
    %464 = vector.broadcast %cst_151 : f32 to vector<16x256xf32>
    %465 = arith.mulf %464, %463 : vector<16x256xf32>
    %cst_152 = arith.constant 0.707106769 : f32
    %466 = vector.broadcast %cst_152 : f32 to vector<16x256xf32>
    %467 = arith.mulf %463, %466 : vector<16x256xf32>
    %468 = math.absf %467 : vector<16x256xf32>
    %cst_153 = arith.constant 0.327591091 : f32
    %469 = vector.broadcast %cst_153 : f32 to vector<16x256xf32>
    %470 = arith.mulf %469, %468 : vector<16x256xf32>
    %cst_154 = arith.constant 1.000000e+00 : f32
    %471 = vector.broadcast %cst_154 : f32 to vector<16x256xf32>
    %472 = arith.addf %471, %470 : vector<16x256xf32>
    %473 = tpu.reciprocal %472 {approx = true} : vector<16x256xf32> -> vector<16x256xf32>
    %cst_155 = arith.constant 1.06140542 : f32
    %474 = vector.broadcast %cst_155 : f32 to vector<16x256xf32>
    %475 = arith.mulf %474, %473 : vector<16x256xf32>
    %cst_156 = arith.constant -1.45315206 : f32
    %476 = vector.broadcast %cst_156 : f32 to vector<16x256xf32>
    %477 = arith.addf %475, %476 : vector<16x256xf32>
    %478 = arith.mulf %477, %473 : vector<16x256xf32>
    %cst_157 = arith.constant 1.42141378 : f32
    %479 = vector.broadcast %cst_157 : f32 to vector<16x256xf32>
    %480 = arith.addf %478, %479 : vector<16x256xf32>
    %481 = arith.mulf %480, %473 : vector<16x256xf32>
    %cst_158 = arith.constant -0.284496725 : f32
    %482 = vector.broadcast %cst_158 : f32 to vector<16x256xf32>
    %483 = arith.addf %481, %482 : vector<16x256xf32>
    %484 = arith.mulf %483, %473 : vector<16x256xf32>
    %cst_159 = arith.constant 0.254829586 : f32
    %485 = vector.broadcast %cst_159 : f32 to vector<16x256xf32>
    %486 = arith.addf %484, %485 : vector<16x256xf32>
    %487 = arith.mulf %486, %473 : vector<16x256xf32>
    %cst_160 = arith.constant 0.000000e+00 : f32
    %488 = vector.broadcast %cst_160 : f32 to vector<16x256xf32>
    %489 = arith.subf %488, %468 : vector<16x256xf32>
    %490 = arith.mulf %489, %468 : vector<16x256xf32>
    %491 = math.exp %490 : vector<16x256xf32>
    %492 = arith.mulf %487, %491 : vector<16x256xf32>
    %cst_161 = arith.constant 1.000000e+00 : f32
    %493 = vector.broadcast %cst_161 : f32 to vector<16x256xf32>
    %494 = arith.subf %493, %492 : vector<16x256xf32>
    %cst_162 = arith.constant 0.000000e+00 : f32
    %495 = vector.broadcast %cst_162 : f32 to vector<16x256xf32>
    %496 = arith.cmpf oge, %467, %495 : vector<16x256xf32>
    %cst_163 = arith.constant 0.000000e+00 : f32
    %497 = vector.broadcast %cst_163 : f32 to vector<16x256xf32>
    %498 = arith.subf %497, %494 : vector<16x256xf32>
    %499 = arith.select %496, %494, %498 : vector<16x256xi1>, vector<16x256xf32>
    %cst_164 = arith.constant 1.000000e+00 : f32
    %500 = vector.broadcast %cst_164 : f32 to vector<16x256xf32>
    %501 = arith.addf %500, %499 : vector<16x256xf32>
    %502 = arith.mulf %465, %501 : vector<16x256xf32>
    %503 = arith.truncf %502 : vector<16x256xf32> to vector<16x256xbf16>
    %c0_165 = arith.constant 0 : index
    %c0_166 = arith.constant 0 : index
    %504 = vector.load %arg20[%c0_165, %c0_166] : memref<256x64xbf16, #tpu.memory_space<vmem>>, vector<256x64xbf16>
    %cst_167 = arith.constant dense<0.000000e+00> : vector<16x64xf32>
    %505 = tpu.matmul %503, %504, %cst_167 {dimension_numbers = #tpu.dot_dimension_numbers<[1], [0], [0], [1], [0, 0, 1, 1], [], []>} : vector<16x256xbf16>, vector<256x64xbf16>, vector<16x64xf32> -> vector<16x64xf32>
    %c0_168 = arith.constant 0 : index
    %c0_169 = arith.constant 0 : index
    %506 = vector.load %arg21[%c0_168, %c0_169] : memref<1x64xf32, #tpu.memory_space<vmem>>, vector<1x64xf32>
    %507 = vector.broadcast %506 : vector<1x64xf32> to vector<16x64xf32>
    %508 = arith.addf %505, %507 : vector<16x64xf32>
    %509 = arith.addf %508, %457 : vector<16x64xf32>
    %510 = arith.addf %509, %366 : vector<16x64xf32>
    %c0_170 = arith.constant 0 : index
    %c0_171 = arith.constant 0 : index
    %c0_172 = arith.constant 0 : index
    %511 = vector.load %arg22[%c0_170, %c0_171, %c0_172] : memref<1x16x64xf32, #tpu.memory_space<vmem>>, vector<1x16x64xf32>
    %512 = vector.shape_cast %511 : vector<1x16x64xf32> to vector<16x64xf32>
    %513 = vector.shape_cast %510 : vector<16x64xf32> to vector<1x16x64xf32>
    tpu.vector_store %arg22[%c0_170, %c0_171, %c0_172], %513 {strides = array<i32>} : memref<1x16x64xf32, #tpu.memory_space<vmem>>, vector<1x16x64xf32>,
    return
  }
  func.func @transform_0(%arg0: i32) -> (i32, i32, i32) {
    %c0_i32 = arith.constant 0 : i32
    %c0_i32_0 = arith.constant 0 : i32
    %c0_i32_1 = arith.constant 0 : i32
    return %arg0, %c0_i32, %c0_i32_0 : i32, i32, i32
  }
  func.func @transform_1(%arg0: i32) -> (i32, i32) {
    %c0_i32 = arith.constant 0 : i32
    %c0_i32_0 = arith.constant 0 : i32
    %c0_i32_1 = arith.constant 0 : i32
    return %c0_i32, %c0_i32_0 : i32, i32
  }
  func.func @transform_2(%arg0: i32) -> (i32, i32) {
    %c0_i32 = arith.constant 0 : i32
    %c0_i32_0 = arith.constant 0 : i32
    %c0_i32_1 = arith.constant 0 : i32
    return %c0_i32, %c0_i32_0 : i32, i32
  }
  func.func @transform_3(%arg0: i32) -> (i32, i32) {
    %c0_i32 = arith.constant 0 : i32
    %c0_i32_0 = arith.constant 0 : i32
    %c0_i32_1 = arith.constant 0 : i32
    return %c0_i32, %c0_i32_0 : i32, i32
  }
  func.func @transform_4(%arg0: i32) -> (i32, i32) {
    %c0_i32 = arith.constant 0 : i32
    %c0_i32_0 = arith.constant 0 : i32
    %c0_i32_1 = arith.constant 0 : i32
    return %c0_i32, %c0_i32_0 : i32, i32
  }
  func.func @transform_5(%arg0: i32) -> (i32, i32) {
    %c0_i32 = arith.constant 0 : i32
    %c0_i32_0 = arith.constant 0 : i32
    %c0_i32_1 = arith.constant 0 : i32
    return %c0_i32, %c0_i32_0 : i32, i32
  }
  func.func @transform_6(%arg0: i32) -> (i32, i32) {
    %c0_i32 = arith.constant 0 : i32
    %c0_i32_0 = arith.constant 0 : i32
    %c0_i32_1 = arith.constant 0 : i32
    return %c0_i32, %c0_i32_0 : i32, i32
  }
  func.func @transform_7(%arg0: i32) -> (i32, i32) {
    %c0_i32 = arith.constant 0 : i32
    %c0_i32_0 = arith.constant 0 : i32
    %c0_i32_1 = arith.constant 0 : i32
    return %c0_i32, %c0_i32_0 : i32, i32
  }
  func.func @transform_8(%arg0: i32) -> (i32, i32) {
    %c0_i32 = arith.constant 0 : i32
    %c0_i32_0 = arith.constant 0 : i32
    %c0_i32_1 = arith.constant 0 : i32
    return %c0_i32, %c0_i32_0 : i32, i32
  }
  func.func @transform_9(%arg0: i32) -> (i32, i32) {
    %c0_i32 = arith.constant 0 : i32
    %c0_i32_0 = arith.constant 0 : i32
    %c0_i32_1 = arith.constant 0 : i32
    return %c0_i32, %c0_i32_0 : i32, i32
  }
  func.func @transform_10(%arg0: i32) -> (i32, i32) {
    %c0_i32 = arith.constant 0 : i32
    %c0_i32_0 = arith.constant 0 : i32
    %c0_i32_1 = arith.constant 0 : i32
    return %c0_i32, %c0_i32_0 : i32, i32
  }
  func.func @transform_11(%arg0: i32) -> (i32, i32) {
    %c0_i32 = arith.constant 0 : i32
    %c0_i32_0 = arith.constant 0 : i32
    %c0_i32_1 = arith.constant 0 : i32
    return %c0_i32, %c0_i32_0 : i32, i32
  }
  func.func @transform_12(%arg0: i32) -> (i32, i32) {
    %c0_i32 = arith.constant 0 : i32
    %c0_i32_0 = arith.constant 0 : i32
    %c0_i32_1 = arith.constant 0 : i32
    return %c0_i32, %c0_i32_0 : i32, i32
  }
  func.func @transform_13(%arg0: i32) -> (i32, i32) {
    %c0_i32 = arith.constant 0 : i32
    %c0_i32_0 = arith.constant 0 : i32
    %c0_i32_1 = arith.constant 0 : i32
    return %c0_i32, %c0_i32_0 : i32, i32
  }
  func.func @transform_14(%arg0: i32) -> (i32, i32) {
    %c0_i32 = arith.constant 0 : i32
    %c0_i32_0 = arith.constant 0 : i32
    %c0_i32_1 = arith.constant 0 : i32
    return %c0_i32, %c0_i32_0 : i32, i32
  }
  func.func @transform_15(%arg0: i32) -> (i32, i32) {
    %c0_i32 = arith.constant 0 : i32
    %c0_i32_0 = arith.constant 0 : i32
    %c0_i32_1 = arith.constant 0 : i32
    return %c0_i32, %c0_i32_0 : i32, i32
  }
  func.func @transform_16(%arg0: i32) -> (i32, i32) {
    %c0_i32 = arith.constant 0 : i32
    %c0_i32_0 = arith.constant 0 : i32
    %c0_i32_1 = arith.constant 0 : i32
    return %c0_i32, %c0_i32_0 : i32, i32
  }
  func.func @transform_17(%arg0: i32) -> (i32, i32) {
    %c0_i32 = arith.constant 0 : i32
    %c0_i32_0 = arith.constant 0 : i32
    %c0_i32_1 = arith.constant 0 : i32
    return %c0_i32, %c0_i32_0 : i32, i32
  }
  func.func @transform_18(%arg0: i32) -> (i32, i32) {
    %c0_i32 = arith.constant 0 : i32
    %c0_i32_0 = arith.constant 0 : i32
    %c0_i32_1 = arith.constant 0 : i32
    return %c0_i32, %c0_i32_0 : i32, i32
  }
  func.func @transform_19(%arg0: i32) -> (i32, i32) {
    %c0_i32 = arith.constant 0 : i32
    %c0_i32_0 = arith.constant 0 : i32
    %c0_i32_1 = arith.constant 0 : i32
    return %c0_i32, %c0_i32_0 : i32, i32
  }
  func.func @transform_20(%arg0: i32) -> (i32, i32) {
    %c0_i32 = arith.constant 0 : i32
    %c0_i32_0 = arith.constant 0 : i32
    %c0_i32_1 = arith.constant 0 : i32
    return %c0_i32, %c0_i32_0 : i32, i32
  }
  func.func @transform_21(%arg0: i32) -> (i32, i32, i32) {
    %c0_i32 = arith.constant 0 : i32
    %c0_i32_0 = arith.constant 0 : i32
    %c0_i32_1 = arith.constant 0 : i32
    return %arg0, %c0_i32, %c0_i32_0 : i32, i32, i32
  }
}

module attributes {stable_mosaic.version = 11 : i64} {
  func.func @_vig_block_kernel(%arg0: i32, %arg1: memref<1x16x64xf32, #tpu.memory_space<vmem>>, %arg2: memref<64x64xbf16, #tpu.memory_space<vmem>>, %arg3: memref<1x64xf32, #tpu.memory_space<vmem>>, %arg4: memref<64x64xbf16, #tpu.memory_space<vmem>>, %arg5: memref<1x64xf32, #tpu.memory_space<vmem>>, %arg6: memref<64x64xbf16, #tpu.memory_space<vmem>>, %arg7: memref<64x64xbf16, #tpu.memory_space<vmem>>, %arg8: memref<1x64xf32, #tpu.memory_space<vmem>>, %arg9: memref<64x64xbf16, #tpu.memory_space<vmem>>, %arg10: memref<1x64xf32, #tpu.memory_space<vmem>>, %arg11: memref<64x64xbf16, #tpu.memory_space<vmem>>, %arg12: memref<1x64xf32, #tpu.memory_space<vmem>>, %arg13: memref<64x256xbf16, #tpu.memory_space<vmem>>, %arg14: memref<1x256xf32, #tpu.memory_space<vmem>>, %arg15: memref<256x64xbf16, #tpu.memory_space<vmem>>, %arg16: memref<1x64xf32, #tpu.memory_space<vmem>>, %arg17: memref<64x256xbf16, #tpu.memory_space<vmem>>, %arg18: memref<1x256xf32, #tpu.memory_space<vmem>>, %arg19: memref<256x64xbf16, #tpu.memory_space<vmem>>, %arg20: memref<1x64xf32, #tpu.memory_space<vmem>>, %arg21: memref<1x16x64xf32, #tpu.memory_space<vmem>>) attributes {dimension_semantics = [#tpu.dimension_semantics<parallel>], iteration_bounds = array<i64: 2>, scalar_prefetch = 0 : i64, scratch_operands = 0 : i64, tpu.core_type = #tpu.core_type<tc>, window_params = [{transform_indices = @transform_0, window_bounds = array<i64: 1, 16, 64>}, {pipeline_mode = #tpu.pipeline_mode<synchronous>, transform_indices = @transform_1, window_bounds = array<i64: 64, 64>}, {pipeline_mode = #tpu.pipeline_mode<synchronous>, transform_indices = @transform_2, window_bounds = array<i64: 1, 64>}, {pipeline_mode = #tpu.pipeline_mode<synchronous>, transform_indices = @transform_3, window_bounds = array<i64: 64, 64>}, {pipeline_mode = #tpu.pipeline_mode<synchronous>, transform_indices = @transform_4, window_bounds = array<i64: 1, 64>}, {pipeline_mode = #tpu.pipeline_mode<synchronous>, transform_indices = @transform_5, window_bounds = array<i64: 64, 64>}, {pipeline_mode = #tpu.pipeline_mode<synchronous>, transform_indices = @transform_6, window_bounds = array<i64: 64, 64>}, {pipeline_mode = #tpu.pipeline_mode<synchronous>, transform_indices = @transform_7, window_bounds = array<i64: 1, 64>}, {pipeline_mode = #tpu.pipeline_mode<synchronous>, transform_indices = @transform_8, window_bounds = array<i64: 64, 64>}, {pipeline_mode = #tpu.pipeline_mode<synchronous>, transform_indices = @transform_9, window_bounds = array<i64: 1, 64>}, {pipeline_mode = #tpu.pipeline_mode<synchronous>, transform_indices = @transform_10, window_bounds = array<i64: 64, 64>}, {pipeline_mode = #tpu.pipeline_mode<synchronous>, transform_indices = @transform_11, window_bounds = array<i64: 1, 64>}, {pipeline_mode = #tpu.pipeline_mode<synchronous>, transform_indices = @transform_12, window_bounds = array<i64: 64, 256>}, {pipeline_mode = #tpu.pipeline_mode<synchronous>, transform_indices = @transform_13, window_bounds = array<i64: 1, 256>}, {pipeline_mode = #tpu.pipeline_mode<synchronous>, transform_indices = @transform_14, window_bounds = array<i64: 256, 64>}, {pipeline_mode = #tpu.pipeline_mode<synchronous>, transform_indices = @transform_15, window_bounds = array<i64: 1, 64>}, {pipeline_mode = #tpu.pipeline_mode<synchronous>, transform_indices = @transform_16, window_bounds = array<i64: 64, 256>}, {pipeline_mode = #tpu.pipeline_mode<synchronous>, transform_indices = @transform_17, window_bounds = array<i64: 1, 256>}, {pipeline_mode = #tpu.pipeline_mode<synchronous>, transform_indices = @transform_18, window_bounds = array<i64: 256, 64>}, {pipeline_mode = #tpu.pipeline_mode<synchronous>, transform_indices = @transform_19, window_bounds = array<i64: 1, 64>}, {transform_indices = @transform_20, window_bounds = array<i64: 1, 16, 64>}]} {
    %c0 = arith.constant 0 : index
    %c0_0 = arith.constant 0 : index
    %c0_1 = arith.constant 0 : index
    %0 = vector.load %arg1[%c0, %c0_0, %c0_1] : memref<1x16x64xf32, #tpu.memory_space<vmem>>, vector<1x16x64xf32>
    %1 = vector.shape_cast %0 : vector<1x16x64xf32> to vector<16x64xf32>
    %cst = arith.constant dense<0.000000e+00> : vector<16x16xf32>
    %2 = tpu.matmul %1, %1, %cst {dimension_numbers = #tpu.dot_dimension_numbers<[1], [1], [0], [0], [0, 0, 1, 0], [], []>} : vector<16x64xf32>, vector<16x64xf32>, vector<16x16xf32> -> vector<16x16xf32>
    %3 = arith.truncf %1 : vector<16x64xf32> to vector<16x64xbf16>
    %c0_2 = arith.constant 0 : index
    %c0_3 = arith.constant 0 : index
    %4 = vector.load %arg2[%c0_2, %c0_3] : memref<64x64xbf16, #tpu.memory_space<vmem>>, vector<64x64xbf16>
    %cst_4 = arith.constant dense<0.000000e+00> : vector<16x64xf32>
    %5 = tpu.matmul %3, %4, %cst_4 {dimension_numbers = #tpu.dot_dimension_numbers<[1], [0], [0], [1], [0, 0, 1, 1], [], []>} : vector<16x64xbf16>, vector<64x64xbf16>, vector<16x64xf32> -> vector<16x64xf32>
    %c0_5 = arith.constant 0 : index
    %c0_6 = arith.constant 0 : index
    %6 = vector.load %arg3[%c0_5, %c0_6] : memref<1x64xf32, #tpu.memory_space<vmem>>, vector<1x64xf32>
    %7 = vector.broadcast %6 : vector<1x64xf32> to vector<16x64xf32>
    %8 = arith.addf %5, %7 : vector<16x64xf32>
    %cst_7 = arith.constant 5.000000e-01 : f32
    %9 = vector.broadcast %cst_7 : f32 to vector<16x64xf32>
    %10 = arith.mulf %9, %8 : vector<16x64xf32>
    %cst_8 = arith.constant 0.707106769 : f32
    %11 = vector.broadcast %cst_8 : f32 to vector<16x64xf32>
    %12 = arith.mulf %8, %11 : vector<16x64xf32>
    %13 = math.absf %12 : vector<16x64xf32>
    %cst_9 = arith.constant 0.327591091 : f32
    %14 = vector.broadcast %cst_9 : f32 to vector<16x64xf32>
    %15 = arith.mulf %14, %13 : vector<16x64xf32>
    %cst_10 = arith.constant 1.000000e+00 : f32
    %16 = vector.broadcast %cst_10 : f32 to vector<16x64xf32>
    %17 = arith.addf %16, %15 : vector<16x64xf32>
    %18 = tpu.reciprocal %17 {approx = true} : vector<16x64xf32> -> vector<16x64xf32>
    %cst_11 = arith.constant 1.06140542 : f32
    %19 = vector.broadcast %cst_11 : f32 to vector<16x64xf32>
    %20 = arith.mulf %19, %18 : vector<16x64xf32>
    %cst_12 = arith.constant -1.45315206 : f32
    %21 = vector.broadcast %cst_12 : f32 to vector<16x64xf32>
    %22 = arith.addf %20, %21 : vector<16x64xf32>
    %23 = arith.mulf %22, %18 : vector<16x64xf32>
    %cst_13 = arith.constant 1.42141378 : f32
    %24 = vector.broadcast %cst_13 : f32 to vector<16x64xf32>
    %25 = arith.addf %23, %24 : vector<16x64xf32>
    %26 = arith.mulf %25, %18 : vector<16x64xf32>
    %cst_14 = arith.constant -0.284496725 : f32
    %27 = vector.broadcast %cst_14 : f32 to vector<16x64xf32>
    %28 = arith.addf %26, %27 : vector<16x64xf32>
    %29 = arith.mulf %28, %18 : vector<16x64xf32>
    %cst_15 = arith.constant 0.254829586 : f32
    %30 = vector.broadcast %cst_15 : f32 to vector<16x64xf32>
    %31 = arith.addf %29, %30 : vector<16x64xf32>
    %32 = arith.mulf %31, %18 : vector<16x64xf32>
    %cst_16 = arith.constant 0.000000e+00 : f32
    %33 = vector.broadcast %cst_16 : f32 to vector<16x64xf32>
    %34 = arith.subf %33, %13 : vector<16x64xf32>
    %35 = arith.mulf %34, %13 : vector<16x64xf32>
    %36 = math.exp %35 : vector<16x64xf32>
    %37 = arith.mulf %32, %36 : vector<16x64xf32>
    %cst_17 = arith.constant 1.000000e+00 : f32
    %38 = vector.broadcast %cst_17 : f32 to vector<16x64xf32>
    %39 = arith.subf %38, %37 : vector<16x64xf32>
    %cst_18 = arith.constant 0.000000e+00 : f32
    %40 = vector.broadcast %cst_18 : f32 to vector<16x64xf32>
    %41 = arith.cmpf oge, %12, %40 : vector<16x64xf32>
    %cst_19 = arith.constant 0.000000e+00 : f32
    %42 = vector.broadcast %cst_19 : f32 to vector<16x64xf32>
    %43 = arith.subf %42, %39 : vector<16x64xf32>
    %44 = arith.select %41, %39, %43 : vector<16x64xi1>, vector<16x64xf32>
    %cst_20 = arith.constant 1.000000e+00 : f32
    %45 = vector.broadcast %cst_20 : f32 to vector<16x64xf32>
    %46 = arith.addf %45, %44 : vector<16x64xf32>
    %47 = arith.mulf %10, %46 : vector<16x64xf32>
    %48 = arith.truncf %47 : vector<16x64xf32> to vector<16x64xbf16>
    %c0_21 = arith.constant 0 : index
    %c0_22 = arith.constant 0 : index
    %49 = vector.load %arg4[%c0_21, %c0_22] : memref<64x64xbf16, #tpu.memory_space<vmem>>, vector<64x64xbf16>
    %cst_23 = arith.constant dense<0.000000e+00> : vector<16x64xf32>
    %50 = tpu.matmul %48, %49, %cst_23 {dimension_numbers = #tpu.dot_dimension_numbers<[1], [0], [0], [1], [0, 0, 1, 1], [], []>} : vector<16x64xbf16>, vector<64x64xbf16>, vector<16x64xf32> -> vector<16x64xf32>
    %c0_24 = arith.constant 0 : index
    %c0_25 = arith.constant 0 : index
    %51 = vector.load %arg5[%c0_24, %c0_25] : memref<1x64xf32, #tpu.memory_space<vmem>>, vector<1x64xf32>
    %52 = vector.broadcast %51 : vector<1x64xf32> to vector<16x64xf32>
    %53 = arith.addf %50, %52 : vector<16x64xf32>
    %54 = arith.addf %53, %1 : vector<16x64xf32>
    %false = arith.constant false
    %55 = vector.broadcast %false : i1 to vector<16x16xi1>
    %cst_26 = arith.constant dense<0xFF800000> : vector<16xf32>
    %56 = vector.multi_reduction <maximumf>, %2, %cst_26 [1] : vector<16x16xf32> to vector<16xf32>
    %57 = vector.shape_cast %56 : vector<16xf32> to vector<16x1xf32>
    %58 = vector.broadcast %57 : vector<16x1xf32> to vector<16x16xf32>
    %59 = arith.cmpf oge, %2, %58 : vector<16x16xf32>
    %60 = arith.ori %55, %59 : vector<16x16xi1>
    %cst_27 = arith.constant -3.000000e+38 : f32
    %61 = vector.broadcast %cst_27 : f32 to vector<16x16xf32>
    %62 = arith.select %59, %61, %2 : vector<16x16xi1>, vector<16x16xf32>
    %cst_28 = arith.constant dense<0xFF800000> : vector<16xf32>
    %63 = vector.multi_reduction <maximumf>, %62, %cst_28 [1] : vector<16x16xf32> to vector<16xf32>
    %64 = vector.shape_cast %63 : vector<16xf32> to vector<16x1xf32>
    %65 = vector.broadcast %64 : vector<16x1xf32> to vector<16x16xf32>
    %66 = arith.cmpf oge, %62, %65 : vector<16x16xf32>
    %67 = arith.ori %60, %66 : vector<16x16xi1>
    %cst_29 = arith.constant -3.000000e+38 : f32
    %68 = vector.broadcast %cst_29 : f32 to vector<16x16xf32>
    %69 = arith.select %66, %68, %62 : vector<16x16xi1>, vector<16x16xf32>
    %cst_30 = arith.constant dense<0xFF800000> : vector<16xf32>
    %70 = vector.multi_reduction <maximumf>, %69, %cst_30 [1] : vector<16x16xf32> to vector<16xf32>
    %71 = vector.shape_cast %70 : vector<16xf32> to vector<16x1xf32>
    %72 = vector.broadcast %71 : vector<16x1xf32> to vector<16x16xf32>
    %73 = arith.cmpf oge, %69, %72 : vector<16x16xf32>
    %74 = arith.ori %67, %73 : vector<16x16xi1>
    %cst_31 = arith.constant -3.000000e+38 : f32
    %75 = vector.broadcast %cst_31 : f32 to vector<16x16xf32>
    %76 = arith.select %73, %75, %69 : vector<16x16xi1>, vector<16x16xf32>
    %cst_32 = arith.constant dense<0xFF800000> : vector<16xf32>
    %77 = vector.multi_reduction <maximumf>, %76, %cst_32 [1] : vector<16x16xf32> to vector<16xf32>
    %78 = vector.shape_cast %77 : vector<16xf32> to vector<16x1xf32>
    %79 = vector.broadcast %78 : vector<16x1xf32> to vector<16x16xf32>
    %80 = arith.cmpf oge, %76, %79 : vector<16x16xf32>
    %81 = arith.ori %74, %80 : vector<16x16xi1>
    %cst_33 = arith.constant -3.000000e+38 : f32
    %82 = vector.broadcast %cst_33 : f32 to vector<16x16xf32>
    %83 = arith.select %80, %82, %76 : vector<16x16xi1>, vector<16x16xf32>
    %cst_34 = arith.constant dense<0xFF800000> : vector<16xf32>
    %84 = vector.multi_reduction <maximumf>, %83, %cst_34 [1] : vector<16x16xf32> to vector<16xf32>
    %85 = vector.shape_cast %84 : vector<16xf32> to vector<16x1xf32>
    %86 = vector.broadcast %85 : vector<16x1xf32> to vector<16x16xf32>
    %87 = arith.cmpf oge, %83, %86 : vector<16x16xf32>
    %88 = arith.ori %81, %87 : vector<16x16xi1>
    %cst_35 = arith.constant -3.000000e+38 : f32
    %89 = vector.broadcast %cst_35 : f32 to vector<16x16xf32>
    %90 = arith.select %87, %89, %83 : vector<16x16xi1>, vector<16x16xf32>
    %cst_36 = arith.constant dense<0xFF800000> : vector<16xf32>
    %91 = vector.multi_reduction <maximumf>, %90, %cst_36 [1] : vector<16x16xf32> to vector<16xf32>
    %92 = vector.shape_cast %91 : vector<16xf32> to vector<16x1xf32>
    %93 = vector.broadcast %92 : vector<16x1xf32> to vector<16x16xf32>
    %94 = arith.cmpf oge, %90, %93 : vector<16x16xf32>
    %95 = arith.ori %88, %94 : vector<16x16xi1>
    %cst_37 = arith.constant -3.000000e+38 : f32
    %96 = vector.broadcast %cst_37 : f32 to vector<16x16xf32>
    %97 = arith.select %94, %96, %90 : vector<16x16xi1>, vector<16x16xf32>
    %cst_38 = arith.constant dense<0xFF800000> : vector<16xf32>
    %98 = vector.multi_reduction <maximumf>, %97, %cst_38 [1] : vector<16x16xf32> to vector<16xf32>
    %99 = vector.shape_cast %98 : vector<16xf32> to vector<16x1xf32>
    %100 = vector.broadcast %99 : vector<16x1xf32> to vector<16x16xf32>
    %101 = arith.cmpf oge, %97, %100 : vector<16x16xf32>
    %102 = arith.ori %95, %101 : vector<16x16xi1>
    %cst_39 = arith.constant -3.000000e+38 : f32
    %103 = vector.broadcast %cst_39 : f32 to vector<16x16xf32>
    %104 = arith.select %101, %103, %97 : vector<16x16xi1>, vector<16x16xf32>
    %cst_40 = arith.constant dense<0xFF800000> : vector<16xf32>
    %105 = vector.multi_reduction <maximumf>, %104, %cst_40 [1] : vector<16x16xf32> to vector<16xf32>
    %106 = vector.shape_cast %105 : vector<16xf32> to vector<16x1xf32>
    %107 = vector.broadcast %106 : vector<16x1xf32> to vector<16x16xf32>
    %108 = arith.cmpf oge, %104, %107 : vector<16x16xf32>
    %109 = arith.ori %102, %108 : vector<16x16xi1>
    %cst_41 = arith.constant -3.000000e+38 : f32
    %110 = vector.broadcast %cst_41 : f32 to vector<16x16xf32>
    %111 = arith.select %108, %110, %104 : vector<16x16xi1>, vector<16x16xf32>
    %cst_42 = arith.constant dense<0xFF800000> : vector<16xf32>
    %112 = vector.multi_reduction <maximumf>, %111, %cst_42 [1] : vector<16x16xf32> to vector<16xf32>
    %113 = vector.shape_cast %112 : vector<16xf32> to vector<16x1xf32>
    %114 = vector.broadcast %113 : vector<16x1xf32> to vector<16x16xf32>
    %115 = arith.cmpf oge, %111, %114 : vector<16x16xf32>
    %116 = arith.ori %109, %115 : vector<16x16xi1>
    %cst_43 = arith.constant -3.000000e+38 : f32
    %117 = vector.broadcast %cst_43 : f32 to vector<16x64xf32>
    %118 = vector.extract_strided_slice %116 {offsets = [0, 0], sizes = [16, 1], strides = [1, 1]} : vector<16x16xi1> to vector<16x1xi1>
    %119 = vector.extract_strided_slice %54 {offsets = [0, 0], sizes = [1, 64], strides = [1, 1]} : vector<16x64xf32> to vector<1x64xf32>
    %cst_44 = arith.constant -3.000000e+38 : f32
    %120 = vector.shape_cast %118 : vector<16x1xi1> to vector<16x1xi1>
    %121 = vector.broadcast %120 : vector<16x1xi1> to vector<16x64xi1>
    %122 = vector.shape_cast %119 : vector<1x64xf32> to vector<1x64xf32>
    %123 = vector.broadcast %122 : vector<1x64xf32> to vector<16x64xf32>
    %124 = vector.broadcast %cst_44 : f32 to vector<16x64xf32>
    %125 = arith.select %121, %123, %124 : vector<16x64xi1>, vector<16x64xf32>
    %126 = arith.maximumf %117, %125 : vector<16x64xf32>
    %127 = vector.extract_strided_slice %116 {offsets = [0, 1], sizes = [16, 1], strides = [1, 1]} : vector<16x16xi1> to vector<16x1xi1>
    %128 = vector.extract_strided_slice %54 {offsets = [1, 0], sizes = [1, 64], strides = [1, 1]} : vector<16x64xf32> to vector<1x64xf32>
    %cst_45 = arith.constant -3.000000e+38 : f32
    %129 = vector.shape_cast %127 : vector<16x1xi1> to vector<16x1xi1>
    %130 = vector.broadcast %129 : vector<16x1xi1> to vector<16x64xi1>
    %131 = vector.shape_cast %128 : vector<1x64xf32> to vector<1x64xf32>
    %132 = vector.broadcast %131 : vector<1x64xf32> to vector<16x64xf32>
    %133 = vector.broadcast %cst_45 : f32 to vector<16x64xf32>
    %134 = arith.select %130, %132, %133 : vector<16x64xi1>, vector<16x64xf32>
    %135 = arith.maximumf %126, %134 : vector<16x64xf32>
    %136 = vector.extract_strided_slice %116 {offsets = [0, 2], sizes = [16, 1], strides = [1, 1]} : vector<16x16xi1> to vector<16x1xi1>
    %137 = vector.extract_strided_slice %54 {offsets = [2, 0], sizes = [1, 64], strides = [1, 1]} : vector<16x64xf32> to vector<1x64xf32>
    %cst_46 = arith.constant -3.000000e+38 : f32
    %138 = vector.shape_cast %136 : vector<16x1xi1> to vector<16x1xi1>
    %139 = vector.broadcast %138 : vector<16x1xi1> to vector<16x64xi1>
    %140 = vector.shape_cast %137 : vector<1x64xf32> to vector<1x64xf32>
    %141 = vector.broadcast %140 : vector<1x64xf32> to vector<16x64xf32>
    %142 = vector.broadcast %cst_46 : f32 to vector<16x64xf32>
    %143 = arith.select %139, %141, %142 : vector<16x64xi1>, vector<16x64xf32>
    %144 = arith.maximumf %135, %143 : vector<16x64xf32>
    %145 = vector.extract_strided_slice %116 {offsets = [0, 3], sizes = [16, 1], strides = [1, 1]} : vector<16x16xi1> to vector<16x1xi1>
    %146 = vector.extract_strided_slice %54 {offsets = [3, 0], sizes = [1, 64], strides = [1, 1]} : vector<16x64xf32> to vector<1x64xf32>
    %cst_47 = arith.constant -3.000000e+38 : f32
    %147 = vector.shape_cast %145 : vector<16x1xi1> to vector<16x1xi1>
    %148 = vector.broadcast %147 : vector<16x1xi1> to vector<16x64xi1>
    %149 = vector.shape_cast %146 : vector<1x64xf32> to vector<1x64xf32>
    %150 = vector.broadcast %149 : vector<1x64xf32> to vector<16x64xf32>
    %151 = vector.broadcast %cst_47 : f32 to vector<16x64xf32>
    %152 = arith.select %148, %150, %151 : vector<16x64xi1>, vector<16x64xf32>
    %153 = arith.maximumf %144, %152 : vector<16x64xf32>
    %154 = vector.extract_strided_slice %116 {offsets = [0, 4], sizes = [16, 1], strides = [1, 1]} : vector<16x16xi1> to vector<16x1xi1>
    %155 = vector.extract_strided_slice %54 {offsets = [4, 0], sizes = [1, 64], strides = [1, 1]} : vector<16x64xf32> to vector<1x64xf32>
    %cst_48 = arith.constant -3.000000e+38 : f32
    %156 = vector.shape_cast %154 : vector<16x1xi1> to vector<16x1xi1>
    %157 = vector.broadcast %156 : vector<16x1xi1> to vector<16x64xi1>
    %158 = vector.shape_cast %155 : vector<1x64xf32> to vector<1x64xf32>
    %159 = vector.broadcast %158 : vector<1x64xf32> to vector<16x64xf32>
    %160 = vector.broadcast %cst_48 : f32 to vector<16x64xf32>
    %161 = arith.select %157, %159, %160 : vector<16x64xi1>, vector<16x64xf32>
    %162 = arith.maximumf %153, %161 : vector<16x64xf32>
    %163 = vector.extract_strided_slice %116 {offsets = [0, 5], sizes = [16, 1], strides = [1, 1]} : vector<16x16xi1> to vector<16x1xi1>
    %164 = vector.extract_strided_slice %54 {offsets = [5, 0], sizes = [1, 64], strides = [1, 1]} : vector<16x64xf32> to vector<1x64xf32>
    %cst_49 = arith.constant -3.000000e+38 : f32
    %165 = vector.shape_cast %163 : vector<16x1xi1> to vector<16x1xi1>
    %166 = vector.broadcast %165 : vector<16x1xi1> to vector<16x64xi1>
    %167 = vector.shape_cast %164 : vector<1x64xf32> to vector<1x64xf32>
    %168 = vector.broadcast %167 : vector<1x64xf32> to vector<16x64xf32>
    %169 = vector.broadcast %cst_49 : f32 to vector<16x64xf32>
    %170 = arith.select %166, %168, %169 : vector<16x64xi1>, vector<16x64xf32>
    %171 = arith.maximumf %162, %170 : vector<16x64xf32>
    %172 = vector.extract_strided_slice %116 {offsets = [0, 6], sizes = [16, 1], strides = [1, 1]} : vector<16x16xi1> to vector<16x1xi1>
    %173 = vector.extract_strided_slice %54 {offsets = [6, 0], sizes = [1, 64], strides = [1, 1]} : vector<16x64xf32> to vector<1x64xf32>
    %cst_50 = arith.constant -3.000000e+38 : f32
    %174 = vector.shape_cast %172 : vector<16x1xi1> to vector<16x1xi1>
    %175 = vector.broadcast %174 : vector<16x1xi1> to vector<16x64xi1>
    %176 = vector.shape_cast %173 : vector<1x64xf32> to vector<1x64xf32>
    %177 = vector.broadcast %176 : vector<1x64xf32> to vector<16x64xf32>
    %178 = vector.broadcast %cst_50 : f32 to vector<16x64xf32>
    %179 = arith.select %175, %177, %178 : vector<16x64xi1>, vector<16x64xf32>
    %180 = arith.maximumf %171, %179 : vector<16x64xf32>
    %181 = vector.extract_strided_slice %116 {offsets = [0, 7], sizes = [16, 1], strides = [1, 1]} : vector<16x16xi1> to vector<16x1xi1>
    %182 = vector.extract_strided_slice %54 {offsets = [7, 0], sizes = [1, 64], strides = [1, 1]} : vector<16x64xf32> to vector<1x64xf32>
    %cst_51 = arith.constant -3.000000e+38 : f32
    %183 = vector.shape_cast %181 : vector<16x1xi1> to vector<16x1xi1>
    %184 = vector.broadcast %183 : vector<16x1xi1> to vector<16x64xi1>
    %185 = vector.shape_cast %182 : vector<1x64xf32> to vector<1x64xf32>
    %186 = vector.broadcast %185 : vector<1x64xf32> to vector<16x64xf32>
    %187 = vector.broadcast %cst_51 : f32 to vector<16x64xf32>
    %188 = arith.select %184, %186, %187 : vector<16x64xi1>, vector<16x64xf32>
    %189 = arith.maximumf %180, %188 : vector<16x64xf32>
    %190 = vector.extract_strided_slice %116 {offsets = [0, 8], sizes = [16, 1], strides = [1, 1]} : vector<16x16xi1> to vector<16x1xi1>
    %191 = vector.extract_strided_slice %54 {offsets = [8, 0], sizes = [1, 64], strides = [1, 1]} : vector<16x64xf32> to vector<1x64xf32>
    %cst_52 = arith.constant -3.000000e+38 : f32
    %192 = vector.shape_cast %190 : vector<16x1xi1> to vector<16x1xi1>
    %193 = vector.broadcast %192 : vector<16x1xi1> to vector<16x64xi1>
    %194 = vector.shape_cast %191 : vector<1x64xf32> to vector<1x64xf32>
    %195 = vector.broadcast %194 : vector<1x64xf32> to vector<16x64xf32>
    %196 = vector.broadcast %cst_52 : f32 to vector<16x64xf32>
    %197 = arith.select %193, %195, %196 : vector<16x64xi1>, vector<16x64xf32>
    %198 = arith.maximumf %189, %197 : vector<16x64xf32>
    %199 = vector.extract_strided_slice %116 {offsets = [0, 9], sizes = [16, 1], strides = [1, 1]} : vector<16x16xi1> to vector<16x1xi1>
    %200 = vector.extract_strided_slice %54 {offsets = [9, 0], sizes = [1, 64], strides = [1, 1]} : vector<16x64xf32> to vector<1x64xf32>
    %cst_53 = arith.constant -3.000000e+38 : f32
    %201 = vector.shape_cast %199 : vector<16x1xi1> to vector<16x1xi1>
    %202 = vector.broadcast %201 : vector<16x1xi1> to vector<16x64xi1>
    %203 = vector.shape_cast %200 : vector<1x64xf32> to vector<1x64xf32>
    %204 = vector.broadcast %203 : vector<1x64xf32> to vector<16x64xf32>
    %205 = vector.broadcast %cst_53 : f32 to vector<16x64xf32>
    %206 = arith.select %202, %204, %205 : vector<16x64xi1>, vector<16x64xf32>
    %207 = arith.maximumf %198, %206 : vector<16x64xf32>
    %208 = vector.extract_strided_slice %116 {offsets = [0, 10], sizes = [16, 1], strides = [1, 1]} : vector<16x16xi1> to vector<16x1xi1>
    %209 = vector.extract_strided_slice %54 {offsets = [10, 0], sizes = [1, 64], strides = [1, 1]} : vector<16x64xf32> to vector<1x64xf32>
    %cst_54 = arith.constant -3.000000e+38 : f32
    %210 = vector.shape_cast %208 : vector<16x1xi1> to vector<16x1xi1>
    %211 = vector.broadcast %210 : vector<16x1xi1> to vector<16x64xi1>
    %212 = vector.shape_cast %209 : vector<1x64xf32> to vector<1x64xf32>
    %213 = vector.broadcast %212 : vector<1x64xf32> to vector<16x64xf32>
    %214 = vector.broadcast %cst_54 : f32 to vector<16x64xf32>
    %215 = arith.select %211, %213, %214 : vector<16x64xi1>, vector<16x64xf32>
    %216 = arith.maximumf %207, %215 : vector<16x64xf32>
    %217 = vector.extract_strided_slice %116 {offsets = [0, 11], sizes = [16, 1], strides = [1, 1]} : vector<16x16xi1> to vector<16x1xi1>
    %218 = vector.extract_strided_slice %54 {offsets = [11, 0], sizes = [1, 64], strides = [1, 1]} : vector<16x64xf32> to vector<1x64xf32>
    %cst_55 = arith.constant -3.000000e+38 : f32
    %219 = vector.shape_cast %217 : vector<16x1xi1> to vector<16x1xi1>
    %220 = vector.broadcast %219 : vector<16x1xi1> to vector<16x64xi1>
    %221 = vector.shape_cast %218 : vector<1x64xf32> to vector<1x64xf32>
    %222 = vector.broadcast %221 : vector<1x64xf32> to vector<16x64xf32>
    %223 = vector.broadcast %cst_55 : f32 to vector<16x64xf32>
    %224 = arith.select %220, %222, %223 : vector<16x64xi1>, vector<16x64xf32>
    %225 = arith.maximumf %216, %224 : vector<16x64xf32>
    %226 = vector.extract_strided_slice %116 {offsets = [0, 12], sizes = [16, 1], strides = [1, 1]} : vector<16x16xi1> to vector<16x1xi1>
    %227 = vector.extract_strided_slice %54 {offsets = [12, 0], sizes = [1, 64], strides = [1, 1]} : vector<16x64xf32> to vector<1x64xf32>
    %cst_56 = arith.constant -3.000000e+38 : f32
    %228 = vector.shape_cast %226 : vector<16x1xi1> to vector<16x1xi1>
    %229 = vector.broadcast %228 : vector<16x1xi1> to vector<16x64xi1>
    %230 = vector.shape_cast %227 : vector<1x64xf32> to vector<1x64xf32>
    %231 = vector.broadcast %230 : vector<1x64xf32> to vector<16x64xf32>
    %232 = vector.broadcast %cst_56 : f32 to vector<16x64xf32>
    %233 = arith.select %229, %231, %232 : vector<16x64xi1>, vector<16x64xf32>
    %234 = arith.maximumf %225, %233 : vector<16x64xf32>
    %235 = vector.extract_strided_slice %116 {offsets = [0, 13], sizes = [16, 1], strides = [1, 1]} : vector<16x16xi1> to vector<16x1xi1>
    %236 = vector.extract_strided_slice %54 {offsets = [13, 0], sizes = [1, 64], strides = [1, 1]} : vector<16x64xf32> to vector<1x64xf32>
    %cst_57 = arith.constant -3.000000e+38 : f32
    %237 = vector.shape_cast %235 : vector<16x1xi1> to vector<16x1xi1>
    %238 = vector.broadcast %237 : vector<16x1xi1> to vector<16x64xi1>
    %239 = vector.shape_cast %236 : vector<1x64xf32> to vector<1x64xf32>
    %240 = vector.broadcast %239 : vector<1x64xf32> to vector<16x64xf32>
    %241 = vector.broadcast %cst_57 : f32 to vector<16x64xf32>
    %242 = arith.select %238, %240, %241 : vector<16x64xi1>, vector<16x64xf32>
    %243 = arith.maximumf %234, %242 : vector<16x64xf32>
    %244 = vector.extract_strided_slice %116 {offsets = [0, 14], sizes = [16, 1], strides = [1, 1]} : vector<16x16xi1> to vector<16x1xi1>
    %245 = vector.extract_strided_slice %54 {offsets = [14, 0], sizes = [1, 64], strides = [1, 1]} : vector<16x64xf32> to vector<1x64xf32>
    %cst_58 = arith.constant -3.000000e+38 : f32
    %246 = vector.shape_cast %244 : vector<16x1xi1> to vector<16x1xi1>
    %247 = vector.broadcast %246 : vector<16x1xi1> to vector<16x64xi1>
    %248 = vector.shape_cast %245 : vector<1x64xf32> to vector<1x64xf32>
    %249 = vector.broadcast %248 : vector<1x64xf32> to vector<16x64xf32>
    %250 = vector.broadcast %cst_58 : f32 to vector<16x64xf32>
    %251 = arith.select %247, %249, %250 : vector<16x64xi1>, vector<16x64xf32>
    %252 = arith.maximumf %243, %251 : vector<16x64xf32>
    %253 = vector.extract_strided_slice %116 {offsets = [0, 15], sizes = [16, 1], strides = [1, 1]} : vector<16x16xi1> to vector<16x1xi1>
    %254 = vector.extract_strided_slice %54 {offsets = [15, 0], sizes = [1, 64], strides = [1, 1]} : vector<16x64xf32> to vector<1x64xf32>
    %cst_59 = arith.constant -3.000000e+38 : f32
    %255 = vector.shape_cast %253 : vector<16x1xi1> to vector<16x1xi1>
    %256 = vector.broadcast %255 : vector<16x1xi1> to vector<16x64xi1>
    %257 = vector.shape_cast %254 : vector<1x64xf32> to vector<1x64xf32>
    %258 = vector.broadcast %257 : vector<1x64xf32> to vector<16x64xf32>
    %259 = vector.broadcast %cst_59 : f32 to vector<16x64xf32>
    %260 = arith.select %256, %258, %259 : vector<16x64xi1>, vector<16x64xf32>
    %261 = arith.maximumf %252, %260 : vector<16x64xf32>
    %262 = arith.subf %261, %54 : vector<16x64xf32>
    %263 = arith.truncf %54 : vector<16x64xf32> to vector<16x64xbf16>
    %c0_60 = arith.constant 0 : index
    %c0_61 = arith.constant 0 : index
    %264 = vector.load %arg6[%c0_60, %c0_61] : memref<64x64xbf16, #tpu.memory_space<vmem>>, vector<64x64xbf16>
    %cst_62 = arith.constant dense<0.000000e+00> : vector<16x64xf32>
    %265 = tpu.matmul %263, %264, %cst_62 {dimension_numbers = #tpu.dot_dimension_numbers<[1], [0], [0], [1], [0, 0, 1, 1], [], []>} : vector<16x64xbf16>, vector<64x64xbf16>, vector<16x64xf32> -> vector<16x64xf32>
    %266 = arith.truncf %262 : vector<16x64xf32> to vector<16x64xbf16>
    %c0_63 = arith.constant 0 : index
    %c0_64 = arith.constant 0 : index
    %267 = vector.load %arg7[%c0_63, %c0_64] : memref<64x64xbf16, #tpu.memory_space<vmem>>, vector<64x64xbf16>
    %cst_65 = arith.constant dense<0.000000e+00> : vector<16x64xf32>
    %268 = tpu.matmul %266, %267, %cst_65 {dimension_numbers = #tpu.dot_dimension_numbers<[1], [0], [0], [1], [0, 0, 1, 1], [], []>} : vector<16x64xbf16>, vector<64x64xbf16>, vector<16x64xf32> -> vector<16x64xf32>
    %269 = arith.addf %265, %268 : vector<16x64xf32>
    %c0_66 = arith.constant 0 : index
    %c0_67 = arith.constant 0 : index
    %270 = vector.load %arg8[%c0_66, %c0_67] : memref<1x64xf32, #tpu.memory_space<vmem>>, vector<1x64xf32>
    %271 = vector.broadcast %270 : vector<1x64xf32> to vector<16x64xf32>
    %272 = arith.addf %269, %271 : vector<16x64xf32>
    %cst_68 = arith.constant 5.000000e-01 : f32
    %273 = vector.broadcast %cst_68 : f32 to vector<16x64xf32>
    %274 = arith.mulf %273, %272 : vector<16x64xf32>
    %cst_69 = arith.constant 0.707106769 : f32
    %275 = vector.broadcast %cst_69 : f32 to vector<16x64xf32>
    %276 = arith.mulf %272, %275 : vector<16x64xf32>
    %277 = math.absf %276 : vector<16x64xf32>
    %cst_70 = arith.constant 0.327591091 : f32
    %278 = vector.broadcast %cst_70 : f32 to vector<16x64xf32>
    %279 = arith.mulf %278, %277 : vector<16x64xf32>
    %cst_71 = arith.constant 1.000000e+00 : f32
    %280 = vector.broadcast %cst_71 : f32 to vector<16x64xf32>
    %281 = arith.addf %280, %279 : vector<16x64xf32>
    %282 = tpu.reciprocal %281 {approx = true} : vector<16x64xf32> -> vector<16x64xf32>
    %cst_72 = arith.constant 1.06140542 : f32
    %283 = vector.broadcast %cst_72 : f32 to vector<16x64xf32>
    %284 = arith.mulf %283, %282 : vector<16x64xf32>
    %cst_73 = arith.constant -1.45315206 : f32
    %285 = vector.broadcast %cst_73 : f32 to vector<16x64xf32>
    %286 = arith.addf %284, %285 : vector<16x64xf32>
    %287 = arith.mulf %286, %282 : vector<16x64xf32>
    %cst_74 = arith.constant 1.42141378 : f32
    %288 = vector.broadcast %cst_74 : f32 to vector<16x64xf32>
    %289 = arith.addf %287, %288 : vector<16x64xf32>
    %290 = arith.mulf %289, %282 : vector<16x64xf32>
    %cst_75 = arith.constant -0.284496725 : f32
    %291 = vector.broadcast %cst_75 : f32 to vector<16x64xf32>
    %292 = arith.addf %290, %291 : vector<16x64xf32>
    %293 = arith.mulf %292, %282 : vector<16x64xf32>
    %cst_76 = arith.constant 0.254829586 : f32
    %294 = vector.broadcast %cst_76 : f32 to vector<16x64xf32>
    %295 = arith.addf %293, %294 : vector<16x64xf32>
    %296 = arith.mulf %295, %282 : vector<16x64xf32>
    %cst_77 = arith.constant 0.000000e+00 : f32
    %297 = vector.broadcast %cst_77 : f32 to vector<16x64xf32>
    %298 = arith.subf %297, %277 : vector<16x64xf32>
    %299 = arith.mulf %298, %277 : vector<16x64xf32>
    %300 = math.exp %299 : vector<16x64xf32>
    %301 = arith.mulf %296, %300 : vector<16x64xf32>
    %cst_78 = arith.constant 1.000000e+00 : f32
    %302 = vector.broadcast %cst_78 : f32 to vector<16x64xf32>
    %303 = arith.subf %302, %301 : vector<16x64xf32>
    %cst_79 = arith.constant 0.000000e+00 : f32
    %304 = vector.broadcast %cst_79 : f32 to vector<16x64xf32>
    %305 = arith.cmpf oge, %276, %304 : vector<16x64xf32>
    %cst_80 = arith.constant 0.000000e+00 : f32
    %306 = vector.broadcast %cst_80 : f32 to vector<16x64xf32>
    %307 = arith.subf %306, %303 : vector<16x64xf32>
    %308 = arith.select %305, %303, %307 : vector<16x64xi1>, vector<16x64xf32>
    %cst_81 = arith.constant 1.000000e+00 : f32
    %309 = vector.broadcast %cst_81 : f32 to vector<16x64xf32>
    %310 = arith.addf %309, %308 : vector<16x64xf32>
    %311 = arith.mulf %274, %310 : vector<16x64xf32>
    %312 = arith.truncf %311 : vector<16x64xf32> to vector<16x64xbf16>
    %c0_82 = arith.constant 0 : index
    %c0_83 = arith.constant 0 : index
    %313 = vector.load %arg9[%c0_82, %c0_83] : memref<64x64xbf16, #tpu.memory_space<vmem>>, vector<64x64xbf16>
    %cst_84 = arith.constant dense<0.000000e+00> : vector<16x64xf32>
    %314 = tpu.matmul %312, %313, %cst_84 {dimension_numbers = #tpu.dot_dimension_numbers<[1], [0], [0], [1], [0, 0, 1, 1], [], []>} : vector<16x64xbf16>, vector<64x64xbf16>, vector<16x64xf32> -> vector<16x64xf32>
    %c0_85 = arith.constant 0 : index
    %c0_86 = arith.constant 0 : index
    %315 = vector.load %arg10[%c0_85, %c0_86] : memref<1x64xf32, #tpu.memory_space<vmem>>, vector<1x64xf32>
    %316 = vector.broadcast %315 : vector<1x64xf32> to vector<16x64xf32>
    %317 = arith.addf %314, %316 : vector<16x64xf32>
    %cst_87 = arith.constant 5.000000e-01 : f32
    %318 = vector.broadcast %cst_87 : f32 to vector<16x64xf32>
    %319 = arith.mulf %318, %317 : vector<16x64xf32>
    %cst_88 = arith.constant 0.707106769 : f32
    %320 = vector.broadcast %cst_88 : f32 to vector<16x64xf32>
    %321 = arith.mulf %317, %320 : vector<16x64xf32>
    %322 = math.absf %321 : vector<16x64xf32>
    %cst_89 = arith.constant 0.327591091 : f32
    %323 = vector.broadcast %cst_89 : f32 to vector<16x64xf32>
    %324 = arith.mulf %323, %322 : vector<16x64xf32>
    %cst_90 = arith.constant 1.000000e+00 : f32
    %325 = vector.broadcast %cst_90 : f32 to vector<16x64xf32>
    %326 = arith.addf %325, %324 : vector<16x64xf32>
    %327 = tpu.reciprocal %326 {approx = true} : vector<16x64xf32> -> vector<16x64xf32>
    %cst_91 = arith.constant 1.06140542 : f32
    %328 = vector.broadcast %cst_91 : f32 to vector<16x64xf32>
    %329 = arith.mulf %328, %327 : vector<16x64xf32>
    %cst_92 = arith.constant -1.45315206 : f32
    %330 = vector.broadcast %cst_92 : f32 to vector<16x64xf32>
    %331 = arith.addf %329, %330 : vector<16x64xf32>
    %332 = arith.mulf %331, %327 : vector<16x64xf32>
    %cst_93 = arith.constant 1.42141378 : f32
    %333 = vector.broadcast %cst_93 : f32 to vector<16x64xf32>
    %334 = arith.addf %332, %333 : vector<16x64xf32>
    %335 = arith.mulf %334, %327 : vector<16x64xf32>
    %cst_94 = arith.constant -0.284496725 : f32
    %336 = vector.broadcast %cst_94 : f32 to vector<16x64xf32>
    %337 = arith.addf %335, %336 : vector<16x64xf32>
    %338 = arith.mulf %337, %327 : vector<16x64xf32>
    %cst_95 = arith.constant 0.254829586 : f32
    %339 = vector.broadcast %cst_95 : f32 to vector<16x64xf32>
    %340 = arith.addf %338, %339 : vector<16x64xf32>
    %341 = arith.mulf %340, %327 : vector<16x64xf32>
    %cst_96 = arith.constant 0.000000e+00 : f32
    %342 = vector.broadcast %cst_96 : f32 to vector<16x64xf32>
    %343 = arith.subf %342, %322 : vector<16x64xf32>
    %344 = arith.mulf %343, %322 : vector<16x64xf32>
    %345 = math.exp %344 : vector<16x64xf32>
    %346 = arith.mulf %341, %345 : vector<16x64xf32>
    %cst_97 = arith.constant 1.000000e+00 : f32
    %347 = vector.broadcast %cst_97 : f32 to vector<16x64xf32>
    %348 = arith.subf %347, %346 : vector<16x64xf32>
    %cst_98 = arith.constant 0.000000e+00 : f32
    %349 = vector.broadcast %cst_98 : f32 to vector<16x64xf32>
    %350 = arith.cmpf oge, %321, %349 : vector<16x64xf32>
    %cst_99 = arith.constant 0.000000e+00 : f32
    %351 = vector.broadcast %cst_99 : f32 to vector<16x64xf32>
    %352 = arith.subf %351, %348 : vector<16x64xf32>
    %353 = arith.select %350, %348, %352 : vector<16x64xi1>, vector<16x64xf32>
    %cst_100 = arith.constant 1.000000e+00 : f32
    %354 = vector.broadcast %cst_100 : f32 to vector<16x64xf32>
    %355 = arith.addf %354, %353 : vector<16x64xf32>
    %356 = arith.mulf %319, %355 : vector<16x64xf32>
    %357 = arith.truncf %356 : vector<16x64xf32> to vector<16x64xbf16>
    %c0_101 = arith.constant 0 : index
    %c0_102 = arith.constant 0 : index
    %358 = vector.load %arg11[%c0_101, %c0_102] : memref<64x64xbf16, #tpu.memory_space<vmem>>, vector<64x64xbf16>
    %cst_103 = arith.constant dense<0.000000e+00> : vector<16x64xf32>
    %359 = tpu.matmul %357, %358, %cst_103 {dimension_numbers = #tpu.dot_dimension_numbers<[1], [0], [0], [1], [0, 0, 1, 1], [], []>} : vector<16x64xbf16>, vector<64x64xbf16>, vector<16x64xf32> -> vector<16x64xf32>
    %c0_104 = arith.constant 0 : index
    %c0_105 = arith.constant 0 : index
    %360 = vector.load %arg12[%c0_104, %c0_105] : memref<1x64xf32, #tpu.memory_space<vmem>>, vector<1x64xf32>
    %361 = vector.broadcast %360 : vector<1x64xf32> to vector<16x64xf32>
    %362 = arith.addf %359, %361 : vector<16x64xf32>
    %363 = arith.addf %362, %311 : vector<16x64xf32>
    %364 = arith.addf %363, %1 : vector<16x64xf32>
    %365 = arith.truncf %364 : vector<16x64xf32> to vector<16x64xbf16>
    %c0_106 = arith.constant 0 : index
    %c0_107 = arith.constant 0 : index
    %366 = vector.load %arg13[%c0_106, %c0_107] : memref<64x256xbf16, #tpu.memory_space<vmem>>, vector<64x256xbf16>
    %cst_108 = arith.constant dense<0.000000e+00> : vector<16x256xf32>
    %367 = tpu.matmul %365, %366, %cst_108 {dimension_numbers = #tpu.dot_dimension_numbers<[1], [0], [0], [1], [0, 0, 1, 1], [], []>} : vector<16x64xbf16>, vector<64x256xbf16>, vector<16x256xf32> -> vector<16x256xf32>
    %c0_109 = arith.constant 0 : index
    %c0_110 = arith.constant 0 : index
    %368 = vector.load %arg14[%c0_109, %c0_110] : memref<1x256xf32, #tpu.memory_space<vmem>>, vector<1x256xf32>
    %369 = vector.broadcast %368 : vector<1x256xf32> to vector<16x256xf32>
    %370 = arith.addf %367, %369 : vector<16x256xf32>
    %cst_111 = arith.constant 5.000000e-01 : f32
    %371 = vector.broadcast %cst_111 : f32 to vector<16x256xf32>
    %372 = arith.mulf %371, %370 : vector<16x256xf32>
    %cst_112 = arith.constant 0.707106769 : f32
    %373 = vector.broadcast %cst_112 : f32 to vector<16x256xf32>
    %374 = arith.mulf %370, %373 : vector<16x256xf32>
    %375 = math.absf %374 : vector<16x256xf32>
    %cst_113 = arith.constant 0.327591091 : f32
    %376 = vector.broadcast %cst_113 : f32 to vector<16x256xf32>
    %377 = arith.mulf %376, %375 : vector<16x256xf32>
    %cst_114 = arith.constant 1.000000e+00 : f32
    %378 = vector.broadcast %cst_114 : f32 to vector<16x256xf32>
    %379 = arith.addf %378, %377 : vector<16x256xf32>
    %380 = tpu.reciprocal %379 {approx = true} : vector<16x256xf32> -> vector<16x256xf32>
    %cst_115 = arith.constant 1.06140542 : f32
    %381 = vector.broadcast %cst_115 : f32 to vector<16x256xf32>
    %382 = arith.mulf %381, %380 : vector<16x256xf32>
    %cst_116 = arith.constant -1.45315206 : f32
    %383 = vector.broadcast %cst_116 : f32 to vector<16x256xf32>
    %384 = arith.addf %382, %383 : vector<16x256xf32>
    %385 = arith.mulf %384, %380 : vector<16x256xf32>
    %cst_117 = arith.constant 1.42141378 : f32
    %386 = vector.broadcast %cst_117 : f32 to vector<16x256xf32>
    %387 = arith.addf %385, %386 : vector<16x256xf32>
    %388 = arith.mulf %387, %380 : vector<16x256xf32>
    %cst_118 = arith.constant -0.284496725 : f32
    %389 = vector.broadcast %cst_118 : f32 to vector<16x256xf32>
    %390 = arith.addf %388, %389 : vector<16x256xf32>
    %391 = arith.mulf %390, %380 : vector<16x256xf32>
    %cst_119 = arith.constant 0.254829586 : f32
    %392 = vector.broadcast %cst_119 : f32 to vector<16x256xf32>
    %393 = arith.addf %391, %392 : vector<16x256xf32>
    %394 = arith.mulf %393, %380 : vector<16x256xf32>
    %cst_120 = arith.constant 0.000000e+00 : f32
    %395 = vector.broadcast %cst_120 : f32 to vector<16x256xf32>
    %396 = arith.subf %395, %375 : vector<16x256xf32>
    %397 = arith.mulf %396, %375 : vector<16x256xf32>
    %398 = math.exp %397 : vector<16x256xf32>
    %399 = arith.mulf %394, %398 : vector<16x256xf32>
    %cst_121 = arith.constant 1.000000e+00 : f32
    %400 = vector.broadcast %cst_121 : f32 to vector<16x256xf32>
    %401 = arith.subf %400, %399 : vector<16x256xf32>
    %cst_122 = arith.constant 0.000000e+00 : f32
    %402 = vector.broadcast %cst_122 : f32 to vector<16x256xf32>
    %403 = arith.cmpf oge, %374, %402 : vector<16x256xf32>
    %cst_123 = arith.constant 0.000000e+00 : f32
    %404 = vector.broadcast %cst_123 : f32 to vector<16x256xf32>
    %405 = arith.subf %404, %401 : vector<16x256xf32>
    %406 = arith.select %403, %401, %405 : vector<16x256xi1>, vector<16x256xf32>
    %cst_124 = arith.constant 1.000000e+00 : f32
    %407 = vector.broadcast %cst_124 : f32 to vector<16x256xf32>
    %408 = arith.addf %407, %406 : vector<16x256xf32>
    %409 = arith.mulf %372, %408 : vector<16x256xf32>
    %410 = arith.truncf %409 : vector<16x256xf32> to vector<16x256xbf16>
    %c0_125 = arith.constant 0 : index
    %c0_126 = arith.constant 0 : index
    %411 = vector.load %arg15[%c0_125, %c0_126] : memref<256x64xbf16, #tpu.memory_space<vmem>>, vector<256x64xbf16>
    %cst_127 = arith.constant dense<0.000000e+00> : vector<16x64xf32>
    %412 = tpu.matmul %410, %411, %cst_127 {dimension_numbers = #tpu.dot_dimension_numbers<[1], [0], [0], [1], [0, 0, 1, 1], [], []>} : vector<16x256xbf16>, vector<256x64xbf16>, vector<16x64xf32> -> vector<16x64xf32>
    %c0_128 = arith.constant 0 : index
    %c0_129 = arith.constant 0 : index
    %413 = vector.load %arg16[%c0_128, %c0_129] : memref<1x64xf32, #tpu.memory_space<vmem>>, vector<1x64xf32>
    %414 = vector.broadcast %413 : vector<1x64xf32> to vector<16x64xf32>
    %415 = arith.addf %412, %414 : vector<16x64xf32>
    %416 = arith.addf %415, %364 : vector<16x64xf32>
    %cst_130 = arith.constant 5.000000e-01 : f32
    %417 = vector.broadcast %cst_130 : f32 to vector<16x64xf32>
    %418 = arith.mulf %417, %416 : vector<16x64xf32>
    %cst_131 = arith.constant 0.707106769 : f32
    %419 = vector.broadcast %cst_131 : f32 to vector<16x64xf32>
    %420 = arith.mulf %416, %419 : vector<16x64xf32>
    %421 = math.absf %420 : vector<16x64xf32>
    %cst_132 = arith.constant 0.327591091 : f32
    %422 = vector.broadcast %cst_132 : f32 to vector<16x64xf32>
    %423 = arith.mulf %422, %421 : vector<16x64xf32>
    %cst_133 = arith.constant 1.000000e+00 : f32
    %424 = vector.broadcast %cst_133 : f32 to vector<16x64xf32>
    %425 = arith.addf %424, %423 : vector<16x64xf32>
    %426 = tpu.reciprocal %425 {approx = true} : vector<16x64xf32> -> vector<16x64xf32>
    %cst_134 = arith.constant 1.06140542 : f32
    %427 = vector.broadcast %cst_134 : f32 to vector<16x64xf32>
    %428 = arith.mulf %427, %426 : vector<16x64xf32>
    %cst_135 = arith.constant -1.45315206 : f32
    %429 = vector.broadcast %cst_135 : f32 to vector<16x64xf32>
    %430 = arith.addf %428, %429 : vector<16x64xf32>
    %431 = arith.mulf %430, %426 : vector<16x64xf32>
    %cst_136 = arith.constant 1.42141378 : f32
    %432 = vector.broadcast %cst_136 : f32 to vector<16x64xf32>
    %433 = arith.addf %431, %432 : vector<16x64xf32>
    %434 = arith.mulf %433, %426 : vector<16x64xf32>
    %cst_137 = arith.constant -0.284496725 : f32
    %435 = vector.broadcast %cst_137 : f32 to vector<16x64xf32>
    %436 = arith.addf %434, %435 : vector<16x64xf32>
    %437 = arith.mulf %436, %426 : vector<16x64xf32>
    %cst_138 = arith.constant 0.254829586 : f32
    %438 = vector.broadcast %cst_138 : f32 to vector<16x64xf32>
    %439 = arith.addf %437, %438 : vector<16x64xf32>
    %440 = arith.mulf %439, %426 : vector<16x64xf32>
    %cst_139 = arith.constant 0.000000e+00 : f32
    %441 = vector.broadcast %cst_139 : f32 to vector<16x64xf32>
    %442 = arith.subf %441, %421 : vector<16x64xf32>
    %443 = arith.mulf %442, %421 : vector<16x64xf32>
    %444 = math.exp %443 : vector<16x64xf32>
    %445 = arith.mulf %440, %444 : vector<16x64xf32>
    %cst_140 = arith.constant 1.000000e+00 : f32
    %446 = vector.broadcast %cst_140 : f32 to vector<16x64xf32>
    %447 = arith.subf %446, %445 : vector<16x64xf32>
    %cst_141 = arith.constant 0.000000e+00 : f32
    %448 = vector.broadcast %cst_141 : f32 to vector<16x64xf32>
    %449 = arith.cmpf oge, %420, %448 : vector<16x64xf32>
    %cst_142 = arith.constant 0.000000e+00 : f32
    %450 = vector.broadcast %cst_142 : f32 to vector<16x64xf32>
    %451 = arith.subf %450, %447 : vector<16x64xf32>
    %452 = arith.select %449, %447, %451 : vector<16x64xi1>, vector<16x64xf32>
    %cst_143 = arith.constant 1.000000e+00 : f32
    %453 = vector.broadcast %cst_143 : f32 to vector<16x64xf32>
    %454 = arith.addf %453, %452 : vector<16x64xf32>
    %455 = arith.mulf %418, %454 : vector<16x64xf32>
    %456 = arith.truncf %455 : vector<16x64xf32> to vector<16x64xbf16>
    %c0_144 = arith.constant 0 : index
    %c0_145 = arith.constant 0 : index
    %457 = vector.load %arg17[%c0_144, %c0_145] : memref<64x256xbf16, #tpu.memory_space<vmem>>, vector<64x256xbf16>
    %cst_146 = arith.constant dense<0.000000e+00> : vector<16x256xf32>
    %458 = tpu.matmul %456, %457, %cst_146 {dimension_numbers = #tpu.dot_dimension_numbers<[1], [0], [0], [1], [0, 0, 1, 1], [], []>} : vector<16x64xbf16>, vector<64x256xbf16>, vector<16x256xf32> -> vector<16x256xf32>
    %c0_147 = arith.constant 0 : index
    %c0_148 = arith.constant 0 : index
    %459 = vector.load %arg18[%c0_147, %c0_148] : memref<1x256xf32, #tpu.memory_space<vmem>>, vector<1x256xf32>
    %460 = vector.broadcast %459 : vector<1x256xf32> to vector<16x256xf32>
    %461 = arith.addf %458, %460 : vector<16x256xf32>
    %cst_149 = arith.constant 5.000000e-01 : f32
    %462 = vector.broadcast %cst_149 : f32 to vector<16x256xf32>
    %463 = arith.mulf %462, %461 : vector<16x256xf32>
    %cst_150 = arith.constant 0.707106769 : f32
    %464 = vector.broadcast %cst_150 : f32 to vector<16x256xf32>
    %465 = arith.mulf %461, %464 : vector<16x256xf32>
    %466 = math.absf %465 : vector<16x256xf32>
    %cst_151 = arith.constant 0.327591091 : f32
    %467 = vector.broadcast %cst_151 : f32 to vector<16x256xf32>
    %468 = arith.mulf %467, %466 : vector<16x256xf32>
    %cst_152 = arith.constant 1.000000e+00 : f32
    %469 = vector.broadcast %cst_152 : f32 to vector<16x256xf32>
    %470 = arith.addf %469, %468 : vector<16x256xf32>
    %471 = tpu.reciprocal %470 {approx = true} : vector<16x256xf32> -> vector<16x256xf32>
    %cst_153 = arith.constant 1.06140542 : f32
    %472 = vector.broadcast %cst_153 : f32 to vector<16x256xf32>
    %473 = arith.mulf %472, %471 : vector<16x256xf32>
    %cst_154 = arith.constant -1.45315206 : f32
    %474 = vector.broadcast %cst_154 : f32 to vector<16x256xf32>
    %475 = arith.addf %473, %474 : vector<16x256xf32>
    %476 = arith.mulf %475, %471 : vector<16x256xf32>
    %cst_155 = arith.constant 1.42141378 : f32
    %477 = vector.broadcast %cst_155 : f32 to vector<16x256xf32>
    %478 = arith.addf %476, %477 : vector<16x256xf32>
    %479 = arith.mulf %478, %471 : vector<16x256xf32>
    %cst_156 = arith.constant -0.284496725 : f32
    %480 = vector.broadcast %cst_156 : f32 to vector<16x256xf32>
    %481 = arith.addf %479, %480 : vector<16x256xf32>
    %482 = arith.mulf %481, %471 : vector<16x256xf32>
    %cst_157 = arith.constant 0.254829586 : f32
    %483 = vector.broadcast %cst_157 : f32 to vector<16x256xf32>
    %484 = arith.addf %482, %483 : vector<16x256xf32>
    %485 = arith.mulf %484, %471 : vector<16x256xf32>
    %cst_158 = arith.constant 0.000000e+00 : f32
    %486 = vector.broadcast %cst_158 : f32 to vector<16x256xf32>
    %487 = arith.subf %486, %466 : vector<16x256xf32>
    %488 = arith.mulf %487, %466 : vector<16x256xf32>
    %489 = math.exp %488 : vector<16x256xf32>
    %490 = arith.mulf %485, %489 : vector<16x256xf32>
    %cst_159 = arith.constant 1.000000e+00 : f32
    %491 = vector.broadcast %cst_159 : f32 to vector<16x256xf32>
    %492 = arith.subf %491, %490 : vector<16x256xf32>
    %cst_160 = arith.constant 0.000000e+00 : f32
    %493 = vector.broadcast %cst_160 : f32 to vector<16x256xf32>
    %494 = arith.cmpf oge, %465, %493 : vector<16x256xf32>
    %cst_161 = arith.constant 0.000000e+00 : f32
    %495 = vector.broadcast %cst_161 : f32 to vector<16x256xf32>
    %496 = arith.subf %495, %492 : vector<16x256xf32>
    %497 = arith.select %494, %492, %496 : vector<16x256xi1>, vector<16x256xf32>
    %cst_162 = arith.constant 1.000000e+00 : f32
    %498 = vector.broadcast %cst_162 : f32 to vector<16x256xf32>
    %499 = arith.addf %498, %497 : vector<16x256xf32>
    %500 = arith.mulf %463, %499 : vector<16x256xf32>
    %501 = arith.truncf %500 : vector<16x256xf32> to vector<16x256xbf16>
    %c0_163 = arith.constant 0 : index
    %c0_164 = arith.constant 0 : index
    %502 = vector.load %arg19[%c0_163, %c0_164] : memref<256x64xbf16, #tpu.memory_space<vmem>>, vector<256x64xbf16>
    %cst_165 = arith.constant dense<0.000000e+00> : vector<16x64xf32>
    %503 = tpu.matmul %501, %502, %cst_165 {dimension_numbers = #tpu.dot_dimension_numbers<[1], [0], [0], [1], [0, 0, 1, 1], [], []>} : vector<16x256xbf16>, vector<256x64xbf16>, vector<16x64xf32> -> vector<16x64xf32>
    %c0_166 = arith.constant 0 : index
    %c0_167 = arith.constant 0 : index
    %504 = vector.load %arg20[%c0_166, %c0_167] : memref<1x64xf32, #tpu.memory_space<vmem>>, vector<1x64xf32>
    %505 = vector.broadcast %504 : vector<1x64xf32> to vector<16x64xf32>
    %506 = arith.addf %503, %505 : vector<16x64xf32>
    %507 = arith.addf %506, %455 : vector<16x64xf32>
    %508 = arith.addf %507, %364 : vector<16x64xf32>
    %c0_168 = arith.constant 0 : index
    %c0_169 = arith.constant 0 : index
    %c0_170 = arith.constant 0 : index
    %509 = vector.load %arg21[%c0_168, %c0_169, %c0_170] : memref<1x16x64xf32, #tpu.memory_space<vmem>>, vector<1x16x64xf32>
    %510 = vector.shape_cast %509 : vector<1x16x64xf32> to vector<16x64xf32>
    %511 = vector.shape_cast %508 : vector<16x64xf32> to vector<1x16x64xf32>
    tpu.vector_store %arg21[%c0_168, %c0_169, %c0_170], %511 {strides = array<i32>} : memref<1x16x64xf32, #tpu.memory_space<vmem>>, vector<1x16x64xf32>,
    return
  }
  func.func @transform_0(%arg0: i32) -> (i32, i32, i32) {
    %c0_i32 = arith.constant 0 : i32
    %c0_i32_0 = arith.constant 0 : i32
    %c0_i32_1 = arith.constant 0 : i32
    return %arg0, %c0_i32, %c0_i32_0 : i32, i32, i32
  }
  func.func @transform_1(%arg0: i32) -> (i32, i32) {
    %c0_i32 = arith.constant 0 : i32
    %c0_i32_0 = arith.constant 0 : i32
    %c0_i32_1 = arith.constant 0 : i32
    return %c0_i32, %c0_i32_0 : i32, i32
  }
  func.func @transform_2(%arg0: i32) -> (i32, i32) {
    %c0_i32 = arith.constant 0 : i32
    %c0_i32_0 = arith.constant 0 : i32
    %c0_i32_1 = arith.constant 0 : i32
    return %c0_i32, %c0_i32_0 : i32, i32
  }
  func.func @transform_3(%arg0: i32) -> (i32, i32) {
    %c0_i32 = arith.constant 0 : i32
    %c0_i32_0 = arith.constant 0 : i32
    %c0_i32_1 = arith.constant 0 : i32
    return %c0_i32, %c0_i32_0 : i32, i32
  }
  func.func @transform_4(%arg0: i32) -> (i32, i32) {
    %c0_i32 = arith.constant 0 : i32
    %c0_i32_0 = arith.constant 0 : i32
    %c0_i32_1 = arith.constant 0 : i32
    return %c0_i32, %c0_i32_0 : i32, i32
  }
  func.func @transform_5(%arg0: i32) -> (i32, i32) {
    %c0_i32 = arith.constant 0 : i32
    %c0_i32_0 = arith.constant 0 : i32
    %c0_i32_1 = arith.constant 0 : i32
    return %c0_i32, %c0_i32_0 : i32, i32
  }
  func.func @transform_6(%arg0: i32) -> (i32, i32) {
    %c0_i32 = arith.constant 0 : i32
    %c0_i32_0 = arith.constant 0 : i32
    %c0_i32_1 = arith.constant 0 : i32
    return %c0_i32, %c0_i32_0 : i32, i32
  }
  func.func @transform_7(%arg0: i32) -> (i32, i32) {
    %c0_i32 = arith.constant 0 : i32
    %c0_i32_0 = arith.constant 0 : i32
    %c0_i32_1 = arith.constant 0 : i32
    return %c0_i32, %c0_i32_0 : i32, i32
  }
  func.func @transform_8(%arg0: i32) -> (i32, i32) {
    %c0_i32 = arith.constant 0 : i32
    %c0_i32_0 = arith.constant 0 : i32
    %c0_i32_1 = arith.constant 0 : i32
    return %c0_i32, %c0_i32_0 : i32, i32
  }
  func.func @transform_9(%arg0: i32) -> (i32, i32) {
    %c0_i32 = arith.constant 0 : i32
    %c0_i32_0 = arith.constant 0 : i32
    %c0_i32_1 = arith.constant 0 : i32
    return %c0_i32, %c0_i32_0 : i32, i32
  }
  func.func @transform_10(%arg0: i32) -> (i32, i32) {
    %c0_i32 = arith.constant 0 : i32
    %c0_i32_0 = arith.constant 0 : i32
    %c0_i32_1 = arith.constant 0 : i32
    return %c0_i32, %c0_i32_0 : i32, i32
  }
  func.func @transform_11(%arg0: i32) -> (i32, i32) {
    %c0_i32 = arith.constant 0 : i32
    %c0_i32_0 = arith.constant 0 : i32
    %c0_i32_1 = arith.constant 0 : i32
    return %c0_i32, %c0_i32_0 : i32, i32
  }
  func.func @transform_12(%arg0: i32) -> (i32, i32) {
    %c0_i32 = arith.constant 0 : i32
    %c0_i32_0 = arith.constant 0 : i32
    %c0_i32_1 = arith.constant 0 : i32
    return %c0_i32, %c0_i32_0 : i32, i32
  }
  func.func @transform_13(%arg0: i32) -> (i32, i32) {
    %c0_i32 = arith.constant 0 : i32
    %c0_i32_0 = arith.constant 0 : i32
    %c0_i32_1 = arith.constant 0 : i32
    return %c0_i32, %c0_i32_0 : i32, i32
  }
  func.func @transform_14(%arg0: i32) -> (i32, i32) {
    %c0_i32 = arith.constant 0 : i32
    %c0_i32_0 = arith.constant 0 : i32
    %c0_i32_1 = arith.constant 0 : i32
    return %c0_i32, %c0_i32_0 : i32, i32
  }
  func.func @transform_15(%arg0: i32) -> (i32, i32) {
    %c0_i32 = arith.constant 0 : i32
    %c0_i32_0 = arith.constant 0 : i32
    %c0_i32_1 = arith.constant 0 : i32
    return %c0_i32, %c0_i32_0 : i32, i32
  }
  func.func @transform_16(%arg0: i32) -> (i32, i32) {
    %c0_i32 = arith.constant 0 : i32
    %c0_i32_0 = arith.constant 0 : i32
    %c0_i32_1 = arith.constant 0 : i32
    return %c0_i32, %c0_i32_0 : i32, i32
  }
  func.func @transform_17(%arg0: i32) -> (i32, i32) {
    %c0_i32 = arith.constant 0 : i32
    %c0_i32_0 = arith.constant 0 : i32
    %c0_i32_1 = arith.constant 0 : i32
    return %c0_i32, %c0_i32_0 : i32, i32
  }
  func.func @transform_18(%arg0: i32) -> (i32, i32) {
    %c0_i32 = arith.constant 0 : i32
    %c0_i32_0 = arith.constant 0 : i32
    %c0_i32_1 = arith.constant 0 : i32
    return %c0_i32, %c0_i32_0 : i32, i32
  }
  func.func @transform_19(%arg0: i32) -> (i32, i32) {
    %c0_i32 = arith.constant 0 : i32
    %c0_i32_0 = arith.constant 0 : i32
    %c0_i32_1 = arith.constant 0 : i32
    return %c0_i32, %c0_i32_0 : i32, i32
  }
  func.func @transform_20(%arg0: i32) -> (i32, i32, i32) {
    %c0_i32 = arith.constant 0 : i32
    %c0_i32_0 = arith.constant 0 : i32
    %c0_i32_1 = arith.constant 0 : i32
    return %arg0, %c0_i32, %c0_i32_0 : i32, i32, i32
  }
}

module attributes {stable_mosaic.version = 11 : i64} {
  func.func @_final_kernel(%arg0: i32, %arg1: memref<1x1x1024xf32, #tpu.memory_space<vmem>>, %arg2: memref<1x1x1024xf32, #tpu.memory_space<vmem>>, %arg3: memref<2x1xf32, #tpu.memory_space<smem>>, %arg4: memref<1xf32, #tpu.memory_space<smem>>, %arg5: memref<1x1x1024xf32, #tpu.memory_space<vmem>>) attributes {dimension_semantics = [#tpu.dimension_semantics<parallel>], iteration_bounds = array<i64: 2>, scalar_prefetch = 0 : i64, scratch_operands = 0 : i64, tpu.core_type = #tpu.core_type<tc>, window_params = [{transform_indices = @transform_0, window_bounds = array<i64: 1, 1, 1024>}, {transform_indices = @transform_1, window_bounds = array<i64: 1, 1, 1024>}, {transform_indices = @transform_2, window_bounds = array<i64: 2, 1>}, {transform_indices = @transform_3, window_bounds = array<i64: 1>}, {transform_indices = @transform_4, window_bounds = array<i64: 1, 1, 1024>}]} {
    %c0 = arith.constant 0 : index
    %c0_0 = arith.constant 0 : index
    %c0_1 = arith.constant 0 : index
    %0 = vector.load %arg1[%c0, %c0_0, %c0_1] : memref<1x1x1024xf32, #tpu.memory_space<vmem>>, vector<1x1x1024xf32>
    %1 = vector.shape_cast %0 : vector<1x1x1024xf32> to vector<1x1024xf32>
    %cst = arith.constant 0.000000e+00 : f32
    %2 = vector.broadcast %cst : f32 to vector<1x1024xf32>
    %3 = arith.subf %2, %1 : vector<1x1024xf32>
    %4 = math.exp %3 : vector<1x1024xf32>
    %cst_2 = arith.constant 1.000000e+00 : f32
    %5 = vector.broadcast %cst_2 : f32 to vector<1x1024xf32>
    %6 = arith.addf %5, %4 : vector<1x1024xf32>
    %cst_3 = arith.constant 1.000000e+00 : f32
    %7 = vector.broadcast %cst_3 : f32 to vector<1x1024xf32>
    %8 = arith.divf %7, %6 : vector<1x1024xf32>
    %c0_4 = arith.constant 0 : index
    %c0_5 = arith.constant 0 : index
    %c0_6 = arith.constant 0 : index
    %9 = vector.load %arg2[%c0_4, %c0_5, %c0_6] : memref<1x1x1024xf32, #tpu.memory_space<vmem>>, vector<1x1x1024xf32>
    %10 = vector.shape_cast %9 : vector<1x1x1024xf32> to vector<1x1024xf32>
    %cst_7 = arith.constant 0.000000e+00 : f32
    %11 = vector.broadcast %cst_7 : f32 to vector<1x1024xf32>
    %c0_8 = arith.constant 0 : index
    %c0_9 = arith.constant 0 : index
    %12 = memref.load %arg3[%c0_8, %c0_9] : memref<2x1xf32, #tpu.memory_space<smem>>
    %13 = vector.broadcast %12 : f32 to vector<1x1024xf32>
    %14 = arith.mulf %13, %8 : vector<1x1024xf32>
    %15 = arith.addf %11, %14 : vector<1x1024xf32>
    %c1 = arith.constant 1 : index
    %c0_10 = arith.constant 0 : index
    %16 = memref.load %arg3[%c1, %c0_10] : memref<2x1xf32, #tpu.memory_space<smem>>
    %17 = vector.broadcast %16 : f32 to vector<1x1024xf32>
    %18 = arith.mulf %17, %10 : vector<1x1024xf32>
    %19 = arith.addf %15, %18 : vector<1x1024xf32>
    %c0_11 = arith.constant 0 : index
    %20 = memref.load %arg4[%c0_11] : memref<1xf32, #tpu.memory_space<smem>>
    %21 = vector.broadcast %20 : f32 to vector<1x1024xf32>
    %22 = arith.addf %19, %21 : vector<1x1024xf32>
    %cst_12 = arith.constant 0.000000e+00 : f32
    %23 = vector.broadcast %cst_12 : f32 to vector<1x1024xf32>
    %24 = arith.subf %23, %22 : vector<1x1024xf32>
    %25 = math.exp %24 : vector<1x1024xf32>
    %cst_13 = arith.constant 1.000000e+00 : f32
    %26 = vector.broadcast %cst_13 : f32 to vector<1x1024xf32>
    %27 = arith.addf %26, %25 : vector<1x1024xf32>
    %cst_14 = arith.constant 1.000000e+00 : f32
    %28 = vector.broadcast %cst_14 : f32 to vector<1x1024xf32>
    %29 = arith.divf %28, %27 : vector<1x1024xf32>
    %c0_15 = arith.constant 0 : index
    %c0_16 = arith.constant 0 : index
    %c0_17 = arith.constant 0 : index
    %30 = vector.load %arg5[%c0_15, %c0_16, %c0_17] : memref<1x1x1024xf32, #tpu.memory_space<vmem>>, vector<1x1x1024xf32>
    %31 = vector.shape_cast %30 : vector<1x1x1024xf32> to vector<1x1024xf32>
    %32 = vector.shape_cast %29 : vector<1x1024xf32> to vector<1x1x1024xf32>
    tpu.vector_store %arg5[%c0_15, %c0_16, %c0_17], %32 {strides = array<i32>} : memref<1x1x1024xf32, #tpu.memory_space<vmem>>, vector<1x1x1024xf32>,
    return
  }
  func.func @transform_0(%arg0: i32) -> (i32, i32, i32) {
    %c0_i32 = arith.constant 0 : i32
    %c0_i32_0 = arith.constant 0 : i32
    %c0_i32_1 = arith.constant 0 : i32
    return %arg0, %c0_i32, %c0_i32_0 : i32, i32, i32
  }
  func.func @transform_1(%arg0: i32) -> (i32, i32, i32) {
    %c0_i32 = arith.constant 0 : i32
    %c0_i32_0 = arith.constant 0 : i32
    %c0_i32_1 = arith.constant 0 : i32
    return %arg0, %c0_i32, %c0_i32_0 : i32, i32, i32
  }
  func.func @transform_2(%arg0: i32) -> (i32, i32) {
    %c0_i32 = arith.constant 0 : i32
    %c0_i32_0 = arith.constant 0 : i32
    %c0_i32_1 = arith.constant 0 : i32
    return %c0_i32, %c0_i32_0 : i32, i32
  }
  func.func @transform_3(%arg0: i32) -> i32 {
    %c0_i32 = arith.constant 0 : i32
    %c0_i32_0 = arith.constant 0 : i32
    return %c0_i32 : i32
  }
  func.func @transform_4(%arg0: i32) -> (i32, i32, i32) {
    %c0_i32 = arith.constant 0 : i32
    %c0_i32_0 = arith.constant 0 : i32
    %c0_i32_1 = arith.constant 0 : i32
    return %arg0, %c0_i32, %c0_i32_0 : i32, i32, i32
  }
}

</mosaic_0001>

<llo_original>
// kernel: _lambda_.5
$region0: #{_lambda_.5}
  #allocation0 [shape = 'u32[]', space=smem, size = 0x4, offset = 0x4, fixed_abs, tag = 'smem constant byte address 0x4 - core index']
  #allocation1 [shape = 'u32[72,128]{1,0:T(1,128)}', space=vmem, size = 0x9000, scoped, tag = 'internal scratch']
  %s0 = inlined_call_operand.vmem [shape: f32[32,64], index: 0, kind: input, shape index: {}]
  %s1 = inlined_call_operand.vmem [shape: bf16[64,32], index: 1, kind: input, shape index: {}]
  %s2 = inlined_call_operand.hbm [shape: f32[1,32], index: 2, kind: input, shape index: {}]
  %s3 = inlined_call_operand.vmem [shape: bf16[32,16], index: 3, kind: input, shape index: {}]
  %s4 = inlined_call_operand.hbm [shape: f32[1,16], index: 4, kind: input, shape index: {}]
  %s5 = inlined_call_operand.hbm [shape: bf16[16,8], index: 5, kind: input, shape index: {}]
  %s6 = inlined_call_operand.hbm [shape: f32[1,8], index: 6, kind: input, shape index: {}]
  %s7 = inlined_call_operand.vmem [shape: bf16[8,16], index: 7, kind: input, shape index: {}]
  %s8 = inlined_call_operand.hbm [shape: f32[1,16], index: 8, kind: input, shape index: {}]
  %s9 = inlined_call_operand.hbm [shape: bf16[16,32], index: 9, kind: input, shape index: {}]
  %s10 = inlined_call_operand.hbm [shape: f32[1,32], index: 10, kind: input, shape index: {}]
  %s11 = inlined_call_operand.hbm [shape: bf16[32,64], index: 11, kind: input, shape index: {}]
  %s12 = inlined_call_operand.hbm [shape: f32[1,64], index: 12, kind: input, shape index: {}]
  %s13 = inlined_call_operand.vmem [shape: f32[32,64], index: 13, kind: output, shape index: {}]
  %s14 = sld [smem:[#allocation0]]
  $region121: #{_lambda_.5} parent=0
    _
  %s16 = ssub.s32 1, %s14
  %s17 = scalar_select 0, %s16, %s14
  $region1: #{_lambda_.5} parent=0
    #allocation2 [shape = 'u8[512]{0}', space=vmem, size = 0x400, scoped, tag = 'input window, operand 2, single buffered']
    #allocation3 [shape = 's32[2]{0}', space=sflag, size = 0x8, scoped, tag = 'scoped memory for _lambda_.5']
    #allocation4 [shape = 'u8[512]{0}', space=vmem, size = 0x400, scoped, tag = 'input window, operand 4, single buffered']
    #allocation5 [shape = 's32[1]{0}', space=sflag, size = 0x4, scoped, tag = 'scoped memory for _lambda_.5']
    #allocation6 [shape = 'u8[4096]{0}', space=vmem, size = 0x1000, scoped, tag = 'input window, operand 5, single buffered']
    #allocation7 [shape = 'u8[512]{0}', space=vmem, size = 0x400, scoped, tag = 'input window, operand 6, single buffered']
    #allocation8 [shape = 's32[1]{0}', space=sflag, size = 0x4, scoped, tag = 'scoped memory for _lambda_.5']
    #allocation9 [shape = 'u8[512]{0}', space=vmem, size = 0x400, scoped, tag = 'input window, operand 8, single buffered']
    #allocation10 [shape = 'u8[4096]{0}', space=vmem, size = 0x1000, scoped, tag = 'input window, operand 9, single buffered']
    #allocation11 [shape = 's32[1]{0}', space=sflag, size = 0x4, scoped, tag = 'scoped memory for _lambda_.5']
    #allocation12 [shape = 'u8[512]{0}', space=vmem, size = 0x400, scoped, tag = 'input window, operand 10, single buffered']
    #allocation13 [shape = 'u8[8192]{0}', space=vmem, size = 0x2000, scoped, tag = 'input window, operand 11, single buffered']
    #allocation14 [shape = 's32[1]{0}', space=sflag, size = 0x4, scoped, tag = 'scoped memory for _lambda_.5']
    #allocation15 [shape = 'u8[512]{0}', space=vmem, size = 0x400, scoped, tag = 'input window, operand 12, single buffered']
    %18 = vsyncpa [#allocation3], 0
    %19 = vsyncpa [#allocation5], 0
    %20 = vsyncpa [#allocation8], 0
    %21 = vsyncpa [#allocation11], 0
    %22 = vsyncpa [#allocation14], 0
    loop: start=0, step=1, limit=4
    $region2: #{_lambda_.5} parent=1 // loop_pre_header
      _
    $region3: #{_lambda_.5} parent=1 // loop_header
      %s24 = sphi 0, %s28
      %p25 = scmp.ge.s32.totalorder %s24, 4
      %s34 = sphi 0, %s36
      %s37 = sphi 0, %s34
      %s38 = sphi 0, %s37
      %s54 = sphi 0, %s38
      %s58 = sphi 0, %s58
      %s60 = sphi 0, %s58
      %s61 = sphi 0, %s60
      %s75 = sphi 0, %s61
      %s79 = sphi 0, %s79
      %s81 = sphi 0, %s79
      %s82 = sphi 0, %s81
      %s96 = sphi 0, %s82
      %s100 = sphi 0, %s100
      %s102 = sphi 0, %s100
      %s103 = sphi 0, %s102
      %s117 = sphi 0, %s103
      %s121 = sphi 0, %s121
      %s123 = sphi 0, %s121
      %s124 = sphi 0, %s123
      %s138 = sphi 0, %s124
      %s142 = sphi 0, %s142
      %s144 = sphi 0, %s142
      %s145 = sphi 0, %s144
      %s159 = sphi 0, %s145
      %s163 = sphi 0, %s163
      %s165 = sphi 0, %s163
      %s166 = sphi 0, %s165
      %s180 = sphi 0, %s166
      %s184 = sphi 0, %s184
      %s186 = sphi 0, %s184
      %s187 = sphi 0, %s186
      %s201 = sphi 0, %s187
      %s205 = sphi 0, %s205
      %s207 = sphi 0, %s205
      %s208 = sphi 0, %s207
      %s222 = sphi 0, %s208
      %s226 = sphi 0, %s226
      %s228 = sphi 0, %s226
      %s229 = sphi 0, %s228
      %s243 = sphi 0, %s229
      %s247 = sphi 0, %s247
      %s249 = sphi 0, %s247
      %s250 = sphi 0, %s249
      %s264 = sphi 0, %s250
      %s268 = sphi 0, %s268
      %s270 = sphi 0, %s268
      %s271 = sphi 0, %s270
      %s285 = sphi 0, %s271
      %s289 = sphi 0, %s289
      %s291 = sphi 0, %s289
      %s292 = sphi 0, %s291
      %s306 = sphi 0, %s292
      %s312 = sphi 0, %s314
      %s315 = sphi 0, %s312
      %s316 = sphi 0, %s315
      %s332 = sphi 0, %s316
    $region4: #{_lambda_.5} parent=1 // loop_header_branch
      %27 = sbr.rel (%p25) target = $region8
    $region5: #{_lambda_.5} parent=1 // loop_body
      %s29 = ssub.s32 %s24, 1
      %s30 = ssub.s32 %s24, 2
      %s31 = sadd.s32 %s24, 1
      %s32 = ssub.s32 %s24, %s31
      %p33 = scmp.eq.s32.totalorder %s32, 0
      %s35 = sadd.s32 %s34, 1
      %s36 = scalar_select %p33, %s34, %s35
      %p39 = pneg %p33
      %p40 = scmp.eq.s32.totalorder %s24, 1
      %p41 = por %p39, %p40
      %p42 = scmp.ne.s32.totalorder %s34, %s37
      %p43 = scmp.eq.s32.totalorder %s24, 0
      %p44 = por %p42, %p43
      %p45 = scmp.ne.s32.totalorder %s34, %s37
      %p46 = scmp.eq.s32.totalorder %s29, 1
      %p47 = por %p45, %p46
      %p48 = scmp.ne.s32.totalorder %s37, %s38
      %p49 = scmp.eq.s32.totalorder %s29, 0
      %p50 = por %p48, %p49
      %p51 = scmp.ne.s32.totalorder %s37, %s38
      %p52 = scmp.eq.s32.totalorder %s30, 1
      %p53 = por %p51, %p52
      %p55 = scmp.ne.s32.totalorder %s38, %s54
      %p56 = scmp.eq.s32.totalorder %s30, 0
      %p57 = por %p55, %p56
      %s59 = sadd.s32 %s58, 1
      %p62 = scmp.eq.s32.totalorder %s24, 1
      %p63 = scmp.ne.s32.totalorder %s58, %s60
      %p64 = scmp.eq.s32.totalorder %s24, 0
      %p65 = por %p63, %p64
      %p66 = scmp.ne.s32.totalorder %s58, %s60
      %p67 = scmp.eq.s32.totalorder %s29, 1
      %p68 = por %p66, %p67
      %p69 = scmp.ne.s32.totalorder %s60, %s61
      %p70 = scmp.eq.s32.totalorder %s29, 0
      %p71 = por %p69, %p70
      %p72 = scmp.ne.s32.totalorder %s60, %s61
      %p73 = scmp.eq.s32.totalorder %s30, 1
      %p74 = por %p72, %p73
      %p76 = scmp.ne.s32.totalorder %s61, %s75
      %p77 = scmp.eq.s32.totalorder %s30, 0
      %p78 = por %p76, %p77
      %s80 = sadd.s32 %s79, 1
      %p83 = scmp.eq.s32.totalorder %s24, 1
      %p84 = scmp.ne.s32.totalorder %s79, %s81
      %p85 = scmp.eq.s32.totalorder %s24, 0
      %p86 = por %p84, %p85
      %p87 = scmp.ne.s32.totalorder %s79, %s81
      %p88 = scmp.eq.s32.totalorder %s29, 1
      %p89 = por %p87, %p88
      %p90 = scmp.ne.s32.totalorder %s81, %s82
      %p91 = scmp.eq.s32.totalorder %s29, 0
      %p92 = por %p90, %p91
      %p93 = scmp.ne.s32.totalorder %s81, %s82
      %p94 = scmp.eq.s32.totalorder %s30, 1
      %p95 = por %p93, %p94
      %p97 = scmp.ne.s32.totalorder %s82, %s96
      %p98 = scmp.eq.s32.totalorder %s30, 0
      %p99 = por %p97, %p98
      %s101 = sadd.s32 %s100, 1
      %p104 = scmp.eq.s32.totalorder %s24, 1
      %p105 = scmp.ne.s32.totalorder %s100, %s102
      %p106 = scmp.eq.s32.totalorder %s24, 0
      %p107 = por %p105, %p106
      %p108 = scmp.ne.s32.totalorder %s100, %s102
      %p109 = scmp.eq.s32.totalorder %s29, 1
      %p110 = por %p108, %p109
      %p111 = scmp.ne.s32.totalorder %s102, %s103
      %p112 = scmp.eq.s32.totalorder %s29, 0
      %p113 = por %p111, %p112
      %p114 = scmp.ne.s32.totalorder %s102, %s103
      %p115 = scmp.eq.s32.totalorder %s30, 1
      %p116 = por %p114, %p115
      %p118 = scmp.ne.s32.totalorder %s103, %s117
      %p119 = scmp.eq.s32.totalorder %s30, 0
      %p120 = por %p118, %p119
      %s122 = sadd.s32 %s121, 1
      %p125 = scmp.eq.s32.totalorder %s24, 1
      %p126 = scmp.ne.s32.totalorder %s121, %s123
      %p127 = scmp.eq.s32.totalorder %s24, 0
      %p128 = por %p126, %p127
      %p129 = scmp.ne.s32.totalorder %s121, %s123
      %p130 = scmp.eq.s32.totalorder %s29, 1
      %p131 = por %p129, %p130
      %p132 = scmp.ne.s32.totalorder %s123, %s124
      %p133 = scmp.eq.s32.totalorder %s29, 0
      %p134 = por %p132, %p133
      %p135 = scmp.ne.s32.totalorder %s123, %s124
      %p136 = scmp.eq.s32.totalorder %s30, 1
      %p137 = por %p135, %p136
      %p139 = scmp.ne.s32.totalorder %s124, %s138
      %p140 = scmp.eq.s32.totalorder %s30, 0
      %p141 = por %p139, %p140
      %s143 = sadd.s32 %s142, 1
      %p146 = scmp.eq.s32.totalorder %s24, 1
      %p147 = scmp.ne.s32.totalorder %s142, %s144
      %p148 = scmp.eq.s32.totalorder %s24, 0
      %p149 = por %p147, %p148
      %p150 = scmp.ne.s32.totalorder %s142, %s144
      %p151 = scmp.eq.s32.totalorder %s29, 1
      %p152 = por %p150, %p151
      %p153 = scmp.ne.s32.totalorder %s144, %s145
      %p154 = scmp.eq.s32.totalorder %s29, 0
      %p155 = por %p153, %p154
      %p156 = scmp.ne.s32.totalorder %s144, %s145
      %p157 = scmp.eq.s32.totalorder %s30, 1
      %p158 = por %p156, %p157
      %p160 = scmp.ne.s32.totalorder %s145, %s159
      %p161 = scmp.eq.s32.totalorder %s30, 0
      %p162 = por %p160, %p161
      %s164 = sadd.s32 %s163, 1
      %p167 = scmp.eq.s32.totalorder %s24, 1
      %p168 = scmp.ne.s32.totalorder %s163, %s165
      %p169 = scmp.eq.s32.totalorder %s24, 0
      %p170 = por %p168, %p169
      %p171 = scmp.ne.s32.totalorder %s163, %s165
      %p172 = scmp.eq.s32.totalorder %s29, 1
      %p173 = por %p171, %p172
      %p174 = scmp.ne.s32.totalorder %s165, %s166
      %p175 = scmp.eq.s32.totalorder %s29, 0
      %p176 = por %p174, %p175
      %p177 = scmp.ne.s32.totalorder %s165, %s166
      %p178 = scmp.eq.s32.totalorder %s30, 1
      %p179 = por %p177, %p178
      %p181 = scmp.ne.s32.totalorder %s166, %s180
      %p182 = scmp.eq.s32.totalorder %s30, 0
      %p183 = por %p181, %p182
      %s185 = sadd.s32 %s184, 1
      %p188 = scmp.eq.s32.totalorder %s24, 1
      %p189 = scmp.ne.s32.totalorder %s184, %s186
      %p190 = scmp.eq.s32.totalorder %s24, 0
      %p191 = por %p189, %p190
      %p192 = scmp.ne.s32.totalorder %s184, %s186
      %p193 = scmp.eq.s32.totalorder %s29, 1
      %p194 = por %p192, %p193
      %p195 = scmp.ne.s32.totalorder %s186, %s187
      %p196 = scmp.eq.s32.totalorder %s29, 0
      %p197 = por %p195, %p196
      %p198 = scmp.ne.s32.totalorder %s186, %s187
      %p199 = scmp.eq.s32.totalorder %s30, 1
      %p200 = por %p198, %p199
      %p202 = scmp.ne.s32.totalorder %s187, %s201
      %p203 = scmp.eq.s32.totalorder %s30, 0
      %p204 = por %p202, %p203
      %s206 = sadd.s32 %s205, 1
      %p209 = scmp.eq.s32.totalorder %s24, 1
      %p210 = scmp.ne.s32.totalorder %s205, %s207
      %p211 = scmp.eq.s32.totalorder %s24, 0
      %p212 = por %p210, %p211
      %p213 = scmp.ne.s32.totalorder %s205, %s207
      %p214 = scmp.eq.s32.totalorder %s29, 1
      %p215 = por %p213, %p214
      %p216 = scmp.ne.s32.totalorder %s207, %s208
      %p217 = scmp.eq.s32.totalorder %s29, 0
      %p218 = por %p216, %p217
      %p219 = scmp.ne.s32.totalorder %s207, %s208
      %p220 = scmp.eq.s32.totalorder %s30, 1
      %p221 = por %p219, %p220
      %p223 = scmp.ne.s32.totalorder %s208, %s222
      %p224 = scmp.eq.s32.totalorder %s30, 0
      %p225 = por %p223, %p224
      %s227 = sadd.s32 %s226, 1
      %p230 = scmp.eq.s32.totalorder %s24, 1
      %p231 = scmp.ne.s32.totalorder %s226, %s228
      %p232 = scmp.eq.s32.totalorder %s24, 0
      %p233 = por %p231, %p232
      %p234 = scmp.ne.s32.totalorder %s226, %s228
      %p235 = scmp.eq.s32.totalorder %s29, 1
      %p236 = por %p234, %p235
      %p237 = scmp.ne.s32.totalorder %s228, %s229
      %p238 = scmp.eq.s32.totalorder %s29, 0
      %p239 = por %p237, %p238
      %p240 = scmp.ne.s32.totalorder %s228, %s229
      %p241 = scmp.eq.s32.totalorder %s30, 1
      %p242 = por %p240, %p241
      %p244 = scmp.ne.s32.totalorder %s229, %s243
      %p245 = scmp.eq.s32.totalorder %s30, 0
      %p246 = por %p244, %p245
      %s248 = sadd.s32 %s247, 1
      %p251 = scmp.eq.s32.totalorder %s24, 1
      %p252 = scmp.ne.s32.totalorder %s247, %s249
      %p253 = scmp.eq.s32.totalorder %s24, 0
      %p254 = por %p252, %p253
      %p255 = scmp.ne.s32.totalorder %s247, %s249
      %p256 = scmp.eq.s32.totalorder %s29, 1
      %p257 = por %p255, %p256
      %p258 = scmp.ne.s32.totalorder %s249, %s250
      %p259 = scmp.eq.s32.totalorder %s29, 0
      %p260 = por %p258, %p259
      %p261 = scmp.ne.s32.totalorder %s249, %s250
      %p262 = scmp.eq.s32.totalorder %s30, 1
      %p263 = por %p261, %p262
      %p265 = scmp.ne.s32.totalorder %s250, %s264
      %p266 = scmp.eq.s32.totalorder %s30, 0
      %p267 = por %p265, %p266
      %s269 = sadd.s32 %s268, 1
      %p272 = scmp.eq.s32.totalorder %s24, 1
      %p273 = scmp.ne.s32.totalorder %s268, %s270
      %p274 = scmp.eq.s32.totalorder %s24, 0
      %p275 = por %p273, %p274
      %p276 = scmp.ne.s32.totalorder %s268, %s270
      %p277 = scmp.eq.s32.totalorder %s29, 1
      %p278 = por %p276, %p277
      %p279 = scmp.ne.s32.totalorder %s270, %s271
      %p280 = scmp.eq.s32.totalorder %s29, 0
      %p281 = por %p279, %p280
      %p282 = scmp.ne.s32.totalorder %s270, %s271
      %p283 = scmp.eq.s32.totalorder %s30, 1
      %p284 = por %p282, %p283
      %p286 = scmp.ne.s32.totalorder %s271, %s285
      %p287 = scmp.eq.s32.totalorder %s30, 0
      %p288 = por %p286, %p287
      %s290 = sadd.s32 %s289, 1
      %p293 = scmp.eq.s32.totalorder %s24, 1
      %p294 = scmp.ne.s32.totalorder %s289, %s291
      %p295 = scmp.eq.s32.totalorder %s24, 0
      %p296 = por %p294, %p295
      %p297 = scmp.ne.s32.totalorder %s289, %s291
      %p298 = scmp.eq.s32.totalorder %s29, 1
      %p299 = por %p297, %p298
      %p300 = scmp.ne.s32.totalorder %s291, %s292
      %p301 = scmp.eq.s32.totalorder %s29, 0
      %p302 = por %p300, %p301
      %p303 = scmp.ne.s32.totalorder %s291, %s292
      %p304 = scmp.eq.s32.totalorder %s30, 1
      %p305 = por %p303, %p304
      %p307 = scmp.ne.s32.totalorder %s292, %s306
      %p308 = scmp.eq.s32.totalorder %s30, 0
      %p309 = por %p307, %p308
      %s310 = ssub.s32 %s24, %s31
      %p311 = scmp.eq.s32.totalorder %s310, 0
      %s313 = sadd.s32 %s312, 1
      %s314 = scalar_select %p311, %s312, %s313
      %p317 = pneg %p311
      %p318 = scmp.eq.s32.totalorder %s24, 1
      %p319 = por %p317, %p318
      %p320 = scmp.ne.s32.totalorder %s312, %s315
      %p321 = scmp.eq.s32.totalorder %s24, 0
      %p322 = por %p320, %p321
      %p323 = scmp.ne.s32.totalorder %s312, %s315
      %p324 = scmp.eq.s32.totalorder %s29, 1
      %p325 = por %p323, %p324
      %p326 = scmp.ne.s32.totalorder %s315, %s316
      %p327 = scmp.eq.s32.totalorder %s29, 0
      %p328 = por %p326, %p327
      %p329 = scmp.ne.s32.totalorder %s315, %s316
      %p330 = scmp.eq.s32.totalorder %s30, 1
      %p331 = por %p329, %p330
      %p333 = scmp.ne.s32.totalorder %s316, %s332
      %p334 = scmp.eq.s32.totalorder %s30, 0
      %p335 = por %p333, %p334
      %p336 = scmp.le.s32.totalorder 1, %s24
      %p337 = scmp.lt.s32.totalorder %s24, 3
      %p338 = pnand %p336, %p337
      %p339 = pneg %p338
      // Predicated region
      $region9: #{_lambda_.5} parent=5 // pred_check
        _
      $region10: #{_lambda_.5} parent=5 // pred_check_branch
        %341 = sbr.rel (%p338) target = $region12
      $region11: #{_lambda_.5} parent=5 // pred_region
        %s342 = ssub.s32 %s24, 1
        // Predicated region
        $region13: #{_lambda_.5} parent=11 // pred_check
          %p343 = pneg %p71
        $region14: #{_lambda_.5} parent=11 // pred_check_branch
          %345 = sbr.rel (%p343) target = $region16
        $region15: #{_lambda_.5} parent=11 // pred_region
          _
        $region16: #{_lambda_.5} parent=11 // pred_fallthru
          _
        // Predicated region
        $region17: #{_lambda_.5} parent=11 // pred_check
          %p346 = pneg %p92
        $region18: #{_lambda_.5} parent=11 // pred_check_branch
          %348 = sbr.rel (%p346) target = $region20
        $region19: #{_lambda_.5} parent=11 // pred_region
          %350 = vsyncadd [#allocation3], 0
          %s352 = sshll.u32 %s2, 4
          %s353 = int_to_ptr.hbm [resolvable:$true] %s352
          %s354 = sshll.u32 [#allocation2], 4
          %s355 = int_to_ptr.vmem [resolvable:$true] %s354
          %357 = dma.hbm_to_vmem [thread:$0]  %s353, 16, %s355, [#allocation3]
        $region20: #{_lambda_.5} parent=11 // pred_fallthru
          _
        // Predicated region
        $region21: #{_lambda_.5} parent=11 // pred_check
          %p358 = pneg %p113
        $region22: #{_lambda_.5} parent=11 // pred_check_branch
          %360 = sbr.rel (%p358) target = $region24
        $region23: #{_lambda_.5} parent=11 // pred_region
          _
        $region24: #{_lambda_.5} parent=11 // pred_fallthru
          _
        // Predicated region
        $region25: #{_lambda_.5} parent=11 // pred_check
          %p361 = pneg %p134
        $region26: #{_lambda_.5} parent=11 // pred_check_branch
          %363 = sbr.rel (%p361) target = $region28
        $region27: #{_lambda_.5} parent=11 // pred_region
          %365 = vsyncadd [#allocation5], 0
          %s367 = sshll.u32 %s4, 4
          %s368 = int_to_ptr.hbm [resolvable:$true] %s367
          %s369 = sshll.u32 [#allocation4], 4
          %s370 = int_to_ptr.vmem [resolvable:$true] %s369
          %372 = dma.hbm_to_vmem [thread:$0]  %s368, 16, %s370, [#allocation5]
        $region28: #{_lambda_.5} parent=11 // pred_fallthru
          _
        // Predicated region
        $region29: #{_lambda_.5} parent=11 // pred_check
          %p373 = pneg %p155
        $region30: #{_lambda_.5} parent=11 // pred_check_branch
          %375 = sbr.rel (%p373) target = $region32
        $region31: #{_lambda_.5} parent=11 // pred_region
          %377 = vsyncadd [#allocation5], 0
          %s378 = sshll.u32 %s5, 4
          %s379 = int_to_ptr.hbm [resolvable:$true] %s378
          %s380 = sshll.u32 [#allocation6], 4
          %s381 = int_to_ptr.vmem [resolvable:$true] %s380
          %386 = dma.hbm_to_vmem [thread:$0]  %s379, 128, %s381, [#allocation5], 64, 64, 4
        $region32: #{_lambda_.5} parent=11 // pred_fallthru
          _
        // Predicated region
        $region33: #{_lambda_.5} parent=11 // pred_check
          %p387 = pneg %p176
        $region34: #{_lambda_.5} parent=11 // pred_check_branch
          %389 = sbr.rel (%p387) target = $region36
        $region35: #{_lambda_.5} parent=11 // pred_region
          %391 = vsyncadd [#allocation8], 0
          %s393 = sshll.u32 %s6, 4
          %s394 = int_to_ptr.hbm [resolvable:$true] %s393
          %s395 = sshll.u32 [#allocation7], 4
          %s396 = int_to_ptr.vmem [resolvable:$true] %s395
          %398 = dma.hbm_to_vmem [thread:$0]  %s394, 16, %s396, [#allocation8]
        $region36: #{_lambda_.5} parent=11 // pred_fallthru
          _
        // Predicated region
        $region37: #{_lambda_.5} parent=11 // pred_check
          %p399 = pneg %p197
        $region38: #{_lambda_.5} parent=11 // pred_check_branch
          %401 = sbr.rel (%p399) target = $region40
        $region39: #{_lambda_.5} parent=11 // pred_region
          _
        $region40: #{_lambda_.5} parent=11 // pred_fallthru
          _
        // Predicated region
        $region41: #{_lambda_.5} parent=11 // pred_check
          %p402 = pneg %p218
        $region42: #{_lambda_.5} parent=11 // pred_check_branch
          %404 = sbr.rel (%p402) target = $region44
        $region43: #{_lambda_.5} parent=11 // pred_region
          %406 = vsyncadd [#allocation8], 0
          %s408 = sshll.u32 %s8, 4
          %s409 = int_to_ptr.hbm [resolvable:$true] %s408
          %s410 = sshll.u32 [#allocation9], 4
          %s411 = int_to_ptr.vmem [resolvable:$true] %s410
          %413 = dma.hbm_to_vmem [thread:$0]  %s409, 16, %s411, [#allocation8]
        $region44: #{_lambda_.5} parent=11 // pred_fallthru
          _
        // Predicated region
        $region45: #{_lambda_.5} parent=11 // pred_check
          %p414 = pneg %p239
        $region46: #{_lambda_.5} parent=11 // pred_check_branch
          %416 = sbr.rel (%p414) target = $region48
        $region47: #{_lambda_.5} parent=11 // pred_region
          %418 = vsyncadd [#allocation11], 0
          %s419 = sshll.u32 %s9, 4
          %s420 = int_to_ptr.hbm [resolvable:$true] %s419
          %s421 = sshll.u32 [#allocation10], 4
          %s422 = int_to_ptr.vmem [resolvable:$true] %s421
          %427 = dma.hbm_to_vmem [thread:$0]  %s420, 128, %s422, [#allocation11], 64, 64, 4
        $region48: #{_lambda_.5} parent=11 // pred_fallthru
          _
        // Predicated region
        $region49: #{_lambda_.5} parent=11 // pred_check
          %p428 = pneg %p260
        $region50: #{_lambda_.5} parent=11 // pred_check_branch
          %430 = sbr.rel (%p428) target = $region52
        $region51: #{_lambda_.5} parent=11 // pred_region
          %432 = vsyncadd [#allocation11], 0
          %s434 = sshll.u32 %s10, 4
          %s435 = int_to_ptr.hbm [resolvable:$true] %s434
          %s436 = sshll.u32 [#allocation12], 4
          %s437 = int_to_ptr.vmem [resolvable:$true] %s436
          %439 = dma.hbm_to_vmem [thread:$0]  %s435, 16, %s437, [#allocation11]
        $region52: #{_lambda_.5} parent=11 // pred_fallthru
          _
        // Predicated region
        $region53: #{_lambda_.5} parent=11 // pred_check
          %p440 = pneg %p281
        $region54: #{_lambda_.5} parent=11 // pred_check_branch
          %442 = sbr.rel (%p440) target = $region56
        $region55: #{_lambda_.5} parent=11 // pred_region
          %444 = vsyncadd [#allocation14], 0
          %s445 = sshll.u32 %s11, 4
          %s446 = int_to_ptr.hbm [resolvable:$true] %s445
          %s447 = sshll.u32 [#allocation13], 4
          %s448 = int_to_ptr.vmem [resolvable:$true] %s447
          %453 = dma.hbm_to_vmem [thread:$0]  %s446, 256, %s448, [#allocation14], 64, 64, 4
        $region56: #{_lambda_.5} parent=11 // pred_fallthru
          _
        // Predicated region
        $region57: #{_lambda_.5} parent=11 // pred_check
          %p454 = pneg %p302
        $region58: #{_lambda_.5} parent=11 // pred_check_branch
          %456 = sbr.rel (%p454) target = $region60
        $region59: #{_lambda_.5} parent=11 // pred_region
          %458 = vsyncadd [#allocation14], 0
          %s460 = sshll.u32 %s12, 4
          %s461 = int_to_ptr.hbm [resolvable:$true] %s460
          %s462 = sshll.u32 [#allocation15], 4
          %s463 = int_to_ptr.vmem [resolvable:$true] %s462
          %465 = dma.hbm_to_vmem [thread:$0]  %s461, 16, %s463, [#allocation14]
        $region60: #{_lambda_.5} parent=11 // pred_fallthru
          _
      $region12: #{_lambda_.5} parent=5 // pred_fallthru
        _
      %p466 = scmp.lt.s32.totalorder %s24, 2
      // Predicated region
      $region61: #{_lambda_.5} parent=5 // pred_check
        %p467 = pneg %p466
      $region62: #{_lambda_.5} parent=5 // pred_check_branch
        %469 = sbr.rel (%p467) target = $region64
      $region63: #{_lambda_.5} parent=5 // pred_region
        // Predicated region
        $region65: #{_lambda_.5} parent=63 // pred_check
          %p470 = pneg %p44
        $region66: #{_lambda_.5} parent=63 // pred_check_branch
          %472 = sbr.rel (%p470) target = $region68
        $region67: #{_lambda_.5} parent=63 // pred_region
          %s473 = smul.u32 2, %s24
          %p474 = scmp.lt.s32.totalorder %s473, 3
          %s475 = scalar_select %p474, %s473, 3
          %s476 = smul.addr %s475, 8
          %s477 = scalar_lea.vmem %s0, %s476
          %s478 = smul.u32 2, %s24
        $region68: #{_lambda_.5} parent=63 // pred_fallthru
          _
      $region64: #{_lambda_.5} parent=5 // pred_fallthru
        _
      %p479 = scmp.le.s32.totalorder 1, %s24
      %p480 = scmp.lt.s32.totalorder %s24, 3
      %p481 = pnand %p479, %p480
      %p482 = pneg %p481
      // Predicated region
      $region69: #{_lambda_.5} parent=5 // pred_check
        _
      $region70: #{_lambda_.5} parent=5 // pred_check_branch
        %484 = sbr.rel (%p481) target = $region72
      $region71: #{_lambda_.5} parent=5 // pred_region
        %s485 = ssub.s32 %s24, 1
        // Predicated region
        $region73: #{_lambda_.5} parent=71 // pred_check
          %p486 = pneg %p92
        $region74: #{_lambda_.5} parent=71 // pred_check_branch
          %488 = sbr.rel (%p486) target = $region76
        $region75: #{_lambda_.5} parent=71 // pred_region
          %490 = dma.done [#allocation3], 16
        $region76: #{_lambda_.5} parent=71 // pred_fallthru
          _
        // Predicated region
        $region77: #{_lambda_.5} parent=71 // pred_check
          %p491 = pneg %p134
        $region78: #{_lambda_.5} parent=71 // pred_check_branch
          %493 = sbr.rel (%p491) target = $region80
        $region79: #{_lambda_.5} parent=71 // pred_region
          %495 = dma.done [#allocation5], 16
        $region80: #{_lambda_.5} parent=71 // pred_fallthru
          _
        // Predicated region
        $region81: #{_lambda_.5} parent=71 // pred_check
          %p496 = pneg %p155
        $region82: #{_lambda_.5} parent=71 // pred_check_branch
          %498 = sbr.rel (%p496) target = $region84
        $region83: #{_lambda_.5} parent=71 // pred_region
          %500 = dma.done [#allocation5], 128
        $region84: #{_lambda_.5} parent=71 // pred_fallthru
          _
        // Predicated region
        $region85: #{_lambda_.5} parent=71 // pred_check
          %p501 = pneg %p176
        $region86: #{_lambda_.5} parent=71 // pred_check_branch
          %503 = sbr.rel (%p501) target = $region88
        $region87: #{_lambda_.5} parent=71 // pred_region
          %505 = dma.done [#allocation8], 16
        $region88: #{_lambda_.5} parent=71 // pred_fallthru
          _
        // Predicated region
        $region89: #{_lambda_.5} parent=71 // pred_check
          %p506 = pneg %p218
        $region90: #{_lambda_.5} parent=71 // pred_check_branch
          %508 = sbr.rel (%p506) target = $region92
        $region91: #{_lambda_.5} parent=71 // pred_region
          %510 = dma.done [#allocation8], 16
        $region92: #{_lambda_.5} parent=71 // pred_fallthru
          _
        // Predicated region
        $region93: #{_lambda_.5} parent=71 // pred_check
          %p511 = pneg %p239
        $region94: #{_lambda_.5} parent=71 // pred_check_branch
          %513 = sbr.rel (%p511) target = $region96
        $region95: #{_lambda_.5} parent=71 // pred_region
          %515 = dma.done [#allocation11], 128
        $region96: #{_lambda_.5} parent=71 // pred_fallthru
          _
        // Predicated region
        $region97: #{_lambda_.5} parent=71 // pred_check
          %p516 = pneg %p260
        $region98: #{_lambda_.5} parent=71 // pred_check_branch
          %518 = sbr.rel (%p516) target = $region100
        $region99: #{_lambda_.5} parent=71 // pred_region
          %520 = dma.done [#allocation11], 16
        $region100: #{_lambda_.5} parent=71 // pred_fallthru
          _
        // Predicated region
        $region101: #{_lambda_.5} parent=71 // pred_check
          %p521 = pneg %p281
        $region102: #{_lambda_.5} parent=71 // pred_check_branch
          %523 = sbr.rel (%p521) target = $region104
        $region103: #{_lambda_.5} parent=71 // pred_region
          %525 = dma.done [#allocation14], 256
        $region104: #{_lambda_.5} parent=71 // pred_fallthru
          _
        // Predicated region
        $region105: #{_lambda_.5} parent=71 // pred_check
          %p526 = pneg %p302
        $region106: #{_lambda_.5} parent=71 // pred_check_branch
          %528 = sbr.rel (%p526) target = $region108
        $region107: #{_lambda_.5} parent=71 // pred_region
          %530 = dma.done [#allocation14], 16
        $region108: #{_lambda_.5} parent=71 // pred_fallthru
          _
        %s531 = smul.u32 2, %s29
        %p532 = scmp.lt.s32.totalorder %s531, 3
        %s533 = scalar_select %p532, %s531, 3
        %s534 = smul.addr %s533, 8
        %s535 = scalar_lea.vmem %s0, %s534
        %p536 = pneg %p50
        %p537 = pneg %p47
        %p538 = pneg %p71
        %p539 = pneg %p68
        %p540 = pneg %p92
        %p541 = pneg %p89
        %p542 = pneg %p113
        %p543 = pneg %p110
        %p544 = pneg %p134
        %p545 = pneg %p131
        %p546 = pneg %p155
        %p547 = pneg %p152
        %p548 = pneg %p176
        %p549 = pneg %p173
        %p550 = pneg %p197
        %p551 = pneg %p194
        %p552 = pneg %p218
        %p553 = pneg %p215
        %p554 = pneg %p239
        %p555 = pneg %p236
        %p556 = pneg %p260
        %p557 = pneg %p257
        %p558 = pneg %p281
        %p559 = pneg %p278
        %p560 = pneg %p302
        %p561 = pneg %p299
        %p562 = pneg %p328
        %p563 = pneg %p325
        %s564 = smul.u32 2, %s29
        %p565 = scmp.lt.s32.totalorder %s564, 3
        %s566 = scalar_select %p565, %s564, 3
        %s567 = smul.addr %s566, 8
        %s568 = scalar_lea.vmem %s13, %s567
        %s569 = smul.u32 2, %s29
        %p570 = scmp.lt.s32.totalorder %s569, 3
        %s571 = scalar_select %p570, %s569, 3
        %s572 = smul.addr %s571, 8
        %s573 = scalar_lea.vmem %s0, %s572
        %s574 = smul.u32 2, %s29
        %s575 = smul.u32 2, %s29
        %p576 = scmp.lt.s32.totalorder %s575, 3
        %s577 = scalar_select %p576, %s575, 3
        %s578 = smul.addr %s577, 8
        %s579 = scalar_lea.vmem %s13, %s578
        %s580 = smul.u32 2, %s29
        %v582 = vld [vmem:[%s573] sm:$0xff]
        %v583 = vld [vmem:[%s573 + $0x8] sm:$0xff]
        %v584 = vld [vmem:[%s1] sm:$0xf]
        %v585 = vld [vmem:[%s1 + $0x4] sm:$0xf]
        %v586 = vld [vmem:[%s1 + $0x8] sm:$0xf]
        %v587 = vld [vmem:[%s1 + $0xc] sm:$0xf]
        %v588 = vld [vmem:[%s1 + $0x10] sm:$0xf]
        %v589 = vld [vmem:[%s1 + $0x14] sm:$0xf]
        %v590 = vld [vmem:[%s1 + $0x18] sm:$0xf]
        %v591 = vld [vmem:[%s1 + $0x1c] sm:$0xf]
        %v592 = vld [vmem:[#allocation2] sm:$0x1]
        %v593 = vpack.c.bf16 %v583, %v582
        %v595 = vperm.slane %v592, 0
        %v605 = vunpack.c.l.b16 %v584
        %v606 = vunpack.c.l.b16 %v585
        %v607 = vunpack.c.l.b16 %v586
        %v608 = vunpack.c.l.b16 %v587
        %v609 = vunpack.c.l.b16 %v588
        %v610 = vunpack.c.l.b16 %v589
        %v611 = vunpack.c.l.b16 %v590
        %v612 = vunpack.c.l.b16 %v591
        %v613 = vpack.c.b16 %v606, %v605
        %v614 = vpack.c.b16 %v608, %v607
        %v615 = vpack.c.b16 %v610, %v609
        %v616 = vpack.c.b16 %v612, %v611
        %vm621 = vcmask 523264
        %v623 = vsel %vm621, %v593, 0
        %625 = vmatpush.bf16.msra.mxu0 0
        %626 = vmatpush.bf16.msra.mxu0 0
        %627 = vmatpush.bf16.msra.mxu0 0
        %628 = vmatpush.bf16.msra.mxu0 0
        %629 = vmatpush.bf16.msra.mxu0 %v616
        %630 = vmatpush.bf16.msra.mxu0 %v615
        %631 = vmatpush.bf16.msra.mxu0 %v614
        %632 = vmatpush.bf16.msra.mxu0 %v613
        %633 = vmatmul.bf16.gmra.mxu0 %v623
        %v634 = vpop.f32.mrf.mxu0
        %v635 = vadd.f32 %v595, %v634
        %v636 = vpop.f32.mrf.mxu0
        %v637 = vadd.f32 %v595, %v636
        %638 = vdwg.mxu0
        %v639 = vmul.f32 %v635, 0.5
        %v640 = vmul.f32 %v637, 0.5
        %v641 = vmul.f32 %v635, 0.70710677
        %v642 = vmul.f32 %v637, 0.70710677
        %v643 = vand.u32 2147483647, %v641
        %v644 = vand.u32 2147483647, %v642
        %v645 = vmul.f32 %v643, 0.3275911
        %v646 = vmul.f32 %v644, 0.3275911
        %v647 = vadd.f32 %v645, 1.0
        %v648 = vadd.f32 %v646, 1.0
        %v649 = vrcp.pop %v647
        %v650 = vrcp.pop %v648
        %v651 = vmul.f32 %v649, 1.0614054
        %v652 = vmul.f32 %v650, 1.0614054
        %v653 = vadd.f32 %v651, -1.4531521
        %v654 = vadd.f32 %v652, -1.4531521
        %v655 = vmul.f32 %v653, %v649
        %v656 = vmul.f32 %v654, %v650
        %v657 = vadd.f32 %v655, 1.4214138
        %v658 = vadd.f32 %v656, 1.4214138
        %v659 = vmul.f32 %v657, %v649
        %v660 = vmul.f32 %v658, %v650
        %v661 = vadd.f32 %v659, -0.28449672
        %v662 = vadd.f32 %v660, -0.28449672
        %v663 = vmul.f32 %v661, %v649
        %v664 = vmul.f32 %v662, %v650
        %v665 = vadd.f32 %v663, 0.2548296
        %v666 = vadd.f32 %v664, 0.2548296
        %v667 = vmul.f32 %v665, %v649
        %v668 = vmul.f32 %v666, %v650
        %v669 = vsub.f32 0.0, %v643
        %v670 = vsub.f32 0.0, %v644
        %v671 = vmul.f32 %v669, %v643
        %v672 = vmul.f32 %v670, %v644
        %v673 = vmul.f32 %v671, 1.442695
        %v674 = vpow.pop %v673
        %v675 = vmul.f32 %v672, 1.442695
        %v676 = vpow.pop %v675
        %v677 = vmul.f32 %v667, %v674
        %v678 = vmul.f32 %v668, %v676
        %v679 = vsub.f32 1.0, %v677
        %v680 = vsub.f32 1.0, %v678
        %vm681 = vcmp.ge.f32.partialorder %v641, 0.0
        %vm682 = vcmp.ge.f32.partialorder %v642, 0.0
        %v683 = vsub.f32 0.0, %v679
        %v684 = vsub.f32 0.0, %v680
        %v685 = vsel %vm681, %v679, %v683
        %v686 = vsel %vm682, %v680, %v684
        %v687 = vadd.f32 %v685, 1.0
        %v688 = vadd.f32 %v686, 1.0
        %v689 = vmul.f32 %v639, %v687
        %v690 = vmul.f32 %v640, %v688
        %v691 = vld [vmem:[%s3] sm:$0xf]
        %v692 = vld [vmem:[%s3 + $0x4] sm:$0xf]
        %v693 = vld [vmem:[%s3 + $0x8] sm:$0xf]
        %v694 = vld [vmem:[%s3 + $0xc] sm:$0xf]
        %v695 = vld [vmem:[#allocation4] sm:$0x1]
        %v696 = vpack.c.bf16 %v690, %v689
        %v698 = vperm.slane %v695, 0
        %v704 = vunpack.c.l.b16 %v691
        %v705 = vunpack.c.l.b16 %v692
        %v706 = vunpack.c.l.b16 %v693
        %v707 = vunpack.c.l.b16 %v694
        %v708 = vpack.c.b16 %v705, %v704
        %v709 = vpack.c.b16 %v707, %v706
        %vm712 = vcmask 261120
        %v714 = vsel %vm712, %v696, 0
        %716 = vmatpush.bf16.msra.mxu0 0
        %717 = vmatpush.bf16.msra.mxu0 0
        %718 = vmatpush.bf16.msra.mxu0 0
        %719 = vmatpush.bf16.msra.mxu0 0
        %720 = vmatpush.bf16.msra.mxu0 0
        %721 = vmatpush.bf16.msra.mxu0 0
        %722 = vmatpush.bf16.msra.mxu0 %v709
        %723 = vmatpush.bf16.msra.mxu0 %v708
        %724 = vmatmul.bf16.gmra.mxu0 %v714
        %v725 = vpop.f32.mrf.mxu0
        %v726 = vadd.f32 %v698, %v725
        %v727 = vpop.f32.mrf.mxu0
        %v728 = vadd.f32 %v698, %v727
        %729 = vdwg.mxu0
        %v730 = vmul.f32 %v726, 0.5
        %v731 = vmul.f32 %v728, 0.5
        %v732 = vmul.f32 %v726, 0.70710677
        %v733 = vmul.f32 %v728, 0.70710677
        %v734 = vand.u32 2147483647, %v732
        %v735 = vand.u32 2147483647, %v733
        %v736 = vmul.f32 %v734, 0.3275911
        %v737 = vmul.f32 %v735, 0.3275911
        %v738 = vadd.f32 %v736, 1.0
        %v739 = vadd.f32 %v737, 1.0
        %v740 = vrcp.pop %v738
        %v741 = vrcp.pop %v739
        %v742 = vmul.f32 %v740, 1.0614054
        %v743 = vmul.f32 %v741, 1.0614054
        %v744 = vadd.f32 %v742, -1.4531521
        %v745 = vadd.f32 %v743, -1.4531521
        %v746 = vmul.f32 %v744, %v740
        %v747 = vmul.f32 %v745, %v741
        %v748 = vadd.f32 %v746, 1.4214138
        %v749 = vadd.f32 %v747, 1.4214138
        %v750 = vmul.f32 %v748, %v740
        %v751 = vmul.f32 %v749, %v741
        %v752 = vadd.f32 %v750, -0.28449672
        %v753 = vadd.f32 %v751, -0.28449672
        %v754 = vmul.f32 %v752, %v740
        %v755 = vmul.f32 %v753, %v741
        %v756 = vadd.f32 %v754, 0.2548296
        %v757 = vadd.f32 %v755, 0.2548296
        %v758 = vmul.f32 %v756, %v740
        %v759 = vmul.f32 %v757, %v741
        %v760 = vsub.f32 0.0, %v734
        %v761 = vsub.f32 0.0, %v735
        %v762 = vmul.f32 %v760, %v734
        %v763 = vmul.f32 %v761, %v735
        %v764 = vmul.f32 %v762, 1.442695
        %v765 = vpow.pop %v764
        %v766 = vmul.f32 %v763, 1.442695
        %v767 = vpow.pop %v766
        %v768 = vmul.f32 %v758, %v765
        %v769 = vmul.f32 %v759, %v767
        %v770 = vsub.f32 1.0, %v768
        %v771 = vsub.f32 1.0, %v769
        %vm772 = vcmp.ge.f32.partialorder %v732, 0.0
        %vm773 = vcmp.ge.f32.partialorder %v733, 0.0
        %v774 = vsub.f32 0.0, %v770
        %v775 = vsub.f32 0.0, %v771
        %v776 = vsel %vm772, %v770, %v774
        %v777 = vsel %vm773, %v771, %v775
        %v778 = vadd.f32 %v776, 1.0
        %v779 = vadd.f32 %v777, 1.0
        %v780 = vmul.f32 %v730, %v778
        %v781 = vmul.f32 %v731, %v779
        %v782 = vld [vmem:[#allocation6] sm:$0xf]
        %v783 = vld [vmem:[#allocation6 + $0x4] sm:$0xf]
        %v784 = vld [vmem:[#allocation7] sm:$0x1]
        %v785 = vpack.c.bf16 %v781, %v780
        %v787 = vperm.slane %v784, 0
        %v791 = vunpack.c.l.b16 %v782
        %v792 = vunpack.c.l.b16 %v783
        %v793 = vpack.c.b16 %v792, %v791
        %vm795 = vcmask 130048
        %v797 = vsel %vm795, %v785, 0
        %799 = vmatpush.bf16.msra.mxu0 0
        %800 = vmatpush.bf16.msra.mxu0 0
        %801 = vmatpush.bf16.msra.mxu0 0
        %802 = vmatpush.bf16.msra.mxu0 0
        %803 = vmatpush.bf16.msra.mxu0 0
        %804 = vmatpush.bf16.msra.mxu0 0
        %805 = vmatpush.bf16.msra.mxu0 0
        %806 = vmatpush.bf16.msra.mxu0 %v793
        %807 = vmatmul.bf16.gmra.mxu0 %v797
        %v808 = vpop.f32.mrf.mxu0
        %v809 = vadd.f32 %v787, %v808
        %v810 = vpop.f32.mrf.mxu0
        %v811 = vadd.f32 %v787, %v810
        %812 = vdwg.mxu0
        %v813 = vmul.f32 %v809, 0.5
        %v814 = vmul.f32 %v811, 0.5
        %v815 = vmul.f32 %v809, 0.70710677
        %v816 = vmul.f32 %v811, 0.70710677
        %v817 = vand.u32 2147483647, %v815
        %v818 = vand.u32 2147483647, %v816
        %v819 = vmul.f32 %v817, 0.3275911
        %v820 = vmul.f32 %v818, 0.3275911
        %v821 = vadd.f32 %v819, 1.0
        %v822 = vadd.f32 %v820, 1.0
        %v823 = vrcp.pop %v821
        %v824 = vrcp.pop %v822
        %v825 = vmul.f32 %v823, 1.0614054
        %v826 = vmul.f32 %v824, 1.0614054
        %v827 = vadd.f32 %v825, -1.4531521
        %v828 = vadd.f32 %v826, -1.4531521
        %v829 = vmul.f32 %v827, %v823
        %v830 = vmul.f32 %v828, %v824
        %v831 = vadd.f32 %v829, 1.4214138
        %v832 = vadd.f32 %v830, 1.4214138
        %v833 = vmul.f32 %v831, %v823
        %v834 = vmul.f32 %v832, %v824
        %v835 = vadd.f32 %v833, -0.28449672
        %v836 = vadd.f32 %v834, -0.28449672
        %v837 = vmul.f32 %v835, %v823
        %v838 = vmul.f32 %v836, %v824
        %v839 = vadd.f32 %v837, 0.2548296
        %v840 = vadd.f32 %v838, 0.2548296
        %v841 = vmul.f32 %v839, %v823
        %v842 = vmul.f32 %v840, %v824
        %v843 = vsub.f32 0.0, %v817
        %v844 = vsub.f32 0.0, %v818
        %v845 = vmul.f32 %v843, %v817
        %v846 = vmul.f32 %v844, %v818
        %v847 = vmul.f32 %v845, 1.442695
        %v848 = vpow.pop %v847
        %v849 = vmul.f32 %v846, 1.442695
        %v850 = vpow.pop %v849
        %v851 = vmul.f32 %v841, %v848
        %v852 = vmul.f32 %v842, %v850
        %v853 = vsub.f32 1.0, %v851
        %v854 = vsub.f32 1.0, %v852
        %vm855 = vcmp.ge.f32.partialorder %v815, 0.0
        %vm856 = vcmp.ge.f32.partialorder %v816, 0.0
        %v857 = vsub.f32 0.0, %v853
        %v858 = vsub.f32 0.0, %v854
        %v859 = vsel %vm855, %v853, %v857
        %v860 = vsel %vm856, %v854, %v858
        %v861 = vadd.f32 %v859, 1.0
        %v862 = vadd.f32 %v860, 1.0
        %v863 = vmul.f32 %v813, %v861
        %v864 = vmul.f32 %v814, %v862
        %v865 = vld [vmem:[%s7] sm:$0xf]
        %v866 = vld [vmem:[#allocation9] sm:$0x1]
        %v867 = vpack.c.bf16 %v864, %v863
        %v869 = vperm.slane %v866, 0
        %vm871 = vcmask 64512
        %v873 = vsel %vm871, %v867, 0
        %vm875 = vcmask 1043456
        %v877 = vsel %vm875, %v865, 0
        %879 = vmatpush.bf16.msra.mxu0 0
        %880 = vmatpush.bf16.msra.mxu0 0
        %881 = vmatpush.bf16.msra.mxu0 0
        %882 = vmatpush.bf16.msra.mxu0 0
        %883 = vmatpush.bf16.msra.mxu0 0
        %884 = vmatpush.bf16.msra.mxu0 0
        %885 = vmatpush.bf16.msra.mxu0 0
        %886 = vmatpush.bf16.msra.mxu0 %v877
        %887 = vmatmul.bf16.gmra.mxu0 %v873
        %v888 = vpop.f32.mrf.mxu0
        %v889 = vadd.f32 %v869, %v888
        %v890 = vpop.f32.mrf.mxu0
        %v891 = vadd.f32 %v869, %v890
        %892 = vdwg.mxu0
        %v893 = vmul.f32 %v889, 0.5
        %v894 = vmul.f32 %v891, 0.5
        %v895 = vmul.f32 %v889, 0.70710677
        %v896 = vmul.f32 %v891, 0.70710677
        %v897 = vand.u32 2147483647, %v895
        %v898 = vand.u32 2147483647, %v896
        %v899 = vmul.f32 %v897, 0.3275911
        %v900 = vmul.f32 %v898, 0.3275911
        %v901 = vadd.f32 %v899, 1.0
        %v902 = vadd.f32 %v900, 1.0
        %v903 = vrcp.pop %v901
        %v904 = vrcp.pop %v902
        %v905 = vmul.f32 %v903, 1.0614054
        %v906 = vmul.f32 %v904, 1.0614054
        %v907 = vadd.f32 %v905, -1.4531521
        %v908 = vadd.f32 %v906, -1.4531521
        %v909 = vmul.f32 %v907, %v903
        %v910 = vmul.f32 %v908, %v904
        %v911 = vadd.f32 %v909, 1.4214138
        %v912 = vadd.f32 %v910, 1.4214138
        %v913 = vmul.f32 %v911, %v903
        %v914 = vmul.f32 %v912, %v904
        %v915 = vadd.f32 %v913, -0.28449672
        %v916 = vadd.f32 %v914, -0.28449672
        %v917 = vmul.f32 %v915, %v903
        %v918 = vmul.f32 %v916, %v904
        %v919 = vadd.f32 %v917, 0.2548296
        %v920 = vadd.f32 %v918, 0.2548296
        %v921 = vmul.f32 %v919, %v903
        %v922 = vmul.f32 %v920, %v904
        %v923 = vsub.f32 0.0, %v897
        %v924 = vsub.f32 0.0, %v898
        %v925 = vmul.f32 %v923, %v897
        %v926 = vmul.f32 %v924, %v898
        %v927 = vmul.f32 %v925, 1.442695
        %v928 = vpow.pop %v927
        %v929 = vmul.f32 %v926, 1.442695
        %v930 = vpow.pop %v929
        %v931 = vmul.f32 %v921, %v928
        %v932 = vmul.f32 %v922, %v930
        %v933 = vsub.f32 1.0, %v931
        %v934 = vsub.f32 1.0, %v932
        %vm935 = vcmp.ge.f32.partialorder %v895, 0.0
        %vm936 = vcmp.ge.f32.partialorder %v896, 0.0
        %v937 = vsub.f32 0.0, %v933
        %v938 = vsub.f32 0.0, %v934
        %v939 = vsel %vm935, %v933, %v937
        %v940 = vsel %vm936, %v934, %v938
        %v941 = vadd.f32 %v939, 1.0
        %v942 = vadd.f32 %v940, 1.0
        %v943 = vmul.f32 %v893, %v941
        %v944 = vmul.f32 %v894, %v942
        %v945 = vld [vmem:[#allocation10] sm:$0xf]
        %v946 = vld [vmem:[#allocation10 + $0x4] sm:$0xf]
        %v947 = vld [vmem:[#allocation12] sm:$0x1]
        %v948 = vpack.c.bf16 %v944, %v943
        %v950 = vperm.slane %v947, 0
        %v954 = vunpack.c.l.b16 %v945
        %v955 = vunpack.c.l.b16 %v946
        %v956 = vpack.c.b16 %v955, %v954
        %v959 = vsel %vm795, %v948, 0
        %961 = vmatpush.bf16.msra.mxu0 0
        %962 = vmatpush.bf16.msra.mxu0 0
        %963 = vmatpush.bf16.msra.mxu0 0
        %964 = vmatpush.bf16.msra.mxu0 0
        %965 = vmatpush.bf16.msra.mxu0 0
        %966 = vmatpush.bf16.msra.mxu0 0
        %967 = vmatpush.bf16.msra.mxu0 0
        %968 = vmatpush.bf16.msra.mxu0 %v956
        %969 = vmatmul.bf16.gmra.mxu0 %v959
        %v970 = vpop.f32.mrf.mxu0
        %v971 = vadd.f32 %v950, %v970
        %v972 = vpop.f32.mrf.mxu0
        %v973 = vadd.f32 %v950, %v972
        %974 = vdwg.mxu0
        %v975 = vmul.f32 %v971, 0.5
        %v976 = vmul.f32 %v973, 0.5
        %v977 = vmul.f32 %v971, 0.70710677
        %v978 = vmul.f32 %v973, 0.70710677
        %v979 = vand.u32 2147483647, %v977
        %v980 = vand.u32 2147483647, %v978
        %v981 = vmul.f32 %v979, 0.3275911
        %v982 = vmul.f32 %v980, 0.3275911
        %v983 = vadd.f32 %v981, 1.0
        %v984 = vadd.f32 %v982, 1.0
        %v985 = vrcp.pop %v983
        %v986 = vrcp.pop %v984
        %v987 = vmul.f32 %v985, 1.0614054
        %v988 = vmul.f32 %v986, 1.0614054
        %v989 = vadd.f32 %v987, -1.4531521
        %v990 = vadd.f32 %v988, -1.4531521
        %v991 = vmul.f32 %v989, %v985
        %v992 = vmul.f32 %v990, %v986
        %v993 = vadd.f32 %v991, 1.4214138
        %v994 = vadd.f32 %v992, 1.4214138
        %v995 = vmul.f32 %v993, %v985
        %v996 = vmul.f32 %v994, %v986
        %v997 = vadd.f32 %v995, -0.28449672
        %v998 = vadd.f32 %v996, -0.28449672
        %v999 = vmul.f32 %v997, %v985
        %v1000 = vmul.f32 %v998, %v986
        %v1001 = vadd.f32 %v999, 0.2548296
        %v1002 = vadd.f32 %v1000, 0.2548296
        %v1003 = vmul.f32 %v1001, %v985
        %v1004 = vmul.f32 %v1002, %v986
        %v1005 = vsub.f32 0.0, %v979
        %v1006 = vsub.f32 0.0, %v980
        %v1007 = vmul.f32 %v1005, %v979
        %v1008 = vmul.f32 %v1006, %v980
        %v1009 = vmul.f32 %v1007, 1.442695
        %v1010 = vpow.pop %v1009
        %v1011 = vmul.f32 %v1008, 1.442695
        %v1012 = vpow.pop %v1011
        %v1013 = vmul.f32 %v1003, %v1010
        %v1014 = vmul.f32 %v1004, %v1012
        %v1015 = vsub.f32 1.0, %v1013
        %v1016 = vsub.f32 1.0, %v1014
        %vm1017 = vcmp.ge.f32.partialorder %v977, 0.0
        %vm1018 = vcmp.ge.f32.partialorder %v978, 0.0
        %v1019 = vsub.f32 0.0, %v1015
        %v1020 = vsub.f32 0.0, %v1016
        %v1021 = vsel %vm1017, %v1015, %v1019
        %v1022 = vsel %vm1018, %v1016, %v1020
        %v1023 = vadd.f32 %v1021, 1.0
        %v1024 = vadd.f32 %v1022, 1.0
        %v1025 = vmul.f32 %v975, %v1023
        %v1026 = vmul.f32 %v976, %v1024
        %v1027 = vld [vmem:[#allocation13] sm:$0xf]
        %v1028 = vld [vmem:[#allocation13 + $0x4] sm:$0xf]
        %v1029 = vld [vmem:[#allocation13 + $0x8] sm:$0xf]
        %v1030 = vld [vmem:[#allocation13 + $0xc] sm:$0xf]
        %v1031 = vld [vmem:[#allocation15] sm:$0x1]
        %v1032 = vpack.c.bf16 %v1026, %v1025
        %v1034 = vperm.slane %v1031, 0
        %v1040 = vunpack.c.l.b16 %v1027
        %v1041 = vunpack.c.l.b16 %v1028
        %v1042 = vunpack.c.l.b16 %v1029
        %v1043 = vunpack.c.l.b16 %v1030
        %v1044 = vpack.c.b16 %v1041, %v1040
        %v1045 = vpack.c.b16 %v1043, %v1042
        %v1049 = vsel %vm712, %v1032, 0
        %1051 = vmatpush.bf16.msra.mxu0 0
        %1052 = vmatpush.bf16.msra.mxu0 0
        %1053 = vmatpush.bf16.msra.mxu0 0
        %1054 = vmatpush.bf16.msra.mxu0 0
        %1055 = vmatpush.bf16.msra.mxu0 0
        %1056 = vmatpush.bf16.msra.mxu0 0
        %1057 = vmatpush.bf16.msra.mxu0 %v1045
        %1058 = vmatpush.bf16.msra.mxu0 %v1044
        %1059 = vmatmul.bf16.gmra.mxu0 %v1049
        %v1060 = vpop.f32.mrf.mxu0
        %v1061 = vadd.f32 %v1034, %v1060
        %v1062 = vpop.f32.mrf.mxu0
        %v1063 = vadd.f32 %v1034, %v1062
        %1064 = vdwg.mxu0
        %1065 = vst.msk [vmem:[%s579] sm:$0xff] %vm621, %v1061
        %1066 = vst.msk [vmem:[%s579 + $0x8] sm:$0xff] %vm621, %v1063
        %s1067 = smul.u32 2, %s29
        %p1068 = scmp.lt.s32.totalorder %s1067, 3
        %s1069 = scalar_select %p1068, %s1067, 3
        %s1070 = smul.addr %s1069, 8
        %s1071 = scalar_lea.vmem %s13, %s1070
        // Predicated region
        $region109: #{_lambda_.5} parent=71 // pred_check
          %p1072 = pneg %p325
        $region110: #{_lambda_.5} parent=71 // pred_check_branch
          %1074 = sbr.rel (%p1072) target = $region112
        $region111: #{_lambda_.5} parent=71 // pred_region
          %s1075 = smul.u32 2, %s29
        $region112: #{_lambda_.5} parent=71 // pred_fallthru
          _
      $region72: #{_lambda_.5} parent=5 // pred_fallthru
        _
      %p1076 = scmp.le.s32.totalorder 2, %s24
      // Predicated region
      $region113: #{_lambda_.5} parent=5 // pred_check
        %p1077 = pneg %p1076
      $region114: #{_lambda_.5} parent=5 // pred_check_branch
        %1079 = sbr.rel (%p1077) target = $region116
      $region115: #{_lambda_.5} parent=5 // pred_region
        %s1080 = ssub.s32 %s24, 2
        // Predicated region
        $region117: #{_lambda_.5} parent=115 // pred_check
          %p1081 = pneg %p331
        $region118: #{_lambda_.5} parent=115 // pred_check_branch
          %1083 = sbr.rel (%p1081) target = $region120
        $region119: #{_lambda_.5} parent=115 // pred_region
          %s1084 = smul.u32 2, %s30
          %p1085 = scmp.lt.s32.totalorder %s1084, 3
          %s1086 = scalar_select %p1085, %s1084, 3
          %s1087 = smul.addr %s1086, 8
          %s1088 = scalar_lea.vmem %s13, %s1087
        $region120: #{_lambda_.5} parent=115 // pred_fallthru
          _
      $region116: #{_lambda_.5} parent=5 // pred_fallthru
        _
    $region6: #{_lambda_.5} parent=1 // loop_footer
      %s28 = sadd.s32 1, %s24
    $region7: #{_lambda_.5} parent=1 // loop_footer_branch
      %23 = sbr.rel target = $region3
    $region8: #{_lambda_.5} parent=1 // loop_exit
      _
    %1089 = vsyncpa [#allocation3], 1
    %s1090 = scalar_lea.sflag [#allocation3], 1
    %1091 = vsyncpa %s1090, 1
    %1092 = vsyncpa [#allocation5], 1
    %1093 = vsyncpa [#allocation8], 1
    %1094 = vsyncpa [#allocation11], 1
    %1095 = vsyncpa [#allocation14], 1

// kernel: _lambda_.8
$region0: #{_lambda_.8}
  #allocation0 [shape = 'u32[]', space=smem, size = 0x4, offset = 0x4, fixed_abs, tag = 'smem constant byte address 0x4 - core index']
  #allocation1 [shape = 'u32[72,128]{1,0:T(1,128)}', space=vmem, size = 0x9000, scoped, tag = 'internal scratch']
  #allocation2 [shape = 'f32[1,1]{1,0:T(1,128)S(1)}', space=vmem, size = 0x200, scoped, tag = 'scoped memory for _lambda_.8']
  %s0 = inlined_call_operand.vmem [shape: f32[16,128], index: 0, kind: input, shape index: {}]
  %s1 = inlined_call_operand.vmem [shape: bf16[8,16], index: 1, kind: input, shape index: {}]
  %s2 = inlined_call_operand.vmem [shape: f32[8,1], index: 2, kind: input, shape index: {}]
  %s3 = inlined_call_operand.vmem [shape: bf16[4,8], index: 3, kind: input, shape index: {}]
  %s4 = inlined_call_operand.vmem [shape: f32[4,1], index: 4, kind: input, shape index: {}]
  %s5 = inlined_call_operand.vmem [shape: bf16[2,4], index: 5, kind: input, shape index: {}]
  %s6 = inlined_call_operand.vmem [shape: f32[2,1], index: 6, kind: input, shape index: {}]
  %s7 = inlined_call_operand.vmem [shape: bf16[1,2], index: 7, kind: input, shape index: {}]
  %s8 = inlined_call_operand.<no memory space> [shape: f32[1,1], index: 8, kind: input, shape index: {}]
  %s9 = inlined_call_operand.vmem [shape: f32[1,128], index: 9, kind: output, shape index: {}]
  %s10 = sld [smem:[#allocation0]]
  $region46: #{_lambda_.8} parent=0
    _
  %s12 = ssub.s32 1, %s10
  %s13 = scalar_select 0, %s12, %s10
  %v14 = vstv %s8
  %15 = vst [vmem:[#allocation2] sm:$0x1] %v14
  // Predicated region
  $region2: #{_lambda_.8} parent=0 // pred_check
    _
  $region3: #{_lambda_.8} parent=0 // pred_check_branch
    %17 = sbr.rel (0) target = $region5
  $region4: #{_lambda_.8} parent=0 // pred_region
    _
  $region5: #{_lambda_.8} parent=0 // pred_fallthru
    _
  // Predicated region
  $region6: #{_lambda_.8} parent=0 // pred_check
    _
  $region7: #{_lambda_.8} parent=0 // pred_check_branch
    %19 = sbr.rel (0) target = $region9
  $region8: #{_lambda_.8} parent=0 // pred_region
    _
  $region9: #{_lambda_.8} parent=0 // pred_fallthru
    _
  // Predicated region
  $region10: #{_lambda_.8} parent=0 // pred_check
    _
  $region11: #{_lambda_.8} parent=0 // pred_check_branch
    %21 = sbr.rel (0) target = $region13
  $region12: #{_lambda_.8} parent=0 // pred_region
    _
  $region13: #{_lambda_.8} parent=0 // pred_fallthru
    _
  // Predicated region
  $region14: #{_lambda_.8} parent=0 // pred_check
    _
  $region15: #{_lambda_.8} parent=0 // pred_check_branch
    %23 = sbr.rel (0) target = $region17
  $region16: #{_lambda_.8} parent=0 // pred_region
    _
  $region17: #{_lambda_.8} parent=0 // pred_fallthru
    _
  // Predicated region
  $region18: #{_lambda_.8} parent=0 // pred_check
    _
  $region19: #{_lambda_.8} parent=0 // pred_check_branch
    %25 = sbr.rel (0) target = $region21
  $region20: #{_lambda_.8} parent=0 // pred_region
    _
  $region21: #{_lambda_.8} parent=0 // pred_fallthru
    _
  // Predicated region
  $region22: #{_lambda_.8} parent=0 // pred_check
    _
  $region23: #{_lambda_.8} parent=0 // pred_check_branch
    %27 = sbr.rel (0) target = $region25
  $region24: #{_lambda_.8} parent=0 // pred_region
    _
  $region25: #{_lambda_.8} parent=0 // pred_fallthru
    _
  // Predicated region
  $region26: #{_lambda_.8} parent=0 // pred_check
    _
  $region27: #{_lambda_.8} parent=0 // pred_check_branch
    %29 = sbr.rel (0) target = $region29
  $region28: #{_lambda_.8} parent=0 // pred_region
    _
  $region29: #{_lambda_.8} parent=0 // pred_fallthru
    _
  // Predicated region
  $region30: #{_lambda_.8} parent=0 // pred_check
    _
  $region31: #{_lambda_.8} parent=0 // pred_check_branch
    %31 = sbr.rel (0) target = $region33
  $region32: #{_lambda_.8} parent=0 // pred_region
    _
  $region33: #{_lambda_.8} parent=0 // pred_fallthru
    _
  // Predicated region
  $region34: #{_lambda_.8} parent=0 // pred_check
    _
  $region35: #{_lambda_.8} parent=0 // pred_check_branch
    %33 = sbr.rel (0) target = $region37
  $region36: #{_lambda_.8} parent=0 // pred_region
    _
  $region37: #{_lambda_.8} parent=0 // pred_fallthru
    _
  %v35 = vld [vmem:[%s0] sm:$0xff]
  %v36 = vld [vmem:[%s0 + $0x8] sm:$0xff]
  %v37 = vld [vmem:[%s1] sm:$0xf]
  %v38 = vld [vmem:[%s2] sm:$0xff]
  %v39 = vpack.c.bf16 %v36, %v35
  %41 = vset.pattern.permute.xlu0 0
  %42 = vperm.xlu0 %41, %v38
  %v43 = vpop.permute.xlu0 %42
  %vm45 = vcmask 130048
  %v47 = vsel %vm45, %v37, 0
  %49 = vmatpush.bf16.msra.mxu0 0
  %50 = vmatpush.bf16.msra.mxu0 0
  %51 = vmatpush.bf16.msra.mxu0 0
  %52 = vmatpush.bf16.msra.mxu0 0
  %53 = vmatpush.bf16.msra.mxu0 0
  %54 = vmatpush.bf16.msra.mxu0 0
  %55 = vmatpush.bf16.msra.mxu0 0
  %56 = vmatpush.bf16.msra.mxu0 %v39
  %57 = vmatmul.bf16.gmra.mxu0 %v47
  %v58 = vpop.f32.mrf.mxu0
  %v59 = vadd.f32 %v43, %v58
  %v60 = vpop.f32.mrf.mxu0
  %61 = vdwg.mxu0
  %v62 = vmax.f32 %v59, 0.0
  %v63 = vld [vmem:[%s3] sm:$0x3]
  %v64 = vld [vmem:[%s4] sm:$0xf]
  %v65 = vpack.c.bf16 %v62, %v62
  %67 = vset.pattern.permute.xlu0 0
  %68 = vperm.xlu0 %67, %v64
  %v69 = vpop.permute.xlu0 %68
  %vm71 = vcmask 64512
  %v73 = vsel %vm71, %v63, 0
  %vm75 = vcmask 1043456
  %v77 = vsel %vm75, %v65, 0
  %79 = vmatpush.bf16.msra.mxu0 0
  %80 = vmatpush.bf16.msra.mxu0 0
  %81 = vmatpush.bf16.msra.mxu0 0
  %82 = vmatpush.bf16.msra.mxu0 0
  %83 = vmatpush.bf16.msra.mxu0 0
  %84 = vmatpush.bf16.msra.mxu0 0
  %85 = vmatpush.bf16.msra.mxu0 0
  %86 = vmatpush.bf16.msra.mxu0 %v77
  %87 = vmatmul.bf16.gmra.mxu0 %v73
  %v88 = vpop.f32.mrf.mxu0
  %v89 = vadd.f32 %v69, %v88
  %v90 = vpop.f32.mrf.mxu0
  %91 = vdwg.mxu0
  %v92 = vmax.f32 %v89, 0.0
  %v93 = vld [vmem:[%s5] sm:$0x1]
  %v94 = vld [vmem:[%s6] sm:$0x3]
  %v95 = vpack.c.bf16 %v92, %v92
  %97 = vset.pattern.permute.xlu0 0
  %98 = vperm.xlu0 %97, %v94
  %v99 = vpop.permute.xlu0 %98
  %vm101 = vcmask 31744
  %v103 = vsel %vm101, %v93, 0
  %vm105 = vcmask 1041408
  %v107 = vsel %vm105, %v95, 0
  %109 = vmatpush.bf16.msra.mxu0 0
  %110 = vmatpush.bf16.msra.mxu0 0
  %111 = vmatpush.bf16.msra.mxu0 0
  %112 = vmatpush.bf16.msra.mxu0 0
  %113 = vmatpush.bf16.msra.mxu0 0
  %114 = vmatpush.bf16.msra.mxu0 0
  %115 = vmatpush.bf16.msra.mxu0 0
  %116 = vmatpush.bf16.msra.mxu0 %v107
  %117 = vmatmul.bf16.gmra.mxu0 %v103
  %v118 = vpop.f32.mrf.mxu0
  %v119 = vadd.f32 %v99, %v118
  %v120 = vpop.f32.mrf.mxu0
  %121 = vdwg.mxu0
  %v122 = vmax.f32 %v119, 0.0
  %v123 = vld [vmem:[%s7] sm:$0x1]
  %v124 = vld [vmem:[#allocation2] sm:$0x1]
  %v125 = vpack.c.bf16 %v122, %v122
  %127 = vset.pattern.permute.xlu0 0
  %128 = vperm.xlu0 %127, %v124
  %v129 = vpop.permute.xlu0 %128
  %v131 = vperm.slane %v129, 0
  %vm132 = vcmask 15360
  %v134 = vsel %vm132, %v123, 0
  %vm136 = vcmask 1040384
  %v138 = vsel %vm136, %v125, 0
  %140 = vmatpush.bf16.msra.mxu0 0
  %141 = vmatpush.bf16.msra.mxu0 0
  %142 = vmatpush.bf16.msra.mxu0 0
  %143 = vmatpush.bf16.msra.mxu0 0
  %144 = vmatpush.bf16.msra.mxu0 0
  %145 = vmatpush.bf16.msra.mxu0 0
  %146 = vmatpush.bf16.msra.mxu0 0
  %147 = vmatpush.bf16.msra.mxu0 %v138
  %148 = vmatmul.bf16.gmra.mxu0 %v134
  %v149 = vpop.f32.mrf.mxu0
  %v150 = vadd.f32 %v131, %v149
  %v151 = vpop.f32.mrf.mxu0
  %152 = vdwg.mxu0
  %153 = vst [vmem:[%s9] sm:$0x1] %v150
  // Predicated region
  $region38: #{_lambda_.8} parent=0 // pred_check
    _
  $region39: #{_lambda_.8} parent=0 // pred_check_branch
    %155 = sbr.rel (0) target = $region41
  $region40: #{_lambda_.8} parent=0 // pred_region
    _
  $region41: #{_lambda_.8} parent=0 // pred_fallthru
    _
  // Predicated region
  $region42: #{_lambda_.8} parent=0 // pred_check
    _
  $region43: #{_lambda_.8} parent=0 // pred_check_branch
    %157 = sbr.rel (0) target = $region45
  $region44: #{_lambda_.8} parent=0 // pred_region
    _
  $region45: #{_lambda_.8} parent=0 // pred_fallthru
    _

// kernel: _lambda_.7
$region0: #{_lambda_.7}
  #allocation0 [shape = 'u32[]', space=smem, size = 0x4, offset = 0x4, fixed_abs, tag = 'smem constant byte address 0x4 - core index']
  #allocation1 [shape = 'u32[72,128]{1,0:T(1,128)}', space=vmem, size = 0x9000, scoped, tag = 'internal scratch']
  %s0 = inlined_call_operand.vmem [shape: f32[2,16,64], index: 0, kind: input, shape index: {}]
  %s1 = inlined_call_operand.vmem [shape: bf16[64,64], index: 1, kind: input, shape index: {}]
  %s2 = inlined_call_operand.hbm [shape: f32[1,64], index: 2, kind: input, shape index: {}]
  %s3 = inlined_call_operand.vmem [shape: bf16[64,64], index: 3, kind: input, shape index: {}]
  %s4 = inlined_call_operand.hbm [shape: f32[1,64], index: 4, kind: input, shape index: {}]
  %s5 = inlined_call_operand.vmem [shape: bf16[64,64], index: 5, kind: input, shape index: {}]
  %s6 = inlined_call_operand.vmem [shape: bf16[64,64], index: 6, kind: input, shape index: {}]
  %s7 = inlined_call_operand.hbm [shape: f32[1,64], index: 7, kind: input, shape index: {}]
  %s8 = inlined_call_operand.vmem [shape: bf16[64,64], index: 8, kind: input, shape index: {}]
  %s9 = inlined_call_operand.hbm [shape: f32[1,64], index: 9, kind: input, shape index: {}]
  %s10 = inlined_call_operand.vmem [shape: bf16[64,64], index: 10, kind: input, shape index: {}]
  %s11 = inlined_call_operand.hbm [shape: f32[1,64], index: 11, kind: input, shape index: {}]
  %s12 = inlined_call_operand.vmem [shape: bf16[64,256], index: 12, kind: input, shape index: {}]
  %s13 = inlined_call_operand.hbm [shape: f32[1,256], index: 13, kind: input, shape index: {}]
  %s14 = inlined_call_operand.vmem [shape: bf16[256,64], index: 14, kind: input, shape index: {}]
  %s15 = inlined_call_operand.hbm [shape: f32[1,64], index: 15, kind: input, shape index: {}]
  %s16 = inlined_call_operand.vmem [shape: bf16[64,256], index: 16, kind: input, shape index: {}]
  %s17 = inlined_call_operand.hbm [shape: f32[1,256], index: 17, kind: input, shape index: {}]
  %s18 = inlined_call_operand.vmem [shape: bf16[256,64], index: 18, kind: input, shape index: {}]
  %s19 = inlined_call_operand.hbm [shape: f32[1,64], index: 19, kind: input, shape index: {}]
  %s20 = inlined_call_operand.vmem [shape: f32[2,16,64], index: 20, kind: output, shape index: {}]
  %s21 = sld [smem:[#allocation0]]
  $region149: #{_lambda_.7} parent=0
    _
  %s23 = ssub.s32 1, %s21
  %s24 = scalar_select 0, %s23, %s21
  $region1: #{_lambda_.7} parent=0
    #allocation2 [shape = 'u8[512]{0}', space=vmem, size = 0x400, scoped, tag = 'input window, operand 2, single buffered']
    #allocation3 [shape = 's32[2]{0}', space=sflag, size = 0x8, scoped, tag = 'scoped memory for _lambda_.7']
    #allocation4 [shape = 'u8[512]{0}', space=vmem, size = 0x400, scoped, tag = 'input window, operand 4, single buffered']
    #allocation5 [shape = 's32[1]{0}', space=sflag, size = 0x4, scoped, tag = 'scoped memory for _lambda_.7']
    #allocation6 [shape = 'u8[512]{0}', space=vmem, size = 0x400, scoped, tag = 'input window, operand 7, single buffered']
    #allocation7 [shape = 'u8[512]{0}', space=vmem, size = 0x400, scoped, tag = 'input window, operand 9, single buffered']
    #allocation8 [shape = 's32[1]{0}', space=sflag, size = 0x4, scoped, tag = 'scoped memory for _lambda_.7']
    #allocation9 [shape = 'u8[512]{0}', space=vmem, size = 0x400, scoped, tag = 'input window, operand 11, single buffered']
    #allocation10 [shape = 'u8[1024]{0}', space=vmem, size = 0x400, scoped, tag = 'input window, operand 13, single buffered']
    #allocation11 [shape = 's32[1]{0}', space=sflag, size = 0x4, scoped, tag = 'scoped memory for _lambda_.7']
    #allocation12 [shape = 'u8[512]{0}', space=vmem, size = 0x400, scoped, tag = 'input window, operand 15, single buffered']
    #allocation13 [shape = 'u8[1024]{0}', space=vmem, size = 0x400, scoped, tag = 'input window, operand 17, single buffered']
    #allocation14 [shape = 's32[1]{0}', space=sflag, size = 0x4, scoped, tag = 'scoped memory for _lambda_.7']
    #allocation15 [shape = 'u8[512]{0}', space=vmem, size = 0x400, scoped, tag = 'input window, operand 19, single buffered']
    %25 = vsyncpa [#allocation3], 0
    %26 = vsyncpa [#allocation5], 0
    %27 = vsyncpa [#allocation8], 0
    %28 = vsyncpa [#allocation11], 0
    %29 = vsyncpa [#allocation14], 0
    loop: start=0, step=1, limit=4
    $region2: #{_lambda_.7} parent=1 // loop_pre_header
      _
    $region3: #{_lambda_.7} parent=1 // loop_header
      %s31 = sphi 0, %s35
      %p32 = scmp.ge.s32.totalorder %s31, 4
      %s41 = sphi 0, %s43
      %s44 = sphi 0, %s41
      %s45 = sphi 0, %s44
      %s61 = sphi 0, %s45
      %s65 = sphi 0, %s65
      %s67 = sphi 0, %s65
      %s68 = sphi 0, %s67
      %s82 = sphi 0, %s68
      %s86 = sphi 0, %s86
      %s88 = sphi 0, %s86
      %s89 = sphi 0, %s88
      %s103 = sphi 0, %s89
      %s107 = sphi 0, %s107
      %s109 = sphi 0, %s107
      %s110 = sphi 0, %s109
      %s124 = sphi 0, %s110
      %s128 = sphi 0, %s128
      %s130 = sphi 0, %s128
      %s131 = sphi 0, %s130
      %s145 = sphi 0, %s131
      %s149 = sphi 0, %s149
      %s151 = sphi 0, %s149
      %s152 = sphi 0, %s151
      %s166 = sphi 0, %s152
      %s170 = sphi 0, %s170
      %s172 = sphi 0, %s170
      %s173 = sphi 0, %s172
      %s187 = sphi 0, %s173
      %s191 = sphi 0, %s191
      %s193 = sphi 0, %s191
      %s194 = sphi 0, %s193
      %s208 = sphi 0, %s194
      %s212 = sphi 0, %s212
      %s214 = sphi 0, %s212
      %s215 = sphi 0, %s214
      %s229 = sphi 0, %s215
      %s233 = sphi 0, %s233
      %s235 = sphi 0, %s233
      %s236 = sphi 0, %s235
      %s250 = sphi 0, %s236
      %s254 = sphi 0, %s254
      %s256 = sphi 0, %s254
      %s257 = sphi 0, %s256
      %s271 = sphi 0, %s257
      %s275 = sphi 0, %s275
      %s277 = sphi 0, %s275
      %s278 = sphi 0, %s277
      %s292 = sphi 0, %s278
      %s296 = sphi 0, %s296
      %s298 = sphi 0, %s296
      %s299 = sphi 0, %s298
      %s313 = sphi 0, %s299
      %s317 = sphi 0, %s317
      %s319 = sphi 0, %s317
      %s320 = sphi 0, %s319
      %s334 = sphi 0, %s320
      %s338 = sphi 0, %s338
      %s340 = sphi 0, %s338
      %s341 = sphi 0, %s340
      %s355 = sphi 0, %s341
      %s359 = sphi 0, %s359
      %s361 = sphi 0, %s359
      %s362 = sphi 0, %s361
      %s376 = sphi 0, %s362
      %s380 = sphi 0, %s380
      %s382 = sphi 0, %s380
      %s383 = sphi 0, %s382
      %s397 = sphi 0, %s383
      %s401 = sphi 0, %s401
      %s403 = sphi 0, %s401
      %s404 = sphi 0, %s403
      %s418 = sphi 0, %s404
      %s422 = sphi 0, %s422
      %s424 = sphi 0, %s422
      %s425 = sphi 0, %s424
      %s439 = sphi 0, %s425
      %s443 = sphi 0, %s443
      %s445 = sphi 0, %s443
      %s446 = sphi 0, %s445
      %s460 = sphi 0, %s446
      %s466 = sphi 0, %s468
      %s469 = sphi 0, %s466
      %s470 = sphi 0, %s469
      %s486 = sphi 0, %s470
    $region4: #{_lambda_.7} parent=1 // loop_header_branch
      %34 = sbr.rel (%p32) target = $region8
    $region5: #{_lambda_.7} parent=1 // loop_body
      %s36 = ssub.s32 %s31, 1
      %s37 = ssub.s32 %s31, 2
      %s38 = sadd.s32 %s31, 1
      %s39 = ssub.s32 %s31, %s38
      %p40 = scmp.eq.s32.totalorder %s39, 0
      %s42 = sadd.s32 %s41, 1
      %s43 = scalar_select %p40, %s41, %s42
      %p46 = pneg %p40
      %p47 = scmp.eq.s32.totalorder %s31, 1
      %p48 = por %p46, %p47
      %p49 = scmp.ne.s32.totalorder %s41, %s44
      %p50 = scmp.eq.s32.totalorder %s31, 0
      %p51 = por %p49, %p50
      %p52 = scmp.ne.s32.totalorder %s41, %s44
      %p53 = scmp.eq.s32.totalorder %s36, 1
      %p54 = por %p52, %p53
      %p55 = scmp.ne.s32.totalorder %s44, %s45
      %p56 = scmp.eq.s32.totalorder %s36, 0
      %p57 = por %p55, %p56
      %p58 = scmp.ne.s32.totalorder %s44, %s45
      %p59 = scmp.eq.s32.totalorder %s37, 1
      %p60 = por %p58, %p59
      %p62 = scmp.ne.s32.totalorder %s45, %s61
      %p63 = scmp.eq.s32.totalorder %s37, 0
      %p64 = por %p62, %p63
      %s66 = sadd.s32 %s65, 1
      %p69 = scmp.eq.s32.totalorder %s31, 1
      %p70 = scmp.ne.s32.totalorder %s65, %s67
      %p71 = scmp.eq.s32.totalorder %s31, 0
      %p72 = por %p70, %p71
      %p73 = scmp.ne.s32.totalorder %s65, %s67
      %p74 = scmp.eq.s32.totalorder %s36, 1
      %p75 = por %p73, %p74
      %p76 = scmp.ne.s32.totalorder %s67, %s68
      %p77 = scmp.eq.s32.totalorder %s36, 0
      %p78 = por %p76, %p77
      %p79 = scmp.ne.s32.totalorder %s67, %s68
      %p80 = scmp.eq.s32.totalorder %s37, 1
      %p81 = por %p79, %p80
      %p83 = scmp.ne.s32.totalorder %s68, %s82
      %p84 = scmp.eq.s32.totalorder %s37, 0
      %p85 = por %p83, %p84
      %s87 = sadd.s32 %s86, 1
      %p90 = scmp.eq.s32.totalorder %s31, 1
      %p91 = scmp.ne.s32.totalorder %s86, %s88
      %p92 = scmp.eq.s32.totalorder %s31, 0
      %p93 = por %p91, %p92
      %p94 = scmp.ne.s32.totalorder %s86, %s88
      %p95 = scmp.eq.s32.totalorder %s36, 1
      %p96 = por %p94, %p95
      %p97 = scmp.ne.s32.totalorder %s88, %s89
      %p98 = scmp.eq.s32.totalorder %s36, 0
      %p99 = por %p97, %p98
      %p100 = scmp.ne.s32.totalorder %s88, %s89
      %p101 = scmp.eq.s32.totalorder %s37, 1
      %p102 = por %p100, %p101
      %p104 = scmp.ne.s32.totalorder %s89, %s103
      %p105 = scmp.eq.s32.totalorder %s37, 0
      %p106 = por %p104, %p105
      %s108 = sadd.s32 %s107, 1
      %p111 = scmp.eq.s32.totalorder %s31, 1
      %p112 = scmp.ne.s32.totalorder %s107, %s109
      %p113 = scmp.eq.s32.totalorder %s31, 0
      %p114 = por %p112, %p113
      %p115 = scmp.ne.s32.totalorder %s107, %s109
      %p116 = scmp.eq.s32.totalorder %s36, 1
      %p117 = por %p115, %p116
      %p118 = scmp.ne.s32.totalorder %s109, %s110
      %p119 = scmp.eq.s32.totalorder %s36, 0
      %p120 = por %p118, %p119
      %p121 = scmp.ne.s32.totalorder %s109, %s110
      %p122 = scmp.eq.s32.totalorder %s37, 1
      %p123 = por %p121, %p122
      %p125 = scmp.ne.s32.totalorder %s110, %s124
      %p126 = scmp.eq.s32.totalorder %s37, 0
      %p127 = por %p125, %p126
      %s129 = sadd.s32 %s128, 1
      %p132 = scmp.eq.s32.totalorder %s31, 1
      %p133 = scmp.ne.s32.totalorder %s128, %s130
      %p134 = scmp.eq.s32.totalorder %s31, 0
      %p135 = por %p133, %p134
      %p136 = scmp.ne.s32.totalorder %s128, %s130
      %p137 = scmp.eq.s32.totalorder %s36, 1
      %p138 = por %p136, %p137
      %p139 = scmp.ne.s32.totalorder %s130, %s131
      %p140 = scmp.eq.s32.totalorder %s36, 0
      %p141 = por %p139, %p140
      %p142 = scmp.ne.s32.totalorder %s130, %s131
      %p143 = scmp.eq.s32.totalorder %s37, 1
      %p144 = por %p142, %p143
      %p146 = scmp.ne.s32.totalorder %s131, %s145
      %p147 = scmp.eq.s32.totalorder %s37, 0
      %p148 = por %p146, %p147
      %s150 = sadd.s32 %s149, 1
      %p153 = scmp.eq.s32.totalorder %s31, 1
      %p154 = scmp.ne.s32.totalorder %s149, %s151
      %p155 = scmp.eq.s32.totalorder %s31, 0
      %p156 = por %p154, %p155
      %p157 = scmp.ne.s32.totalorder %s149, %s151
      %p158 = scmp.eq.s32.totalorder %s36, 1
      %p159 = por %p157, %p158
      %p160 = scmp.ne.s32.totalorder %s151, %s152
      %p161 = scmp.eq.s32.totalorder %s36, 0
      %p162 = por %p160, %p161
      %p163 = scmp.ne.s32.totalorder %s151, %s152
      %p164 = scmp.eq.s32.totalorder %s37, 1
      %p165 = por %p163, %p164
      %p167 = scmp.ne.s32.totalorder %s152, %s166
      %p168 = scmp.eq.s32.totalorder %s37, 0
      %p169 = por %p167, %p168
      %s171 = sadd.s32 %s170, 1
      %p174 = scmp.eq.s32.totalorder %s31, 1
      %p175 = scmp.ne.s32.totalorder %s170, %s172
      %p176 = scmp.eq.s32.totalorder %s31, 0
      %p177 = por %p175, %p176
      %p178 = scmp.ne.s32.totalorder %s170, %s172
      %p179 = scmp.eq.s32.totalorder %s36, 1
      %p180 = por %p178, %p179
      %p181 = scmp.ne.s32.totalorder %s172, %s173
      %p182 = scmp.eq.s32.totalorder %s36, 0
      %p183 = por %p181, %p182
      %p184 = scmp.ne.s32.totalorder %s172, %s173
      %p185 = scmp.eq.s32.totalorder %s37, 1
      %p186 = por %p184, %p185
      %p188 = scmp.ne.s32.totalorder %s173, %s187
      %p189 = scmp.eq.s32.totalorder %s37, 0
      %p190 = por %p188, %p189
      %s192 = sadd.s32 %s191, 1
      %p195 = scmp.eq.s32.totalorder %s31, 1
      %p196 = scmp.ne.s32.totalorder %s191, %s193
      %p197 = scmp.eq.s32.totalorder %s31, 0
      %p198 = por %p196, %p197
      %p199 = scmp.ne.s32.totalorder %s191, %s193
      %p200 = scmp.eq.s32.totalorder %s36, 1
      %p201 = por %p199, %p200
      %p202 = scmp.ne.s32.totalorder %s193, %s194
      %p203 = scmp.eq.s32.totalorder %s36, 0
      %p204 = por %p202, %p203
      %p205 = scmp.ne.s32.totalorder %s193, %s194
      %p206 = scmp.eq.s32.totalorder %s37, 1
      %p207 = por %p205, %p206
      %p209 = scmp.ne.s32.totalorder %s194, %s208
      %p210 = scmp.eq.s32.totalorder %s37, 0
      %p211 = por %p209, %p210
      %s213 = sadd.s32 %s212, 1
      %p216 = scmp.eq.s32.totalorder %s31, 1
      %p217 = scmp.ne.s32.totalorder %s212, %s214
      %p218 = scmp.eq.s32.totalorder %s31, 0
      %p219 = por %p217, %p218
      %p220 = scmp.ne.s32.totalorder %s212, %s214
      %p221 = scmp.eq.s32.totalorder %s36, 1
      %p222 = por %p220, %p221
      %p223 = scmp.ne.s32.totalorder %s214, %s215
      %p224 = scmp.eq.s32.totalorder %s36, 0
      %p225 = por %p223, %p224
      %p226 = scmp.ne.s32.totalorder %s214, %s215
      %p227 = scmp.eq.s32.totalorder %s37, 1
      %p228 = por %p226, %p227
      %p230 = scmp.ne.s32.totalorder %s215, %s229
      %p231 = scmp.eq.s32.totalorder %s37, 0
      %p232 = por %p230, %p231
      %s234 = sadd.s32 %s233, 1
      %p237 = scmp.eq.s32.totalorder %s31, 1
      %p238 = scmp.ne.s32.totalorder %s233, %s235
      %p239 = scmp.eq.s32.totalorder %s31, 0
      %p240 = por %p238, %p239
      %p241 = scmp.ne.s32.totalorder %s233, %s235
      %p242 = scmp.eq.s32.totalorder %s36, 1
      %p243 = por %p241, %p242
      %p244 = scmp.ne.s32.totalorder %s235, %s236
      %p245 = scmp.eq.s32.totalorder %s36, 0
      %p246 = por %p244, %p245
      %p247 = scmp.ne.s32.totalorder %s235, %s236
      %p248 = scmp.eq.s32.totalorder %s37, 1
      %p249 = por %p247, %p248
      %p251 = scmp.ne.s32.totalorder %s236, %s250
      %p252 = scmp.eq.s32.totalorder %s37, 0
      %p253 = por %p251, %p252
      %s255 = sadd.s32 %s254, 1
      %p258 = scmp.eq.s32.totalorder %s31, 1
      %p259 = scmp.ne.s32.totalorder %s254, %s256
      %p260 = scmp.eq.s32.totalorder %s31, 0
      %p261 = por %p259, %p260
      %p262 = scmp.ne.s32.totalorder %s254, %s256
      %p263 = scmp.eq.s32.totalorder %s36, 1
      %p264 = por %p262, %p263
      %p265 = scmp.ne.s32.totalorder %s256, %s257
      %p266 = scmp.eq.s32.totalorder %s36, 0
      %p267 = por %p265, %p266
      %p268 = scmp.ne.s32.totalorder %s256, %s257
      %p269 = scmp.eq.s32.totalorder %s37, 1
      %p270 = por %p268, %p269
      %p272 = scmp.ne.s32.totalorder %s257, %s271
      %p273 = scmp.eq.s32.totalorder %s37, 0
      %p274 = por %p272, %p273
      %s276 = sadd.s32 %s275, 1
      %p279 = scmp.eq.s32.totalorder %s31, 1
      %p280 = scmp.ne.s32.totalorder %s275, %s277
      %p281 = scmp.eq.s32.totalorder %s31, 0
      %p282 = por %p280, %p281
      %p283 = scmp.ne.s32.totalorder %s275, %s277
      %p284 = scmp.eq.s32.totalorder %s36, 1
      %p285 = por %p283, %p284
      %p286 = scmp.ne.s32.totalorder %s277, %s278
      %p287 = scmp.eq.s32.totalorder %s36, 0
      %p288 = por %p286, %p287
      %p289 = scmp.ne.s32.totalorder %s277, %s278
      %p290 = scmp.eq.s32.totalorder %s37, 1
      %p291 = por %p289, %p290
      %p293 = scmp.ne.s32.totalorder %s278, %s292
      %p294 = scmp.eq.s32.totalorder %s37, 0
      %p295 = por %p293, %p294
      %s297 = sadd.s32 %s296, 1
      %p300 = scmp.eq.s32.totalorder %s31, 1
      %p301 = scmp.ne.s32.totalorder %s296, %s298
      %p302 = scmp.eq.s32.totalorder %s31, 0
      %p303 = por %p301, %p302
      %p304 = scmp.ne.s32.totalorder %s296, %s298
      %p305 = scmp.eq.s32.totalorder %s36, 1
      %p306 = por %p304, %p305
      %p307 = scmp.ne.s32.totalorder %s298, %s299
      %p308 = scmp.eq.s32.totalorder %s36, 0
      %p309 = por %p307, %p308
      %p310 = scmp.ne.s32.totalorder %s298, %s299
      %p311 = scmp.eq.s32.totalorder %s37, 1
      %p312 = por %p310, %p311
      %p314 = scmp.ne.s32.totalorder %s299, %s313
      %p315 = scmp.eq.s32.totalorder %s37, 0
      %p316 = por %p314, %p315
      %s318 = sadd.s32 %s317, 1
      %p321 = scmp.eq.s32.totalorder %s31, 1
      %p322 = scmp.ne.s32.totalorder %s317, %s319
      %p323 = scmp.eq.s32.totalorder %s31, 0
      %p324 = por %p322, %p323
      %p325 = scmp.ne.s32.totalorder %s317, %s319
      %p326 = scmp.eq.s32.totalorder %s36, 1
      %p327 = por %p325, %p326
      %p328 = scmp.ne.s32.totalorder %s319, %s320
      %p329 = scmp.eq.s32.totalorder %s36, 0
      %p330 = por %p328, %p329
      %p331 = scmp.ne.s32.totalorder %s319, %s320
      %p332 = scmp.eq.s32.totalorder %s37, 1
      %p333 = por %p331, %p332
      %p335 = scmp.ne.s32.totalorder %s320, %s334
      %p336 = scmp.eq.s32.totalorder %s37, 0
      %p337 = por %p335, %p336
      %s339 = sadd.s32 %s338, 1
      %p342 = scmp.eq.s32.totalorder %s31, 1
      %p343 = scmp.ne.s32.totalorder %s338, %s340
      %p344 = scmp.eq.s32.totalorder %s31, 0
      %p345 = por %p343, %p344
      %p346 = scmp.ne.s32.totalorder %s338, %s340
      %p347 = scmp.eq.s32.totalorder %s36, 1
      %p348 = por %p346, %p347
      %p349 = scmp.ne.s32.totalorder %s340, %s341
      %p350 = scmp.eq.s32.totalorder %s36, 0
      %p351 = por %p349, %p350
      %p352 = scmp.ne.s32.totalorder %s340, %s341
      %p353 = scmp.eq.s32.totalorder %s37, 1
      %p354 = por %p352, %p353
      %p356 = scmp.ne.s32.totalorder %s341, %s355
      %p357 = scmp.eq.s32.totalorder %s37, 0
      %p358 = por %p356, %p357
      %s360 = sadd.s32 %s359, 1
      %p363 = scmp.eq.s32.totalorder %s31, 1
      %p364 = scmp.ne.s32.totalorder %s359, %s361
      %p365 = scmp.eq.s32.totalorder %s31, 0
      %p366 = por %p364, %p365
      %p367 = scmp.ne.s32.totalorder %s359, %s361
      %p368 = scmp.eq.s32.totalorder %s36, 1
      %p369 = por %p367, %p368
      %p370 = scmp.ne.s32.totalorder %s361, %s362
      %p371 = scmp.eq.s32.totalorder %s36, 0
      %p372 = por %p370, %p371
      %p373 = scmp.ne.s32.totalorder %s361, %s362
      %p374 = scmp.eq.s32.totalorder %s37, 1
      %p375 = por %p373, %p374
      %p377 = scmp.ne.s32.totalorder %s362, %s376
      %p378 = scmp.eq.s32.totalorder %s37, 0
      %p379 = por %p377, %p378
      %s381 = sadd.s32 %s380, 1
      %p384 = scmp.eq.s32.totalorder %s31, 1
      %p385 = scmp.ne.s32.totalorder %s380, %s382
      %p386 = scmp.eq.s32.totalorder %s31, 0
      %p387 = por %p385, %p386
      %p388 = scmp.ne.s32.totalorder %s380, %s382
      %p389 = scmp.eq.s32.totalorder %s36, 1
      %p390 = por %p388, %p389
      %p391 = scmp.ne.s32.totalorder %s382, %s383
      %p392 = scmp.eq.s32.totalorder %s36, 0
      %p393 = por %p391, %p392
      %p394 = scmp.ne.s32.totalorder %s382, %s383
      %p395 = scmp.eq.s32.totalorder %s37, 1
      %p396 = por %p394, %p395
      %p398 = scmp.ne.s32.totalorder %s383, %s397
      %p399 = scmp.eq.s32.totalorder %s37, 0
      %p400 = por %p398, %p399
      %s402 = sadd.s32 %s401, 1
      %p405 = scmp.eq.s32.totalorder %s31, 1
      %p406 = scmp.ne.s32.totalorder %s401, %s403
      %p407 = scmp.eq.s32.totalorder %s31, 0
      %p408 = por %p406, %p407
      %p409 = scmp.ne.s32.totalorder %s401, %s403
      %p410 = scmp.eq.s32.totalorder %s36, 1
      %p411 = por %p409, %p410
      %p412 = scmp.ne.s32.totalorder %s403, %s404
      %p413 = scmp.eq.s32.totalorder %s36, 0
      %p414 = por %p412, %p413
      %p415 = scmp.ne.s32.totalorder %s403, %s404
      %p416 = scmp.eq.s32.totalorder %s37, 1
      %p417 = por %p415, %p416
      %p419 = scmp.ne.s32.totalorder %s404, %s418
      %p420 = scmp.eq.s32.totalorder %s37, 0
      %p421 = por %p419, %p420
      %s423 = sadd.s32 %s422, 1
      %p426 = scmp.eq.s32.totalorder %s31, 1
      %p427 = scmp.ne.s32.totalorder %s422, %s424
      %p428 = scmp.eq.s32.totalorder %s31, 0
      %p429 = por %p427, %p428
      %p430 = scmp.ne.s32.totalorder %s422, %s424
      %p431 = scmp.eq.s32.totalorder %s36, 1
      %p432 = por %p430, %p431
      %p433 = scmp.ne.s32.totalorder %s424, %s425
      %p434 = scmp.eq.s32.totalorder %s36, 0
      %p435 = por %p433, %p434
      %p436 = scmp.ne.s32.totalorder %s424, %s425
      %p437 = scmp.eq.s32.totalorder %s37, 1
      %p438 = por %p436, %p437
      %p440 = scmp.ne.s32.totalorder %s425, %s439
      %p441 = scmp.eq.s32.totalorder %s37, 0
      %p442 = por %p440, %p441
      %s444 = sadd.s32 %s443, 1
      %p447 = scmp.eq.s32.totalorder %s31, 1
      %p448 = scmp.ne.s32.totalorder %s443, %s445
      %p449 = scmp.eq.s32.totalorder %s31, 0
      %p450 = por %p448, %p449
      %p451 = scmp.ne.s32.totalorder %s443, %s445
      %p452 = scmp.eq.s32.totalorder %s36, 1
      %p453 = por %p451, %p452
      %p454 = scmp.ne.s32.totalorder %s445, %s446
      %p455 = scmp.eq.s32.totalorder %s36, 0
      %p456 = por %p454, %p455
      %p457 = scmp.ne.s32.totalorder %s445, %s446
      %p458 = scmp.eq.s32.totalorder %s37, 1
      %p459 = por %p457, %p458
      %p461 = scmp.ne.s32.totalorder %s446, %s460
      %p462 = scmp.eq.s32.totalorder %s37, 0
      %p463 = por %p461, %p462
      %s464 = ssub.s32 %s31, %s38
      %p465 = scmp.eq.s32.totalorder %s464, 0
      %s467 = sadd.s32 %s466, 1
      %s468 = scalar_select %p465, %s466, %s467
      %p471 = pneg %p465
      %p472 = scmp.eq.s32.totalorder %s31, 1
      %p473 = por %p471, %p472
      %p474 = scmp.ne.s32.totalorder %s466, %s469
      %p475 = scmp.eq.s32.totalorder %s31, 0
      %p476 = por %p474, %p475
      %p477 = scmp.ne.s32.totalorder %s466, %s469
      %p478 = scmp.eq.s32.totalorder %s36, 1
      %p479 = por %p477, %p478
      %p480 = scmp.ne.s32.totalorder %s469, %s470
      %p481 = scmp.eq.s32.totalorder %s36, 0
      %p482 = por %p480, %p481
      %p483 = scmp.ne.s32.totalorder %s469, %s470
      %p484 = scmp.eq.s32.totalorder %s37, 1
      %p485 = por %p483, %p484
      %p487 = scmp.ne.s32.totalorder %s470, %s486
      %p488 = scmp.eq.s32.totalorder %s37, 0
      %p489 = por %p487, %p488
      %p490 = scmp.le.s32.totalorder 1, %s31
      %p491 = scmp.lt.s32.totalorder %s31, 3
      %p492 = pnand %p490, %p491
      %p493 = pneg %p492
      // Predicated region
      $region9: #{_lambda_.7} parent=5 // pred_check
        _
      $region10: #{_lambda_.7} parent=5 // pred_check_branch
        %495 = sbr.rel (%p492) target = $region12
      $region11: #{_lambda_.7} parent=5 // pred_region
        %s496 = ssub.s32 %s31, 1
        // Predicated region
        $region13: #{_lambda_.7} parent=11 // pred_check
          %p497 = pneg %p78
        $region14: #{_lambda_.7} parent=11 // pred_check_branch
          %499 = sbr.rel (%p497) target = $region16
        $region15: #{_lambda_.7} parent=11 // pred_region
          _
        $region16: #{_lambda_.7} parent=11 // pred_fallthru
          _
        // Predicated region
        $region17: #{_lambda_.7} parent=11 // pred_check
          %p500 = pneg %p99
        $region18: #{_lambda_.7} parent=11 // pred_check_branch
          %502 = sbr.rel (%p500) target = $region20
        $region19: #{_lambda_.7} parent=11 // pred_region
          %504 = vsyncadd [#allocation3], 0
          %s506 = sshll.u32 %s2, 4
          %s507 = int_to_ptr.hbm [resolvable:$true] %s506
          %s508 = sshll.u32 [#allocation2], 4
          %s509 = int_to_ptr.vmem [resolvable:$true] %s508
          %511 = dma.hbm_to_vmem [thread:$0]  %s507, 16, %s509, [#allocation3]
        $region20: #{_lambda_.7} parent=11 // pred_fallthru
          _
        // Predicated region
        $region21: #{_lambda_.7} parent=11 // pred_check
          %p512 = pneg %p120
        $region22: #{_lambda_.7} parent=11 // pred_check_branch
          %514 = sbr.rel (%p512) target = $region24
        $region23: #{_lambda_.7} parent=11 // pred_region
          _
        $region24: #{_lambda_.7} parent=11 // pred_fallthru
          _
        // Predicated region
        $region25: #{_lambda_.7} parent=11 // pred_check
          %p515 = pneg %p141
        $region26: #{_lambda_.7} parent=11 // pred_check_branch
          %517 = sbr.rel (%p515) target = $region28
        $region27: #{_lambda_.7} parent=11 // pred_region
          %519 = vsyncadd [#allocation5], 0
          %s521 = sshll.u32 %s4, 4
          %s522 = int_to_ptr.hbm [resolvable:$true] %s521
          %s523 = sshll.u32 [#allocation4], 4
          %s524 = int_to_ptr.vmem [resolvable:$true] %s523
          %526 = dma.hbm_to_vmem [thread:$0]  %s522, 16, %s524, [#allocation5]
        $region28: #{_lambda_.7} parent=11 // pred_fallthru
          _
        // Predicated region
        $region29: #{_lambda_.7} parent=11 // pred_check
          %p527 = pneg %p162
        $region30: #{_lambda_.7} parent=11 // pred_check_branch
          %529 = sbr.rel (%p527) target = $region32
        $region31: #{_lambda_.7} parent=11 // pred_region
          _
        $region32: #{_lambda_.7} parent=11 // pred_fallthru
          _
        // Predicated region
        $region33: #{_lambda_.7} parent=11 // pred_check
          %p530 = pneg %p183
        $region34: #{_lambda_.7} parent=11 // pred_check_branch
          %532 = sbr.rel (%p530) target = $region36
        $region35: #{_lambda_.7} parent=11 // pred_region
          _
        $region36: #{_lambda_.7} parent=11 // pred_fallthru
          _
        // Predicated region
        $region37: #{_lambda_.7} parent=11 // pred_check
          %p533 = pneg %p204
        $region38: #{_lambda_.7} parent=11 // pred_check_branch
          %535 = sbr.rel (%p533) target = $region40
        $region39: #{_lambda_.7} parent=11 // pred_region
          %537 = vsyncadd [#allocation5], 0
          %s539 = sshll.u32 %s7, 4
          %s540 = int_to_ptr.hbm [resolvable:$true] %s539
          %s541 = sshll.u32 [#allocation6], 4
          %s542 = int_to_ptr.vmem [resolvable:$true] %s541
          %544 = dma.hbm_to_vmem [thread:$0]  %s540, 16, %s542, [#allocation5]
        $region40: #{_lambda_.7} parent=11 // pred_fallthru
          _
        // Predicated region
        $region41: #{_lambda_.7} parent=11 // pred_check
          %p545 = pneg %p225
        $region42: #{_lambda_.7} parent=11 // pred_check_branch
          %547 = sbr.rel (%p545) target = $region44
        $region43: #{_lambda_.7} parent=11 // pred_region
          _
        $region44: #{_lambda_.7} parent=11 // pred_fallthru
          _
        // Predicated region
        $region45: #{_lambda_.7} parent=11 // pred_check
          %p548 = pneg %p246
        $region46: #{_lambda_.7} parent=11 // pred_check_branch
          %550 = sbr.rel (%p548) target = $region48
        $region47: #{_lambda_.7} parent=11 // pred_region
          %552 = vsyncadd [#allocation8], 0
          %s554 = sshll.u32 %s9, 4
          %s555 = int_to_ptr.hbm [resolvable:$true] %s554
          %s556 = sshll.u32 [#allocation7], 4
          %s557 = int_to_ptr.vmem [resolvable:$true] %s556
          %559 = dma.hbm_to_vmem [thread:$0]  %s555, 16, %s557, [#allocation8]
        $region48: #{_lambda_.7} parent=11 // pred_fallthru
          _
        // Predicated region
        $region49: #{_lambda_.7} parent=11 // pred_check
          %p560 = pneg %p267
        $region50: #{_lambda_.7} parent=11 // pred_check_branch
          %562 = sbr.rel (%p560) target = $region52
        $region51: #{_lambda_.7} parent=11 // pred_region
          _
        $region52: #{_lambda_.7} parent=11 // pred_fallthru
          _
        // Predicated region
        $region53: #{_lambda_.7} parent=11 // pred_check
          %p563 = pneg %p288
        $region54: #{_lambda_.7} parent=11 // pred_check_branch
          %565 = sbr.rel (%p563) target = $region56
        $region55: #{_lambda_.7} parent=11 // pred_region
          %567 = vsyncadd [#allocation8], 0
          %s569 = sshll.u32 %s11, 4
          %s570 = int_to_ptr.hbm [resolvable:$true] %s569
          %s571 = sshll.u32 [#allocation9], 4
          %s572 = int_to_ptr.vmem [resolvable:$true] %s571
          %574 = dma.hbm_to_vmem [thread:$0]  %s570, 16, %s572, [#allocation8]
        $region56: #{_lambda_.7} parent=11 // pred_fallthru
          _
        // Predicated region
        $region57: #{_lambda_.7} parent=11 // pred_check
          %p575 = pneg %p309
        $region58: #{_lambda_.7} parent=11 // pred_check_branch
          %577 = sbr.rel (%p575) target = $region60
        $region59: #{_lambda_.7} parent=11 // pred_region
          _
        $region60: #{_lambda_.7} parent=11 // pred_fallthru
          _
        // Predicated region
        $region61: #{_lambda_.7} parent=11 // pred_check
          %p578 = pneg %p330
        $region62: #{_lambda_.7} parent=11 // pred_check_branch
          %580 = sbr.rel (%p578) target = $region64
        $region63: #{_lambda_.7} parent=11 // pred_region
          %582 = vsyncadd [#allocation11], 0
          %s584 = sshll.u32 %s13, 4
          %s585 = int_to_ptr.hbm [resolvable:$true] %s584
          %s586 = sshll.u32 [#allocation10], 4
          %s587 = int_to_ptr.vmem [resolvable:$true] %s586
          %589 = dma.hbm_to_vmem [thread:$0]  %s585, 32, %s587, [#allocation11]
        $region64: #{_lambda_.7} parent=11 // pred_fallthru
          _
        // Predicated region
        $region65: #{_lambda_.7} parent=11 // pred_check
          %p590 = pneg %p351
        $region66: #{_lambda_.7} parent=11 // pred_check_branch
          %592 = sbr.rel (%p590) target = $region68
        $region67: #{_lambda_.7} parent=11 // pred_region
          _
        $region68: #{_lambda_.7} parent=11 // pred_fallthru
          _
        // Predicated region
        $region69: #{_lambda_.7} parent=11 // pred_check
          %p593 = pneg %p372
        $region70: #{_lambda_.7} parent=11 // pred_check_branch
          %595 = sbr.rel (%p593) target = $region72
        $region71: #{_lambda_.7} parent=11 // pred_region
          %597 = vsyncadd [#allocation11], 0
          %s599 = sshll.u32 %s15, 4
          %s600 = int_to_ptr.hbm [resolvable:$true] %s599
          %s601 = sshll.u32 [#allocation12], 4
          %s602 = int_to_ptr.vmem [resolvable:$true] %s601
          %604 = dma.hbm_to_vmem [thread:$0]  %s600, 16, %s602, [#allocation11]
        $region72: #{_lambda_.7} parent=11 // pred_fallthru
          _
        // Predicated region
        $region73: #{_lambda_.7} parent=11 // pred_check
          %p605 = pneg %p393
        $region74: #{_lambda_.7} parent=11 // pred_check_branch
          %607 = sbr.rel (%p605) target = $region76
        $region75: #{_lambda_.7} parent=11 // pred_region
          _
        $region76: #{_lambda_.7} parent=11 // pred_fallthru
          _
        // Predicated region
        $region77: #{_lambda_.7} parent=11 // pred_check
          %p608 = pneg %p414
        $region78: #{_lambda_.7} parent=11 // pred_check_branch
          %610 = sbr.rel (%p608) target = $region80
        $region79: #{_lambda_.7} parent=11 // pred_region
          %612 = vsyncadd [#allocation14], 0
          %s614 = sshll.u32 %s17, 4
          %s615 = int_to_ptr.hbm [resolvable:$true] %s614
          %s616 = sshll.u32 [#allocation13], 4
          %s617 = int_to_ptr.vmem [resolvable:$true] %s616
          %619 = dma.hbm_to_vmem [thread:$0]  %s615, 32, %s617, [#allocation14]
        $region80: #{_lambda_.7} parent=11 // pred_fallthru
          _
        // Predicated region
        $region81: #{_lambda_.7} parent=11 // pred_check
          %p620 = pneg %p435
        $region82: #{_lambda_.7} parent=11 // pred_check_branch
          %622 = sbr.rel (%p620) target = $region84
        $region83: #{_lambda_.7} parent=11 // pred_region
          _
        $region84: #{_lambda_.7} parent=11 // pred_fallthru
          _
        // Predicated region
        $region85: #{_lambda_.7} parent=11 // pred_check
          %p623 = pneg %p456
        $region86: #{_lambda_.7} parent=11 // pred_check_branch
          %625 = sbr.rel (%p623) target = $region88
        $region87: #{_lambda_.7} parent=11 // pred_region
          %627 = vsyncadd [#allocation14], 0
          %s629 = sshll.u32 %s19, 4
          %s630 = int_to_ptr.hbm [resolvable:$true] %s629
          %s631 = sshll.u32 [#allocation15], 4
          %s632 = int_to_ptr.vmem [resolvable:$true] %s631
          %634 = dma.hbm_to_vmem [thread:$0]  %s630, 16, %s632, [#allocation14]
        $region88: #{_lambda_.7} parent=11 // pred_fallthru
          _
      $region12: #{_lambda_.7} parent=5 // pred_fallthru
        _
      %p635 = scmp.lt.s32.totalorder %s31, 2
      // Predicated region
      $region89: #{_lambda_.7} parent=5 // pred_check
        %p636 = pneg %p635
      $region90: #{_lambda_.7} parent=5 // pred_check_branch
        %638 = sbr.rel (%p636) target = $region92
      $region91: #{_lambda_.7} parent=5 // pred_region
        // Predicated region
        $region93: #{_lambda_.7} parent=91 // pred_check
          %p639 = pneg %p51
        $region94: #{_lambda_.7} parent=91 // pred_check_branch
          %641 = sbr.rel (%p639) target = $region96
        $region95: #{_lambda_.7} parent=91 // pred_region
          %p642 = scmp.lt.s32.totalorder %s31, 1
          %s643 = scalar_select %p642, %s31, 1
          %s644 = smul.addr %s643, 2
          %s645 = smul.addr %s644, 8
          %s646 = scalar_lea.vmem %s0, %s645
        $region96: #{_lambda_.7} parent=91 // pred_fallthru
          _
      $region92: #{_lambda_.7} parent=5 // pred_fallthru
        _
      %p647 = scmp.le.s32.totalorder 1, %s31
      %p648 = scmp.lt.s32.totalorder %s31, 3
      %p649 = pnand %p647, %p648
      %p650 = pneg %p649
      // Predicated region
      $region97: #{_lambda_.7} parent=5 // pred_check
        _
      $region98: #{_lambda_.7} parent=5 // pred_check_branch
        %652 = sbr.rel (%p649) target = $region100
      $region99: #{_lambda_.7} parent=5 // pred_region
        %s653 = ssub.s32 %s31, 1
        // Predicated region
        $region101: #{_lambda_.7} parent=99 // pred_check
          %p654 = pneg %p99
        $region102: #{_lambda_.7} parent=99 // pred_check_branch
          %656 = sbr.rel (%p654) target = $region104
        $region103: #{_lambda_.7} parent=99 // pred_region
          %658 = dma.done [#allocation3], 16
        $region104: #{_lambda_.7} parent=99 // pred_fallthru
          _
        // Predicated region
        $region105: #{_lambda_.7} parent=99 // pred_check
          %p659 = pneg %p141
        $region106: #{_lambda_.7} parent=99 // pred_check_branch
          %661 = sbr.rel (%p659) target = $region108
        $region107: #{_lambda_.7} parent=99 // pred_region
          %663 = dma.done [#allocation5], 16
        $region108: #{_lambda_.7} parent=99 // pred_fallthru
          _
        // Predicated region
        $region109: #{_lambda_.7} parent=99 // pred_check
          %p664 = pneg %p204
        $region110: #{_lambda_.7} parent=99 // pred_check_branch
          %666 = sbr.rel (%p664) target = $region112
        $region111: #{_lambda_.7} parent=99 // pred_region
          %668 = dma.done [#allocation5], 16
        $region112: #{_lambda_.7} parent=99 // pred_fallthru
          _
        // Predicated region
        $region113: #{_lambda_.7} parent=99 // pred_check
          %p669 = pneg %p246
        $region114: #{_lambda_.7} parent=99 // pred_check_branch
          %671 = sbr.rel (%p669) target = $region116
        $region115: #{_lambda_.7} parent=99 // pred_region
          %673 = dma.done [#allocation8], 16
        $region116: #{_lambda_.7} parent=99 // pred_fallthru
          _
        // Predicated region
        $region117: #{_lambda_.7} parent=99 // pred_check
          %p674 = pneg %p288
        $region118: #{_lambda_.7} parent=99 // pred_check_branch
          %676 = sbr.rel (%p674) target = $region120
        $region119: #{_lambda_.7} parent=99 // pred_region
          %678 = dma.done [#allocation8], 16
        $region120: #{_lambda_.7} parent=99 // pred_fallthru
          _
        // Predicated region
        $region121: #{_lambda_.7} parent=99 // pred_check
          %p679 = pneg %p330
        $region122: #{_lambda_.7} parent=99 // pred_check_branch
          %681 = sbr.rel (%p679) target = $region124
        $region123: #{_lambda_.7} parent=99 // pred_region
          %683 = dma.done [#allocation11], 32
        $region124: #{_lambda_.7} parent=99 // pred_fallthru
          _
        // Predicated region
        $region125: #{_lambda_.7} parent=99 // pred_check
          %p684 = pneg %p372
        $region126: #{_lambda_.7} parent=99 // pred_check_branch
          %686 = sbr.rel (%p684) target = $region128
        $region127: #{_lambda_.7} parent=99 // pred_region
          %688 = dma.done [#allocation11], 16
        $region128: #{_lambda_.7} parent=99 // pred_fallthru
          _
        // Predicated region
        $region129: #{_lambda_.7} parent=99 // pred_check
          %p689 = pneg %p414
        $region130: #{_lambda_.7} parent=99 // pred_check_branch
          %691 = sbr.rel (%p689) target = $region132
        $region131: #{_lambda_.7} parent=99 // pred_region
          %693 = dma.done [#allocation14], 32
        $region132: #{_lambda_.7} parent=99 // pred_fallthru
          _
        // Predicated region
        $region133: #{_lambda_.7} parent=99 // pred_check
          %p694 = pneg %p456
        $region134: #{_lambda_.7} parent=99 // pred_check_branch
          %696 = sbr.rel (%p694) target = $region136
        $region135: #{_lambda_.7} parent=99 // pred_region
          %698 = dma.done [#allocation14], 16
        $region136: #{_lambda_.7} parent=99 // pred_fallthru
          _
        %p699 = scmp.lt.s32.totalorder %s36, 1
        %s700 = scalar_select %p699, %s36, 1
        %s701 = smul.addr %s700, 2
        %s702 = smul.addr %s701, 8
        %s703 = scalar_lea.vmem %s0, %s702
        %p704 = pneg %p57
        %p705 = pneg %p54
        %p706 = pneg %p78
        %p707 = pneg %p75
        %p708 = pneg %p99
        %p709 = pneg %p96
        %p710 = pneg %p120
        %p711 = pneg %p117
        %p712 = pneg %p141
        %p713 = pneg %p138
        %p714 = pneg %p162
        %p715 = pneg %p159
        %p716 = pneg %p183
        %p717 = pneg %p180
        %p718 = pneg %p204
        %p719 = pneg %p201
        %p720 = pneg %p225
        %p721 = pneg %p222
        %p722 = pneg %p246
        %p723 = pneg %p243
        %p724 = pneg %p267
        %p725 = pneg %p264
        %p726 = pneg %p288
        %p727 = pneg %p285
        %p728 = pneg %p309
        %p729 = pneg %p306
        %p730 = pneg %p330
        %p731 = pneg %p327
        %p732 = pneg %p351
        %p733 = pneg %p348
        %p734 = pneg %p372
        %p735 = pneg %p369
        %p736 = pneg %p393
        %p737 = pneg %p390
        %p738 = pneg %p414
        %p739 = pneg %p411
        %p740 = pneg %p435
        %p741 = pneg %p432
        %p742 = pneg %p456
        %p743 = pneg %p453
        %p744 = pneg %p482
        %p745 = pneg %p479
        %p746 = scmp.lt.s32.totalorder %s36, 1
        %s747 = scalar_select %p746, %s36, 1
        %s748 = smul.addr %s747, 2
        %s749 = smul.addr %s748, 8
        %s750 = scalar_lea.vmem %s20, %s749
        %p751 = scmp.lt.s32.totalorder %s36, 1
        %s752 = scalar_select %p751, %s36, 1
        %s753 = smul.addr %s752, 2
        %s754 = smul.addr %s753, 8
        %s755 = scalar_lea.vmem %s0, %s754
        %p756 = scmp.lt.s32.totalorder %s36, 1
        %s757 = scalar_select %p756, %s36, 1
        %s758 = smul.addr %s757, 2
        %s759 = smul.addr %s758, 8
        %s760 = scalar_lea.vmem %s20, %s759
        %v762 = vld [vmem:[%s755] sm:$0xff]
        %v763 = vld [vmem:[%s755 + $0x8] sm:$0xff]
        %vm764 = vcmask 523264
        %v766 = vsel %vm764, %v762, 0
        %v769 = vsel %vm764, %v763, 0
        %771 = vmatpush.xpose.msra.mxu0 0.0
        %772 = vmatpush.xpose.msra.mxu0 0.0
        %773 = vmatpush.xpose.msra.mxu0 0.0
        %774 = vmatpush.xpose.msra.mxu0 0.0
        %775 = vmatpush.xpose.msra.mxu0 0.0
        %776 = vmatpush.xpose.msra.mxu0 0.0
        %777 = vmatpush.xpose.msra.mxu0 0.0
        %778 = vmatpush.xpose.msra.mxu0 0.0
        %779 = vmatpush.xpose.msra.mxu0 0.0
        %780 = vmatpush.xpose.msra.mxu0 0.0
        %781 = vmatpush.xpose.msra.mxu0 0.0
        %782 = vmatpush.xpose.msra.mxu0 0.0
        %783 = vmatpush.xpose.msra.mxu0 0.0
        %784 = vmatpush.xpose.msra.mxu0 0.0
        %785 = vmatpush.xpose.msra.mxu0 %v769
        %786 = vmatpush.xpose.msra.mxu0 %v766
        %787 = vmatmul.f32.gmra.mxu0 %v766
        %v788 = vpop.f32.mrf.mxu0
        %v789 = vadd.f32 0.0, %v788
        %790 = vmatmul.f32.gmra.mxu0 %v769
        %v791 = vpop.f32.mrf.mxu0
        %v792 = vadd.f32 0.0, %v791
        %793 = vdwg.mxu0
        %v794 = vpack.c.bf16 %v763, %v762
        %v795 = vld [vmem:[%s1] sm:$0xf]
        %v796 = vld [vmem:[%s1 + $0x4] sm:$0xf]
        %v797 = vld [vmem:[%s1 + $0x8] sm:$0xf]
        %v798 = vld [vmem:[%s1 + $0xc] sm:$0xf]
        %v799 = vld [vmem:[%s1 + $0x10] sm:$0xf]
        %v800 = vld [vmem:[%s1 + $0x14] sm:$0xf]
        %v801 = vld [vmem:[%s1 + $0x18] sm:$0xf]
        %v802 = vld [vmem:[%s1 + $0x1c] sm:$0xf]
        %v803 = vld [vmem:[#allocation2] sm:$0x1]
        %v805 = vperm.slane %v803, 0
        %v815 = vunpack.c.l.b16 %v795
        %v816 = vunpack.c.l.b16 %v796
        %v817 = vunpack.c.l.b16 %v797
        %v818 = vunpack.c.l.b16 %v798
        %v819 = vunpack.c.l.b16 %v799
        %v820 = vunpack.c.l.b16 %v800
        %v821 = vunpack.c.l.b16 %v801
        %v822 = vunpack.c.l.b16 %v802
        %v823 = vpack.c.b16 %v816, %v815
        %v824 = vpack.c.b16 %v818, %v817
        %v825 = vpack.c.b16 %v820, %v819
        %v826 = vpack.c.b16 %v822, %v821
        %v832 = vsel %vm764, %v794, 0
        %834 = vmatpush.bf16.msra.mxu0 0
        %835 = vmatpush.bf16.msra.mxu0 0
        %836 = vmatpush.bf16.msra.mxu0 0
        %837 = vmatpush.bf16.msra.mxu0 0
        %838 = vmatpush.bf16.msra.mxu0 %v826
        %839 = vmatpush.bf16.msra.mxu0 %v825
        %840 = vmatpush.bf16.msra.mxu0 %v824
        %841 = vmatpush.bf16.msra.mxu0 %v823
        %842 = vmatmul.bf16.gmra.mxu0 %v832
        %v843 = vpop.f32.mrf.mxu0
        %v844 = vadd.f32 %v805, %v843
        %v845 = vpop.f32.mrf.mxu0
        %v846 = vadd.f32 %v805, %v845
        %847 = vdwg.mxu0
        %v848 = vmul.f32 %v844, 0.5
        %v849 = vmul.f32 %v846, 0.5
        %v850 = vmul.f32 %v844, 0.70710677
        %v851 = vmul.f32 %v846, 0.70710677
        %v852 = vand.u32 2147483647, %v850
        %v853 = vand.u32 2147483647, %v851
        %v854 = vmul.f32 %v852, 0.3275911
        %v855 = vmul.f32 %v853, 0.3275911
        %v856 = vadd.f32 %v854, 1.0
        %v857 = vadd.f32 %v855, 1.0
        %v858 = vrcp.pop %v856
        %v859 = vrcp.pop %v857
        %v860 = vmul.f32 %v858, 1.0614054
        %v861 = vmul.f32 %v859, 1.0614054
        %v862 = vadd.f32 %v860, -1.4531521
        %v863 = vadd.f32 %v861, -1.4531521
        %v864 = vmul.f32 %v862, %v858
        %v865 = vmul.f32 %v863, %v859
        %v866 = vadd.f32 %v864, 1.4214138
        %v867 = vadd.f32 %v865, 1.4214138
        %v868 = vmul.f32 %v866, %v858
        %v869 = vmul.f32 %v867, %v859
        %v870 = vadd.f32 %v868, -0.28449672
        %v871 = vadd.f32 %v869, -0.28449672
        %v872 = vmul.f32 %v870, %v858
        %v873 = vmul.f32 %v871, %v859
        %v874 = vadd.f32 %v872, 0.2548296
        %v875 = vadd.f32 %v873, 0.2548296
        %v876 = vmul.f32 %v874, %v858
        %v877 = vmul.f32 %v875, %v859
        %v878 = vsub.f32 0.0, %v852
        %v879 = vsub.f32 0.0, %v853
        %v880 = vmul.f32 %v878, %v852
        %v881 = vmul.f32 %v879, %v853
        %v882 = vmul.f32 %v880, 1.442695
        %v883 = vpow.pop %v882
        %v884 = vmul.f32 %v881, 1.442695
        %v885 = vpow.pop %v884
        %v886 = vmul.f32 %v876, %v883
        %v887 = vmul.f32 %v877, %v885
        %v888 = vsub.f32 1.0, %v886
        %v889 = vsub.f32 1.0, %v887
        %vm890 = vcmp.ge.f32.partialorder %v850, 0.0
        %vm891 = vcmp.ge.f32.partialorder %v851, 0.0
        %v892 = vsub.f32 0.0, %v888
        %v893 = vsub.f32 0.0, %v889
        %v894 = vsel %vm890, %v888, %v892
        %v895 = vsel %vm891, %v889, %v893
        %v896 = vadd.f32 %v894, 1.0
        %v897 = vadd.f32 %v895, 1.0
        %v898 = vmul.f32 %v848, %v896
        %v899 = vmul.f32 %v849, %v897
        %v900 = vpack.c.bf16 %v899, %v898
        %v901 = vld [vmem:[%s3] sm:$0xf]
        %v902 = vld [vmem:[%s3 + $0x4] sm:$0xf]
        %v903 = vld [vmem:[%s3 + $0x8] sm:$0xf]
        %v904 = vld [vmem:[%s3 + $0xc] sm:$0xf]
        %v905 = vld [vmem:[%s3 + $0x10] sm:$0xf]
        %v906 = vld [vmem:[%s3 + $0x14] sm:$0xf]
        %v907 = vld [vmem:[%s3 + $0x18] sm:$0xf]
        %v908 = vld [vmem:[%s3 + $0x1c] sm:$0xf]
        %v909 = vld [vmem:[#allocation4] sm:$0x1]
        %v911 = vperm.slane %v909, 0
        %v921 = vunpack.c.l.b16 %v901
        %v922 = vunpack.c.l.b16 %v902
        %v923 = vunpack.c.l.b16 %v903
        %v924 = vunpack.c.l.b16 %v904
        %v925 = vunpack.c.l.b16 %v905
        %v926 = vunpack.c.l.b16 %v906
        %v927 = vunpack.c.l.b16 %v907
        %v928 = vunpack.c.l.b16 %v908
        %v929 = vpack.c.b16 %v922, %v921
        %v930 = vpack.c.b16 %v924, %v923
        %v931 = vpack.c.b16 %v926, %v925
        %v932 = vpack.c.b16 %v928, %v927
        %v938 = vsel %vm764, %v900, 0
        %940 = vmatpush.bf16.msra.mxu0 0
        %941 = vmatpush.bf16.msra.mxu0 0
        %942 = vmatpush.bf16.msra.mxu0 0
        %943 = vmatpush.bf16.msra.mxu0 0
        %944 = vmatpush.bf16.msra.mxu0 %v932
        %945 = vmatpush.bf16.msra.mxu0 %v931
        %946 = vmatpush.bf16.msra.mxu0 %v930
        %947 = vmatpush.bf16.msra.mxu0 %v929
        %948 = vmatmul.bf16.gmra.mxu0 %v938
        %v949 = vpop.f32.mrf.mxu0
        %v950 = vadd.f32 %v911, %v949
        %v951 = vpop.f32.mrf.mxu0
        %v952 = vadd.f32 %v911, %v951
        %953 = vdwg.mxu0
        %v954 = vadd.f32 %v950, %v762
        %v955 = vadd.f32 %v952, %v763
        %vm956 = vcmask 130048
        %v957 = vsel %vm956, %v789, -inf
        %958 = vmax.xlane.f32.xlu0 %v957
        %v959 = vpop.xlane.xlu0 %958
        %v960 = vsel %vm956, %v792, -inf
        %961 = vmax.xlane.f32.xlu0 %v960
        %v962 = vpop.xlane.xlu0 %961
        %vm963 = vcmp.ge.f32.partialorder %v789, %v959
        %vm964 = vcmp.ge.f32.partialorder %v792, %v962
        %v965 = vsel %vm963, -3e+38, %v789
        %v966 = vsel %vm964, -3e+38, %v792
        %v967 = vsel %vm956, %v965, -inf
        %968 = vmax.xlane.f32.xlu0 %v967
        %v969 = vpop.xlane.xlu0 %968
        %v970 = vsel %vm956, %v966, -inf
        %971 = vmax.xlane.f32.xlu0 %v970
        %v972 = vpop.xlane.xlu0 %971
        %vm973 = vcmp.ge.f32.partialorder %v965, %v969
        %vm974 = vcmp.ge.f32.partialorder %v966, %v972
        %vm975 = vmor %vm963, %vm973
        %vm976 = vmor %vm964, %vm974
        %v977 = vsel %vm973, -3e+38, %v965
        %v978 = vsel %vm974, -3e+38, %v966
        %v979 = vsel %vm956, %v977, -inf
        %980 = vmax.xlane.f32.xlu0 %v979
        %v981 = vpop.xlane.xlu0 %980
        %v982 = vsel %vm956, %v978, -inf
        %983 = vmax.xlane.f32.xlu0 %v982
        %v984 = vpop.xlane.xlu0 %983
        %vm985 = vcmp.ge.f32.partialorder %v977, %v981
        %vm986 = vcmp.ge.f32.partialorder %v978, %v984
        %vm987 = vmor %vm975, %vm985
        %vm988 = vmor %vm976, %vm986
        %v989 = vsel %vm985, -3e+38, %v977
        %v990 = vsel %vm986, -3e+38, %v978
        %v991 = vsel %vm956, %v989, -inf
        %992 = vmax.xlane.f32.xlu0 %v991
        %v993 = vpop.xlane.xlu0 %992
        %v994 = vsel %vm956, %v990, -inf
        %995 = vmax.xlane.f32.xlu0 %v994
        %v996 = vpop.xlane.xlu0 %995
        %vm997 = vcmp.ge.f32.partialorder %v989, %v993
        %vm998 = vcmp.ge.f32.partialorder %v990, %v996
        %vm999 = vmor %vm987, %vm997
        %vm1000 = vmor %vm988, %vm998
        %v1001 = vsel %vm997, -3e+38, %v989
        %v1002 = vsel %vm998, -3e+38, %v990
        %v1003 = vsel %vm956, %v1001, -inf
        %1004 = vmax.xlane.f32.xlu0 %v1003
        %v1005 = vpop.xlane.xlu0 %1004
        %v1006 = vsel %vm956, %v1002, -inf
        %1007 = vmax.xlane.f32.xlu0 %v1006
        %v1008 = vpop.xlane.xlu0 %1007
        %vm1009 = vcmp.ge.f32.partialorder %v1001, %v1005
        %vm1010 = vcmp.ge.f32.partialorder %v1002, %v1008
        %vm1011 = vmor %vm999, %vm1009
        %vm1012 = vmor %vm1000, %vm1010
        %v1013 = vsel %vm1009, -3e+38, %v1001
        %v1014 = vsel %vm1010, -3e+38, %v1002
        %v1015 = vsel %vm956, %v1013, -inf
        %1016 = vmax.xlane.f32.xlu0 %v1015
        %v1017 = vpop.xlane.xlu0 %1016
        %v1018 = vsel %vm956, %v1014, -inf
        %1019 = vmax.xlane.f32.xlu0 %v1018
        %v1020 = vpop.xlane.xlu0 %1019
        %vm1021 = vcmp.ge.f32.partialorder %v1013, %v1017
        %vm1022 = vcmp.ge.f32.partialorder %v1014, %v1020
        %vm1023 = vmor %vm1011, %vm1021
        %vm1024 = vmor %vm1012, %vm1022
        %v1025 = vsel %vm1021, -3e+38, %v1013
        %v1026 = vsel %vm1022, -3e+38, %v1014
        %v1027 = vsel %vm956, %v1025, -inf
        %1028 = vmax.xlane.f32.xlu0 %v1027
        %v1029 = vpop.xlane.xlu0 %1028
        %v1030 = vsel %vm956, %v1026, -inf
        %1031 = vmax.xlane.f32.xlu0 %v1030
        %v1032 = vpop.xlane.xlu0 %1031
        %vm1033 = vcmp.ge.f32.partialorder %v1025, %v1029
        %vm1034 = vcmp.ge.f32.partialorder %v1026, %v1032
        %vm1035 = vmor %vm1023, %vm1033
        %vm1036 = vmor %vm1024, %vm1034
        %v1037 = vsel %vm1033, -3e+38, %v1025
        %v1038 = vsel %vm1034, -3e+38, %v1026
        %v1039 = vsel %vm956, %v1037, -inf
        %1040 = vmax.xlane.f32.xlu0 %v1039
        %v1041 = vpop.xlane.xlu0 %1040
        %v1042 = vsel %vm956, %v1038, -inf
        %1043 = vmax.xlane.f32.xlu0 %v1042
        %v1044 = vpop.xlane.xlu0 %1043
        %vm1045 = vcmp.ge.f32.partialorder %v1037, %v1041
        %vm1046 = vcmp.ge.f32.partialorder %v1038, %v1044
        %vm1047 = vmor %vm1035, %vm1045
        %vm1048 = vmor %vm1036, %vm1046
        %v1049 = vsel %vm1045, -3e+38, %v1037
        %v1050 = vsel %vm1046, -3e+38, %v1038
        %v1051 = vsel %vm956, %v1049, -inf
        %1052 = vmax.xlane.f32.xlu0 %v1051
        %v1053 = vpop.xlane.xlu0 %1052
        %v1054 = vsel %vm956, %v1050, -inf
        %1055 = vmax.xlane.f32.xlu0 %v1054
        %v1056 = vpop.xlane.xlu0 %1055
        %vm1057 = vcmp.ge.f32.partialorder %v1049, %v1053
        %vm1058 = vcmp.ge.f32.partialorder %v1050, %v1056
        %vm1059 = vmor %vm1047, %vm1057
        %vm1060 = vmor %vm1048, %vm1058
        %v1061 = vsel %vm1059, 1, 0
        %v1062 = vsel %vm1060, 1, 0
        %1063 = vset.pattern.permute.xlu0 0
        %1064 = vperm.xlu0 %1063, %v1061
        %v1065 = vpop.permute.xlu0 %1064
        %1066 = vset.pattern.permute.xlu0 0
        %1067 = vperm.xlu0 %1066, %v1062
        %v1068 = vpop.permute.xlu0 %1067
        %vm1069 = vcmp.eq.s32.totalorder %v1065, 1
        %vm1070 = vcmp.eq.s32.totalorder %v1068, 1
        %v1071 = vperm.slane %v954, 0
        %v1072 = vsel %vm1069, %v1071, -3e+38
        %v1073 = vsel %vm1070, %v1071, -3e+38
        %v1074 = vmax.f32 %v1072, -3e+38
        %v1075 = vmax.f32 %v1073, -3e+38
        %1076 = vset.pattern.permute.xlu0 1
        %1077 = vperm.xlu0 %1076, %v1061
        %v1078 = vpop.permute.xlu0 %1077
        %1079 = vset.pattern.permute.xlu0 1
        %1080 = vperm.xlu0 %1079, %v1062
        %v1081 = vpop.permute.xlu0 %1080
        %vm1082 = vcmp.eq.s32.totalorder %v1078, 1
        %vm1083 = vcmp.eq.s32.totalorder %v1081, 1
        %v1084 = vperm.slane %v954, 1
        %v1085 = vsel %vm1082, %v1084, -3e+38
        %v1086 = vsel %vm1083, %v1084, -3e+38
        %v1087 = vmax.f32 %v1074, %v1085
        %v1088 = vmax.f32 %v1075, %v1086
        %1089 = vset.pattern.permute.xlu0 2
        %1090 = vperm.xlu0 %1089, %v1061
        %v1091 = vpop.permute.xlu0 %1090
        %1092 = vset.pattern.permute.xlu0 2
        %1093 = vperm.xlu0 %1092, %v1062
        %v1094 = vpop.permute.xlu0 %1093
        %vm1095 = vcmp.eq.s32.totalorder %v1091, 1
        %vm1096 = vcmp.eq.s32.totalorder %v1094, 1
        %v1097 = vperm.slane %v954, 2
        %v1098 = vsel %vm1095, %v1097, -3e+38
        %v1099 = vsel %vm1096, %v1097, -3e+38
        %v1100 = vmax.f32 %v1087, %v1098
        %v1101 = vmax.f32 %v1088, %v1099
        %1102 = vset.pattern.permute.xlu0 3
        %1103 = vperm.xlu0 %1102, %v1061
        %v1104 = vpop.permute.xlu0 %1103
        %1105 = vset.pattern.permute.xlu0 3
        %1106 = vperm.xlu0 %1105, %v1062
        %v1107 = vpop.permute.xlu0 %1106
        %vm1108 = vcmp.eq.s32.totalorder %v1104, 1
        %vm1109 = vcmp.eq.s32.totalorder %v1107, 1
        %v1110 = vperm.slane %v954, 3
        %v1111 = vsel %vm1108, %v1110, -3e+38
        %v1112 = vsel %vm1109, %v1110, -3e+38
        %v1113 = vmax.f32 %v1100, %v1111
        %v1114 = vmax.f32 %v1101, %v1112
        %1115 = vset.pattern.permute.xlu0 4
        %1116 = vperm.xlu0 %1115, %v1061
        %v1117 = vpop.permute.xlu0 %1116
        %1118 = vset.pattern.permute.xlu0 4
        %1119 = vperm.xlu0 %1118, %v1062
        %v1120 = vpop.permute.xlu0 %1119
        %vm1121 = vcmp.eq.s32.totalorder %v1117, 1
        %vm1122 = vcmp.eq.s32.totalorder %v1120, 1
        %v1123 = vperm.slane %v954, 4
        %v1124 = vsel %vm1121, %v1123, -3e+38
        %v1125 = vsel %vm1122, %v1123, -3e+38
        %v1126 = vmax.f32 %v1113, %v1124
        %v1127 = vmax.f32 %v1114, %v1125
        %1128 = vset.pattern.permute.xlu0 5
        %1129 = vperm.xlu0 %1128, %v1061
        %v1130 = vpop.permute.xlu0 %1129
        %1131 = vset.pattern.permute.xlu0 5
        %1132 = vperm.xlu0 %1131, %v1062
        %v1133 = vpop.permute.xlu0 %1132
        %vm1134 = vcmp.eq.s32.totalorder %v1130, 1
        %vm1135 = vcmp.eq.s32.totalorder %v1133, 1
        %v1136 = vperm.slane %v954, 5
        %v1137 = vsel %vm1134, %v1136, -3e+38
        %v1138 = vsel %vm1135, %v1136, -3e+38
        %v1139 = vmax.f32 %v1126, %v1137
        %v1140 = vmax.f32 %v1127, %v1138
        %1141 = vset.pattern.permute.xlu0 6
        %1142 = vperm.xlu0 %1141, %v1061
        %v1143 = vpop.permute.xlu0 %1142
        %1144 = vset.pattern.permute.xlu0 6
        %1145 = vperm.xlu0 %1144, %v1062
        %v1146 = vpop.permute.xlu0 %1145
        %vm1147 = vcmp.eq.s32.totalorder %v1143, 1
        %vm1148 = vcmp.eq.s32.totalorder %v1146, 1
        %v1149 = vperm.slane %v954, 6
        %v1150 = vsel %vm1147, %v1149, -3e+38
        %v1151 = vsel %vm1148, %v1149, -3e+38
        %v1152 = vmax.f32 %v1139, %v1150
        %v1153 = vmax.f32 %v1140, %v1151
        %1154 = vset.pattern.permute.xlu0 7
        %1155 = vperm.xlu0 %1154, %v1061
        %v1156 = vpop.permute.xlu0 %1155
        %1157 = vset.pattern.permute.xlu0 7
        %1158 = vperm.xlu0 %1157, %v1062
        %v1159 = vpop.permute.xlu0 %1158
        %vm1160 = vcmp.eq.s32.totalorder %v1156, 1
        %vm1161 = vcmp.eq.s32.totalorder %v1159, 1
        %v1162 = vperm.slane %v954, 7
        %v1163 = vsel %vm1160, %v1162, -3e+38
        %v1164 = vsel %vm1161, %v1162, -3e+38
        %v1165 = vmax.f32 %v1152, %v1163
        %v1166 = vmax.f32 %v1153, %v1164
        %1167 = vset.pattern.permute.xlu0 8
        %1168 = vperm.xlu0 %1167, %v1061
        %v1169 = vpop.permute.xlu0 %1168
        %1170 = vset.pattern.permute.xlu0 8
        %1171 = vperm.xlu0 %1170, %v1062
        %v1172 = vpop.permute.xlu0 %1171
        %vm1173 = vcmp.eq.s32.totalorder %v1169, 1
        %vm1174 = vcmp.eq.s32.totalorder %v1172, 1
        %v1175 = vperm.slane %v955, 0
        %v1176 = vsel %vm1173, %v1175, -3e+38
        %v1177 = vsel %vm1174, %v1175, -3e+38
        %v1178 = vmax.f32 %v1165, %v1176
        %v1179 = vmax.f32 %v1166, %v1177
        %1180 = vset.pattern.permute.xlu0 9
        %1181 = vperm.xlu0 %1180, %v1061
        %v1182 = vpop.permute.xlu0 %1181
        %1183 = vset.pattern.permute.xlu0 9
        %1184 = vperm.xlu0 %1183, %v1062
        %v1185 = vpop.permute.xlu0 %1184
        %vm1186 = vcmp.eq.s32.totalorder %v1182, 1
        %vm1187 = vcmp.eq.s32.totalorder %v1185, 1
        %v1188 = vperm.slane %v955, 1
        %v1189 = vsel %vm1186, %v1188, -3e+38
        %v1190 = vsel %vm1187, %v1188, -3e+38
        %v1191 = vmax.f32 %v1178, %v1189
        %v1192 = vmax.f32 %v1179, %v1190
        %1193 = vset.pattern.permute.xlu0 10
        %1194 = vperm.xlu0 %1193, %v1061
        %v1195 = vpop.permute.xlu0 %1194
        %1196 = vset.pattern.permute.xlu0 10
        %1197 = vperm.xlu0 %1196, %v1062
        %v1198 = vpop.permute.xlu0 %1197
        %vm1199 = vcmp.eq.s32.totalorder %v1195, 1
        %vm1200 = vcmp.eq.s32.totalorder %v1198, 1
        %v1201 = vperm.slane %v955, 2
        %v1202 = vsel %vm1199, %v1201, -3e+38
        %v1203 = vsel %vm1200, %v1201, -3e+38
        %v1204 = vmax.f32 %v1191, %v1202
        %v1205 = vmax.f32 %v1192, %v1203
        %1206 = vset.pattern.permute.xlu0 11
        %1207 = vperm.xlu0 %1206, %v1061
        %v1208 = vpop.permute.xlu0 %1207
        %1209 = vset.pattern.permute.xlu0 11
        %1210 = vperm.xlu0 %1209, %v1062
        %v1211 = vpop.permute.xlu0 %1210
        %vm1212 = vcmp.eq.s32.totalorder %v1208, 1
        %vm1213 = vcmp.eq.s32.totalorder %v1211, 1
        %v1214 = vperm.slane %v955, 3
        %v1215 = vsel %vm1212, %v1214, -3e+38
        %v1216 = vsel %vm1213, %v1214, -3e+38
        %v1217 = vmax.f32 %v1204, %v1215
        %v1218 = vmax.f32 %v1205, %v1216
        %1219 = vset.pattern.permute.xlu0 12
        %1220 = vperm.xlu0 %1219, %v1061
        %v1221 = vpop.permute.xlu0 %1220
        %1222 = vset.pattern.permute.xlu0 12
        %1223 = vperm.xlu0 %1222, %v1062
        %v1224 = vpop.permute.xlu0 %1223
        %vm1225 = vcmp.eq.s32.totalorder %v1221, 1
        %vm1226 = vcmp.eq.s32.totalorder %v1224, 1
        %v1227 = vperm.slane %v955, 4
        %v1228 = vsel %vm1225, %v1227, -3e+38
        %v1229 = vsel %vm1226, %v1227, -3e+38
        %v1230 = vmax.f32 %v1217, %v1228
        %v1231 = vmax.f32 %v1218, %v1229
        %1232 = vset.pattern.permute.xlu0 13
        %1233 = vperm.xlu0 %1232, %v1061
        %v1234 = vpop.permute.xlu0 %1233
        %1235 = vset.pattern.permute.xlu0 13
        %1236 = vperm.xlu0 %1235, %v1062
        %v1237 = vpop.permute.xlu0 %1236
        %vm1238 = vcmp.eq.s32.totalorder %v1234, 1
        %vm1239 = vcmp.eq.s32.totalorder %v1237, 1
        %v1240 = vperm.slane %v955, 5
        %v1241 = vsel %vm1238, %v1240, -3e+38
        %v1242 = vsel %vm1239, %v1240, -3e+38
        %v1243 = vmax.f32 %v1230, %v1241
        %v1244 = vmax.f32 %v1231, %v1242
        %1245 = vset.pattern.permute.xlu0 14
        %1246 = vperm.xlu0 %1245, %v1061
        %v1247 = vpop.permute.xlu0 %1246
        %1248 = vset.pattern.permute.xlu0 14
        %1249 = vperm.xlu0 %1248, %v1062
        %v1250 = vpop.permute.xlu0 %1249
        %vm1251 = vcmp.eq.s32.totalorder %v1247, 1
        %vm1252 = vcmp.eq.s32.totalorder %v1250, 1
        %v1253 = vperm.slane %v955, 6
        %v1254 = vsel %vm1251, %v1253, -3e+38
        %v1255 = vsel %vm1252, %v1253, -3e+38
        %v1256 = vmax.f32 %v1243, %v1254
        %v1257 = vmax.f32 %v1244, %v1255
        %1258 = vset.pattern.permute.xlu0 15
        %1259 = vperm.xlu0 %1258, %v1061
        %v1260 = vpop.permute.xlu0 %1259
        %1261 = vset.pattern.permute.xlu0 15
        %1262 = vperm.xlu0 %1261, %v1062
        %v1263 = vpop.permute.xlu0 %1262
        %vm1264 = vcmp.eq.s32.totalorder %v1260, 1
        %vm1265 = vcmp.eq.s32.totalorder %v1263, 1
        %v1266 = vperm.slane %v955, 7
        %v1267 = vsel %vm1264, %v1266, -3e+38
        %v1268 = vsel %vm1265, %v1266, -3e+38
        %v1269 = vmax.f32 %v1256, %v1267
        %v1270 = vmax.f32 %v1257, %v1268
        %v1271 = vsub.f32 %v1269, %v954
        %v1272 = vsub.f32 %v1270, %v955
        %v1273 = vpack.c.bf16 %v955, %v954
        %v1274 = vld [vmem:[%s5] sm:$0xf]
        %v1275 = vld [vmem:[%s5 + $0x4] sm:$0xf]
        %v1276 = vld [vmem:[%s5 + $0x8] sm:$0xf]
        %v1277 = vld [vmem:[%s5 + $0xc] sm:$0xf]
        %v1278 = vld [vmem:[%s5 + $0x10] sm:$0xf]
        %v1279 = vld [vmem:[%s5 + $0x14] sm:$0xf]
        %v1280 = vld [vmem:[%s5 + $0x18] sm:$0xf]
        %v1281 = vld [vmem:[%s5 + $0x1c] sm:$0xf]
        %v1282 = vpack.c.bf16 %v1272, %v1271
        %v1283 = vld [vmem:[%s6] sm:$0xf]
        %v1284 = vld [vmem:[%s6 + $0x4] sm:$0xf]
        %v1285 = vld [vmem:[%s6 + $0x8] sm:$0xf]
        %v1286 = vld [vmem:[%s6 + $0xc] sm:$0xf]
        %v1287 = vld [vmem:[%s6 + $0x10] sm:$0xf]
        %v1288 = vld [vmem:[%s6 + $0x14] sm:$0xf]
        %v1289 = vld [vmem:[%s6 + $0x18] sm:$0xf]
        %v1290 = vld [vmem:[%s6 + $0x1c] sm:$0xf]
        %v1299 = vunpack.c.l.b16 %v1283
        %v1300 = vunpack.c.l.b16 %v1284
        %v1301 = vunpack.c.l.b16 %v1285
        %v1302 = vunpack.c.l.b16 %v1286
        %v1303 = vunpack.c.l.b16 %v1287
        %v1304 = vunpack.c.l.b16 %v1288
        %v1305 = vunpack.c.l.b16 %v1289
        %v1306 = vunpack.c.l.b16 %v1290
        %v1307 = vpack.c.b16 %v1300, %v1299
        %v1308 = vpack.c.b16 %v1302, %v1301
        %v1309 = vpack.c.b16 %v1304, %v1303
        %v1310 = vpack.c.b16 %v1306, %v1305
        %v1316 = vsel %vm764, %v1282, 0
        %1318 = vmatpush.bf16.msra.mxu0 0
        %1319 = vmatpush.bf16.msra.mxu0 0
        %1320 = vmatpush.bf16.msra.mxu0 0
        %1321 = vmatpush.bf16.msra.mxu0 0
        %1322 = vmatpush.bf16.msra.mxu0 %v1310
        %1323 = vmatpush.bf16.msra.mxu0 %v1309
        %1324 = vmatpush.bf16.msra.mxu0 %v1308
        %1325 = vmatpush.bf16.msra.mxu0 %v1307
        %1326 = vmatmul.bf16.gmra.mxu0 %v1316
        %v1327 = vpop.f32.mrf.mxu0
        %v1328 = vadd.f32 0.0, %v1327
        %v1329 = vpop.f32.mrf.mxu0
        %v1330 = vadd.f32 0.0, %v1329
        %1331 = vdwg.mxu0
        %v1340 = vunpack.c.l.b16 %v1274
        %v1341 = vunpack.c.l.b16 %v1275
        %v1342 = vunpack.c.l.b16 %v1276
        %v1343 = vunpack.c.l.b16 %v1277
        %v1344 = vunpack.c.l.b16 %v1278
        %v1345 = vunpack.c.l.b16 %v1279
        %v1346 = vunpack.c.l.b16 %v1280
        %v1347 = vunpack.c.l.b16 %v1281
        %v1348 = vpack.c.b16 %v1341, %v1340
        %v1349 = vpack.c.b16 %v1343, %v1342
        %v1350 = vpack.c.b16 %v1345, %v1344
        %v1351 = vpack.c.b16 %v1347, %v1346
        %v1357 = vsel %vm764, %v1273, 0
        %1359 = vmatpush.bf16.msra.mxu0 0
        %1360 = vmatpush.bf16.msra.mxu0 0
        %1361 = vmatpush.bf16.msra.mxu0 0
        %1362 = vmatpush.bf16.msra.mxu0 0
        %1363 = vmatpush.bf16.msra.mxu0 %v1351
        %1364 = vmatpush.bf16.msra.mxu0 %v1350
        %1365 = vmatpush.bf16.msra.mxu0 %v1349
        %1366 = vmatpush.bf16.msra.mxu0 %v1348
        %1367 = vmatmul.bf16.gmra.mxu0 %v1357
        %v1368 = vpop.f32.mrf.mxu0
        %v1369 = vadd.f32 %v1328, %v1368
        %v1370 = vpop.f32.mrf.mxu0
        %v1371 = vadd.f32 %v1330, %v1370
        %1372 = vdwg.mxu0
        %v1373 = vld [vmem:[#allocation6] sm:$0x1]
        %v1375 = vperm.slane %v1373, 0
        %v1377 = vadd.f32 %v1369, %v1375
        %v1378 = vadd.f32 %v1371, %v1375
        %v1379 = vmul.f32 %v1377, 0.5
        %v1380 = vmul.f32 %v1378, 0.5
        %v1381 = vmul.f32 %v1377, 0.70710677
        %v1382 = vmul.f32 %v1378, 0.70710677
        %v1383 = vand.u32 2147483647, %v1381
        %v1384 = vand.u32 2147483647, %v1382
        %v1385 = vmul.f32 %v1383, 0.3275911
        %v1386 = vmul.f32 %v1384, 0.3275911
        %v1387 = vadd.f32 %v1385, 1.0
        %v1388 = vadd.f32 %v1386, 1.0
        %v1389 = vrcp.pop %v1387
        %v1390 = vrcp.pop %v1388
        %v1391 = vmul.f32 %v1389, 1.0614054
        %v1392 = vmul.f32 %v1390, 1.0614054
        %v1393 = vadd.f32 %v1391, -1.4531521
        %v1394 = vadd.f32 %v1392, -1.4531521
        %v1395 = vmul.f32 %v1393, %v1389
        %v1396 = vmul.f32 %v1394, %v1390
        %v1397 = vadd.f32 %v1395, 1.4214138
        %v1398 = vadd.f32 %v1396, 1.4214138
        %v1399 = vmul.f32 %v1397, %v1389
        %v1400 = vmul.f32 %v1398, %v1390
        %v1401 = vadd.f32 %v1399, -0.28449672
        %v1402 = vadd.f32 %v1400, -0.28449672
        %v1403 = vmul.f32 %v1401, %v1389
        %v1404 = vmul.f32 %v1402, %v1390
        %v1405 = vadd.f32 %v1403, 0.2548296
        %v1406 = vadd.f32 %v1404, 0.2548296
        %v1407 = vmul.f32 %v1405, %v1389
        %v1408 = vmul.f32 %v1406, %v1390
        %v1409 = vsub.f32 0.0, %v1383
        %v1410 = vsub.f32 0.0, %v1384
        %v1411 = vmul.f32 %v1409, %v1383
        %v1412 = vmul.f32 %v1410, %v1384
        %v1413 = vmul.f32 %v1411, 1.442695
        %v1414 = vpow.pop %v1413
        %v1415 = vmul.f32 %v1412, 1.442695
        %v1416 = vpow.pop %v1415
        %v1417 = vmul.f32 %v1407, %v1414
        %v1418 = vmul.f32 %v1408, %v1416
        %v1419 = vsub.f32 1.0, %v1417
        %v1420 = vsub.f32 1.0, %v1418
        %vm1421 = vcmp.ge.f32.partialorder %v1381, 0.0
        %vm1422 = vcmp.ge.f32.partialorder %v1382, 0.0
        %v1423 = vsub.f32 0.0, %v1419
        %v1424 = vsub.f32 0.0, %v1420
        %v1425 = vsel %vm1421, %v1419, %v1423
        %v1426 = vsel %vm1422, %v1420, %v1424
        %v1427 = vadd.f32 %v1425, 1.0
        %v1428 = vadd.f32 %v1426, 1.0
        %v1429 = vmul.f32 %v1379, %v1427
        %v1430 = vmul.f32 %v1380, %v1428
        %v1431 = vpack.c.bf16 %v1430, %v1429
        %v1432 = vld [vmem:[%s8] sm:$0xf]
        %v1433 = vld [vmem:[%s8 + $0x4] sm:$0xf]
        %v1434 = vld [vmem:[%s8 + $0x8] sm:$0xf]
        %v1435 = vld [vmem:[%s8 + $0xc] sm:$0xf]
        %v1436 = vld [vmem:[%s8 + $0x10] sm:$0xf]
        %v1437 = vld [vmem:[%s8 + $0x14] sm:$0xf]
        %v1438 = vld [vmem:[%s8 + $0x18] sm:$0xf]
        %v1439 = vld [vmem:[%s8 + $0x1c] sm:$0xf]
        %v1440 = vld [vmem:[#allocation7] sm:$0x1]
        %v1442 = vperm.slane %v1440, 0
        %v1452 = vunpack.c.l.b16 %v1432
        %v1453 = vunpack.c.l.b16 %v1433
        %v1454 = vunpack.c.l.b16 %v1434
        %v1455 = vunpack.c.l.b16 %v1435
        %v1456 = vunpack.c.l.b16 %v1436
        %v1457 = vunpack.c.l.b16 %v1437
        %v1458 = vunpack.c.l.b16 %v1438
        %v1459 = vunpack.c.l.b16 %v1439
        %v1460 = vpack.c.b16 %v1453, %v1452
        %v1461 = vpack.c.b16 %v1455, %v1454
        %v1462 = vpack.c.b16 %v1457, %v1456
        %v1463 = vpack.c.b16 %v1459, %v1458
        %v1469 = vsel %vm764, %v1431, 0
        %1471 = vmatpush.bf16.msra.mxu0 0
        %1472 = vmatpush.bf16.msra.mxu0 0
        %1473 = vmatpush.bf16.msra.mxu0 0
        %1474 = vmatpush.bf16.msra.mxu0 0
        %1475 = vmatpush.bf16.msra.mxu0 %v1463
        %1476 = vmatpush.bf16.msra.mxu0 %v1462
        %1477 = vmatpush.bf16.msra.mxu0 %v1461
        %1478 = vmatpush.bf16.msra.mxu0 %v1460
        %1479 = vmatmul.bf16.gmra.mxu0 %v1469
        %v1480 = vpop.f32.mrf.mxu0
        %v1481 = vadd.f32 %v1442, %v1480
        %v1482 = vpop.f32.mrf.mxu0
        %v1483 = vadd.f32 %v1442, %v1482
        %1484 = vdwg.mxu0
        %v1485 = vmul.f32 %v1481, 0.5
        %v1486 = vmul.f32 %v1483, 0.5
        %v1487 = vmul.f32 %v1481, 0.70710677
        %v1488 = vmul.f32 %v1483, 0.70710677
        %v1489 = vand.u32 2147483647, %v1487
        %v1490 = vand.u32 2147483647, %v1488
        %v1491 = vmul.f32 %v1489, 0.3275911
        %v1492 = vmul.f32 %v1490, 0.3275911
        %v1493 = vadd.f32 %v1491, 1.0
        %v1494 = vadd.f32 %v1492, 1.0
        %v1495 = vrcp.pop %v1493
        %v1496 = vrcp.pop %v1494
        %v1497 = vmul.f32 %v1495, 1.0614054
        %v1498 = vmul.f32 %v1496, 1.0614054
        %v1499 = vadd.f32 %v1497, -1.4531521
        %v1500 = vadd.f32 %v1498, -1.4531521
        %v1501 = vmul.f32 %v1499, %v1495
        %v1502 = vmul.f32 %v1500, %v1496
        %v1503 = vadd.f32 %v1501, 1.4214138
        %v1504 = vadd.f32 %v1502, 1.4214138
        %v1505 = vmul.f32 %v1503, %v1495
        %v1506 = vmul.f32 %v1504, %v1496
        %v1507 = vadd.f32 %v1505, -0.28449672
        %v1508 = vadd.f32 %v1506, -0.28449672
        %v1509 = vmul.f32 %v1507, %v1495
        %v1510 = vmul.f32 %v1508, %v1496
        %v1511 = vadd.f32 %v1509, 0.2548296
        %v1512 = vadd.f32 %v1510, 0.2548296
        %v1513 = vmul.f32 %v1511, %v1495
        %v1514 = vmul.f32 %v1512, %v1496
        %v1515 = vsub.f32 0.0, %v1489
        %v1516 = vsub.f32 0.0, %v1490
        %v1517 = vmul.f32 %v1515, %v1489
        %v1518 = vmul.f32 %v1516, %v1490
        %v1519 = vmul.f32 %v1517, 1.442695
        %v1520 = vpow.pop %v1519
        %v1521 = vmul.f32 %v1518, 1.442695
        %v1522 = vpow.pop %v1521
        %v1523 = vmul.f32 %v1513, %v1520
        %v1524 = vmul.f32 %v1514, %v1522
        %v1525 = vsub.f32 1.0, %v1523
        %v1526 = vsub.f32 1.0, %v1524
        %vm1527 = vcmp.ge.f32.partialorder %v1487, 0.0
        %vm1528 = vcmp.ge.f32.partialorder %v1488, 0.0
        %v1529 = vsub.f32 0.0, %v1525
        %v1530 = vsub.f32 0.0, %v1526
        %v1531 = vsel %vm1527, %v1525, %v1529
        %v1532 = vsel %vm1528, %v1526, %v1530
        %v1533 = vadd.f32 %v1531, 1.0
        %v1534 = vadd.f32 %v1532, 1.0
        %v1535 = vmul.f32 %v1485, %v1533
        %v1536 = vmul.f32 %v1486, %v1534
        %v1537 = vpack.c.bf16 %v1536, %v1535
        %v1538 = vld [vmem:[%s10] sm:$0xf]
        %v1539 = vld [vmem:[%s10 + $0x4] sm:$0xf]
        %v1540 = vld [vmem:[%s10 + $0x8] sm:$0xf]
        %v1541 = vld [vmem:[%s10 + $0xc] sm:$0xf]
        %v1542 = vld [vmem:[%s10 + $0x10] sm:$0xf]
        %v1543 = vld [vmem:[%s10 + $0x14] sm:$0xf]
        %v1544 = vld [vmem:[%s10 + $0x18] sm:$0xf]
        %v1545 = vld [vmem:[%s10 + $0x1c] sm:$0xf]
        %v1546 = vld [vmem:[#allocation9] sm:$0x1]
        %v1548 = vperm.slane %v1546, 0
        %v1558 = vunpack.c.l.b16 %v1538
        %v1559 = vunpack.c.l.b16 %v1539
        %v1560 = vunpack.c.l.b16 %v1540
        %v1561 = vunpack.c.l.b16 %v1541
        %v1562 = vunpack.c.l.b16 %v1542
        %v1563 = vunpack.c.l.b16 %v1543
        %v1564 = vunpack.c.l.b16 %v1544
        %v1565 = vunpack.c.l.b16 %v1545
        %v1566 = vpack.c.b16 %v1559, %v1558
        %v1567 = vpack.c.b16 %v1561, %v1560
        %v1568 = vpack.c.b16 %v1563, %v1562
        %v1569 = vpack.c.b16 %v1565, %v1564
        %v1575 = vsel %vm764, %v1537, 0
        %1577 = vmatpush.bf16.msra.mxu0 0
        %1578 = vmatpush.bf16.msra.mxu0 0
        %1579 = vmatpush.bf16.msra.mxu0 0
        %1580 = vmatpush.bf16.msra.mxu0 0
        %1581 = vmatpush.bf16.msra.mxu0 %v1569
        %1582 = vmatpush.bf16.msra.mxu0 %v1568
        %1583 = vmatpush.bf16.msra.mxu0 %v1567
        %1584 = vmatpush.bf16.msra.mxu0 %v1566
        %1585 = vmatmul.bf16.gmra.mxu0 %v1575
        %v1586 = vpop.f32.mrf.mxu0
        %v1587 = vadd.f32 %v1548, %v1586
        %v1588 = vpop.f32.mrf.mxu0
        %v1589 = vadd.f32 %v1548, %v1588
        %1590 = vdwg.mxu0
        %v1591 = vadd.f32 %v1587, %v1429
        %v1592 = vadd.f32 %v1589, %v1430
        %v1593 = vadd.f32 %v1591, %v762
        %v1594 = vadd.f32 %v1592, %v763
        %v1595 = vpack.c.bf16 %v1594, %v1593
        %v1596 = vld [vmem:[%s12] sm:$0xff]
        %v1597 = vld [vmem:[%s12 + $0x8] sm:$0xff]
        %v1598 = vld [vmem:[%s12 + $0x10] sm:$0xff]
        %v1599 = vld [vmem:[%s12 + $0x18] sm:$0xff]
        %v1600 = vld [vmem:[%s12 + $0x20] sm:$0xff]
        %v1601 = vld [vmem:[%s12 + $0x28] sm:$0xff]
        %v1602 = vld [vmem:[%s12 + $0x30] sm:$0xff]
        %v1603 = vld [vmem:[%s12 + $0x38] sm:$0xff]
        %v1604 = vld [vmem:[#allocation10] sm:$0x3]
        %v1606 = vperm.slane %v1604, 0
        %v1607 = vperm.slane %v1604, 1
        %v1618 = vunpack.c.l.b16 %v1596
        %v1619 = vunpack.c.h.b16 %v1596
        %v1620 = vunpack.c.l.b16 %v1597
        %v1621 = vunpack.c.h.b16 %v1597
        %v1622 = vunpack.c.l.b16 %v1598
        %v1623 = vunpack.c.h.b16 %v1598
        %v1624 = vunpack.c.l.b16 %v1599
        %v1625 = vunpack.c.h.b16 %v1599
        %v1626 = vunpack.c.l.b16 %v1600
        %v1627 = vunpack.c.h.b16 %v1600
        %v1628 = vunpack.c.l.b16 %v1601
        %v1629 = vunpack.c.h.b16 %v1601
        %v1630 = vunpack.c.l.b16 %v1602
        %v1631 = vunpack.c.h.b16 %v1602
        %v1632 = vunpack.c.l.b16 %v1603
        %v1633 = vunpack.c.h.b16 %v1603
        %v1634 = vpack.c.b16 %v1620, %v1618
        %v1635 = vpack.c.b16 %v1621, %v1619
        %v1636 = vpack.c.b16 %v1624, %v1622
        %v1637 = vpack.c.b16 %v1625, %v1623
        %v1638 = vpack.c.b16 %v1628, %v1626
        %v1639 = vpack.c.b16 %v1629, %v1627
        %v1640 = vpack.c.b16 %v1632, %v1630
        %v1641 = vpack.c.b16 %v1633, %v1631
        %v1651 = vsel %vm764, %v1595, 0
        %1653 = vmatpush.bf16.msra.mxu0 0
        %1654 = vmatpush.bf16.msra.mxu0 0
        %1655 = vmatpush.bf16.msra.mxu0 0
        %1656 = vmatpush.bf16.msra.mxu0 0
        %1657 = vmatpush.bf16.msra.mxu0 %v1640
        %1658 = vmatpush.bf16.msra.mxu0 %v1638
        %1659 = vmatpush.bf16.msra.mxu0 %v1636
        %1660 = vmatpush.bf16.msra.mxu0 %v1634
        %1661 = vmatmul.bf16.gmra.mxu0 %v1651
        %v1662 = vpop.f32.mrf.mxu0
        %v1663 = vadd.f32 %v1606, %v1662
        %v1664 = vpop.f32.mrf.mxu0
        %v1665 = vadd.f32 %v1606, %v1664
        %1666 = vdwg.mxu0
        %1667 = vmatpush.bf16.msra.mxu0 0
        %1668 = vmatpush.bf16.msra.mxu0 0
        %1669 = vmatpush.bf16.msra.mxu0 0
        %1670 = vmatpush.bf16.msra.mxu0 0
        %1671 = vmatpush.bf16.msra.mxu0 %v1641
        %1672 = vmatpush.bf16.msra.mxu0 %v1639
        %1673 = vmatpush.bf16.msra.mxu0 %v1637
        %1674 = vmatpush.bf16.msra.mxu0 %v1635
        %1675 = vmatmul.bf16.gmra.mxu0 %v1651
        %v1676 = vpop.f32.mrf.mxu0
        %v1677 = vadd.f32 %v1607, %v1676
        %v1678 = vpop.f32.mrf.mxu0
        %v1679 = vadd.f32 %v1607, %v1678
        %1680 = vdwg.mxu0
        %v1681 = vmul.f32 %v1663, 0.5
        %v1682 = vmul.f32 %v1677, 0.5
        %v1683 = vmul.f32 %v1665, 0.5
        %v1684 = vmul.f32 %v1679, 0.5
        %v1685 = vmul.f32 %v1663, 0.70710677
        %v1686 = vmul.f32 %v1677, 0.70710677
        %v1687 = vmul.f32 %v1665, 0.70710677
        %v1688 = vmul.f32 %v1679, 0.70710677
        %v1689 = vand.u32 2147483647, %v1685
        %v1690 = vand.u32 2147483647, %v1686
        %v1691 = vand.u32 2147483647, %v1687
        %v1692 = vand.u32 2147483647, %v1688
        %v1693 = vmul.f32 %v1689, 0.3275911
        %v1694 = vmul.f32 %v1690, 0.3275911
        %v1695 = vmul.f32 %v1691, 0.3275911
        %v1696 = vmul.f32 %v1692, 0.3275911
        %v1697 = vadd.f32 %v1693, 1.0
        %v1698 = vadd.f32 %v1694, 1.0
        %v1699 = vadd.f32 %v1695, 1.0
        %v1700 = vadd.f32 %v1696, 1.0
        %v1701 = vrcp.pop %v1697
        %v1702 = vrcp.pop %v1698
        %v1703 = vrcp.pop %v1699
        %v1704 = vrcp.pop %v1700
        %v1705 = vmul.f32 %v1701, 1.0614054
        %v1706 = vmul.f32 %v1702, 1.0614054
        %v1707 = vmul.f32 %v1703, 1.0614054
        %v1708 = vmul.f32 %v1704, 1.0614054
        %v1709 = vadd.f32 %v1705, -1.4531521
        %v1710 = vadd.f32 %v1706, -1.4531521
        %v1711 = vadd.f32 %v1707, -1.4531521
        %v1712 = vadd.f32 %v1708, -1.4531521
        %v1713 = vmul.f32 %v1709, %v1701
        %v1714 = vmul.f32 %v1710, %v1702
        %v1715 = vmul.f32 %v1711, %v1703
        %v1716 = vmul.f32 %v1712, %v1704
        %v1717 = vadd.f32 %v1713, 1.4214138
        %v1718 = vadd.f32 %v1714, 1.4214138
        %v1719 = vadd.f32 %v1715, 1.4214138
        %v1720 = vadd.f32 %v1716, 1.4214138
        %v1721 = vmul.f32 %v1717, %v1701
        %v1722 = vmul.f32 %v1718, %v1702
        %v1723 = vmul.f32 %v1719, %v1703
        %v1724 = vmul.f32 %v1720, %v1704
        %v1725 = vadd.f32 %v1721, -0.28449672
        %v1726 = vadd.f32 %v1722, -0.28449672
        %v1727 = vadd.f32 %v1723, -0.28449672
        %v1728 = vadd.f32 %v1724, -0.28449672
        %v1729 = vmul.f32 %v1725, %v1701
        %v1730 = vmul.f32 %v1726, %v1702
        %v1731 = vmul.f32 %v1727, %v1703
        %v1732 = vmul.f32 %v1728, %v1704
        %v1733 = vadd.f32 %v1729, 0.2548296
        %v1734 = vadd.f32 %v1730, 0.2548296
        %v1735 = vadd.f32 %v1731, 0.2548296
        %v1736 = vadd.f32 %v1732, 0.2548296
        %v1737 = vmul.f32 %v1733, %v1701
        %v1738 = vmul.f32 %v1734, %v1702
        %v1739 = vmul.f32 %v1735, %v1703
        %v1740 = vmul.f32 %v1736, %v1704
        %v1741 = vsub.f32 0.0, %v1689
        %v1742 = vsub.f32 0.0, %v1690
        %v1743 = vsub.f32 0.0, %v1691
        %v1744 = vsub.f32 0.0, %v1692
        %v1745 = vmul.f32 %v1741, %v1689
        %v1746 = vmul.f32 %v1742, %v1690
        %v1747 = vmul.f32 %v1743, %v1691
        %v1748 = vmul.f32 %v1744, %v1692
        %v1749 = vmul.f32 %v1745, 1.442695
        %v1750 = vpow.pop %v1749
        %v1751 = vmul.f32 %v1746, 1.442695
        %v1752 = vpow.pop %v1751
        %v1753 = vmul.f32 %v1747, 1.442695
        %v1754 = vpow.pop %v1753
        %v1755 = vmul.f32 %v1748, 1.442695
        %v1756 = vpow.pop %v1755
        %v1757 = vmul.f32 %v1737, %v1750
        %v1758 = vmul.f32 %v1738, %v1752
        %v1759 = vmul.f32 %v1739, %v1754
        %v1760 = vmul.f32 %v1740, %v1756
        %v1761 = vsub.f32 1.0, %v1757
        %v1762 = vsub.f32 1.0, %v1758
        %v1763 = vsub.f32 1.0, %v1759
        %v1764 = vsub.f32 1.0, %v1760
        %vm1765 = vcmp.ge.f32.partialorder %v1685, 0.0
        %vm1766 = vcmp.ge.f32.partialorder %v1686, 0.0
        %vm1767 = vcmp.ge.f32.partialorder %v1687, 0.0
        %vm1768 = vcmp.ge.f32.partialorder %v1688, 0.0
        %v1769 = vsub.f32 0.0, %v1761
        %v1770 = vsub.f32 0.0, %v1762
        %v1771 = vsub.f32 0.0, %v1763
        %v1772 = vsub.f32 0.0, %v1764
        %v1773 = vsel %vm1765, %v1761, %v1769
        %v1774 = vsel %vm1766, %v1762, %v1770
        %v1775 = vsel %vm1767, %v1763, %v1771
        %v1776 = vsel %vm1768, %v1764, %v1772
        %v1777 = vadd.f32 %v1773, 1.0
        %v1778 = vadd.f32 %v1774, 1.0
        %v1779 = vadd.f32 %v1775, 1.0
        %v1780 = vadd.f32 %v1776, 1.0
        %v1781 = vmul.f32 %v1681, %v1777
        %v1782 = vmul.f32 %v1682, %v1778
        %v1783 = vmul.f32 %v1683, %v1779
        %v1784 = vmul.f32 %v1684, %v1780
        %v1785 = vpack.c.bf16 %v1783, %v1781
        %v1786 = vpack.c.bf16 %v1784, %v1782
        %v1787 = vld [vmem:[%s14] sm:$0xf]
        %v1788 = vld [vmem:[%s14 + $0x4] sm:$0xf]
        %v1789 = vld [vmem:[%s14 + $0x8] sm:$0xf]
        %v1790 = vld [vmem:[%s14 + $0xc] sm:$0xf]
        %v1791 = vld [vmem:[%s14 + $0x10] sm:$0xf]
        %v1792 = vld [vmem:[%s14 + $0x14] sm:$0xf]
        %v1793 = vld [vmem:[%s14 + $0x18] sm:$0xf]
        %v1794 = vld [vmem:[%s14 + $0x1c] sm:$0xf]
        %v1795 = vld [vmem:[%s14 + $0x20] sm:$0xf]
        %v1796 = vld [vmem:[%s14 + $0x24] sm:$0xf]
        %v1797 = vld [vmem:[%s14 + $0x28] sm:$0xf]
        %v1798 = vld [vmem:[%s14 + $0x2c] sm:$0xf]
        %v1799 = vld [vmem:[%s14 + $0x30] sm:$0xf]
        %v1800 = vld [vmem:[%s14 + $0x34] sm:$0xf]
        %v1801 = vld [vmem:[%s14 + $0x38] sm:$0xf]
        %v1802 = vld [vmem:[%s14 + $0x3c] sm:$0xf]
        %v1803 = vld [vmem:[%s14 + $0x40] sm:$0xf]
        %v1804 = vld [vmem:[%s14 + $0x44] sm:$0xf]
        %v1805 = vld [vmem:[%s14 + $0x48] sm:$0xf]
        %v1806 = vld [vmem:[%s14 + $0x4c] sm:$0xf]
        %v1807 = vld [vmem:[%s14 + $0x50] sm:$0xf]
        %v1808 = vld [vmem:[%s14 + $0x54] sm:$0xf]
        %v1809 = vld [vmem:[%s14 + $0x58] sm:$0xf]
        %v1810 = vld [vmem:[%s14 + $0x5c] sm:$0xf]
        %v1811 = vld [vmem:[%s14 + $0x60] sm:$0xf]
        %v1812 = vld [vmem:[%s14 + $0x64] sm:$0xf]
        %v1813 = vld [vmem:[%s14 + $0x68] sm:$0xf]
        %v1814 = vld [vmem:[%s14 + $0x6c] sm:$0xf]
        %v1815 = vld [vmem:[%s14 + $0x70] sm:$0xf]
        %v1816 = vld [vmem:[%s14 + $0x74] sm:$0xf]
        %v1817 = vld [vmem:[%s14 + $0x78] sm:$0xf]
        %v1818 = vld [vmem:[%s14 + $0x7c] sm:$0xf]
        %v1819 = vld [vmem:[#allocation12] sm:$0x1]
        %v1821 = vperm.slane %v1819, 0
        %v1855 = vunpack.c.l.b16 %v1787
        %v1856 = vunpack.c.l.b16 %v1788
        %v1857 = vunpack.c.l.b16 %v1789
        %v1858 = vunpack.c.l.b16 %v1790
        %v1859 = vunpack.c.l.b16 %v1791
        %v1860 = vunpack.c.l.b16 %v1792
        %v1861 = vunpack.c.l.b16 %v1793
        %v1862 = vunpack.c.l.b16 %v1794
        %v1863 = vunpack.c.l.b16 %v1795
        %v1864 = vunpack.c.l.b16 %v1796
        %v1865 = vunpack.c.l.b16 %v1797
        %v1866 = vunpack.c.l.b16 %v1798
        %v1867 = vunpack.c.l.b16 %v1799
        %v1868 = vunpack.c.l.b16 %v1800
        %v1869 = vunpack.c.l.b16 %v1801
        %v1870 = vunpack.c.l.b16 %v1802
        %v1871 = vunpack.c.l.b16 %v1803
        %v1872 = vunpack.c.l.b16 %v1804
        %v1873 = vunpack.c.l.b16 %v1805
        %v1874 = vunpack.c.l.b16 %v1806
        %v1875 = vunpack.c.l.b16 %v1807
        %v1876 = vunpack.c.l.b16 %v1808
        %v1877 = vunpack.c.l.b16 %v1809
        %v1878 = vunpack.c.l.b16 %v1810
        %v1879 = vunpack.c.l.b16 %v1811
        %v1880 = vunpack.c.l.b16 %v1812
        %v1881 = vunpack.c.l.b16 %v1813
        %v1882 = vunpack.c.l.b16 %v1814
        %v1883 = vunpack.c.l.b16 %v1815
        %v1884 = vunpack.c.l.b16 %v1816
        %v1885 = vunpack.c.l.b16 %v1817
        %v1886 = vunpack.c.l.b16 %v1818
        %v1887 = vpack.c.b16 %v1856, %v1855
        %v1888 = vpack.c.b16 %v1858, %v1857
        %v1889 = vpack.c.b16 %v1860, %v1859
        %v1890 = vpack.c.b16 %v1862, %v1861
        %v1891 = vpack.c.b16 %v1864, %v1863
        %v1892 = vpack.c.b16 %v1866, %v1865
        %v1893 = vpack.c.b16 %v1868, %v1867
        %v1894 = vpack.c.b16 %v1870, %v1869
        %v1895 = vpack.c.b16 %v1872, %v1871
        %v1896 = vpack.c.b16 %v1874, %v1873
        %v1897 = vpack.c.b16 %v1876, %v1875
        %v1898 = vpack.c.b16 %v1878, %v1877
        %v1899 = vpack.c.b16 %v1880, %v1879
        %v1900 = vpack.c.b16 %v1882, %v1881
        %v1901 = vpack.c.b16 %v1884, %v1883
        %v1902 = vpack.c.b16 %v1886, %v1885
        %1919 = vmatpush.bf16.msra.mxu0 %v1894
        %1920 = vmatpush.bf16.msra.mxu0 %v1893
        %1921 = vmatpush.bf16.msra.mxu0 %v1892
        %1922 = vmatpush.bf16.msra.mxu0 %v1891
        %1923 = vmatpush.bf16.msra.mxu0 %v1890
        %1924 = vmatpush.bf16.msra.mxu0 %v1889
        %1925 = vmatpush.bf16.msra.mxu0 %v1888
        %1926 = vmatpush.bf16.msra.mxu0 %v1887
        %1927 = vmatmul.bf16.gmra.mxu0 %v1785
        %v1928 = vpop.f32.mrf.mxu0
        %v1929 = vadd.f32 %v1821, %v1928
        %v1930 = vpop.f32.mrf.mxu0
        %v1931 = vadd.f32 %v1821, %v1930
        %1932 = vdwg.mxu0
        %1933 = vmatpush.bf16.msra.mxu0 %v1902
        %1934 = vmatpush.bf16.msra.mxu0 %v1901
        %1935 = vmatpush.bf16.msra.mxu0 %v1900
        %1936 = vmatpush.bf16.msra.mxu0 %v1899
        %1937 = vmatpush.bf16.msra.mxu0 %v1898
        %1938 = vmatpush.bf16.msra.mxu0 %v1897
        %1939 = vmatpush.bf16.msra.mxu0 %v1896
        %1940 = vmatpush.bf16.msra.mxu0 %v1895
        %1941 = vmatmul.bf16.gmra.mxu0 %v1786
        %v1942 = vpop.f32.mrf.mxu0
        %v1943 = vadd.f32 %v1929, %v1942
        %v1944 = vpop.f32.mrf.mxu0
        %v1945 = vadd.f32 %v1931, %v1944
        %1946 = vdwg.mxu0
        %v1947 = vadd.f32 %v1943, %v1593
        %v1948 = vadd.f32 %v1945, %v1594
        %v1949 = vmul.f32 %v1947, 0.5
        %v1950 = vmul.f32 %v1948, 0.5
        %v1951 = vmul.f32 %v1947, 0.70710677
        %v1952 = vmul.f32 %v1948, 0.70710677
        %v1953 = vand.u32 2147483647, %v1951
        %v1954 = vand.u32 2147483647, %v1952
        %v1955 = vmul.f32 %v1953, 0.3275911
        %v1956 = vmul.f32 %v1954, 0.3275911
        %v1957 = vadd.f32 %v1955, 1.0
        %v1958 = vadd.f32 %v1956, 1.0
        %v1959 = vrcp.pop %v1957
        %v1960 = vrcp.pop %v1958
        %v1961 = vmul.f32 %v1959, 1.0614054
        %v1962 = vmul.f32 %v1960, 1.0614054
        %v1963 = vadd.f32 %v1961, -1.4531521
        %v1964 = vadd.f32 %v1962, -1.4531521
        %v1965 = vmul.f32 %v1963, %v1959
        %v1966 = vmul.f32 %v1964, %v1960
        %v1967 = vadd.f32 %v1965, 1.4214138
        %v1968 = vadd.f32 %v1966, 1.4214138
        %v1969 = vmul.f32 %v1967, %v1959
        %v1970 = vmul.f32 %v1968, %v1960
        %v1971 = vadd.f32 %v1969, -0.28449672
        %v1972 = vadd.f32 %v1970, -0.28449672
        %v1973 = vmul.f32 %v1971, %v1959
        %v1974 = vmul.f32 %v1972, %v1960
        %v1975 = vadd.f32 %v1973, 0.2548296
        %v1976 = vadd.f32 %v1974, 0.2548296
        %v1977 = vmul.f32 %v1975, %v1959
        %v1978 = vmul.f32 %v1976, %v1960
        %v1979 = vsub.f32 0.0, %v1953
        %v1980 = vsub.f32 0.0, %v1954
        %v1981 = vmul.f32 %v1979, %v1953
        %v1982 = vmul.f32 %v1980, %v1954
        %v1983 = vmul.f32 %v1981, 1.442695
        %v1984 = vpow.pop %v1983
        %v1985 = vmul.f32 %v1982, 1.442695
        %v1986 = vpow.pop %v1985
        %v1987 = vmul.f32 %v1977, %v1984
        %v1988 = vmul.f32 %v1978, %v1986
        %v1989 = vsub.f32 1.0, %v1987
        %v1990 = vsub.f32 1.0, %v1988
        %vm1991 = vcmp.ge.f32.partialorder %v1951, 0.0
        %vm1992 = vcmp.ge.f32.partialorder %v1952, 0.0
        %v1993 = vsub.f32 0.0, %v1989
        %v1994 = vsub.f32 0.0, %v1990
        %v1995 = vsel %vm1991, %v1989, %v1993
        %v1996 = vsel %vm1992, %v1990, %v1994
        %v1997 = vadd.f32 %v1995, 1.0
        %v1998 = vadd.f32 %v1996, 1.0
        %v1999 = vmul.f32 %v1949, %v1997
        %v2000 = vmul.f32 %v1950, %v1998
        %v2001 = vpack.c.bf16 %v2000, %v1999
        %v2002 = vld [vmem:[%s16] sm:$0xff]
        %v2003 = vld [vmem:[%s16 + $0x8] sm:$0xff]
        %v2004 = vld [vmem:[%s16 + $0x10] sm:$0xff]
        %v2005 = vld [vmem:[%s16 + $0x18] sm:$0xff]
        %v2006 = vld [vmem:[%s16 + $0x20] sm:$0xff]
        %v2007 = vld [vmem:[%s16 + $0x28] sm:$0xff]
        %v2008 = vld [vmem:[%s16 + $0x30] sm:$0xff]
        %v2009 = vld [vmem:[%s16 + $0x38] sm:$0xff]
        %v2010 = vld [vmem:[#allocation13] sm:$0x3]
        %v2012 = vperm.slane %v2010, 0
        %v2013 = vperm.slane %v2010, 1
        %v2024 = vunpack.c.l.b16 %v2002
        %v2025 = vunpack.c.h.b16 %v2002
        %v2026 = vunpack.c.l.b16 %v2003
        %v2027 = vunpack.c.h.b16 %v2003
        %v2028 = vunpack.c.l.b16 %v2004
        %v2029 = vunpack.c.h.b16 %v2004
        %v2030 = vunpack.c.l.b16 %v2005
        %v2031 = vunpack.c.h.b16 %v2005
        %v2032 = vunpack.c.l.b16 %v2006
        %v2033 = vunpack.c.h.b16 %v2006
        %v2034 = vunpack.c.l.b16 %v2007
        %v2035 = vunpack.c.h.b16 %v2007
        %v2036 = vunpack.c.l.b16 %v2008
        %v2037 = vunpack.c.h.b16 %v2008
        %v2038 = vunpack.c.l.b16 %v2009
        %v2039 = vunpack.c.h.b16 %v2009
        %v2040 = vpack.c.b16 %v2026, %v2024
        %v2041 = vpack.c.b16 %v2027, %v2025
        %v2042 = vpack.c.b16 %v2030, %v2028
        %v2043 = vpack.c.b16 %v2031, %v2029
        %v2044 = vpack.c.b16 %v2034, %v2032
        %v2045 = vpack.c.b16 %v2035, %v2033
        %v2046 = vpack.c.b16 %v2038, %v2036
        %v2047 = vpack.c.b16 %v2039, %v2037
        %v2057 = vsel %vm764, %v2001, 0
        %2059 = vmatpush.bf16.msra.mxu0 0
        %2060 = vmatpush.bf16.msra.mxu0 0
        %2061 = vmatpush.bf16.msra.mxu0 0
        %2062 = vmatpush.bf16.msra.mxu0 0
        %2063 = vmatpush.bf16.msra.mxu0 %v2046
        %2064 = vmatpush.bf16.msra.mxu0 %v2044
        %2065 = vmatpush.bf16.msra.mxu0 %v2042
        %2066 = vmatpush.bf16.msra.mxu0 %v2040
        %2067 = vmatmul.bf16.gmra.mxu0 %v2057
        %v2068 = vpop.f32.mrf.mxu0
        %v2069 = vadd.f32 %v2012, %v2068
        %v2070 = vpop.f32.mrf.mxu0
        %v2071 = vadd.f32 %v2012, %v2070
        %2072 = vdwg.mxu0
        %2073 = vmatpush.bf16.msra.mxu0 0
        %2074 = vmatpush.bf16.msra.mxu0 0
        %2075 = vmatpush.bf16.msra.mxu0 0
        %2076 = vmatpush.bf16.msra.mxu0 0
        %2077 = vmatpush.bf16.msra.mxu0 %v2047
        %2078 = vmatpush.bf16.msra.mxu0 %v2045
        %2079 = vmatpush.bf16.msra.mxu0 %v2043
        %2080 = vmatpush.bf16.msra.mxu0 %v2041
        %2081 = vmatmul.bf16.gmra.mxu0 %v2057
        %v2082 = vpop.f32.mrf.mxu0
        %v2083 = vadd.f32 %v2013, %v2082
        %v2084 = vpop.f32.mrf.mxu0
        %v2085 = vadd.f32 %v2013, %v2084
        %2086 = vdwg.mxu0
        %v2087 = vmul.f32 %v2069, 0.5
        %v2088 = vmul.f32 %v2083, 0.5
        %v2089 = vmul.f32 %v2071, 0.5
        %v2090 = vmul.f32 %v2085, 0.5
        %v2091 = vmul.f32 %v2069, 0.70710677
        %v2092 = vmul.f32 %v2083, 0.70710677
        %v2093 = vmul.f32 %v2071, 0.70710677
        %v2094 = vmul.f32 %v2085, 0.70710677
        %v2095 = vand.u32 2147483647, %v2091
        %v2096 = vand.u32 2147483647, %v2092
        %v2097 = vand.u32 2147483647, %v2093
        %v2098 = vand.u32 2147483647, %v2094
        %v2099 = vmul.f32 %v2095, 0.3275911
        %v2100 = vmul.f32 %v2096, 0.3275911
        %v2101 = vmul.f32 %v2097, 0.3275911
        %v2102 = vmul.f32 %v2098, 0.3275911
        %v2103 = vadd.f32 %v2099, 1.0
        %v2104 = vadd.f32 %v2100, 1.0
        %v2105 = vadd.f32 %v2101, 1.0
        %v2106 = vadd.f32 %v2102, 1.0
        %v2107 = vrcp.pop %v2103
        %v2108 = vrcp.pop %v2104
        %v2109 = vrcp.pop %v2105
        %v2110 = vrcp.pop %v2106
        %v2111 = vmul.f32 %v2107, 1.0614054
        %v2112 = vmul.f32 %v2108, 1.0614054
        %v2113 = vmul.f32 %v2109, 1.0614054
        %v2114 = vmul.f32 %v2110, 1.0614054
        %v2115 = vadd.f32 %v2111, -1.4531521
        %v2116 = vadd.f32 %v2112, -1.4531521
        %v2117 = vadd.f32 %v2113, -1.4531521
        %v2118 = vadd.f32 %v2114, -1.4531521
        %v2119 = vmul.f32 %v2115, %v2107
        %v2120 = vmul.f32 %v2116, %v2108
        %v2121 = vmul.f32 %v2117, %v2109
        %v2122 = vmul.f32 %v2118, %v2110
        %v2123 = vadd.f32 %v2119, 1.4214138
        %v2124 = vadd.f32 %v2120, 1.4214138
        %v2125 = vadd.f32 %v2121, 1.4214138
        %v2126 = vadd.f32 %v2122, 1.4214138
        %v2127 = vmul.f32 %v2123, %v2107
        %v2128 = vmul.f32 %v2124, %v2108
        %v2129 = vmul.f32 %v2125, %v2109
        %v2130 = vmul.f32 %v2126, %v2110
        %v2131 = vadd.f32 %v2127, -0.28449672
        %v2132 = vadd.f32 %v2128, -0.28449672
        %v2133 = vadd.f32 %v2129, -0.28449672
        %v2134 = vadd.f32 %v2130, -0.28449672
        %v2135 = vmul.f32 %v2131, %v2107
        %v2136 = vmul.f32 %v2132, %v2108
        %v2137 = vmul.f32 %v2133, %v2109
        %v2138 = vmul.f32 %v2134, %v2110
        %v2139 = vadd.f32 %v2135, 0.2548296
        %v2140 = vadd.f32 %v2136, 0.2548296
        %v2141 = vadd.f32 %v2137, 0.2548296
        %v2142 = vadd.f32 %v2138, 0.2548296
        %v2143 = vmul.f32 %v2139, %v2107
        %v2144 = vmul.f32 %v2140, %v2108
        %v2145 = vmul.f32 %v2141, %v2109
        %v2146 = vmul.f32 %v2142, %v2110
        %v2147 = vsub.f32 0.0, %v2095
        %v2148 = vsub.f32 0.0, %v2096
        %v2149 = vsub.f32 0.0, %v2097
        %v2150 = vsub.f32 0.0, %v2098
        %v2151 = vmul.f32 %v2147, %v2095
        %v2152 = vmul.f32 %v2148, %v2096
        %v2153 = vmul.f32 %v2149, %v2097
        %v2154 = vmul.f32 %v2150, %v2098
        %v2155 = vmul.f32 %v2151, 1.442695
        %v2156 = vpow.pop %v2155
        %v2157 = vmul.f32 %v2152, 1.442695
        %v2158 = vpow.pop %v2157
        %v2159 = vmul.f32 %v2153, 1.442695
        %v2160 = vpow.pop %v2159
        %v2161 = vmul.f32 %v2154, 1.442695
        %v2162 = vpow.pop %v2161
        %v2163 = vmul.f32 %v2143, %v2156
        %v2164 = vmul.f32 %v2144, %v2158
        %v2165 = vmul.f32 %v2145, %v2160
        %v2166 = vmul.f32 %v2146, %v2162
        %v2167 = vsub.f32 1.0, %v2163
        %v2168 = vsub.f32 1.0, %v2164
        %v2169 = vsub.f32 1.0, %v2165
        %v2170 = vsub.f32 1.0, %v2166
        %vm2171 = vcmp.ge.f32.partialorder %v2091, 0.0
        %vm2172 = vcmp.ge.f32.partialorder %v2092, 0.0
        %vm2173 = vcmp.ge.f32.partialorder %v2093, 0.0
        %vm2174 = vcmp.ge.f32.partialorder %v2094, 0.0
        %v2175 = vsub.f32 0.0, %v2167
        %v2176 = vsub.f32 0.0, %v2168
        %v2177 = vsub.f32 0.0, %v2169
        %v2178 = vsub.f32 0.0, %v2170
        %v2179 = vsel %vm2171, %v2167, %v2175
        %v2180 = vsel %vm2172, %v2168, %v2176
        %v2181 = vsel %vm2173, %v2169, %v2177
        %v2182 = vsel %vm2174, %v2170, %v2178
        %v2183 = vadd.f32 %v2179, 1.0
        %v2184 = vadd.f32 %v2180, 1.0
        %v2185 = vadd.f32 %v2181, 1.0
        %v2186 = vadd.f32 %v2182, 1.0
        %v2187 = vmul.f32 %v2087, %v2183
        %v2188 = vmul.f32 %v2088, %v2184
        %v2189 = vmul.f32 %v2089, %v2185
        %v2190 = vmul.f32 %v2090, %v2186
        %v2191 = vpack.c.bf16 %v2189, %v2187
        %v2192 = vpack.c.bf16 %v2190, %v2188
        %v2193 = vld [vmem:[%s18] sm:$0xf]
        %v2194 = vld [vmem:[%s18 + $0x4] sm:$0xf]
        %v2195 = vld [vmem:[%s18 + $0x8] sm:$0xf]
        %v2196 = vld [vmem:[%s18 + $0xc] sm:$0xf]
        %v2197 = vld [vmem:[%s18 + $0x10] sm:$0xf]
        %v2198 = vld [vmem:[%s18 + $0x14] sm:$0xf]
        %v2199 = vld [vmem:[%s18 + $0x18] sm:$0xf]
        %v2200 = vld [vmem:[%s18 + $0x1c] sm:$0xf]
        %v2201 = vld [vmem:[%s18 + $0x20] sm:$0xf]
        %v2202 = vld [vmem:[%s18 + $0x24] sm:$0xf]
        %v2203 = vld [vmem:[%s18 + $0x28] sm:$0xf]
        %v2204 = vld [vmem:[%s18 + $0x2c] sm:$0xf]
        %v2205 = vld [vmem:[%s18 + $0x30] sm:$0xf]
        %v2206 = vld [vmem:[%s18 + $0x34] sm:$0xf]
        %v2207 = vld [vmem:[%s18 + $0x38] sm:$0xf]
        %v2208 = vld [vmem:[%s18 + $0x3c] sm:$0xf]
        %v2209 = vld [vmem:[%s18 + $0x40] sm:$0xf]
        %v2210 = vld [vmem:[%s18 + $0x44] sm:$0xf]
        %v2211 = vld [vmem:[%s18 + $0x48] sm:$0xf]
        %v2212 = vld [vmem:[%s18 + $0x4c] sm:$0xf]
        %v2213 = vld [vmem:[%s18 + $0x50] sm:$0xf]
        %v2214 = vld [vmem:[%s18 + $0x54] sm:$0xf]
        %v2215 = vld [vmem:[%s18 + $0x58] sm:$0xf]
        %v2216 = vld [vmem:[%s18 + $0x5c] sm:$0xf]
        %v2217 = vld [vmem:[%s18 + $0x60] sm:$0xf]
        %v2218 = vld [vmem:[%s18 + $0x64] sm:$0xf]
        %v2219 = vld [vmem:[%s18 + $0x68] sm:$0xf]
        %v2220 = vld [vmem:[%s18 + $0x6c] sm:$0xf]
        %v2221 = vld [vmem:[%s18 + $0x70] sm:$0xf]
        %v2222 = vld [vmem:[%s18 + $0x74] sm:$0xf]
        %v2223 = vld [vmem:[%s18 + $0x78] sm:$0xf]
        %v2224 = vld [vmem:[%s18 + $0x7c] sm:$0xf]
        %v2225 = vld [vmem:[#allocation15] sm:$0x1]
        %v2227 = vperm.slane %v2225, 0
        %v2261 = vunpack.c.l.b16 %v2193
        %v2262 = vunpack.c.l.b16 %v2194
        %v2263 = vunpack.c.l.b16 %v2195
        %v2264 = vunpack.c.l.b16 %v2196
        %v2265 = vunpack.c.l.b16 %v2197
        %v2266 = vunpack.c.l.b16 %v2198
        %v2267 = vunpack.c.l.b16 %v2199
        %v2268 = vunpack.c.l.b16 %v2200
        %v2269 = vunpack.c.l.b16 %v2201
        %v2270 = vunpack.c.l.b16 %v2202
        %v2271 = vunpack.c.l.b16 %v2203
        %v2272 = vunpack.c.l.b16 %v2204
        %v2273 = vunpack.c.l.b16 %v2205
        %v2274 = vunpack.c.l.b16 %v2206
        %v2275 = vunpack.c.l.b16 %v2207
        %v2276 = vunpack.c.l.b16 %v2208
        %v2277 = vunpack.c.l.b16 %v2209
        %v2278 = vunpack.c.l.b16 %v2210
        %v2279 = vunpack.c.l.b16 %v2211
        %v2280 = vunpack.c.l.b16 %v2212
        %v2281 = vunpack.c.l.b16 %v2213
        %v2282 = vunpack.c.l.b16 %v2214
        %v2283 = vunpack.c.l.b16 %v2215
        %v2284 = vunpack.c.l.b16 %v2216
        %v2285 = vunpack.c.l.b16 %v2217
        %v2286 = vunpack.c.l.b16 %v2218
        %v2287 = vunpack.c.l.b16 %v2219
        %v2288 = vunpack.c.l.b16 %v2220
        %v2289 = vunpack.c.l.b16 %v2221
        %v2290 = vunpack.c.l.b16 %v2222
        %v2291 = vunpack.c.l.b16 %v2223
        %v2292 = vunpack.c.l.b16 %v2224
        %v2293 = vpack.c.b16 %v2262, %v2261
        %v2294 = vpack.c.b16 %v2264, %v2263
        %v2295 = vpack.c.b16 %v2266, %v2265
        %v2296 = vpack.c.b16 %v2268, %v2267
        %v2297 = vpack.c.b16 %v2270, %v2269
        %v2298 = vpack.c.b16 %v2272, %v2271
        %v2299 = vpack.c.b16 %v2274, %v2273
        %v2300 = vpack.c.b16 %v2276, %v2275
        %v2301 = vpack.c.b16 %v2278, %v2277
        %v2302 = vpack.c.b16 %v2280, %v2279
        %v2303 = vpack.c.b16 %v2282, %v2281
        %v2304 = vpack.c.b16 %v2284, %v2283
        %v2305 = vpack.c.b16 %v2286, %v2285
        %v2306 = vpack.c.b16 %v2288, %v2287
        %v2307 = vpack.c.b16 %v2290, %v2289
        %v2308 = vpack.c.b16 %v2292, %v2291
        %2325 = vmatpush.bf16.msra.mxu0 %v2300
        %2326 = vmatpush.bf16.msra.mxu0 %v2299
        %2327 = vmatpush.bf16.msra.mxu0 %v2298
        %2328 = vmatpush.bf16.msra.mxu0 %v2297
        %2329 = vmatpush.bf16.msra.mxu0 %v2296
        %2330 = vmatpush.bf16.msra.mxu0 %v2295
        %2331 = vmatpush.bf16.msra.mxu0 %v2294
        %2332 = vmatpush.bf16.msra.mxu0 %v2293
        %2333 = vmatmul.bf16.gmra.mxu0 %v2191
        %v2334 = vpop.f32.mrf.mxu0
        %v2335 = vadd.f32 %v2227, %v2334
        %v2336 = vpop.f32.mrf.mxu0
        %v2337 = vadd.f32 %v2227, %v2336
        %2338 = vdwg.mxu0
        %2339 = vmatpush.bf16.msra.mxu0 %v2308
        %2340 = vmatpush.bf16.msra.mxu0 %v2307
        %2341 = vmatpush.bf16.msra.mxu0 %v2306
        %2342 = vmatpush.bf16.msra.mxu0 %v2305
        %2343 = vmatpush.bf16.msra.mxu0 %v2304
        %2344 = vmatpush.bf16.msra.mxu0 %v2303
        %2345 = vmatpush.bf16.msra.mxu0 %v2302
        %2346 = vmatpush.bf16.msra.mxu0 %v2301
        %2347 = vmatmul.bf16.gmra.mxu0 %v2192
        %v2348 = vpop.f32.mrf.mxu0
        %v2349 = vadd.f32 %v2335, %v2348
        %v2350 = vpop.f32.mrf.mxu0
        %v2351 = vadd.f32 %v2337, %v2350
        %2352 = vdwg.mxu0
        %v2353 = vadd.f32 %v2349, %v1999
        %v2354 = vadd.f32 %v2351, %v2000
        %v2355 = vadd.f32 %v2353, %v1593
        %v2356 = vadd.f32 %v2354, %v1594
        %2357 = vst.msk [vmem:[%s760] sm:$0xff] %vm764, %v2355
        %2358 = vst.msk [vmem:[%s760 + $0x8] sm:$0xff] %vm764, %v2356
        %p2359 = scmp.lt.s32.totalorder %s36, 1
        %s2360 = scalar_select %p2359, %s36, 1
        %s2361 = smul.addr %s2360, 2
        %s2362 = smul.addr %s2361, 8
        %s2363 = scalar_lea.vmem %s20, %s2362
        // Predicated region
        $region137: #{_lambda_.7} parent=99 // pred_check
          %p2364 = pneg %p479
        $region138: #{_lambda_.7} parent=99 // pred_check_branch
          %2366 = sbr.rel (%p2364) target = $region140
        $region139: #{_lambda_.7} parent=99 // pred_region
          _
        $region140: #{_lambda_.7} parent=99 // pred_fallthru
          _
      $region100: #{_lambda_.7} parent=5 // pred_fallthru
        _
      %p2367 = scmp.le.s32.totalorder 2, %s31
      // Predicated region
      $region141: #{_lambda_.7} parent=5 // pred_check
        %p2368 = pneg %p2367
      $region142: #{_lambda_.7} parent=5 // pred_check_branch
        %2370 = sbr.rel (%p2368) target = $region144
      $region143: #{_lambda_.7} parent=5 // pred_region
        %s2371 = ssub.s32 %s31, 2
        // Predicated region
        $region145: #{_lambda_.7} parent=143 // pred_check
          %p2372 = pneg %p485
        $region146: #{_lambda_.7} parent=143 // pred_check_branch
          %2374 = sbr.rel (%p2372) target = $region148
        $region147: #{_lambda_.7} parent=143 // pred_region
          %p2375 = scmp.lt.s32.totalorder %s37, 1
          %s2376 = scalar_select %p2375, %s37, 1
          %s2377 = smul.addr %s2376, 2
          %s2378 = smul.addr %s2377, 8
          %s2379 = scalar_lea.vmem %s20, %s2378
        $region148: #{_lambda_.7} parent=143 // pred_fallthru
          _
      $region144: #{_lambda_.7} parent=5 // pred_fallthru
        _
    $region6: #{_lambda_.7} parent=1 // loop_footer
      %s35 = sadd.s32 1, %s31
    $region7: #{_lambda_.7} parent=1 // loop_footer_branch
      %30 = sbr.rel target = $region3
    $region8: #{_lambda_.7} parent=1 // loop_exit
      _
    %2380 = vsyncpa [#allocation3], 1
    %s2381 = scalar_lea.sflag [#allocation3], 1
    %2382 = vsyncpa %s2381, 1
    %2383 = vsyncpa [#allocation5], 1
    %2384 = vsyncpa [#allocation8], 1
    %2385 = vsyncpa [#allocation11], 1
    %2386 = vsyncpa [#allocation14], 1

// kernel: _lambda_.6
$region0: #{_lambda_.6}
  #allocation0 [shape = 'u32[]', space=smem, size = 0x4, offset = 0x4, fixed_abs, tag = 'smem constant byte address 0x4 - core index']
  #allocation1 [shape = 'u32[72,128]{1,0:T(1,128)}', space=vmem, size = 0x9000, scoped, tag = 'internal scratch']
  %s0 = inlined_call_operand.vmem [shape: f32[2,16,64], index: 0, kind: input, shape index: {}]
  %s1 = inlined_call_operand.hbm [shape: f32[16,64], index: 1, kind: input, shape index: {}]
  %s2 = inlined_call_operand.vmem [shape: bf16[64,64], index: 2, kind: input, shape index: {}]
  %s3 = inlined_call_operand.hbm [shape: f32[1,64], index: 3, kind: input, shape index: {}]
  %s4 = inlined_call_operand.vmem [shape: bf16[64,64], index: 4, kind: input, shape index: {}]
  %s5 = inlined_call_operand.hbm [shape: f32[1,64], index: 5, kind: input, shape index: {}]
  %s6 = inlined_call_operand.vmem [shape: bf16[64,64], index: 6, kind: input, shape index: {}]
  %s7 = inlined_call_operand.vmem [shape: bf16[64,64], index: 7, kind: input, shape index: {}]
  %s8 = inlined_call_operand.hbm [shape: f32[1,64], index: 8, kind: input, shape index: {}]
  %s9 = inlined_call_operand.vmem [shape: bf16[64,64], index: 9, kind: input, shape index: {}]
  %s10 = inlined_call_operand.hbm [shape: f32[1,64], index: 10, kind: input, shape index: {}]
  %s11 = inlined_call_operand.hbm [shape: bf16[64,64], index: 11, kind: input, shape index: {}]
  %s12 = inlined_call_operand.hbm [shape: f32[1,64], index: 12, kind: input, shape index: {}]
  %s13 = inlined_call_operand.vmem [shape: bf16[64,256], index: 13, kind: input, shape index: {}]
  %s14 = inlined_call_operand.hbm [shape: f32[1,256], index: 14, kind: input, shape index: {}]
  %s15 = inlined_call_operand.vmem [shape: bf16[256,64], index: 15, kind: input, shape index: {}]
  %s16 = inlined_call_operand.hbm [shape: f32[1,64], index: 16, kind: input, shape index: {}]
  %s17 = inlined_call_operand.vmem [shape: bf16[64,256], index: 17, kind: input, shape index: {}]
  %s18 = inlined_call_operand.hbm [shape: f32[1,256], index: 18, kind: input, shape index: {}]
  %s19 = inlined_call_operand.vmem [shape: bf16[256,64], index: 19, kind: input, shape index: {}]
  %s20 = inlined_call_operand.hbm [shape: f32[1,64], index: 20, kind: input, shape index: {}]
  %s21 = inlined_call_operand.vmem [shape: f32[2,16,64], index: 21, kind: output, shape index: {}]
  %s22 = sld [smem:[#allocation0]]
  $region161: #{_lambda_.6} parent=0
    _
  %s24 = ssub.s32 1, %s22
  %s25 = scalar_select 0, %s24, %s22
  $region1: #{_lambda_.6} parent=0
    #allocation2 [shape = 'u8[8192]{0}', space=vmem, size = 0x2000, scoped, tag = 'input window, operand 1, single buffered']
    #allocation3 [shape = 's32[2]{0}', space=sflag, size = 0x8, scoped, tag = 'scoped memory for _lambda_.6']
    #allocation4 [shape = 'u8[512]{0}', space=vmem, size = 0x400, scoped, tag = 'input window, operand 3, single buffered']
    #allocation5 [shape = 's32[1]{0}', space=sflag, size = 0x4, scoped, tag = 'scoped memory for _lambda_.6']
    #allocation6 [shape = 'u8[512]{0}', space=vmem, size = 0x400, scoped, tag = 'input window, operand 5, single buffered']
    #allocation7 [shape = 'u8[512]{0}', space=vmem, size = 0x400, scoped, tag = 'input window, operand 8, single buffered']
    #allocation8 [shape = 's32[1]{0}', space=sflag, size = 0x4, scoped, tag = 'scoped memory for _lambda_.6']
    #allocation9 [shape = 'u8[512]{0}', space=vmem, size = 0x400, scoped, tag = 'input window, operand 10, single buffered']
    #allocation10 [shape = 'u8[16384]{0}', space=vmem, size = 0x4000, scoped, tag = 'input window, operand 11, single buffered']
    #allocation11 [shape = 's32[1]{0}', space=sflag, size = 0x4, scoped, tag = 'scoped memory for _lambda_.6']
    #allocation12 [shape = 'u8[512]{0}', space=vmem, size = 0x400, scoped, tag = 'input window, operand 12, single buffered']
    #allocation13 [shape = 'u8[1024]{0}', space=vmem, size = 0x400, scoped, tag = 'input window, operand 14, single buffered']
    #allocation14 [shape = 's32[1]{0}', space=sflag, size = 0x4, scoped, tag = 'scoped memory for _lambda_.6']
    #allocation15 [shape = 'u8[512]{0}', space=vmem, size = 0x400, scoped, tag = 'input window, operand 16, single buffered']
    #allocation16 [shape = 'u8[1024]{0}', space=vmem, size = 0x400, scoped, tag = 'input window, operand 18, single buffered']
    #allocation17 [shape = 's32[1]{0}', space=sflag, size = 0x4, scoped, tag = 'scoped memory for _lambda_.6']
    #allocation18 [shape = 'u8[512]{0}', space=vmem, size = 0x400, scoped, tag = 'input window, operand 20, single buffered']
    %26 = vsyncpa [#allocation3], 0
    %27 = vsyncpa [#allocation5], 0
    %28 = vsyncpa [#allocation8], 0
    %29 = vsyncpa [#allocation11], 0
    %30 = vsyncpa [#allocation14], 0
    %31 = vsyncpa [#allocation17], 0
    loop: start=0, step=1, limit=4
    $region2: #{_lambda_.6} parent=1 // loop_pre_header
      _
    $region3: #{_lambda_.6} parent=1 // loop_header
      %s33 = sphi 0, %s37
      %p34 = scmp.ge.s32.totalorder %s33, 4
      %s43 = sphi 0, %s45
      %s46 = sphi 0, %s43
      %s47 = sphi 0, %s46
      %s63 = sphi 0, %s47
      %s67 = sphi 0, %s67
      %s69 = sphi 0, %s67
      %s70 = sphi 0, %s69
      %s84 = sphi 0, %s70
      %s88 = sphi 0, %s88
      %s90 = sphi 0, %s88
      %s91 = sphi 0, %s90
      %s105 = sphi 0, %s91
      %s109 = sphi 0, %s109
      %s111 = sphi 0, %s109
      %s112 = sphi 0, %s111
      %s126 = sphi 0, %s112
      %s130 = sphi 0, %s130
      %s132 = sphi 0, %s130
      %s133 = sphi 0, %s132
      %s147 = sphi 0, %s133
      %s151 = sphi 0, %s151
      %s153 = sphi 0, %s151
      %s154 = sphi 0, %s153
      %s168 = sphi 0, %s154
      %s172 = sphi 0, %s172
      %s174 = sphi 0, %s172
      %s175 = sphi 0, %s174
      %s189 = sphi 0, %s175
      %s193 = sphi 0, %s193
      %s195 = sphi 0, %s193
      %s196 = sphi 0, %s195
      %s210 = sphi 0, %s196
      %s214 = sphi 0, %s214
      %s216 = sphi 0, %s214
      %s217 = sphi 0, %s216
      %s231 = sphi 0, %s217
      %s235 = sphi 0, %s235
      %s237 = sphi 0, %s235
      %s238 = sphi 0, %s237
      %s252 = sphi 0, %s238
      %s256 = sphi 0, %s256
      %s258 = sphi 0, %s256
      %s259 = sphi 0, %s258
      %s273 = sphi 0, %s259
      %s277 = sphi 0, %s277
      %s279 = sphi 0, %s277
      %s280 = sphi 0, %s279
      %s294 = sphi 0, %s280
      %s298 = sphi 0, %s298
      %s300 = sphi 0, %s298
      %s301 = sphi 0, %s300
      %s315 = sphi 0, %s301
      %s319 = sphi 0, %s319
      %s321 = sphi 0, %s319
      %s322 = sphi 0, %s321
      %s336 = sphi 0, %s322
      %s340 = sphi 0, %s340
      %s342 = sphi 0, %s340
      %s343 = sphi 0, %s342
      %s357 = sphi 0, %s343
      %s361 = sphi 0, %s361
      %s363 = sphi 0, %s361
      %s364 = sphi 0, %s363
      %s378 = sphi 0, %s364
      %s382 = sphi 0, %s382
      %s384 = sphi 0, %s382
      %s385 = sphi 0, %s384
      %s399 = sphi 0, %s385
      %s403 = sphi 0, %s403
      %s405 = sphi 0, %s403
      %s406 = sphi 0, %s405
      %s420 = sphi 0, %s406
      %s424 = sphi 0, %s424
      %s426 = sphi 0, %s424
      %s427 = sphi 0, %s426
      %s441 = sphi 0, %s427
      %s445 = sphi 0, %s445
      %s447 = sphi 0, %s445
      %s448 = sphi 0, %s447
      %s462 = sphi 0, %s448
      %s466 = sphi 0, %s466
      %s468 = sphi 0, %s466
      %s469 = sphi 0, %s468
      %s483 = sphi 0, %s469
      %s489 = sphi 0, %s491
      %s492 = sphi 0, %s489
      %s493 = sphi 0, %s492
      %s509 = sphi 0, %s493
    $region4: #{_lambda_.6} parent=1 // loop_header_branch
      %36 = sbr.rel (%p34) target = $region8
    $region5: #{_lambda_.6} parent=1 // loop_body
      %s38 = ssub.s32 %s33, 1
      %s39 = ssub.s32 %s33, 2
      %s40 = sadd.s32 %s33, 1
      %s41 = ssub.s32 %s33, %s40
      %p42 = scmp.eq.s32.totalorder %s41, 0
      %s44 = sadd.s32 %s43, 1
      %s45 = scalar_select %p42, %s43, %s44
      %p48 = pneg %p42
      %p49 = scmp.eq.s32.totalorder %s33, 1
      %p50 = por %p48, %p49
      %p51 = scmp.ne.s32.totalorder %s43, %s46
      %p52 = scmp.eq.s32.totalorder %s33, 0
      %p53 = por %p51, %p52
      %p54 = scmp.ne.s32.totalorder %s43, %s46
      %p55 = scmp.eq.s32.totalorder %s38, 1
      %p56 = por %p54, %p55
      %p57 = scmp.ne.s32.totalorder %s46, %s47
      %p58 = scmp.eq.s32.totalorder %s38, 0
      %p59 = por %p57, %p58
      %p60 = scmp.ne.s32.totalorder %s46, %s47
      %p61 = scmp.eq.s32.totalorder %s39, 1
      %p62 = por %p60, %p61
      %p64 = scmp.ne.s32.totalorder %s47, %s63
      %p65 = scmp.eq.s32.totalorder %s39, 0
      %p66 = por %p64, %p65
      %s68 = sadd.s32 %s67, 1
      %p71 = scmp.eq.s32.totalorder %s33, 1
      %p72 = scmp.ne.s32.totalorder %s67, %s69
      %p73 = scmp.eq.s32.totalorder %s33, 0
      %p74 = por %p72, %p73
      %p75 = scmp.ne.s32.totalorder %s67, %s69
      %p76 = scmp.eq.s32.totalorder %s38, 1
      %p77 = por %p75, %p76
      %p78 = scmp.ne.s32.totalorder %s69, %s70
      %p79 = scmp.eq.s32.totalorder %s38, 0
      %p80 = por %p78, %p79
      %p81 = scmp.ne.s32.totalorder %s69, %s70
      %p82 = scmp.eq.s32.totalorder %s39, 1
      %p83 = por %p81, %p82
      %p85 = scmp.ne.s32.totalorder %s70, %s84
      %p86 = scmp.eq.s32.totalorder %s39, 0
      %p87 = por %p85, %p86
      %s89 = sadd.s32 %s88, 1
      %p92 = scmp.eq.s32.totalorder %s33, 1
      %p93 = scmp.ne.s32.totalorder %s88, %s90
      %p94 = scmp.eq.s32.totalorder %s33, 0
      %p95 = por %p93, %p94
      %p96 = scmp.ne.s32.totalorder %s88, %s90
      %p97 = scmp.eq.s32.totalorder %s38, 1
      %p98 = por %p96, %p97
      %p99 = scmp.ne.s32.totalorder %s90, %s91
      %p100 = scmp.eq.s32.totalorder %s38, 0
      %p101 = por %p99, %p100
      %p102 = scmp.ne.s32.totalorder %s90, %s91
      %p103 = scmp.eq.s32.totalorder %s39, 1
      %p104 = por %p102, %p103
      %p106 = scmp.ne.s32.totalorder %s91, %s105
      %p107 = scmp.eq.s32.totalorder %s39, 0
      %p108 = por %p106, %p107
      %s110 = sadd.s32 %s109, 1
      %p113 = scmp.eq.s32.totalorder %s33, 1
      %p114 = scmp.ne.s32.totalorder %s109, %s111
      %p115 = scmp.eq.s32.totalorder %s33, 0
      %p116 = por %p114, %p115
      %p117 = scmp.ne.s32.totalorder %s109, %s111
      %p118 = scmp.eq.s32.totalorder %s38, 1
      %p119 = por %p117, %p118
      %p120 = scmp.ne.s32.totalorder %s111, %s112
      %p121 = scmp.eq.s32.totalorder %s38, 0
      %p122 = por %p120, %p121
      %p123 = scmp.ne.s32.totalorder %s111, %s112
      %p124 = scmp.eq.s32.totalorder %s39, 1
      %p125 = por %p123, %p124
      %p127 = scmp.ne.s32.totalorder %s112, %s126
      %p128 = scmp.eq.s32.totalorder %s39, 0
      %p129 = por %p127, %p128
      %s131 = sadd.s32 %s130, 1
      %p134 = scmp.eq.s32.totalorder %s33, 1
      %p135 = scmp.ne.s32.totalorder %s130, %s132
      %p136 = scmp.eq.s32.totalorder %s33, 0
      %p137 = por %p135, %p136
      %p138 = scmp.ne.s32.totalorder %s130, %s132
      %p139 = scmp.eq.s32.totalorder %s38, 1
      %p140 = por %p138, %p139
      %p141 = scmp.ne.s32.totalorder %s132, %s133
      %p142 = scmp.eq.s32.totalorder %s38, 0
      %p143 = por %p141, %p142
      %p144 = scmp.ne.s32.totalorder %s132, %s133
      %p145 = scmp.eq.s32.totalorder %s39, 1
      %p146 = por %p144, %p145
      %p148 = scmp.ne.s32.totalorder %s133, %s147
      %p149 = scmp.eq.s32.totalorder %s39, 0
      %p150 = por %p148, %p149
      %s152 = sadd.s32 %s151, 1
      %p155 = scmp.eq.s32.totalorder %s33, 1
      %p156 = scmp.ne.s32.totalorder %s151, %s153
      %p157 = scmp.eq.s32.totalorder %s33, 0
      %p158 = por %p156, %p157
      %p159 = scmp.ne.s32.totalorder %s151, %s153
      %p160 = scmp.eq.s32.totalorder %s38, 1
      %p161 = por %p159, %p160
      %p162 = scmp.ne.s32.totalorder %s153, %s154
      %p163 = scmp.eq.s32.totalorder %s38, 0
      %p164 = por %p162, %p163
      %p165 = scmp.ne.s32.totalorder %s153, %s154
      %p166 = scmp.eq.s32.totalorder %s39, 1
      %p167 = por %p165, %p166
      %p169 = scmp.ne.s32.totalorder %s154, %s168
      %p170 = scmp.eq.s32.totalorder %s39, 0
      %p171 = por %p169, %p170
      %s173 = sadd.s32 %s172, 1
      %p176 = scmp.eq.s32.totalorder %s33, 1
      %p177 = scmp.ne.s32.totalorder %s172, %s174
      %p178 = scmp.eq.s32.totalorder %s33, 0
      %p179 = por %p177, %p178
      %p180 = scmp.ne.s32.totalorder %s172, %s174
      %p181 = scmp.eq.s32.totalorder %s38, 1
      %p182 = por %p180, %p181
      %p183 = scmp.ne.s32.totalorder %s174, %s175
      %p184 = scmp.eq.s32.totalorder %s38, 0
      %p185 = por %p183, %p184
      %p186 = scmp.ne.s32.totalorder %s174, %s175
      %p187 = scmp.eq.s32.totalorder %s39, 1
      %p188 = por %p186, %p187
      %p190 = scmp.ne.s32.totalorder %s175, %s189
      %p191 = scmp.eq.s32.totalorder %s39, 0
      %p192 = por %p190, %p191
      %s194 = sadd.s32 %s193, 1
      %p197 = scmp.eq.s32.totalorder %s33, 1
      %p198 = scmp.ne.s32.totalorder %s193, %s195
      %p199 = scmp.eq.s32.totalorder %s33, 0
      %p200 = por %p198, %p199
      %p201 = scmp.ne.s32.totalorder %s193, %s195
      %p202 = scmp.eq.s32.totalorder %s38, 1
      %p203 = por %p201, %p202
      %p204 = scmp.ne.s32.totalorder %s195, %s196
      %p205 = scmp.eq.s32.totalorder %s38, 0
      %p206 = por %p204, %p205
      %p207 = scmp.ne.s32.totalorder %s195, %s196
      %p208 = scmp.eq.s32.totalorder %s39, 1
      %p209 = por %p207, %p208
      %p211 = scmp.ne.s32.totalorder %s196, %s210
      %p212 = scmp.eq.s32.totalorder %s39, 0
      %p213 = por %p211, %p212
      %s215 = sadd.s32 %s214, 1
      %p218 = scmp.eq.s32.totalorder %s33, 1
      %p219 = scmp.ne.s32.totalorder %s214, %s216
      %p220 = scmp.eq.s32.totalorder %s33, 0
      %p221 = por %p219, %p220
      %p222 = scmp.ne.s32.totalorder %s214, %s216
      %p223 = scmp.eq.s32.totalorder %s38, 1
      %p224 = por %p222, %p223
      %p225 = scmp.ne.s32.totalorder %s216, %s217
      %p226 = scmp.eq.s32.totalorder %s38, 0
      %p227 = por %p225, %p226
      %p228 = scmp.ne.s32.totalorder %s216, %s217
      %p229 = scmp.eq.s32.totalorder %s39, 1
      %p230 = por %p228, %p229
      %p232 = scmp.ne.s32.totalorder %s217, %s231
      %p233 = scmp.eq.s32.totalorder %s39, 0
      %p234 = por %p232, %p233
      %s236 = sadd.s32 %s235, 1
      %p239 = scmp.eq.s32.totalorder %s33, 1
      %p240 = scmp.ne.s32.totalorder %s235, %s237
      %p241 = scmp.eq.s32.totalorder %s33, 0
      %p242 = por %p240, %p241
      %p243 = scmp.ne.s32.totalorder %s235, %s237
      %p244 = scmp.eq.s32.totalorder %s38, 1
      %p245 = por %p243, %p244
      %p246 = scmp.ne.s32.totalorder %s237, %s238
      %p247 = scmp.eq.s32.totalorder %s38, 0
      %p248 = por %p246, %p247
      %p249 = scmp.ne.s32.totalorder %s237, %s238
      %p250 = scmp.eq.s32.totalorder %s39, 1
      %p251 = por %p249, %p250
      %p253 = scmp.ne.s32.totalorder %s238, %s252
      %p254 = scmp.eq.s32.totalorder %s39, 0
      %p255 = por %p253, %p254
      %s257 = sadd.s32 %s256, 1
      %p260 = scmp.eq.s32.totalorder %s33, 1
      %p261 = scmp.ne.s32.totalorder %s256, %s258
      %p262 = scmp.eq.s32.totalorder %s33, 0
      %p263 = por %p261, %p262
      %p264 = scmp.ne.s32.totalorder %s256, %s258
      %p265 = scmp.eq.s32.totalorder %s38, 1
      %p266 = por %p264, %p265
      %p267 = scmp.ne.s32.totalorder %s258, %s259
      %p268 = scmp.eq.s32.totalorder %s38, 0
      %p269 = por %p267, %p268
      %p270 = scmp.ne.s32.totalorder %s258, %s259
      %p271 = scmp.eq.s32.totalorder %s39, 1
      %p272 = por %p270, %p271
      %p274 = scmp.ne.s32.totalorder %s259, %s273
      %p275 = scmp.eq.s32.totalorder %s39, 0
      %p276 = por %p274, %p275
      %s278 = sadd.s32 %s277, 1
      %p281 = scmp.eq.s32.totalorder %s33, 1
      %p282 = scmp.ne.s32.totalorder %s277, %s279
      %p283 = scmp.eq.s32.totalorder %s33, 0
      %p284 = por %p282, %p283
      %p285 = scmp.ne.s32.totalorder %s277, %s279
      %p286 = scmp.eq.s32.totalorder %s38, 1
      %p287 = por %p285, %p286
      %p288 = scmp.ne.s32.totalorder %s279, %s280
      %p289 = scmp.eq.s32.totalorder %s38, 0
      %p290 = por %p288, %p289
      %p291 = scmp.ne.s32.totalorder %s279, %s280
      %p292 = scmp.eq.s32.totalorder %s39, 1
      %p293 = por %p291, %p292
      %p295 = scmp.ne.s32.totalorder %s280, %s294
      %p296 = scmp.eq.s32.totalorder %s39, 0
      %p297 = por %p295, %p296
      %s299 = sadd.s32 %s298, 1
      %p302 = scmp.eq.s32.totalorder %s33, 1
      %p303 = scmp.ne.s32.totalorder %s298, %s300
      %p304 = scmp.eq.s32.totalorder %s33, 0
      %p305 = por %p303, %p304
      %p306 = scmp.ne.s32.totalorder %s298, %s300
      %p307 = scmp.eq.s32.totalorder %s38, 1
      %p308 = por %p306, %p307
      %p309 = scmp.ne.s32.totalorder %s300, %s301
      %p310 = scmp.eq.s32.totalorder %s38, 0
      %p311 = por %p309, %p310
      %p312 = scmp.ne.s32.totalorder %s300, %s301
      %p313 = scmp.eq.s32.totalorder %s39, 1
      %p314 = por %p312, %p313
      %p316 = scmp.ne.s32.totalorder %s301, %s315
      %p317 = scmp.eq.s32.totalorder %s39, 0
      %p318 = por %p316, %p317
      %s320 = sadd.s32 %s319, 1
      %p323 = scmp.eq.s32.totalorder %s33, 1
      %p324 = scmp.ne.s32.totalorder %s319, %s321
      %p325 = scmp.eq.s32.totalorder %s33, 0
      %p326 = por %p324, %p325
      %p327 = scmp.ne.s32.totalorder %s319, %s321
      %p328 = scmp.eq.s32.totalorder %s38, 1
      %p329 = por %p327, %p328
      %p330 = scmp.ne.s32.totalorder %s321, %s322
      %p331 = scmp.eq.s32.totalorder %s38, 0
      %p332 = por %p330, %p331
      %p333 = scmp.ne.s32.totalorder %s321, %s322
      %p334 = scmp.eq.s32.totalorder %s39, 1
      %p335 = por %p333, %p334
      %p337 = scmp.ne.s32.totalorder %s322, %s336
      %p338 = scmp.eq.s32.totalorder %s39, 0
      %p339 = por %p337, %p338
      %s341 = sadd.s32 %s340, 1
      %p344 = scmp.eq.s32.totalorder %s33, 1
      %p345 = scmp.ne.s32.totalorder %s340, %s342
      %p346 = scmp.eq.s32.totalorder %s33, 0
      %p347 = por %p345, %p346
      %p348 = scmp.ne.s32.totalorder %s340, %s342
      %p349 = scmp.eq.s32.totalorder %s38, 1
      %p350 = por %p348, %p349
      %p351 = scmp.ne.s32.totalorder %s342, %s343
      %p352 = scmp.eq.s32.totalorder %s38, 0
      %p353 = por %p351, %p352
      %p354 = scmp.ne.s32.totalorder %s342, %s343
      %p355 = scmp.eq.s32.totalorder %s39, 1
      %p356 = por %p354, %p355
      %p358 = scmp.ne.s32.totalorder %s343, %s357
      %p359 = scmp.eq.s32.totalorder %s39, 0
      %p360 = por %p358, %p359
      %s362 = sadd.s32 %s361, 1
      %p365 = scmp.eq.s32.totalorder %s33, 1
      %p366 = scmp.ne.s32.totalorder %s361, %s363
      %p367 = scmp.eq.s32.totalorder %s33, 0
      %p368 = por %p366, %p367
      %p369 = scmp.ne.s32.totalorder %s361, %s363
      %p370 = scmp.eq.s32.totalorder %s38, 1
      %p371 = por %p369, %p370
      %p372 = scmp.ne.s32.totalorder %s363, %s364
      %p373 = scmp.eq.s32.totalorder %s38, 0
      %p374 = por %p372, %p373
      %p375 = scmp.ne.s32.totalorder %s363, %s364
      %p376 = scmp.eq.s32.totalorder %s39, 1
      %p377 = por %p375, %p376
      %p379 = scmp.ne.s32.totalorder %s364, %s378
      %p380 = scmp.eq.s32.totalorder %s39, 0
      %p381 = por %p379, %p380
      %s383 = sadd.s32 %s382, 1
      %p386 = scmp.eq.s32.totalorder %s33, 1
      %p387 = scmp.ne.s32.totalorder %s382, %s384
      %p388 = scmp.eq.s32.totalorder %s33, 0
      %p389 = por %p387, %p388
      %p390 = scmp.ne.s32.totalorder %s382, %s384
      %p391 = scmp.eq.s32.totalorder %s38, 1
      %p392 = por %p390, %p391
      %p393 = scmp.ne.s32.totalorder %s384, %s385
      %p394 = scmp.eq.s32.totalorder %s38, 0
      %p395 = por %p393, %p394
      %p396 = scmp.ne.s32.totalorder %s384, %s385
      %p397 = scmp.eq.s32.totalorder %s39, 1
      %p398 = por %p396, %p397
      %p400 = scmp.ne.s32.totalorder %s385, %s399
      %p401 = scmp.eq.s32.totalorder %s39, 0
      %p402 = por %p400, %p401
      %s404 = sadd.s32 %s403, 1
      %p407 = scmp.eq.s32.totalorder %s33, 1
      %p408 = scmp.ne.s32.totalorder %s403, %s405
      %p409 = scmp.eq.s32.totalorder %s33, 0
      %p410 = por %p408, %p409
      %p411 = scmp.ne.s32.totalorder %s403, %s405
      %p412 = scmp.eq.s32.totalorder %s38, 1
      %p413 = por %p411, %p412
      %p414 = scmp.ne.s32.totalorder %s405, %s406
      %p415 = scmp.eq.s32.totalorder %s38, 0
      %p416 = por %p414, %p415
      %p417 = scmp.ne.s32.totalorder %s405, %s406
      %p418 = scmp.eq.s32.totalorder %s39, 1
      %p419 = por %p417, %p418
      %p421 = scmp.ne.s32.totalorder %s406, %s420
      %p422 = scmp.eq.s32.totalorder %s39, 0
      %p423 = por %p421, %p422
      %s425 = sadd.s32 %s424, 1
      %p428 = scmp.eq.s32.totalorder %s33, 1
      %p429 = scmp.ne.s32.totalorder %s424, %s426
      %p430 = scmp.eq.s32.totalorder %s33, 0
      %p431 = por %p429, %p430
      %p432 = scmp.ne.s32.totalorder %s424, %s426
      %p433 = scmp.eq.s32.totalorder %s38, 1
      %p434 = por %p432, %p433
      %p435 = scmp.ne.s32.totalorder %s426, %s427
      %p436 = scmp.eq.s32.totalorder %s38, 0
      %p437 = por %p435, %p436
      %p438 = scmp.ne.s32.totalorder %s426, %s427
      %p439 = scmp.eq.s32.totalorder %s39, 1
      %p440 = por %p438, %p439
      %p442 = scmp.ne.s32.totalorder %s427, %s441
      %p443 = scmp.eq.s32.totalorder %s39, 0
      %p444 = por %p442, %p443
      %s446 = sadd.s32 %s445, 1
      %p449 = scmp.eq.s32.totalorder %s33, 1
      %p450 = scmp.ne.s32.totalorder %s445, %s447
      %p451 = scmp.eq.s32.totalorder %s33, 0
      %p452 = por %p450, %p451
      %p453 = scmp.ne.s32.totalorder %s445, %s447
      %p454 = scmp.eq.s32.totalorder %s38, 1
      %p455 = por %p453, %p454
      %p456 = scmp.ne.s32.totalorder %s447, %s448
      %p457 = scmp.eq.s32.totalorder %s38, 0
      %p458 = por %p456, %p457
      %p459 = scmp.ne.s32.totalorder %s447, %s448
      %p460 = scmp.eq.s32.totalorder %s39, 1
      %p461 = por %p459, %p460
      %p463 = scmp.ne.s32.totalorder %s448, %s462
      %p464 = scmp.eq.s32.totalorder %s39, 0
      %p465 = por %p463, %p464
      %s467 = sadd.s32 %s466, 1
      %p470 = scmp.eq.s32.totalorder %s33, 1
      %p471 = scmp.ne.s32.totalorder %s466, %s468
      %p472 = scmp.eq.s32.totalorder %s33, 0
      %p473 = por %p471, %p472
      %p474 = scmp.ne.s32.totalorder %s466, %s468
      %p475 = scmp.eq.s32.totalorder %s38, 1
      %p476 = por %p474, %p475
      %p477 = scmp.ne.s32.totalorder %s468, %s469
      %p478 = scmp.eq.s32.totalorder %s38, 0
      %p479 = por %p477, %p478
      %p480 = scmp.ne.s32.totalorder %s468, %s469
      %p481 = scmp.eq.s32.totalorder %s39, 1
      %p482 = por %p480, %p481
      %p484 = scmp.ne.s32.totalorder %s469, %s483
      %p485 = scmp.eq.s32.totalorder %s39, 0
      %p486 = por %p484, %p485
      %s487 = ssub.s32 %s33, %s40
      %p488 = scmp.eq.s32.totalorder %s487, 0
      %s490 = sadd.s32 %s489, 1
      %s491 = scalar_select %p488, %s489, %s490
      %p494 = pneg %p488
      %p495 = scmp.eq.s32.totalorder %s33, 1
      %p496 = por %p494, %p495
      %p497 = scmp.ne.s32.totalorder %s489, %s492
      %p498 = scmp.eq.s32.totalorder %s33, 0
      %p499 = por %p497, %p498
      %p500 = scmp.ne.s32.totalorder %s489, %s492
      %p501 = scmp.eq.s32.totalorder %s38, 1
      %p502 = por %p500, %p501
      %p503 = scmp.ne.s32.totalorder %s492, %s493
      %p504 = scmp.eq.s32.totalorder %s38, 0
      %p505 = por %p503, %p504
      %p506 = scmp.ne.s32.totalorder %s492, %s493
      %p507 = scmp.eq.s32.totalorder %s39, 1
      %p508 = por %p506, %p507
      %p510 = scmp.ne.s32.totalorder %s493, %s509
      %p511 = scmp.eq.s32.totalorder %s39, 0
      %p512 = por %p510, %p511
      %p513 = scmp.le.s32.totalorder 1, %s33
      %p514 = scmp.lt.s32.totalorder %s33, 3
      %p515 = pnand %p513, %p514
      %p516 = pneg %p515
      // Predicated region
      $region9: #{_lambda_.6} parent=5 // pred_check
        _
      $region10: #{_lambda_.6} parent=5 // pred_check_branch
        %518 = sbr.rel (%p515) target = $region12
      $region11: #{_lambda_.6} parent=5 // pred_region
        %s519 = ssub.s32 %s33, 1
        // Predicated region
        $region13: #{_lambda_.6} parent=11 // pred_check
          %p520 = pneg %p80
        $region14: #{_lambda_.6} parent=11 // pred_check_branch
          %522 = sbr.rel (%p520) target = $region16
        $region15: #{_lambda_.6} parent=11 // pred_region
          %524 = vsyncadd [#allocation3], 0
          %s525 = sshll.u32 %s1, 4
          %s526 = int_to_ptr.hbm [resolvable:$true] %s525
          %s527 = sshll.u32 [#allocation2], 4
          %s528 = int_to_ptr.vmem [resolvable:$true] %s527
          %533 = dma.hbm_to_vmem [thread:$0]  %s526, 256, %s528, [#allocation3], 128, 128, 8
        $region16: #{_lambda_.6} parent=11 // pred_fallthru
          _
        // Predicated region
        $region17: #{_lambda_.6} parent=11 // pred_check
          %p534 = pneg %p101
        $region18: #{_lambda_.6} parent=11 // pred_check_branch
          %536 = sbr.rel (%p534) target = $region20
        $region19: #{_lambda_.6} parent=11 // pred_region
          _
        $region20: #{_lambda_.6} parent=11 // pred_fallthru
          _
        // Predicated region
        $region21: #{_lambda_.6} parent=11 // pred_check
          %p537 = pneg %p122
        $region22: #{_lambda_.6} parent=11 // pred_check_branch
          %539 = sbr.rel (%p537) target = $region24
        $region23: #{_lambda_.6} parent=11 // pred_region
          %541 = vsyncadd [#allocation5], 0
          %s543 = sshll.u32 %s3, 4
          %s544 = int_to_ptr.hbm [resolvable:$true] %s543
          %s545 = sshll.u32 [#allocation4], 4
          %s546 = int_to_ptr.vmem [resolvable:$true] %s545
          %548 = dma.hbm_to_vmem [thread:$0]  %s544, 16, %s546, [#allocation5]
        $region24: #{_lambda_.6} parent=11 // pred_fallthru
          _
        // Predicated region
        $region25: #{_lambda_.6} parent=11 // pred_check
          %p549 = pneg %p143
        $region26: #{_lambda_.6} parent=11 // pred_check_branch
          %551 = sbr.rel (%p549) target = $region28
        $region27: #{_lambda_.6} parent=11 // pred_region
          _
        $region28: #{_lambda_.6} parent=11 // pred_fallthru
          _
        // Predicated region
        $region29: #{_lambda_.6} parent=11 // pred_check
          %p552 = pneg %p164
        $region30: #{_lambda_.6} parent=11 // pred_check_branch
          %554 = sbr.rel (%p552) target = $region32
        $region31: #{_lambda_.6} parent=11 // pred_region
          %556 = vsyncadd [#allocation5], 0
          %s558 = sshll.u32 %s5, 4
          %s559 = int_to_ptr.hbm [resolvable:$true] %s558
          %s560 = sshll.u32 [#allocation6], 4
          %s561 = int_to_ptr.vmem [resolvable:$true] %s560
          %563 = dma.hbm_to_vmem [thread:$0]  %s559, 16, %s561, [#allocation5]
        $region32: #{_lambda_.6} parent=11 // pred_fallthru
          _
        // Predicated region
        $region33: #{_lambda_.6} parent=11 // pred_check
          %p564 = pneg %p185
        $region34: #{_lambda_.6} parent=11 // pred_check_branch
          %566 = sbr.rel (%p564) target = $region36
        $region35: #{_lambda_.6} parent=11 // pred_region
          _
        $region36: #{_lambda_.6} parent=11 // pred_fallthru
          _
        // Predicated region
        $region37: #{_lambda_.6} parent=11 // pred_check
          %p567 = pneg %p206
        $region38: #{_lambda_.6} parent=11 // pred_check_branch
          %569 = sbr.rel (%p567) target = $region40
        $region39: #{_lambda_.6} parent=11 // pred_region
          _
        $region40: #{_lambda_.6} parent=11 // pred_fallthru
          _
        // Predicated region
        $region41: #{_lambda_.6} parent=11 // pred_check
          %p570 = pneg %p227
        $region42: #{_lambda_.6} parent=11 // pred_check_branch
          %572 = sbr.rel (%p570) target = $region44
        $region43: #{_lambda_.6} parent=11 // pred_region
          %574 = vsyncadd [#allocation8], 0
          %s576 = sshll.u32 %s8, 4
          %s577 = int_to_ptr.hbm [resolvable:$true] %s576
          %s578 = sshll.u32 [#allocation7], 4
          %s579 = int_to_ptr.vmem [resolvable:$true] %s578
          %581 = dma.hbm_to_vmem [thread:$0]  %s577, 16, %s579, [#allocation8]
        $region44: #{_lambda_.6} parent=11 // pred_fallthru
          _
        // Predicated region
        $region45: #{_lambda_.6} parent=11 // pred_check
          %p582 = pneg %p248
        $region46: #{_lambda_.6} parent=11 // pred_check_branch
          %584 = sbr.rel (%p582) target = $region48
        $region47: #{_lambda_.6} parent=11 // pred_region
          _
        $region48: #{_lambda_.6} parent=11 // pred_fallthru
          _
        // Predicated region
        $region49: #{_lambda_.6} parent=11 // pred_check
          %p585 = pneg %p269
        $region50: #{_lambda_.6} parent=11 // pred_check_branch
          %587 = sbr.rel (%p585) target = $region52
        $region51: #{_lambda_.6} parent=11 // pred_region
          %589 = vsyncadd [#allocation8], 0
          %s591 = sshll.u32 %s10, 4
          %s592 = int_to_ptr.hbm [resolvable:$true] %s591
          %s593 = sshll.u32 [#allocation9], 4
          %s594 = int_to_ptr.vmem [resolvable:$true] %s593
          %596 = dma.hbm_to_vmem [thread:$0]  %s592, 16, %s594, [#allocation8]
        $region52: #{_lambda_.6} parent=11 // pred_fallthru
          _
        // Predicated region
        $region53: #{_lambda_.6} parent=11 // pred_check
          %p597 = pneg %p290
        $region54: #{_lambda_.6} parent=11 // pred_check_branch
          %599 = sbr.rel (%p597) target = $region56
        $region55: #{_lambda_.6} parent=11 // pred_region
          %601 = vsyncadd [#allocation11], 0
          %s602 = sshll.u32 %s11, 4
          %s603 = int_to_ptr.hbm [resolvable:$true] %s602
          %s604 = sshll.u32 [#allocation10], 4
          %s605 = int_to_ptr.vmem [resolvable:$true] %s604
          %610 = dma.hbm_to_vmem [thread:$0]  %s603, 512, %s605, [#allocation11], 64, 64, 4
        $region56: #{_lambda_.6} parent=11 // pred_fallthru
          _
        // Predicated region
        $region57: #{_lambda_.6} parent=11 // pred_check
          %p611 = pneg %p311
        $region58: #{_lambda_.6} parent=11 // pred_check_branch
          %613 = sbr.rel (%p611) target = $region60
        $region59: #{_lambda_.6} parent=11 // pred_region
          %615 = vsyncadd [#allocation11], 0
          %s617 = sshll.u32 %s12, 4
          %s618 = int_to_ptr.hbm [resolvable:$true] %s617
          %s619 = sshll.u32 [#allocation12], 4
          %s620 = int_to_ptr.vmem [resolvable:$true] %s619
          %622 = dma.hbm_to_vmem [thread:$0]  %s618, 16, %s620, [#allocation11]
        $region60: #{_lambda_.6} parent=11 // pred_fallthru
          _
        // Predicated region
        $region61: #{_lambda_.6} parent=11 // pred_check
          %p623 = pneg %p332
        $region62: #{_lambda_.6} parent=11 // pred_check_branch
          %625 = sbr.rel (%p623) target = $region64
        $region63: #{_lambda_.6} parent=11 // pred_region
          _
        $region64: #{_lambda_.6} parent=11 // pred_fallthru
          _
        // Predicated region
        $region65: #{_lambda_.6} parent=11 // pred_check
          %p626 = pneg %p353
        $region66: #{_lambda_.6} parent=11 // pred_check_branch
          %628 = sbr.rel (%p626) target = $region68
        $region67: #{_lambda_.6} parent=11 // pred_region
          %630 = vsyncadd [#allocation14], 0
          %s632 = sshll.u32 %s14, 4
          %s633 = int_to_ptr.hbm [resolvable:$true] %s632
          %s634 = sshll.u32 [#allocation13], 4
          %s635 = int_to_ptr.vmem [resolvable:$true] %s634
          %637 = dma.hbm_to_vmem [thread:$0]  %s633, 32, %s635, [#allocation14]
        $region68: #{_lambda_.6} parent=11 // pred_fallthru
          _
        // Predicated region
        $region69: #{_lambda_.6} parent=11 // pred_check
          %p638 = pneg %p374
        $region70: #{_lambda_.6} parent=11 // pred_check_branch
          %640 = sbr.rel (%p638) target = $region72
        $region71: #{_lambda_.6} parent=11 // pred_region
          _
        $region72: #{_lambda_.6} parent=11 // pred_fallthru
          _
        // Predicated region
        $region73: #{_lambda_.6} parent=11 // pred_check
          %p641 = pneg %p395
        $region74: #{_lambda_.6} parent=11 // pred_check_branch
          %643 = sbr.rel (%p641) target = $region76
        $region75: #{_lambda_.6} parent=11 // pred_region
          %645 = vsyncadd [#allocation14], 0
          %s647 = sshll.u32 %s16, 4
          %s648 = int_to_ptr.hbm [resolvable:$true] %s647
          %s649 = sshll.u32 [#allocation15], 4
          %s650 = int_to_ptr.vmem [resolvable:$true] %s649
          %652 = dma.hbm_to_vmem [thread:$0]  %s648, 16, %s650, [#allocation14]
        $region76: #{_lambda_.6} parent=11 // pred_fallthru
          _
        // Predicated region
        $region77: #{_lambda_.6} parent=11 // pred_check
          %p653 = pneg %p416
        $region78: #{_lambda_.6} parent=11 // pred_check_branch
          %655 = sbr.rel (%p653) target = $region80
        $region79: #{_lambda_.6} parent=11 // pred_region
          _
        $region80: #{_lambda_.6} parent=11 // pred_fallthru
          _
        // Predicated region
        $region81: #{_lambda_.6} parent=11 // pred_check
          %p656 = pneg %p437
        $region82: #{_lambda_.6} parent=11 // pred_check_branch
          %658 = sbr.rel (%p656) target = $region84
        $region83: #{_lambda_.6} parent=11 // pred_region
          %660 = vsyncadd [#allocation17], 0
          %s662 = sshll.u32 %s18, 4
          %s663 = int_to_ptr.hbm [resolvable:$true] %s662
          %s664 = sshll.u32 [#allocation16], 4
          %s665 = int_to_ptr.vmem [resolvable:$true] %s664
          %667 = dma.hbm_to_vmem [thread:$0]  %s663, 32, %s665, [#allocation17]
        $region84: #{_lambda_.6} parent=11 // pred_fallthru
          _
        // Predicated region
        $region85: #{_lambda_.6} parent=11 // pred_check
          %p668 = pneg %p458
        $region86: #{_lambda_.6} parent=11 // pred_check_branch
          %670 = sbr.rel (%p668) target = $region88
        $region87: #{_lambda_.6} parent=11 // pred_region
          _
        $region88: #{_lambda_.6} parent=11 // pred_fallthru
          _
        // Predicated region
        $region89: #{_lambda_.6} parent=11 // pred_check
          %p671 = pneg %p479
        $region90: #{_lambda_.6} parent=11 // pred_check_branch
          %673 = sbr.rel (%p671) target = $region92
        $region91: #{_lambda_.6} parent=11 // pred_region
          %675 = vsyncadd [#allocation17], 0
          %s677 = sshll.u32 %s20, 4
          %s678 = int_to_ptr.hbm [resolvable:$true] %s677
          %s679 = sshll.u32 [#allocation18], 4
          %s680 = int_to_ptr.vmem [resolvable:$true] %s679
          %682 = dma.hbm_to_vmem [thread:$0]  %s678, 16, %s680, [#allocation17]
        $region92: #{_lambda_.6} parent=11 // pred_fallthru
          _
      $region12: #{_lambda_.6} parent=5 // pred_fallthru
        _
      %p683 = scmp.lt.s32.totalorder %s33, 2
      // Predicated region
      $region93: #{_lambda_.6} parent=5 // pred_check
        %p684 = pneg %p683
      $region94: #{_lambda_.6} parent=5 // pred_check_branch
        %686 = sbr.rel (%p684) target = $region96
      $region95: #{_lambda_.6} parent=5 // pred_region
        // Predicated region
        $region97: #{_lambda_.6} parent=95 // pred_check
          %p687 = pneg %p53
        $region98: #{_lambda_.6} parent=95 // pred_check_branch
          %689 = sbr.rel (%p687) target = $region100
        $region99: #{_lambda_.6} parent=95 // pred_region
          %p690 = scmp.lt.s32.totalorder %s33, 1
          %s691 = scalar_select %p690, %s33, 1
          %s692 = smul.addr %s691, 2
          %s693 = smul.addr %s692, 8
          %s694 = scalar_lea.vmem %s0, %s693
        $region100: #{_lambda_.6} parent=95 // pred_fallthru
          _
      $region96: #{_lambda_.6} parent=5 // pred_fallthru
        _
      %p695 = scmp.le.s32.totalorder 1, %s33
      %p696 = scmp.lt.s32.totalorder %s33, 3
      %p697 = pnand %p695, %p696
      %p698 = pneg %p697
      // Predicated region
      $region101: #{_lambda_.6} parent=5 // pred_check
        _
      $region102: #{_lambda_.6} parent=5 // pred_check_branch
        %700 = sbr.rel (%p697) target = $region104
      $region103: #{_lambda_.6} parent=5 // pred_region
        %s701 = ssub.s32 %s33, 1
        // Predicated region
        $region105: #{_lambda_.6} parent=103 // pred_check
          %p702 = pneg %p80
        $region106: #{_lambda_.6} parent=103 // pred_check_branch
          %704 = sbr.rel (%p702) target = $region108
        $region107: #{_lambda_.6} parent=103 // pred_region
          %706 = dma.done [#allocation3], 256
        $region108: #{_lambda_.6} parent=103 // pred_fallthru
          _
        // Predicated region
        $region109: #{_lambda_.6} parent=103 // pred_check
          %p707 = pneg %p122
        $region110: #{_lambda_.6} parent=103 // pred_check_branch
          %709 = sbr.rel (%p707) target = $region112
        $region111: #{_lambda_.6} parent=103 // pred_region
          %711 = dma.done [#allocation5], 16
        $region112: #{_lambda_.6} parent=103 // pred_fallthru
          _
        // Predicated region
        $region113: #{_lambda_.6} parent=103 // pred_check
          %p712 = pneg %p164
        $region114: #{_lambda_.6} parent=103 // pred_check_branch
          %714 = sbr.rel (%p712) target = $region116
        $region115: #{_lambda_.6} parent=103 // pred_region
          %716 = dma.done [#allocation5], 16
        $region116: #{_lambda_.6} parent=103 // pred_fallthru
          _
        // Predicated region
        $region117: #{_lambda_.6} parent=103 // pred_check
          %p717 = pneg %p227
        $region118: #{_lambda_.6} parent=103 // pred_check_branch
          %719 = sbr.rel (%p717) target = $region120
        $region119: #{_lambda_.6} parent=103 // pred_region
          %721 = dma.done [#allocation8], 16
        $region120: #{_lambda_.6} parent=103 // pred_fallthru
          _
        // Predicated region
        $region121: #{_lambda_.6} parent=103 // pred_check
          %p722 = pneg %p269
        $region122: #{_lambda_.6} parent=103 // pred_check_branch
          %724 = sbr.rel (%p722) target = $region124
        $region123: #{_lambda_.6} parent=103 // pred_region
          %726 = dma.done [#allocation8], 16
        $region124: #{_lambda_.6} parent=103 // pred_fallthru
          _
        // Predicated region
        $region125: #{_lambda_.6} parent=103 // pred_check
          %p727 = pneg %p290
        $region126: #{_lambda_.6} parent=103 // pred_check_branch
          %729 = sbr.rel (%p727) target = $region128
        $region127: #{_lambda_.6} parent=103 // pred_region
          %731 = dma.done [#allocation11], 512
        $region128: #{_lambda_.6} parent=103 // pred_fallthru
          _
        // Predicated region
        $region129: #{_lambda_.6} parent=103 // pred_check
          %p732 = pneg %p311
        $region130: #{_lambda_.6} parent=103 // pred_check_branch
          %734 = sbr.rel (%p732) target = $region132
        $region131: #{_lambda_.6} parent=103 // pred_region
          %736 = dma.done [#allocation11], 16
        $region132: #{_lambda_.6} parent=103 // pred_fallthru
          _
        // Predicated region
        $region133: #{_lambda_.6} parent=103 // pred_check
          %p737 = pneg %p353
        $region134: #{_lambda_.6} parent=103 // pred_check_branch
          %739 = sbr.rel (%p737) target = $region136
        $region135: #{_lambda_.6} parent=103 // pred_region
          %741 = dma.done [#allocation14], 32
        $region136: #{_lambda_.6} parent=103 // pred_fallthru
          _
        // Predicated region
        $region137: #{_lambda_.6} parent=103 // pred_check
          %p742 = pneg %p395
        $region138: #{_lambda_.6} parent=103 // pred_check_branch
          %744 = sbr.rel (%p742) target = $region140
        $region139: #{_lambda_.6} parent=103 // pred_region
          %746 = dma.done [#allocation14], 16
        $region140: #{_lambda_.6} parent=103 // pred_fallthru
          _
        // Predicated region
        $region141: #{_lambda_.6} parent=103 // pred_check
          %p747 = pneg %p437
        $region142: #{_lambda_.6} parent=103 // pred_check_branch
          %749 = sbr.rel (%p747) target = $region144
        $region143: #{_lambda_.6} parent=103 // pred_region
          %751 = dma.done [#allocation17], 32
        $region144: #{_lambda_.6} parent=103 // pred_fallthru
          _
        // Predicated region
        $region145: #{_lambda_.6} parent=103 // pred_check
          %p752 = pneg %p479
        $region146: #{_lambda_.6} parent=103 // pred_check_branch
          %754 = sbr.rel (%p752) target = $region148
        $region147: #{_lambda_.6} parent=103 // pred_region
          %756 = dma.done [#allocation17], 16
        $region148: #{_lambda_.6} parent=103 // pred_fallthru
          _
        %p757 = scmp.lt.s32.totalorder %s38, 1
        %s758 = scalar_select %p757, %s38, 1
        %s759 = smul.addr %s758, 2
        %s760 = smul.addr %s759, 8
        %s761 = scalar_lea.vmem %s0, %s760
        %p762 = pneg %p59
        %p763 = pneg %p56
        %p764 = pneg %p80
        %p765 = pneg %p77
        %p766 = pneg %p101
        %p767 = pneg %p98
        %p768 = pneg %p122
        %p769 = pneg %p119
        %p770 = pneg %p143
        %p771 = pneg %p140
        %p772 = pneg %p164
        %p773 = pneg %p161
        %p774 = pneg %p185
        %p775 = pneg %p182
        %p776 = pneg %p206
        %p777 = pneg %p203
        %p778 = pneg %p227
        %p779 = pneg %p224
        %p780 = pneg %p248
        %p781 = pneg %p245
        %p782 = pneg %p269
        %p783 = pneg %p266
        %p784 = pneg %p290
        %p785 = pneg %p287
        %p786 = pneg %p311
        %p787 = pneg %p308
        %p788 = pneg %p332
        %p789 = pneg %p329
        %p790 = pneg %p353
        %p791 = pneg %p350
        %p792 = pneg %p374
        %p793 = pneg %p371
        %p794 = pneg %p395
        %p795 = pneg %p392
        %p796 = pneg %p416
        %p797 = pneg %p413
        %p798 = pneg %p437
        %p799 = pneg %p434
        %p800 = pneg %p458
        %p801 = pneg %p455
        %p802 = pneg %p479
        %p803 = pneg %p476
        %p804 = pneg %p505
        %p805 = pneg %p502
        %p806 = scmp.lt.s32.totalorder %s38, 1
        %s807 = scalar_select %p806, %s38, 1
        %s808 = smul.addr %s807, 2
        %s809 = smul.addr %s808, 8
        %s810 = scalar_lea.vmem %s21, %s809
        %p811 = scmp.lt.s32.totalorder %s38, 1
        %s812 = scalar_select %p811, %s38, 1
        %s813 = smul.addr %s812, 2
        %s814 = smul.addr %s813, 8
        %s815 = scalar_lea.vmem %s0, %s814
        %p816 = scmp.lt.s32.totalorder %s38, 1
        %s817 = scalar_select %p816, %s38, 1
        %s818 = smul.addr %s817, 2
        %s819 = smul.addr %s818, 8
        %s820 = scalar_lea.vmem %s21, %s819
        %v822 = vld [vmem:[%s815] sm:$0xff]
        %v823 = vld [vmem:[%s815 + $0x8] sm:$0xff]
        %v824 = vld [vmem:[#allocation2] sm:$0xff]
        %v825 = vld [vmem:[#allocation2 + $0x8] sm:$0xff]
        %v826 = vadd.f32 %v822, %v824
        %v827 = vadd.f32 %v823, %v825
        %vm828 = vcmask 523264
        %v830 = vsel %vm828, %v826, 0
        %v833 = vsel %vm828, %v827, 0
        %835 = vmatpush.xpose.msra.mxu0 0.0
        %836 = vmatpush.xpose.msra.mxu0 0.0
        %837 = vmatpush.xpose.msra.mxu0 0.0
        %838 = vmatpush.xpose.msra.mxu0 0.0
        %839 = vmatpush.xpose.msra.mxu0 0.0
        %840 = vmatpush.xpose.msra.mxu0 0.0
        %841 = vmatpush.xpose.msra.mxu0 0.0
        %842 = vmatpush.xpose.msra.mxu0 0.0
        %843 = vmatpush.xpose.msra.mxu0 0.0
        %844 = vmatpush.xpose.msra.mxu0 0.0
        %845 = vmatpush.xpose.msra.mxu0 0.0
        %846 = vmatpush.xpose.msra.mxu0 0.0
        %847 = vmatpush.xpose.msra.mxu0 0.0
        %848 = vmatpush.xpose.msra.mxu0 0.0
        %849 = vmatpush.xpose.msra.mxu0 %v833
        %850 = vmatpush.xpose.msra.mxu0 %v830
        %851 = vmatmul.f32.gmra.mxu0 %v830
        %v852 = vpop.f32.mrf.mxu0
        %v853 = vadd.f32 0.0, %v852
        %854 = vmatmul.f32.gmra.mxu0 %v833
        %v855 = vpop.f32.mrf.mxu0
        %v856 = vadd.f32 0.0, %v855
        %857 = vdwg.mxu0
        %v858 = vpack.c.bf16 %v827, %v826
        %v859 = vld [vmem:[%s2] sm:$0xf]
        %v860 = vld [vmem:[%s2 + $0x4] sm:$0xf]
        %v861 = vld [vmem:[%s2 + $0x8] sm:$0xf]
        %v862 = vld [vmem:[%s2 + $0xc] sm:$0xf]
        %v863 = vld [vmem:[%s2 + $0x10] sm:$0xf]
        %v864 = vld [vmem:[%s2 + $0x14] sm:$0xf]
        %v865 = vld [vmem:[%s2 + $0x18] sm:$0xf]
        %v866 = vld [vmem:[%s2 + $0x1c] sm:$0xf]
        %v867 = vld [vmem:[#allocation4] sm:$0x1]
        %v869 = vperm.slane %v867, 0
        %v879 = vunpack.c.l.b16 %v859
        %v880 = vunpack.c.l.b16 %v860
        %v881 = vunpack.c.l.b16 %v861
        %v882 = vunpack.c.l.b16 %v862
        %v883 = vunpack.c.l.b16 %v863
        %v884 = vunpack.c.l.b16 %v864
        %v885 = vunpack.c.l.b16 %v865
        %v886 = vunpack.c.l.b16 %v866
        %v887 = vpack.c.b16 %v880, %v879
        %v888 = vpack.c.b16 %v882, %v881
        %v889 = vpack.c.b16 %v884, %v883
        %v890 = vpack.c.b16 %v886, %v885
        %v896 = vsel %vm828, %v858, 0
        %898 = vmatpush.bf16.msra.mxu0 0
        %899 = vmatpush.bf16.msra.mxu0 0
        %900 = vmatpush.bf16.msra.mxu0 0
        %901 = vmatpush.bf16.msra.mxu0 0
        %902 = vmatpush.bf16.msra.mxu0 %v890
        %903 = vmatpush.bf16.msra.mxu0 %v889
        %904 = vmatpush.bf16.msra.mxu0 %v888
        %905 = vmatpush.bf16.msra.mxu0 %v887
        %906 = vmatmul.bf16.gmra.mxu0 %v896
        %v907 = vpop.f32.mrf.mxu0
        %v908 = vadd.f32 %v869, %v907
        %v909 = vpop.f32.mrf.mxu0
        %v910 = vadd.f32 %v869, %v909
        %911 = vdwg.mxu0
        %v912 = vmul.f32 %v908, 0.5
        %v913 = vmul.f32 %v910, 0.5
        %v914 = vmul.f32 %v908, 0.70710677
        %v915 = vmul.f32 %v910, 0.70710677
        %v916 = vand.u32 2147483647, %v914
        %v917 = vand.u32 2147483647, %v915
        %v918 = vmul.f32 %v916, 0.3275911
        %v919 = vmul.f32 %v917, 0.3275911
        %v920 = vadd.f32 %v918, 1.0
        %v921 = vadd.f32 %v919, 1.0
        %v922 = vrcp.pop %v920
        %v923 = vrcp.pop %v921
        %v924 = vmul.f32 %v922, 1.0614054
        %v925 = vmul.f32 %v923, 1.0614054
        %v926 = vadd.f32 %v924, -1.4531521
        %v927 = vadd.f32 %v925, -1.4531521
        %v928 = vmul.f32 %v926, %v922
        %v929 = vmul.f32 %v927, %v923
        %v930 = vadd.f32 %v928, 1.4214138
        %v931 = vadd.f32 %v929, 1.4214138
        %v932 = vmul.f32 %v930, %v922
        %v933 = vmul.f32 %v931, %v923
        %v934 = vadd.f32 %v932, -0.28449672
        %v935 = vadd.f32 %v933, -0.28449672
        %v936 = vmul.f32 %v934, %v922
        %v937 = vmul.f32 %v935, %v923
        %v938 = vadd.f32 %v936, 0.2548296
        %v939 = vadd.f32 %v937, 0.2548296
        %v940 = vmul.f32 %v938, %v922
        %v941 = vmul.f32 %v939, %v923
        %v942 = vsub.f32 0.0, %v916
        %v943 = vsub.f32 0.0, %v917
        %v944 = vmul.f32 %v942, %v916
        %v945 = vmul.f32 %v943, %v917
        %v946 = vmul.f32 %v944, 1.442695
        %v947 = vpow.pop %v946
        %v948 = vmul.f32 %v945, 1.442695
        %v949 = vpow.pop %v948
        %v950 = vmul.f32 %v940, %v947
        %v951 = vmul.f32 %v941, %v949
        %v952 = vsub.f32 1.0, %v950
        %v953 = vsub.f32 1.0, %v951
        %vm954 = vcmp.ge.f32.partialorder %v914, 0.0
        %vm955 = vcmp.ge.f32.partialorder %v915, 0.0
        %v956 = vsub.f32 0.0, %v952
        %v957 = vsub.f32 0.0, %v953
        %v958 = vsel %vm954, %v952, %v956
        %v959 = vsel %vm955, %v953, %v957
        %v960 = vadd.f32 %v958, 1.0
        %v961 = vadd.f32 %v959, 1.0
        %v962 = vmul.f32 %v912, %v960
        %v963 = vmul.f32 %v913, %v961
        %v964 = vpack.c.bf16 %v963, %v962
        %v965 = vld [vmem:[%s4] sm:$0xf]
        %v966 = vld [vmem:[%s4 + $0x4] sm:$0xf]
        %v967 = vld [vmem:[%s4 + $0x8] sm:$0xf]
        %v968 = vld [vmem:[%s4 + $0xc] sm:$0xf]
        %v969 = vld [vmem:[%s4 + $0x10] sm:$0xf]
        %v970 = vld [vmem:[%s4 + $0x14] sm:$0xf]
        %v971 = vld [vmem:[%s4 + $0x18] sm:$0xf]
        %v972 = vld [vmem:[%s4 + $0x1c] sm:$0xf]
        %v973 = vld [vmem:[#allocation6] sm:$0x1]
        %v975 = vperm.slane %v973, 0
        %v985 = vunpack.c.l.b16 %v965
        %v986 = vunpack.c.l.b16 %v966
        %v987 = vunpack.c.l.b16 %v967
        %v988 = vunpack.c.l.b16 %v968
        %v989 = vunpack.c.l.b16 %v969
        %v990 = vunpack.c.l.b16 %v970
        %v991 = vunpack.c.l.b16 %v971
        %v992 = vunpack.c.l.b16 %v972
        %v993 = vpack.c.b16 %v986, %v985
        %v994 = vpack.c.b16 %v988, %v987
        %v995 = vpack.c.b16 %v990, %v989
        %v996 = vpack.c.b16 %v992, %v991
        %v1002 = vsel %vm828, %v964, 0
        %1004 = vmatpush.bf16.msra.mxu0 0
        %1005 = vmatpush.bf16.msra.mxu0 0
        %1006 = vmatpush.bf16.msra.mxu0 0
        %1007 = vmatpush.bf16.msra.mxu0 0
        %1008 = vmatpush.bf16.msra.mxu0 %v996
        %1009 = vmatpush.bf16.msra.mxu0 %v995
        %1010 = vmatpush.bf16.msra.mxu0 %v994
        %1011 = vmatpush.bf16.msra.mxu0 %v993
        %1012 = vmatmul.bf16.gmra.mxu0 %v1002
        %v1013 = vpop.f32.mrf.mxu0
        %v1014 = vadd.f32 %v975, %v1013
        %v1015 = vpop.f32.mrf.mxu0
        %v1016 = vadd.f32 %v975, %v1015
        %1017 = vdwg.mxu0
        %v1018 = vadd.f32 %v1014, %v826
        %v1019 = vadd.f32 %v1016, %v827
        %vm1020 = vcmask 130048
        %v1021 = vsel %vm1020, %v853, -inf
        %1022 = vmax.xlane.f32.xlu0 %v1021
        %v1023 = vpop.xlane.xlu0 %1022
        %v1024 = vsel %vm1020, %v856, -inf
        %1025 = vmax.xlane.f32.xlu0 %v1024
        %v1026 = vpop.xlane.xlu0 %1025
        %vm1027 = vcmp.ge.f32.partialorder %v853, %v1023
        %vm1028 = vcmp.ge.f32.partialorder %v856, %v1026
        %v1029 = vsel %vm1027, -3e+38, %v853
        %v1030 = vsel %vm1028, -3e+38, %v856
        %v1031 = vsel %vm1020, %v1029, -inf
        %1032 = vmax.xlane.f32.xlu0 %v1031
        %v1033 = vpop.xlane.xlu0 %1032
        %v1034 = vsel %vm1020, %v1030, -inf
        %1035 = vmax.xlane.f32.xlu0 %v1034
        %v1036 = vpop.xlane.xlu0 %1035
        %vm1037 = vcmp.ge.f32.partialorder %v1029, %v1033
        %vm1038 = vcmp.ge.f32.partialorder %v1030, %v1036
        %vm1039 = vmor %vm1027, %vm1037
        %vm1040 = vmor %vm1028, %vm1038
        %v1041 = vsel %vm1037, -3e+38, %v1029
        %v1042 = vsel %vm1038, -3e+38, %v1030
        %v1043 = vsel %vm1020, %v1041, -inf
        %1044 = vmax.xlane.f32.xlu0 %v1043
        %v1045 = vpop.xlane.xlu0 %1044
        %v1046 = vsel %vm1020, %v1042, -inf
        %1047 = vmax.xlane.f32.xlu0 %v1046
        %v1048 = vpop.xlane.xlu0 %1047
        %vm1049 = vcmp.ge.f32.partialorder %v1041, %v1045
        %vm1050 = vcmp.ge.f32.partialorder %v1042, %v1048
        %vm1051 = vmor %vm1039, %vm1049
        %vm1052 = vmor %vm1040, %vm1050
        %v1053 = vsel %vm1049, -3e+38, %v1041
        %v1054 = vsel %vm1050, -3e+38, %v1042
        %v1055 = vsel %vm1020, %v1053, -inf
        %1056 = vmax.xlane.f32.xlu0 %v1055
        %v1057 = vpop.xlane.xlu0 %1056
        %v1058 = vsel %vm1020, %v1054, -inf
        %1059 = vmax.xlane.f32.xlu0 %v1058
        %v1060 = vpop.xlane.xlu0 %1059
        %vm1061 = vcmp.ge.f32.partialorder %v1053, %v1057
        %vm1062 = vcmp.ge.f32.partialorder %v1054, %v1060
        %vm1063 = vmor %vm1051, %vm1061
        %vm1064 = vmor %vm1052, %vm1062
        %v1065 = vsel %vm1061, -3e+38, %v1053
        %v1066 = vsel %vm1062, -3e+38, %v1054
        %v1067 = vsel %vm1020, %v1065, -inf
        %1068 = vmax.xlane.f32.xlu0 %v1067
        %v1069 = vpop.xlane.xlu0 %1068
        %v1070 = vsel %vm1020, %v1066, -inf
        %1071 = vmax.xlane.f32.xlu0 %v1070
        %v1072 = vpop.xlane.xlu0 %1071
        %vm1073 = vcmp.ge.f32.partialorder %v1065, %v1069
        %vm1074 = vcmp.ge.f32.partialorder %v1066, %v1072
        %vm1075 = vmor %vm1063, %vm1073
        %vm1076 = vmor %vm1064, %vm1074
        %v1077 = vsel %vm1073, -3e+38, %v1065
        %v1078 = vsel %vm1074, -3e+38, %v1066
        %v1079 = vsel %vm1020, %v1077, -inf
        %1080 = vmax.xlane.f32.xlu0 %v1079
        %v1081 = vpop.xlane.xlu0 %1080
        %v1082 = vsel %vm1020, %v1078, -inf
        %1083 = vmax.xlane.f32.xlu0 %v1082
        %v1084 = vpop.xlane.xlu0 %1083
        %vm1085 = vcmp.ge.f32.partialorder %v1077, %v1081
        %vm1086 = vcmp.ge.f32.partialorder %v1078, %v1084
        %vm1087 = vmor %vm1075, %vm1085
        %vm1088 = vmor %vm1076, %vm1086
        %v1089 = vsel %vm1085, -3e+38, %v1077
        %v1090 = vsel %vm1086, -3e+38, %v1078
        %v1091 = vsel %vm1020, %v1089, -inf
        %1092 = vmax.xlane.f32.xlu0 %v1091
        %v1093 = vpop.xlane.xlu0 %1092
        %v1094 = vsel %vm1020, %v1090, -inf
        %1095 = vmax.xlane.f32.xlu0 %v1094
        %v1096 = vpop.xlane.xlu0 %1095
        %vm1097 = vcmp.ge.f32.partialorder %v1089, %v1093
        %vm1098 = vcmp.ge.f32.partialorder %v1090, %v1096
        %vm1099 = vmor %vm1087, %vm1097
        %vm1100 = vmor %vm1088, %vm1098
        %v1101 = vsel %vm1097, -3e+38, %v1089
        %v1102 = vsel %vm1098, -3e+38, %v1090
        %v1103 = vsel %vm1020, %v1101, -inf
        %1104 = vmax.xlane.f32.xlu0 %v1103
        %v1105 = vpop.xlane.xlu0 %1104
        %v1106 = vsel %vm1020, %v1102, -inf
        %1107 = vmax.xlane.f32.xlu0 %v1106
        %v1108 = vpop.xlane.xlu0 %1107
        %vm1109 = vcmp.ge.f32.partialorder %v1101, %v1105
        %vm1110 = vcmp.ge.f32.partialorder %v1102, %v1108
        %vm1111 = vmor %vm1099, %vm1109
        %vm1112 = vmor %vm1100, %vm1110
        %v1113 = vsel %vm1109, -3e+38, %v1101
        %v1114 = vsel %vm1110, -3e+38, %v1102
        %v1115 = vsel %vm1020, %v1113, -inf
        %1116 = vmax.xlane.f32.xlu0 %v1115
        %v1117 = vpop.xlane.xlu0 %1116
        %v1118 = vsel %vm1020, %v1114, -inf
        %1119 = vmax.xlane.f32.xlu0 %v1118
        %v1120 = vpop.xlane.xlu0 %1119
        %vm1121 = vcmp.ge.f32.partialorder %v1113, %v1117
        %vm1122 = vcmp.ge.f32.partialorder %v1114, %v1120
        %vm1123 = vmor %vm1111, %vm1121
        %vm1124 = vmor %vm1112, %vm1122
        %v1125 = vsel %vm1123, 1, 0
        %v1126 = vsel %vm1124, 1, 0
        %1127 = vset.pattern.permute.xlu0 0
        %1128 = vperm.xlu0 %1127, %v1125
        %v1129 = vpop.permute.xlu0 %1128
        %1130 = vset.pattern.permute.xlu0 0
        %1131 = vperm.xlu0 %1130, %v1126
        %v1132 = vpop.permute.xlu0 %1131
        %vm1133 = vcmp.eq.s32.totalorder %v1129, 1
        %vm1134 = vcmp.eq.s32.totalorder %v1132, 1
        %v1135 = vperm.slane %v1018, 0
        %v1136 = vsel %vm1133, %v1135, -3e+38
        %v1137 = vsel %vm1134, %v1135, -3e+38
        %v1138 = vmax.f32 %v1136, -3e+38
        %v1139 = vmax.f32 %v1137, -3e+38
        %1140 = vset.pattern.permute.xlu0 1
        %1141 = vperm.xlu0 %1140, %v1125
        %v1142 = vpop.permute.xlu0 %1141
        %1143 = vset.pattern.permute.xlu0 1
        %1144 = vperm.xlu0 %1143, %v1126
        %v1145 = vpop.permute.xlu0 %1144
        %vm1146 = vcmp.eq.s32.totalorder %v1142, 1
        %vm1147 = vcmp.eq.s32.totalorder %v1145, 1
        %v1148 = vperm.slane %v1018, 1
        %v1149 = vsel %vm1146, %v1148, -3e+38
        %v1150 = vsel %vm1147, %v1148, -3e+38
        %v1151 = vmax.f32 %v1138, %v1149
        %v1152 = vmax.f32 %v1139, %v1150
        %1153 = vset.pattern.permute.xlu0 2
        %1154 = vperm.xlu0 %1153, %v1125
        %v1155 = vpop.permute.xlu0 %1154
        %1156 = vset.pattern.permute.xlu0 2
        %1157 = vperm.xlu0 %1156, %v1126
        %v1158 = vpop.permute.xlu0 %1157
        %vm1159 = vcmp.eq.s32.totalorder %v1155, 1
        %vm1160 = vcmp.eq.s32.totalorder %v1158, 1
        %v1161 = vperm.slane %v1018, 2
        %v1162 = vsel %vm1159, %v1161, -3e+38
        %v1163 = vsel %vm1160, %v1161, -3e+38
        %v1164 = vmax.f32 %v1151, %v1162
        %v1165 = vmax.f32 %v1152, %v1163
        %1166 = vset.pattern.permute.xlu0 3
        %1167 = vperm.xlu0 %1166, %v1125
        %v1168 = vpop.permute.xlu0 %1167
        %1169 = vset.pattern.permute.xlu0 3
        %1170 = vperm.xlu0 %1169, %v1126
        %v1171 = vpop.permute.xlu0 %1170
        %vm1172 = vcmp.eq.s32.totalorder %v1168, 1
        %vm1173 = vcmp.eq.s32.totalorder %v1171, 1
        %v1174 = vperm.slane %v1018, 3
        %v1175 = vsel %vm1172, %v1174, -3e+38
        %v1176 = vsel %vm1173, %v1174, -3e+38
        %v1177 = vmax.f32 %v1164, %v1175
        %v1178 = vmax.f32 %v1165, %v1176
        %1179 = vset.pattern.permute.xlu0 4
        %1180 = vperm.xlu0 %1179, %v1125
        %v1181 = vpop.permute.xlu0 %1180
        %1182 = vset.pattern.permute.xlu0 4
        %1183 = vperm.xlu0 %1182, %v1126
        %v1184 = vpop.permute.xlu0 %1183
        %vm1185 = vcmp.eq.s32.totalorder %v1181, 1
        %vm1186 = vcmp.eq.s32.totalorder %v1184, 1
        %v1187 = vperm.slane %v1018, 4
        %v1188 = vsel %vm1185, %v1187, -3e+38
        %v1189 = vsel %vm1186, %v1187, -3e+38
        %v1190 = vmax.f32 %v1177, %v1188
        %v1191 = vmax.f32 %v1178, %v1189
        %1192 = vset.pattern.permute.xlu0 5
        %1193 = vperm.xlu0 %1192, %v1125
        %v1194 = vpop.permute.xlu0 %1193
        %1195 = vset.pattern.permute.xlu0 5
        %1196 = vperm.xlu0 %1195, %v1126
        %v1197 = vpop.permute.xlu0 %1196
        %vm1198 = vcmp.eq.s32.totalorder %v1194, 1
        %vm1199 = vcmp.eq.s32.totalorder %v1197, 1
        %v1200 = vperm.slane %v1018, 5
        %v1201 = vsel %vm1198, %v1200, -3e+38
        %v1202 = vsel %vm1199, %v1200, -3e+38
        %v1203 = vmax.f32 %v1190, %v1201
        %v1204 = vmax.f32 %v1191, %v1202
        %1205 = vset.pattern.permute.xlu0 6
        %1206 = vperm.xlu0 %1205, %v1125
        %v1207 = vpop.permute.xlu0 %1206
        %1208 = vset.pattern.permute.xlu0 6
        %1209 = vperm.xlu0 %1208, %v1126
        %v1210 = vpop.permute.xlu0 %1209
        %vm1211 = vcmp.eq.s32.totalorder %v1207, 1
        %vm1212 = vcmp.eq.s32.totalorder %v1210, 1
        %v1213 = vperm.slane %v1018, 6
        %v1214 = vsel %vm1211, %v1213, -3e+38
        %v1215 = vsel %vm1212, %v1213, -3e+38
        %v1216 = vmax.f32 %v1203, %v1214
        %v1217 = vmax.f32 %v1204, %v1215
        %1218 = vset.pattern.permute.xlu0 7
        %1219 = vperm.xlu0 %1218, %v1125
        %v1220 = vpop.permute.xlu0 %1219
        %1221 = vset.pattern.permute.xlu0 7
        %1222 = vperm.xlu0 %1221, %v1126
        %v1223 = vpop.permute.xlu0 %1222
        %vm1224 = vcmp.eq.s32.totalorder %v1220, 1
        %vm1225 = vcmp.eq.s32.totalorder %v1223, 1
        %v1226 = vperm.slane %v1018, 7
        %v1227 = vsel %vm1224, %v1226, -3e+38
        %v1228 = vsel %vm1225, %v1226, -3e+38
        %v1229 = vmax.f32 %v1216, %v1227
        %v1230 = vmax.f32 %v1217, %v1228
        %1231 = vset.pattern.permute.xlu0 8
        %1232 = vperm.xlu0 %1231, %v1125
        %v1233 = vpop.permute.xlu0 %1232
        %1234 = vset.pattern.permute.xlu0 8
        %1235 = vperm.xlu0 %1234, %v1126
        %v1236 = vpop.permute.xlu0 %1235
        %vm1237 = vcmp.eq.s32.totalorder %v1233, 1
        %vm1238 = vcmp.eq.s32.totalorder %v1236, 1
        %v1239 = vperm.slane %v1019, 0
        %v1240 = vsel %vm1237, %v1239, -3e+38
        %v1241 = vsel %vm1238, %v1239, -3e+38
        %v1242 = vmax.f32 %v1229, %v1240
        %v1243 = vmax.f32 %v1230, %v1241
        %1244 = vset.pattern.permute.xlu0 9
        %1245 = vperm.xlu0 %1244, %v1125
        %v1246 = vpop.permute.xlu0 %1245
        %1247 = vset.pattern.permute.xlu0 9
        %1248 = vperm.xlu0 %1247, %v1126
        %v1249 = vpop.permute.xlu0 %1248
        %vm1250 = vcmp.eq.s32.totalorder %v1246, 1
        %vm1251 = vcmp.eq.s32.totalorder %v1249, 1
        %v1252 = vperm.slane %v1019, 1
        %v1253 = vsel %vm1250, %v1252, -3e+38
        %v1254 = vsel %vm1251, %v1252, -3e+38
        %v1255 = vmax.f32 %v1242, %v1253
        %v1256 = vmax.f32 %v1243, %v1254
        %1257 = vset.pattern.permute.xlu0 10
        %1258 = vperm.xlu0 %1257, %v1125
        %v1259 = vpop.permute.xlu0 %1258
        %1260 = vset.pattern.permute.xlu0 10
        %1261 = vperm.xlu0 %1260, %v1126
        %v1262 = vpop.permute.xlu0 %1261
        %vm1263 = vcmp.eq.s32.totalorder %v1259, 1
        %vm1264 = vcmp.eq.s32.totalorder %v1262, 1
        %v1265 = vperm.slane %v1019, 2
        %v1266 = vsel %vm1263, %v1265, -3e+38
        %v1267 = vsel %vm1264, %v1265, -3e+38
        %v1268 = vmax.f32 %v1255, %v1266
        %v1269 = vmax.f32 %v1256, %v1267
        %1270 = vset.pattern.permute.xlu0 11
        %1271 = vperm.xlu0 %1270, %v1125
        %v1272 = vpop.permute.xlu0 %1271
        %1273 = vset.pattern.permute.xlu0 11
        %1274 = vperm.xlu0 %1273, %v1126
        %v1275 = vpop.permute.xlu0 %1274
        %vm1276 = vcmp.eq.s32.totalorder %v1272, 1
        %vm1277 = vcmp.eq.s32.totalorder %v1275, 1
        %v1278 = vperm.slane %v1019, 3
        %v1279 = vsel %vm1276, %v1278, -3e+38
        %v1280 = vsel %vm1277, %v1278, -3e+38
        %v1281 = vmax.f32 %v1268, %v1279
        %v1282 = vmax.f32 %v1269, %v1280
        %1283 = vset.pattern.permute.xlu0 12
        %1284 = vperm.xlu0 %1283, %v1125
        %v1285 = vpop.permute.xlu0 %1284
        %1286 = vset.pattern.permute.xlu0 12
        %1287 = vperm.xlu0 %1286, %v1126
        %v1288 = vpop.permute.xlu0 %1287
        %vm1289 = vcmp.eq.s32.totalorder %v1285, 1
        %vm1290 = vcmp.eq.s32.totalorder %v1288, 1
        %v1291 = vperm.slane %v1019, 4
        %v1292 = vsel %vm1289, %v1291, -3e+38
        %v1293 = vsel %vm1290, %v1291, -3e+38
        %v1294 = vmax.f32 %v1281, %v1292
        %v1295 = vmax.f32 %v1282, %v1293
        %1296 = vset.pattern.permute.xlu0 13
        %1297 = vperm.xlu0 %1296, %v1125
        %v1298 = vpop.permute.xlu0 %1297
        %1299 = vset.pattern.permute.xlu0 13
        %1300 = vperm.xlu0 %1299, %v1126
        %v1301 = vpop.permute.xlu0 %1300
        %vm1302 = vcmp.eq.s32.totalorder %v1298, 1
        %vm1303 = vcmp.eq.s32.totalorder %v1301, 1
        %v1304 = vperm.slane %v1019, 5
        %v1305 = vsel %vm1302, %v1304, -3e+38
        %v1306 = vsel %vm1303, %v1304, -3e+38
        %v1307 = vmax.f32 %v1294, %v1305
        %v1308 = vmax.f32 %v1295, %v1306
        %1309 = vset.pattern.permute.xlu0 14
        %1310 = vperm.xlu0 %1309, %v1125
        %v1311 = vpop.permute.xlu0 %1310
        %1312 = vset.pattern.permute.xlu0 14
        %1313 = vperm.xlu0 %1312, %v1126
        %v1314 = vpop.permute.xlu0 %1313
        %vm1315 = vcmp.eq.s32.totalorder %v1311, 1
        %vm1316 = vcmp.eq.s32.totalorder %v1314, 1
        %v1317 = vperm.slane %v1019, 6
        %v1318 = vsel %vm1315, %v1317, -3e+38
        %v1319 = vsel %vm1316, %v1317, -3e+38
        %v1320 = vmax.f32 %v1307, %v1318
        %v1321 = vmax.f32 %v1308, %v1319
        %1322 = vset.pattern.permute.xlu0 15
        %1323 = vperm.xlu0 %1322, %v1125
        %v1324 = vpop.permute.xlu0 %1323
        %1325 = vset.pattern.permute.xlu0 15
        %1326 = vperm.xlu0 %1325, %v1126
        %v1327 = vpop.permute.xlu0 %1326
        %vm1328 = vcmp.eq.s32.totalorder %v1324, 1
        %vm1329 = vcmp.eq.s32.totalorder %v1327, 1
        %v1330 = vperm.slane %v1019, 7
        %v1331 = vsel %vm1328, %v1330, -3e+38
        %v1332 = vsel %vm1329, %v1330, -3e+38
        %v1333 = vmax.f32 %v1320, %v1331
        %v1334 = vmax.f32 %v1321, %v1332
        %v1335 = vsub.f32 %v1333, %v1018
        %v1336 = vsub.f32 %v1334, %v1019
        %v1337 = vpack.c.bf16 %v1019, %v1018
        %v1338 = vld [vmem:[%s6] sm:$0xf]
        %v1339 = vld [vmem:[%s6 + $0x4] sm:$0xf]
        %v1340 = vld [vmem:[%s6 + $0x8] sm:$0xf]
        %v1341 = vld [vmem:[%s6 + $0xc] sm:$0xf]
        %v1342 = vld [vmem:[%s6 + $0x10] sm:$0xf]
        %v1343 = vld [vmem:[%s6 + $0x14] sm:$0xf]
        %v1344 = vld [vmem:[%s6 + $0x18] sm:$0xf]
        %v1345 = vld [vmem:[%s6 + $0x1c] sm:$0xf]
        %v1346 = vpack.c.bf16 %v1336, %v1335
        %v1347 = vld [vmem:[%s7] sm:$0xf]
        %v1348 = vld [vmem:[%s7 + $0x4] sm:$0xf]
        %v1349 = vld [vmem:[%s7 + $0x8] sm:$0xf]
        %v1350 = vld [vmem:[%s7 + $0xc] sm:$0xf]
        %v1351 = vld [vmem:[%s7 + $0x10] sm:$0xf]
        %v1352 = vld [vmem:[%s7 + $0x14] sm:$0xf]
        %v1353 = vld [vmem:[%s7 + $0x18] sm:$0xf]
        %v1354 = vld [vmem:[%s7 + $0x1c] sm:$0xf]
        %v1363 = vunpack.c.l.b16 %v1347
        %v1364 = vunpack.c.l.b16 %v1348
        %v1365 = vunpack.c.l.b16 %v1349
        %v1366 = vunpack.c.l.b16 %v1350
        %v1367 = vunpack.c.l.b16 %v1351
        %v1368 = vunpack.c.l.b16 %v1352
        %v1369 = vunpack.c.l.b16 %v1353
        %v1370 = vunpack.c.l.b16 %v1354
        %v1371 = vpack.c.b16 %v1364, %v1363
        %v1372 = vpack.c.b16 %v1366, %v1365
        %v1373 = vpack.c.b16 %v1368, %v1367
        %v1374 = vpack.c.b16 %v1370, %v1369
        %v1380 = vsel %vm828, %v1346, 0
        %1382 = vmatpush.bf16.msra.mxu0 0
        %1383 = vmatpush.bf16.msra.mxu0 0
        %1384 = vmatpush.bf16.msra.mxu0 0
        %1385 = vmatpush.bf16.msra.mxu0 0
        %1386 = vmatpush.bf16.msra.mxu0 %v1374
        %1387 = vmatpush.bf16.msra.mxu0 %v1373
        %1388 = vmatpush.bf16.msra.mxu0 %v1372
        %1389 = vmatpush.bf16.msra.mxu0 %v1371
        %1390 = vmatmul.bf16.gmra.mxu0 %v1380
        %v1391 = vpop.f32.mrf.mxu0
        %v1392 = vadd.f32 0.0, %v1391
        %v1393 = vpop.f32.mrf.mxu0
        %v1394 = vadd.f32 0.0, %v1393
        %1395 = vdwg.mxu0
        %v1404 = vunpack.c.l.b16 %v1338
        %v1405 = vunpack.c.l.b16 %v1339
        %v1406 = vunpack.c.l.b16 %v1340
        %v1407 = vunpack.c.l.b16 %v1341
        %v1408 = vunpack.c.l.b16 %v1342
        %v1409 = vunpack.c.l.b16 %v1343
        %v1410 = vunpack.c.l.b16 %v1344
        %v1411 = vunpack.c.l.b16 %v1345
        %v1412 = vpack.c.b16 %v1405, %v1404
        %v1413 = vpack.c.b16 %v1407, %v1406
        %v1414 = vpack.c.b16 %v1409, %v1408
        %v1415 = vpack.c.b16 %v1411, %v1410
        %v1421 = vsel %vm828, %v1337, 0
        %1423 = vmatpush.bf16.msra.mxu0 0
        %1424 = vmatpush.bf16.msra.mxu0 0
        %1425 = vmatpush.bf16.msra.mxu0 0
        %1426 = vmatpush.bf16.msra.mxu0 0
        %1427 = vmatpush.bf16.msra.mxu0 %v1415
        %1428 = vmatpush.bf16.msra.mxu0 %v1414
        %1429 = vmatpush.bf16.msra.mxu0 %v1413
        %1430 = vmatpush.bf16.msra.mxu0 %v1412
        %1431 = vmatmul.bf16.gmra.mxu0 %v1421
        %v1432 = vpop.f32.mrf.mxu0
        %v1433 = vadd.f32 %v1392, %v1432
        %v1434 = vpop.f32.mrf.mxu0
        %v1435 = vadd.f32 %v1394, %v1434
        %1436 = vdwg.mxu0
        %v1437 = vld [vmem:[#allocation7] sm:$0x1]
        %v1439 = vperm.slane %v1437, 0
        %v1441 = vadd.f32 %v1433, %v1439
        %v1442 = vadd.f32 %v1435, %v1439
        %v1443 = vmul.f32 %v1441, 0.5
        %v1444 = vmul.f32 %v1442, 0.5
        %v1445 = vmul.f32 %v1441, 0.70710677
        %v1446 = vmul.f32 %v1442, 0.70710677
        %v1447 = vand.u32 2147483647, %v1445
        %v1448 = vand.u32 2147483647, %v1446
        %v1449 = vmul.f32 %v1447, 0.3275911
        %v1450 = vmul.f32 %v1448, 0.3275911
        %v1451 = vadd.f32 %v1449, 1.0
        %v1452 = vadd.f32 %v1450, 1.0
        %v1453 = vrcp.pop %v1451
        %v1454 = vrcp.pop %v1452
        %v1455 = vmul.f32 %v1453, 1.0614054
        %v1456 = vmul.f32 %v1454, 1.0614054
        %v1457 = vadd.f32 %v1455, -1.4531521
        %v1458 = vadd.f32 %v1456, -1.4531521
        %v1459 = vmul.f32 %v1457, %v1453
        %v1460 = vmul.f32 %v1458, %v1454
        %v1461 = vadd.f32 %v1459, 1.4214138
        %v1462 = vadd.f32 %v1460, 1.4214138
        %v1463 = vmul.f32 %v1461, %v1453
        %v1464 = vmul.f32 %v1462, %v1454
        %v1465 = vadd.f32 %v1463, -0.28449672
        %v1466 = vadd.f32 %v1464, -0.28449672
        %v1467 = vmul.f32 %v1465, %v1453
        %v1468 = vmul.f32 %v1466, %v1454
        %v1469 = vadd.f32 %v1467, 0.2548296
        %v1470 = vadd.f32 %v1468, 0.2548296
        %v1471 = vmul.f32 %v1469, %v1453
        %v1472 = vmul.f32 %v1470, %v1454
        %v1473 = vsub.f32 0.0, %v1447
        %v1474 = vsub.f32 0.0, %v1448
        %v1475 = vmul.f32 %v1473, %v1447
        %v1476 = vmul.f32 %v1474, %v1448
        %v1477 = vmul.f32 %v1475, 1.442695
        %v1478 = vpow.pop %v1477
        %v1479 = vmul.f32 %v1476, 1.442695
        %v1480 = vpow.pop %v1479
        %v1481 = vmul.f32 %v1471, %v1478
        %v1482 = vmul.f32 %v1472, %v1480
        %v1483 = vsub.f32 1.0, %v1481
        %v1484 = vsub.f32 1.0, %v1482
        %vm1485 = vcmp.ge.f32.partialorder %v1445, 0.0
        %vm1486 = vcmp.ge.f32.partialorder %v1446, 0.0
        %v1487 = vsub.f32 0.0, %v1483
        %v1488 = vsub.f32 0.0, %v1484
        %v1489 = vsel %vm1485, %v1483, %v1487
        %v1490 = vsel %vm1486, %v1484, %v1488
        %v1491 = vadd.f32 %v1489, 1.0
        %v1492 = vadd.f32 %v1490, 1.0
        %v1493 = vmul.f32 %v1443, %v1491
        %v1494 = vmul.f32 %v1444, %v1492
        %v1495 = vpack.c.bf16 %v1494, %v1493
        %v1496 = vld [vmem:[%s9] sm:$0xf]
        %v1497 = vld [vmem:[%s9 + $0x4] sm:$0xf]
        %v1498 = vld [vmem:[%s9 + $0x8] sm:$0xf]
        %v1499 = vld [vmem:[%s9 + $0xc] sm:$0xf]
        %v1500 = vld [vmem:[%s9 + $0x10] sm:$0xf]
        %v1501 = vld [vmem:[%s9 + $0x14] sm:$0xf]
        %v1502 = vld [vmem:[%s9 + $0x18] sm:$0xf]
        %v1503 = vld [vmem:[%s9 + $0x1c] sm:$0xf]
        %v1504 = vld [vmem:[#allocation9] sm:$0x1]
        %v1506 = vperm.slane %v1504, 0
        %v1516 = vunpack.c.l.b16 %v1496
        %v1517 = vunpack.c.l.b16 %v1497
        %v1518 = vunpack.c.l.b16 %v1498
        %v1519 = vunpack.c.l.b16 %v1499
        %v1520 = vunpack.c.l.b16 %v1500
        %v1521 = vunpack.c.l.b16 %v1501
        %v1522 = vunpack.c.l.b16 %v1502
        %v1523 = vunpack.c.l.b16 %v1503
        %v1524 = vpack.c.b16 %v1517, %v1516
        %v1525 = vpack.c.b16 %v1519, %v1518
        %v1526 = vpack.c.b16 %v1521, %v1520
        %v1527 = vpack.c.b16 %v1523, %v1522
        %v1533 = vsel %vm828, %v1495, 0
        %1535 = vmatpush.bf16.msra.mxu0 0
        %1536 = vmatpush.bf16.msra.mxu0 0
        %1537 = vmatpush.bf16.msra.mxu0 0
        %1538 = vmatpush.bf16.msra.mxu0 0
        %1539 = vmatpush.bf16.msra.mxu0 %v1527
        %1540 = vmatpush.bf16.msra.mxu0 %v1526
        %1541 = vmatpush.bf16.msra.mxu0 %v1525
        %1542 = vmatpush.bf16.msra.mxu0 %v1524
        %1543 = vmatmul.bf16.gmra.mxu0 %v1533
        %v1544 = vpop.f32.mrf.mxu0
        %v1545 = vadd.f32 %v1506, %v1544
        %v1546 = vpop.f32.mrf.mxu0
        %v1547 = vadd.f32 %v1506, %v1546
        %1548 = vdwg.mxu0
        %v1549 = vmul.f32 %v1545, 0.5
        %v1550 = vmul.f32 %v1547, 0.5
        %v1551 = vmul.f32 %v1545, 0.70710677
        %v1552 = vmul.f32 %v1547, 0.70710677
        %v1553 = vand.u32 2147483647, %v1551
        %v1554 = vand.u32 2147483647, %v1552
        %v1555 = vmul.f32 %v1553, 0.3275911
        %v1556 = vmul.f32 %v1554, 0.3275911
        %v1557 = vadd.f32 %v1555, 1.0
        %v1558 = vadd.f32 %v1556, 1.0
        %v1559 = vrcp.pop %v1557
        %v1560 = vrcp.pop %v1558
        %v1561 = vmul.f32 %v1559, 1.0614054
        %v1562 = vmul.f32 %v1560, 1.0614054
        %v1563 = vadd.f32 %v1561, -1.4531521
        %v1564 = vadd.f32 %v1562, -1.4531521
        %v1565 = vmul.f32 %v1563, %v1559
        %v1566 = vmul.f32 %v1564, %v1560
        %v1567 = vadd.f32 %v1565, 1.4214138
        %v1568 = vadd.f32 %v1566, 1.4214138
        %v1569 = vmul.f32 %v1567, %v1559
        %v1570 = vmul.f32 %v1568, %v1560
        %v1571 = vadd.f32 %v1569, -0.28449672
        %v1572 = vadd.f32 %v1570, -0.28449672
        %v1573 = vmul.f32 %v1571, %v1559
        %v1574 = vmul.f32 %v1572, %v1560
        %v1575 = vadd.f32 %v1573, 0.2548296
        %v1576 = vadd.f32 %v1574, 0.2548296
        %v1577 = vmul.f32 %v1575, %v1559
        %v1578 = vmul.f32 %v1576, %v1560
        %v1579 = vsub.f32 0.0, %v1553
        %v1580 = vsub.f32 0.0, %v1554
        %v1581 = vmul.f32 %v1579, %v1553
        %v1582 = vmul.f32 %v1580, %v1554
        %v1583 = vmul.f32 %v1581, 1.442695
        %v1584 = vpow.pop %v1583
        %v1585 = vmul.f32 %v1582, 1.442695
        %v1586 = vpow.pop %v1585
        %v1587 = vmul.f32 %v1577, %v1584
        %v1588 = vmul.f32 %v1578, %v1586
        %v1589 = vsub.f32 1.0, %v1587
        %v1590 = vsub.f32 1.0, %v1588
        %vm1591 = vcmp.ge.f32.partialorder %v1551, 0.0
        %vm1592 = vcmp.ge.f32.partialorder %v1552, 0.0
        %v1593 = vsub.f32 0.0, %v1589
        %v1594 = vsub.f32 0.0, %v1590
        %v1595 = vsel %vm1591, %v1589, %v1593
        %v1596 = vsel %vm1592, %v1590, %v1594
        %v1597 = vadd.f32 %v1595, 1.0
        %v1598 = vadd.f32 %v1596, 1.0
        %v1599 = vmul.f32 %v1549, %v1597
        %v1600 = vmul.f32 %v1550, %v1598
        %v1601 = vpack.c.bf16 %v1600, %v1599
        %v1602 = vld [vmem:[#allocation10] sm:$0xf]
        %v1603 = vld [vmem:[#allocation10 + $0x4] sm:$0xf]
        %v1604 = vld [vmem:[#allocation10 + $0x8] sm:$0xf]
        %v1605 = vld [vmem:[#allocation10 + $0xc] sm:$0xf]
        %v1606 = vld [vmem:[#allocation10 + $0x10] sm:$0xf]
        %v1607 = vld [vmem:[#allocation10 + $0x14] sm:$0xf]
        %v1608 = vld [vmem:[#allocation10 + $0x18] sm:$0xf]
        %v1609 = vld [vmem:[#allocation10 + $0x1c] sm:$0xf]
        %v1610 = vld [vmem:[#allocation12] sm:$0x1]
        %v1612 = vperm.slane %v1610, 0
        %v1622 = vunpack.c.l.b16 %v1602
        %v1623 = vunpack.c.l.b16 %v1603
        %v1624 = vunpack.c.l.b16 %v1604
        %v1625 = vunpack.c.l.b16 %v1605
        %v1626 = vunpack.c.l.b16 %v1606
        %v1627 = vunpack.c.l.b16 %v1607
        %v1628 = vunpack.c.l.b16 %v1608
        %v1629 = vunpack.c.l.b16 %v1609
        %v1630 = vpack.c.b16 %v1623, %v1622
        %v1631 = vpack.c.b16 %v1625, %v1624
        %v1632 = vpack.c.b16 %v1627, %v1626
        %v1633 = vpack.c.b16 %v1629, %v1628
        %v1639 = vsel %vm828, %v1601, 0
        %1641 = vmatpush.bf16.msra.mxu0 0
        %1642 = vmatpush.bf16.msra.mxu0 0
        %1643 = vmatpush.bf16.msra.mxu0 0
        %1644 = vmatpush.bf16.msra.mxu0 0
        %1645 = vmatpush.bf16.msra.mxu0 %v1633
        %1646 = vmatpush.bf16.msra.mxu0 %v1632
        %1647 = vmatpush.bf16.msra.mxu0 %v1631
        %1648 = vmatpush.bf16.msra.mxu0 %v1630
        %1649 = vmatmul.bf16.gmra.mxu0 %v1639
        %v1650 = vpop.f32.mrf.mxu0
        %v1651 = vadd.f32 %v1612, %v1650
        %v1652 = vpop.f32.mrf.mxu0
        %v1653 = vadd.f32 %v1612, %v1652
        %1654 = vdwg.mxu0
        %v1655 = vadd.f32 %v1651, %v1493
        %v1656 = vadd.f32 %v1653, %v1494
        %v1657 = vadd.f32 %v1655, %v826
        %v1658 = vadd.f32 %v1656, %v827
        %v1659 = vpack.c.bf16 %v1658, %v1657
        %v1660 = vld [vmem:[%s13] sm:$0xff]
        %v1661 = vld [vmem:[%s13 + $0x8] sm:$0xff]
        %v1662 = vld [vmem:[%s13 + $0x10] sm:$0xff]
        %v1663 = vld [vmem:[%s13 + $0x18] sm:$0xff]
        %v1664 = vld [vmem:[%s13 + $0x20] sm:$0xff]
        %v1665 = vld [vmem:[%s13 + $0x28] sm:$0xff]
        %v1666 = vld [vmem:[%s13 + $0x30] sm:$0xff]
        %v1667 = vld [vmem:[%s13 + $0x38] sm:$0xff]
        %v1668 = vld [vmem:[#allocation13] sm:$0x3]
        %v1670 = vperm.slane %v1668, 0
        %v1671 = vperm.slane %v1668, 1
        %v1682 = vunpack.c.l.b16 %v1660
        %v1683 = vunpack.c.h.b16 %v1660
        %v1684 = vunpack.c.l.b16 %v1661
        %v1685 = vunpack.c.h.b16 %v1661
        %v1686 = vunpack.c.l.b16 %v1662
        %v1687 = vunpack.c.h.b16 %v1662
        %v1688 = vunpack.c.l.b16 %v1663
        %v1689 = vunpack.c.h.b16 %v1663
        %v1690 = vunpack.c.l.b16 %v1664
        %v1691 = vunpack.c.h.b16 %v1664
        %v1692 = vunpack.c.l.b16 %v1665
        %v1693 = vunpack.c.h.b16 %v1665
        %v1694 = vunpack.c.l.b16 %v1666
        %v1695 = vunpack.c.h.b16 %v1666
        %v1696 = vunpack.c.l.b16 %v1667
        %v1697 = vunpack.c.h.b16 %v1667
        %v1698 = vpack.c.b16 %v1684, %v1682
        %v1699 = vpack.c.b16 %v1685, %v1683
        %v1700 = vpack.c.b16 %v1688, %v1686
        %v1701 = vpack.c.b16 %v1689, %v1687
        %v1702 = vpack.c.b16 %v1692, %v1690
        %v1703 = vpack.c.b16 %v1693, %v1691
        %v1704 = vpack.c.b16 %v1696, %v1694
        %v1705 = vpack.c.b16 %v1697, %v1695
        %v1715 = vsel %vm828, %v1659, 0
        %1717 = vmatpush.bf16.msra.mxu0 0
        %1718 = vmatpush.bf16.msra.mxu0 0
        %1719 = vmatpush.bf16.msra.mxu0 0
        %1720 = vmatpush.bf16.msra.mxu0 0
        %1721 = vmatpush.bf16.msra.mxu0 %v1704
        %1722 = vmatpush.bf16.msra.mxu0 %v1702
        %1723 = vmatpush.bf16.msra.mxu0 %v1700
        %1724 = vmatpush.bf16.msra.mxu0 %v1698
        %1725 = vmatmul.bf16.gmra.mxu0 %v1715
        %v1726 = vpop.f32.mrf.mxu0
        %v1727 = vadd.f32 %v1670, %v1726
        %v1728 = vpop.f32.mrf.mxu0
        %v1729 = vadd.f32 %v1670, %v1728
        %1730 = vdwg.mxu0
        %1731 = vmatpush.bf16.msra.mxu0 0
        %1732 = vmatpush.bf16.msra.mxu0 0
        %1733 = vmatpush.bf16.msra.mxu0 0
        %1734 = vmatpush.bf16.msra.mxu0 0
        %1735 = vmatpush.bf16.msra.mxu0 %v1705
        %1736 = vmatpush.bf16.msra.mxu0 %v1703
        %1737 = vmatpush.bf16.msra.mxu0 %v1701
        %1738 = vmatpush.bf16.msra.mxu0 %v1699
        %1739 = vmatmul.bf16.gmra.mxu0 %v1715
        %v1740 = vpop.f32.mrf.mxu0
        %v1741 = vadd.f32 %v1671, %v1740
        %v1742 = vpop.f32.mrf.mxu0
        %v1743 = vadd.f32 %v1671, %v1742
        %1744 = vdwg.mxu0
        %v1745 = vmul.f32 %v1727, 0.5
        %v1746 = vmul.f32 %v1741, 0.5
        %v1747 = vmul.f32 %v1729, 0.5
        %v1748 = vmul.f32 %v1743, 0.5
        %v1749 = vmul.f32 %v1727, 0.70710677
        %v1750 = vmul.f32 %v1741, 0.70710677
        %v1751 = vmul.f32 %v1729, 0.70710677
        %v1752 = vmul.f32 %v1743, 0.70710677
        %v1753 = vand.u32 2147483647, %v1749
        %v1754 = vand.u32 2147483647, %v1750
        %v1755 = vand.u32 2147483647, %v1751
        %v1756 = vand.u32 2147483647, %v1752
        %v1757 = vmul.f32 %v1753, 0.3275911
        %v1758 = vmul.f32 %v1754, 0.3275911
        %v1759 = vmul.f32 %v1755, 0.3275911
        %v1760 = vmul.f32 %v1756, 0.3275911
        %v1761 = vadd.f32 %v1757, 1.0
        %v1762 = vadd.f32 %v1758, 1.0
        %v1763 = vadd.f32 %v1759, 1.0
        %v1764 = vadd.f32 %v1760, 1.0
        %v1765 = vrcp.pop %v1761
        %v1766 = vrcp.pop %v1762
        %v1767 = vrcp.pop %v1763
        %v1768 = vrcp.pop %v1764
        %v1769 = vmul.f32 %v1765, 1.0614054
        %v1770 = vmul.f32 %v1766, 1.0614054
        %v1771 = vmul.f32 %v1767, 1.0614054
        %v1772 = vmul.f32 %v1768, 1.0614054
        %v1773 = vadd.f32 %v1769, -1.4531521
        %v1774 = vadd.f32 %v1770, -1.4531521
        %v1775 = vadd.f32 %v1771, -1.4531521
        %v1776 = vadd.f32 %v1772, -1.4531521
        %v1777 = vmul.f32 %v1773, %v1765
        %v1778 = vmul.f32 %v1774, %v1766
        %v1779 = vmul.f32 %v1775, %v1767
        %v1780 = vmul.f32 %v1776, %v1768
        %v1781 = vadd.f32 %v1777, 1.4214138
        %v1782 = vadd.f32 %v1778, 1.4214138
        %v1783 = vadd.f32 %v1779, 1.4214138
        %v1784 = vadd.f32 %v1780, 1.4214138
        %v1785 = vmul.f32 %v1781, %v1765
        %v1786 = vmul.f32 %v1782, %v1766
        %v1787 = vmul.f32 %v1783, %v1767
        %v1788 = vmul.f32 %v1784, %v1768
        %v1789 = vadd.f32 %v1785, -0.28449672
        %v1790 = vadd.f32 %v1786, -0.28449672
        %v1791 = vadd.f32 %v1787, -0.28449672
        %v1792 = vadd.f32 %v1788, -0.28449672
        %v1793 = vmul.f32 %v1789, %v1765
        %v1794 = vmul.f32 %v1790, %v1766
        %v1795 = vmul.f32 %v1791, %v1767
        %v1796 = vmul.f32 %v1792, %v1768
        %v1797 = vadd.f32 %v1793, 0.2548296
        %v1798 = vadd.f32 %v1794, 0.2548296
        %v1799 = vadd.f32 %v1795, 0.2548296
        %v1800 = vadd.f32 %v1796, 0.2548296
        %v1801 = vmul.f32 %v1797, %v1765
        %v1802 = vmul.f32 %v1798, %v1766
        %v1803 = vmul.f32 %v1799, %v1767
        %v1804 = vmul.f32 %v1800, %v1768
        %v1805 = vsub.f32 0.0, %v1753
        %v1806 = vsub.f32 0.0, %v1754
        %v1807 = vsub.f32 0.0, %v1755
        %v1808 = vsub.f32 0.0, %v1756
        %v1809 = vmul.f32 %v1805, %v1753
        %v1810 = vmul.f32 %v1806, %v1754
        %v1811 = vmul.f32 %v1807, %v1755
        %v1812 = vmul.f32 %v1808, %v1756
        %v1813 = vmul.f32 %v1809, 1.442695
        %v1814 = vpow.pop %v1813
        %v1815 = vmul.f32 %v1810, 1.442695
        %v1816 = vpow.pop %v1815
        %v1817 = vmul.f32 %v1811, 1.442695
        %v1818 = vpow.pop %v1817
        %v1819 = vmul.f32 %v1812, 1.442695
        %v1820 = vpow.pop %v1819
        %v1821 = vmul.f32 %v1801, %v1814
        %v1822 = vmul.f32 %v1802, %v1816
        %v1823 = vmul.f32 %v1803, %v1818
        %v1824 = vmul.f32 %v1804, %v1820
        %v1825 = vsub.f32 1.0, %v1821
        %v1826 = vsub.f32 1.0, %v1822
        %v1827 = vsub.f32 1.0, %v1823
        %v1828 = vsub.f32 1.0, %v1824
        %vm1829 = vcmp.ge.f32.partialorder %v1749, 0.0
        %vm1830 = vcmp.ge.f32.partialorder %v1750, 0.0
        %vm1831 = vcmp.ge.f32.partialorder %v1751, 0.0
        %vm1832 = vcmp.ge.f32.partialorder %v1752, 0.0
        %v1833 = vsub.f32 0.0, %v1825
        %v1834 = vsub.f32 0.0, %v1826
        %v1835 = vsub.f32 0.0, %v1827
        %v1836 = vsub.f32 0.0, %v1828
        %v1837 = vsel %vm1829, %v1825, %v1833
        %v1838 = vsel %vm1830, %v1826, %v1834
        %v1839 = vsel %vm1831, %v1827, %v1835
        %v1840 = vsel %vm1832, %v1828, %v1836
        %v1841 = vadd.f32 %v1837, 1.0
        %v1842 = vadd.f32 %v1838, 1.0
        %v1843 = vadd.f32 %v1839, 1.0
        %v1844 = vadd.f32 %v1840, 1.0
        %v1845 = vmul.f32 %v1745, %v1841
        %v1846 = vmul.f32 %v1746, %v1842
        %v1847 = vmul.f32 %v1747, %v1843
        %v1848 = vmul.f32 %v1748, %v1844
        %v1849 = vpack.c.bf16 %v1847, %v1845
        %v1850 = vpack.c.bf16 %v1848, %v1846
        %v1851 = vld [vmem:[%s15] sm:$0xf]
        %v1852 = vld [vmem:[%s15 + $0x4] sm:$0xf]
        %v1853 = vld [vmem:[%s15 + $0x8] sm:$0xf]
        %v1854 = vld [vmem:[%s15 + $0xc] sm:$0xf]
        %v1855 = vld [vmem:[%s15 + $0x10] sm:$0xf]
        %v1856 = vld [vmem:[%s15 + $0x14] sm:$0xf]
        %v1857 = vld [vmem:[%s15 + $0x18] sm:$0xf]
        %v1858 = vld [vmem:[%s15 + $0x1c] sm:$0xf]
        %v1859 = vld [vmem:[%s15 + $0x20] sm:$0xf]
        %v1860 = vld [vmem:[%s15 + $0x24] sm:$0xf]
        %v1861 = vld [vmem:[%s15 + $0x28] sm:$0xf]
        %v1862 = vld [vmem:[%s15 + $0x2c] sm:$0xf]
        %v1863 = vld [vmem:[%s15 + $0x30] sm:$0xf]
        %v1864 = vld [vmem:[%s15 + $0x34] sm:$0xf]
        %v1865 = vld [vmem:[%s15 + $0x38] sm:$0xf]
        %v1866 = vld [vmem:[%s15 + $0x3c] sm:$0xf]
        %v1867 = vld [vmem:[%s15 + $0x40] sm:$0xf]
        %v1868 = vld [vmem:[%s15 + $0x44] sm:$0xf]
        %v1869 = vld [vmem:[%s15 + $0x48] sm:$0xf]
        %v1870 = vld [vmem:[%s15 + $0x4c] sm:$0xf]
        %v1871 = vld [vmem:[%s15 + $0x50] sm:$0xf]
        %v1872 = vld [vmem:[%s15 + $0x54] sm:$0xf]
        %v1873 = vld [vmem:[%s15 + $0x58] sm:$0xf]
        %v1874 = vld [vmem:[%s15 + $0x5c] sm:$0xf]
        %v1875 = vld [vmem:[%s15 + $0x60] sm:$0xf]
        %v1876 = vld [vmem:[%s15 + $0x64] sm:$0xf]
        %v1877 = vld [vmem:[%s15 + $0x68] sm:$0xf]
        %v1878 = vld [vmem:[%s15 + $0x6c] sm:$0xf]
        %v1879 = vld [vmem:[%s15 + $0x70] sm:$0xf]
        %v1880 = vld [vmem:[%s15 + $0x74] sm:$0xf]
        %v1881 = vld [vmem:[%s15 + $0x78] sm:$0xf]
        %v1882 = vld [vmem:[%s15 + $0x7c] sm:$0xf]
        %v1883 = vld [vmem:[#allocation15] sm:$0x1]
        %v1885 = vperm.slane %v1883, 0
        %v1919 = vunpack.c.l.b16 %v1851
        %v1920 = vunpack.c.l.b16 %v1852
        %v1921 = vunpack.c.l.b16 %v1853
        %v1922 = vunpack.c.l.b16 %v1854
        %v1923 = vunpack.c.l.b16 %v1855
        %v1924 = vunpack.c.l.b16 %v1856
        %v1925 = vunpack.c.l.b16 %v1857
        %v1926 = vunpack.c.l.b16 %v1858
        %v1927 = vunpack.c.l.b16 %v1859
        %v1928 = vunpack.c.l.b16 %v1860
        %v1929 = vunpack.c.l.b16 %v1861
        %v1930 = vunpack.c.l.b16 %v1862
        %v1931 = vunpack.c.l.b16 %v1863
        %v1932 = vunpack.c.l.b16 %v1864
        %v1933 = vunpack.c.l.b16 %v1865
        %v1934 = vunpack.c.l.b16 %v1866
        %v1935 = vunpack.c.l.b16 %v1867
        %v1936 = vunpack.c.l.b16 %v1868
        %v1937 = vunpack.c.l.b16 %v1869
        %v1938 = vunpack.c.l.b16 %v1870
        %v1939 = vunpack.c.l.b16 %v1871
        %v1940 = vunpack.c.l.b16 %v1872
        %v1941 = vunpack.c.l.b16 %v1873
        %v1942 = vunpack.c.l.b16 %v1874
        %v1943 = vunpack.c.l.b16 %v1875
        %v1944 = vunpack.c.l.b16 %v1876
        %v1945 = vunpack.c.l.b16 %v1877
        %v1946 = vunpack.c.l.b16 %v1878
        %v1947 = vunpack.c.l.b16 %v1879
        %v1948 = vunpack.c.l.b16 %v1880
        %v1949 = vunpack.c.l.b16 %v1881
        %v1950 = vunpack.c.l.b16 %v1882
        %v1951 = vpack.c.b16 %v1920, %v1919
        %v1952 = vpack.c.b16 %v1922, %v1921
        %v1953 = vpack.c.b16 %v1924, %v1923
        %v1954 = vpack.c.b16 %v1926, %v1925
        %v1955 = vpack.c.b16 %v1928, %v1927
        %v1956 = vpack.c.b16 %v1930, %v1929
        %v1957 = vpack.c.b16 %v1932, %v1931
        %v1958 = vpack.c.b16 %v1934, %v1933
        %v1959 = vpack.c.b16 %v1936, %v1935
        %v1960 = vpack.c.b16 %v1938, %v1937
        %v1961 = vpack.c.b16 %v1940, %v1939
        %v1962 = vpack.c.b16 %v1942, %v1941
        %v1963 = vpack.c.b16 %v1944, %v1943
        %v1964 = vpack.c.b16 %v1946, %v1945
        %v1965 = vpack.c.b16 %v1948, %v1947
        %v1966 = vpack.c.b16 %v1950, %v1949
        %1983 = vmatpush.bf16.msra.mxu0 %v1958
        %1984 = vmatpush.bf16.msra.mxu0 %v1957
        %1985 = vmatpush.bf16.msra.mxu0 %v1956
        %1986 = vmatpush.bf16.msra.mxu0 %v1955
        %1987 = vmatpush.bf16.msra.mxu0 %v1954
        %1988 = vmatpush.bf16.msra.mxu0 %v1953
        %1989 = vmatpush.bf16.msra.mxu0 %v1952
        %1990 = vmatpush.bf16.msra.mxu0 %v1951
        %1991 = vmatmul.bf16.gmra.mxu0 %v1849
        %v1992 = vpop.f32.mrf.mxu0
        %v1993 = vadd.f32 %v1885, %v1992
        %v1994 = vpop.f32.mrf.mxu0
        %v1995 = vadd.f32 %v1885, %v1994
        %1996 = vdwg.mxu0
        %1997 = vmatpush.bf16.msra.mxu0 %v1966
        %1998 = vmatpush.bf16.msra.mxu0 %v1965
        %1999 = vmatpush.bf16.msra.mxu0 %v1964
        %2000 = vmatpush.bf16.msra.mxu0 %v1963
        %2001 = vmatpush.bf16.msra.mxu0 %v1962
        %2002 = vmatpush.bf16.msra.mxu0 %v1961
        %2003 = vmatpush.bf16.msra.mxu0 %v1960
        %2004 = vmatpush.bf16.msra.mxu0 %v1959
        %2005 = vmatmul.bf16.gmra.mxu0 %v1850
        %v2006 = vpop.f32.mrf.mxu0
        %v2007 = vadd.f32 %v1993, %v2006
        %v2008 = vpop.f32.mrf.mxu0
        %v2009 = vadd.f32 %v1995, %v2008
        %2010 = vdwg.mxu0
        %v2011 = vadd.f32 %v2007, %v1657
        %v2012 = vadd.f32 %v2009, %v1658
        %v2013 = vmul.f32 %v2011, 0.5
        %v2014 = vmul.f32 %v2012, 0.5
        %v2015 = vmul.f32 %v2011, 0.70710677
        %v2016 = vmul.f32 %v2012, 0.70710677
        %v2017 = vand.u32 2147483647, %v2015
        %v2018 = vand.u32 2147483647, %v2016
        %v2019 = vmul.f32 %v2017, 0.3275911
        %v2020 = vmul.f32 %v2018, 0.3275911
        %v2021 = vadd.f32 %v2019, 1.0
        %v2022 = vadd.f32 %v2020, 1.0
        %v2023 = vrcp.pop %v2021
        %v2024 = vrcp.pop %v2022
        %v2025 = vmul.f32 %v2023, 1.0614054
        %v2026 = vmul.f32 %v2024, 1.0614054
        %v2027 = vadd.f32 %v2025, -1.4531521
        %v2028 = vadd.f32 %v2026, -1.4531521
        %v2029 = vmul.f32 %v2027, %v2023
        %v2030 = vmul.f32 %v2028, %v2024
        %v2031 = vadd.f32 %v2029, 1.4214138
        %v2032 = vadd.f32 %v2030, 1.4214138
        %v2033 = vmul.f32 %v2031, %v2023
        %v2034 = vmul.f32 %v2032, %v2024
        %v2035 = vadd.f32 %v2033, -0.28449672
        %v2036 = vadd.f32 %v2034, -0.28449672
        %v2037 = vmul.f32 %v2035, %v2023
        %v2038 = vmul.f32 %v2036, %v2024
        %v2039 = vadd.f32 %v2037, 0.2548296
        %v2040 = vadd.f32 %v2038, 0.2548296
        %v2041 = vmul.f32 %v2039, %v2023
        %v2042 = vmul.f32 %v2040, %v2024
        %v2043 = vsub.f32 0.0, %v2017
        %v2044 = vsub.f32 0.0, %v2018
        %v2045 = vmul.f32 %v2043, %v2017
        %v2046 = vmul.f32 %v2044, %v2018
        %v2047 = vmul.f32 %v2045, 1.442695
        %v2048 = vpow.pop %v2047
        %v2049 = vmul.f32 %v2046, 1.442695
        %v2050 = vpow.pop %v2049
        %v2051 = vmul.f32 %v2041, %v2048
        %v2052 = vmul.f32 %v2042, %v2050
        %v2053 = vsub.f32 1.0, %v2051
        %v2054 = vsub.f32 1.0, %v2052
        %vm2055 = vcmp.ge.f32.partialorder %v2015, 0.0
        %vm2056 = vcmp.ge.f32.partialorder %v2016, 0.0
        %v2057 = vsub.f32 0.0, %v2053
        %v2058 = vsub.f32 0.0, %v2054
        %v2059 = vsel %vm2055, %v2053, %v2057
        %v2060 = vsel %vm2056, %v2054, %v2058
        %v2061 = vadd.f32 %v2059, 1.0
        %v2062 = vadd.f32 %v2060, 1.0
        %v2063 = vmul.f32 %v2013, %v2061
        %v2064 = vmul.f32 %v2014, %v2062
        %v2065 = vpack.c.bf16 %v2064, %v2063
        %v2066 = vld [vmem:[%s17] sm:$0xff]
        %v2067 = vld [vmem:[%s17 + $0x8] sm:$0xff]
        %v2068 = vld [vmem:[%s17 + $0x10] sm:$0xff]
        %v2069 = vld [vmem:[%s17 + $0x18] sm:$0xff]
        %v2070 = vld [vmem:[%s17 + $0x20] sm:$0xff]
        %v2071 = vld [vmem:[%s17 + $0x28] sm:$0xff]
        %v2072 = vld [vmem:[%s17 + $0x30] sm:$0xff]
        %v2073 = vld [vmem:[%s17 + $0x38] sm:$0xff]
        %v2074 = vld [vmem:[#allocation16] sm:$0x3]
        %v2076 = vperm.slane %v2074, 0
        %v2077 = vperm.slane %v2074, 1
        %v2088 = vunpack.c.l.b16 %v2066
        %v2089 = vunpack.c.h.b16 %v2066
        %v2090 = vunpack.c.l.b16 %v2067
        %v2091 = vunpack.c.h.b16 %v2067
        %v2092 = vunpack.c.l.b16 %v2068
        %v2093 = vunpack.c.h.b16 %v2068
        %v2094 = vunpack.c.l.b16 %v2069
        %v2095 = vunpack.c.h.b16 %v2069
        %v2096 = vunpack.c.l.b16 %v2070
        %v2097 = vunpack.c.h.b16 %v2070
        %v2098 = vunpack.c.l.b16 %v2071
        %v2099 = vunpack.c.h.b16 %v2071
        %v2100 = vunpack.c.l.b16 %v2072
        %v2101 = vunpack.c.h.b16 %v2072
        %v2102 = vunpack.c.l.b16 %v2073
        %v2103 = vunpack.c.h.b16 %v2073
        %v2104 = vpack.c.b16 %v2090, %v2088
        %v2105 = vpack.c.b16 %v2091, %v2089
        %v2106 = vpack.c.b16 %v2094, %v2092
        %v2107 = vpack.c.b16 %v2095, %v2093
        %v2108 = vpack.c.b16 %v2098, %v2096
        %v2109 = vpack.c.b16 %v2099, %v2097
        %v2110 = vpack.c.b16 %v2102, %v2100
        %v2111 = vpack.c.b16 %v2103, %v2101
        %v2121 = vsel %vm828, %v2065, 0
        %2123 = vmatpush.bf16.msra.mxu0 0
        %2124 = vmatpush.bf16.msra.mxu0 0
        %2125 = vmatpush.bf16.msra.mxu0 0
        %2126 = vmatpush.bf16.msra.mxu0 0
        %2127 = vmatpush.bf16.msra.mxu0 %v2110
        %2128 = vmatpush.bf16.msra.mxu0 %v2108
        %2129 = vmatpush.bf16.msra.mxu0 %v2106
        %2130 = vmatpush.bf16.msra.mxu0 %v2104
        %2131 = vmatmul.bf16.gmra.mxu0 %v2121
        %v2132 = vpop.f32.mrf.mxu0
        %v2133 = vadd.f32 %v2076, %v2132
        %v2134 = vpop.f32.mrf.mxu0
        %v2135 = vadd.f32 %v2076, %v2134
        %2136 = vdwg.mxu0
        %2137 = vmatpush.bf16.msra.mxu0 0
        %2138 = vmatpush.bf16.msra.mxu0 0
        %2139 = vmatpush.bf16.msra.mxu0 0
        %2140 = vmatpush.bf16.msra.mxu0 0
        %2141 = vmatpush.bf16.msra.mxu0 %v2111
        %2142 = vmatpush.bf16.msra.mxu0 %v2109
        %2143 = vmatpush.bf16.msra.mxu0 %v2107
        %2144 = vmatpush.bf16.msra.mxu0 %v2105
        %2145 = vmatmul.bf16.gmra.mxu0 %v2121
        %v2146 = vpop.f32.mrf.mxu0
        %v2147 = vadd.f32 %v2077, %v2146
        %v2148 = vpop.f32.mrf.mxu0
        %v2149 = vadd.f32 %v2077, %v2148
        %2150 = vdwg.mxu0
        %v2151 = vmul.f32 %v2133, 0.5
        %v2152 = vmul.f32 %v2147, 0.5
        %v2153 = vmul.f32 %v2135, 0.5
        %v2154 = vmul.f32 %v2149, 0.5
        %v2155 = vmul.f32 %v2133, 0.70710677
        %v2156 = vmul.f32 %v2147, 0.70710677
        %v2157 = vmul.f32 %v2135, 0.70710677
        %v2158 = vmul.f32 %v2149, 0.70710677
        %v2159 = vand.u32 2147483647, %v2155
        %v2160 = vand.u32 2147483647, %v2156
        %v2161 = vand.u32 2147483647, %v2157
        %v2162 = vand.u32 2147483647, %v2158
        %v2163 = vmul.f32 %v2159, 0.3275911
        %v2164 = vmul.f32 %v2160, 0.3275911
        %v2165 = vmul.f32 %v2161, 0.3275911
        %v2166 = vmul.f32 %v2162, 0.3275911
        %v2167 = vadd.f32 %v2163, 1.0
        %v2168 = vadd.f32 %v2164, 1.0
        %v2169 = vadd.f32 %v2165, 1.0
        %v2170 = vadd.f32 %v2166, 1.0
        %v2171 = vrcp.pop %v2167
        %v2172 = vrcp.pop %v2168
        %v2173 = vrcp.pop %v2169
        %v2174 = vrcp.pop %v2170
        %v2175 = vmul.f32 %v2171, 1.0614054
        %v2176 = vmul.f32 %v2172, 1.0614054
        %v2177 = vmul.f32 %v2173, 1.0614054
        %v2178 = vmul.f32 %v2174, 1.0614054
        %v2179 = vadd.f32 %v2175, -1.4531521
        %v2180 = vadd.f32 %v2176, -1.4531521
        %v2181 = vadd.f32 %v2177, -1.4531521
        %v2182 = vadd.f32 %v2178, -1.4531521
        %v2183 = vmul.f32 %v2179, %v2171
        %v2184 = vmul.f32 %v2180, %v2172
        %v2185 = vmul.f32 %v2181, %v2173
        %v2186 = vmul.f32 %v2182, %v2174
        %v2187 = vadd.f32 %v2183, 1.4214138
        %v2188 = vadd.f32 %v2184, 1.4214138
        %v2189 = vadd.f32 %v2185, 1.4214138
        %v2190 = vadd.f32 %v2186, 1.4214138
        %v2191 = vmul.f32 %v2187, %v2171
        %v2192 = vmul.f32 %v2188, %v2172
        %v2193 = vmul.f32 %v2189, %v2173
        %v2194 = vmul.f32 %v2190, %v2174
        %v2195 = vadd.f32 %v2191, -0.28449672
        %v2196 = vadd.f32 %v2192, -0.28449672
        %v2197 = vadd.f32 %v2193, -0.28449672
        %v2198 = vadd.f32 %v2194, -0.28449672
        %v2199 = vmul.f32 %v2195, %v2171
        %v2200 = vmul.f32 %v2196, %v2172
        %v2201 = vmul.f32 %v2197, %v2173
        %v2202 = vmul.f32 %v2198, %v2174
        %v2203 = vadd.f32 %v2199, 0.2548296
        %v2204 = vadd.f32 %v2200, 0.2548296
        %v2205 = vadd.f32 %v2201, 0.2548296
        %v2206 = vadd.f32 %v2202, 0.2548296
        %v2207 = vmul.f32 %v2203, %v2171
        %v2208 = vmul.f32 %v2204, %v2172
        %v2209 = vmul.f32 %v2205, %v2173
        %v2210 = vmul.f32 %v2206, %v2174
        %v2211 = vsub.f32 0.0, %v2159
        %v2212 = vsub.f32 0.0, %v2160
        %v2213 = vsub.f32 0.0, %v2161
        %v2214 = vsub.f32 0.0, %v2162
        %v2215 = vmul.f32 %v2211, %v2159
        %v2216 = vmul.f32 %v2212, %v2160
        %v2217 = vmul.f32 %v2213, %v2161
        %v2218 = vmul.f32 %v2214, %v2162
        %v2219 = vmul.f32 %v2215, 1.442695
        %v2220 = vpow.pop %v2219
        %v2221 = vmul.f32 %v2216, 1.442695
        %v2222 = vpow.pop %v2221
        %v2223 = vmul.f32 %v2217, 1.442695
        %v2224 = vpow.pop %v2223
        %v2225 = vmul.f32 %v2218, 1.442695
        %v2226 = vpow.pop %v2225
        %v2227 = vmul.f32 %v2207, %v2220
        %v2228 = vmul.f32 %v2208, %v2222
        %v2229 = vmul.f32 %v2209, %v2224
        %v2230 = vmul.f32 %v2210, %v2226
        %v2231 = vsub.f32 1.0, %v2227
        %v2232 = vsub.f32 1.0, %v2228
        %v2233 = vsub.f32 1.0, %v2229
        %v2234 = vsub.f32 1.0, %v2230
        %vm2235 = vcmp.ge.f32.partialorder %v2155, 0.0
        %vm2236 = vcmp.ge.f32.partialorder %v2156, 0.0
        %vm2237 = vcmp.ge.f32.partialorder %v2157, 0.0
        %vm2238 = vcmp.ge.f32.partialorder %v2158, 0.0
        %v2239 = vsub.f32 0.0, %v2231
        %v2240 = vsub.f32 0.0, %v2232
        %v2241 = vsub.f32 0.0, %v2233
        %v2242 = vsub.f32 0.0, %v2234
        %v2243 = vsel %vm2235, %v2231, %v2239
        %v2244 = vsel %vm2236, %v2232, %v2240
        %v2245 = vsel %vm2237, %v2233, %v2241
        %v2246 = vsel %vm2238, %v2234, %v2242
        %v2247 = vadd.f32 %v2243, 1.0
        %v2248 = vadd.f32 %v2244, 1.0
        %v2249 = vadd.f32 %v2245, 1.0
        %v2250 = vadd.f32 %v2246, 1.0
        %v2251 = vmul.f32 %v2151, %v2247
        %v2252 = vmul.f32 %v2152, %v2248
        %v2253 = vmul.f32 %v2153, %v2249
        %v2254 = vmul.f32 %v2154, %v2250
        %v2255 = vpack.c.bf16 %v2253, %v2251
        %v2256 = vpack.c.bf16 %v2254, %v2252
        %v2257 = vld [vmem:[%s19] sm:$0xf]
        %v2258 = vld [vmem:[%s19 + $0x4] sm:$0xf]
        %v2259 = vld [vmem:[%s19 + $0x8] sm:$0xf]
        %v2260 = vld [vmem:[%s19 + $0xc] sm:$0xf]
        %v2261 = vld [vmem:[%s19 + $0x10] sm:$0xf]
        %v2262 = vld [vmem:[%s19 + $0x14] sm:$0xf]
        %v2263 = vld [vmem:[%s19 + $0x18] sm:$0xf]
        %v2264 = vld [vmem:[%s19 + $0x1c] sm:$0xf]
        %v2265 = vld [vmem:[%s19 + $0x20] sm:$0xf]
        %v2266 = vld [vmem:[%s19 + $0x24] sm:$0xf]
        %v2267 = vld [vmem:[%s19 + $0x28] sm:$0xf]
        %v2268 = vld [vmem:[%s19 + $0x2c] sm:$0xf]
        %v2269 = vld [vmem:[%s19 + $0x30] sm:$0xf]
        %v2270 = vld [vmem:[%s19 + $0x34] sm:$0xf]
        %v2271 = vld [vmem:[%s19 + $0x38] sm:$0xf]
        %v2272 = vld [vmem:[%s19 + $0x3c] sm:$0xf]
        %v2273 = vld [vmem:[%s19 + $0x40] sm:$0xf]
        %v2274 = vld [vmem:[%s19 + $0x44] sm:$0xf]
        %v2275 = vld [vmem:[%s19 + $0x48] sm:$0xf]
        %v2276 = vld [vmem:[%s19 + $0x4c] sm:$0xf]
        %v2277 = vld [vmem:[%s19 + $0x50] sm:$0xf]
        %v2278 = vld [vmem:[%s19 + $0x54] sm:$0xf]
        %v2279 = vld [vmem:[%s19 + $0x58] sm:$0xf]
        %v2280 = vld [vmem:[%s19 + $0x5c] sm:$0xf]
        %v2281 = vld [vmem:[%s19 + $0x60] sm:$0xf]
        %v2282 = vld [vmem:[%s19 + $0x64] sm:$0xf]
        %v2283 = vld [vmem:[%s19 + $0x68] sm:$0xf]
        %v2284 = vld [vmem:[%s19 + $0x6c] sm:$0xf]
        %v2285 = vld [vmem:[%s19 + $0x70] sm:$0xf]
        %v2286 = vld [vmem:[%s19 + $0x74] sm:$0xf]
        %v2287 = vld [vmem:[%s19 + $0x78] sm:$0xf]
        %v2288 = vld [vmem:[%s19 + $0x7c] sm:$0xf]
        %v2289 = vld [vmem:[#allocation18] sm:$0x1]
        %v2291 = vperm.slane %v2289, 0
        %v2325 = vunpack.c.l.b16 %v2257
        %v2326 = vunpack.c.l.b16 %v2258
        %v2327 = vunpack.c.l.b16 %v2259
        %v2328 = vunpack.c.l.b16 %v2260
        %v2329 = vunpack.c.l.b16 %v2261
        %v2330 = vunpack.c.l.b16 %v2262
        %v2331 = vunpack.c.l.b16 %v2263
        %v2332 = vunpack.c.l.b16 %v2264
        %v2333 = vunpack.c.l.b16 %v2265
        %v2334 = vunpack.c.l.b16 %v2266
        %v2335 = vunpack.c.l.b16 %v2267
        %v2336 = vunpack.c.l.b16 %v2268
        %v2337 = vunpack.c.l.b16 %v2269
        %v2338 = vunpack.c.l.b16 %v2270
        %v2339 = vunpack.c.l.b16 %v2271
        %v2340 = vunpack.c.l.b16 %v2272
        %v2341 = vunpack.c.l.b16 %v2273
        %v2342 = vunpack.c.l.b16 %v2274
        %v2343 = vunpack.c.l.b16 %v2275
        %v2344 = vunpack.c.l.b16 %v2276
        %v2345 = vunpack.c.l.b16 %v2277
        %v2346 = vunpack.c.l.b16 %v2278
        %v2347 = vunpack.c.l.b16 %v2279
        %v2348 = vunpack.c.l.b16 %v2280
        %v2349 = vunpack.c.l.b16 %v2281
        %v2350 = vunpack.c.l.b16 %v2282
        %v2351 = vunpack.c.l.b16 %v2283
        %v2352 = vunpack.c.l.b16 %v2284
        %v2353 = vunpack.c.l.b16 %v2285
        %v2354 = vunpack.c.l.b16 %v2286
        %v2355 = vunpack.c.l.b16 %v2287
        %v2356 = vunpack.c.l.b16 %v2288
        %v2357 = vpack.c.b16 %v2326, %v2325
        %v2358 = vpack.c.b16 %v2328, %v2327
        %v2359 = vpack.c.b16 %v2330, %v2329
        %v2360 = vpack.c.b16 %v2332, %v2331
        %v2361 = vpack.c.b16 %v2334, %v2333
        %v2362 = vpack.c.b16 %v2336, %v2335
        %v2363 = vpack.c.b16 %v2338, %v2337
        %v2364 = vpack.c.b16 %v2340, %v2339
        %v2365 = vpack.c.b16 %v2342, %v2341
        %v2366 = vpack.c.b16 %v2344, %v2343
        %v2367 = vpack.c.b16 %v2346, %v2345
        %v2368 = vpack.c.b16 %v2348, %v2347
        %v2369 = vpack.c.b16 %v2350, %v2349
        %v2370 = vpack.c.b16 %v2352, %v2351
        %v2371 = vpack.c.b16 %v2354, %v2353
        %v2372 = vpack.c.b16 %v2356, %v2355
        %2389 = vmatpush.bf16.msra.mxu0 %v2364
        %2390 = vmatpush.bf16.msra.mxu0 %v2363
        %2391 = vmatpush.bf16.msra.mxu0 %v2362
        %2392 = vmatpush.bf16.msra.mxu0 %v2361
        %2393 = vmatpush.bf16.msra.mxu0 %v2360
        %2394 = vmatpush.bf16.msra.mxu0 %v2359
        %2395 = vmatpush.bf16.msra.mxu0 %v2358
        %2396 = vmatpush.bf16.msra.mxu0 %v2357
        %2397 = vmatmul.bf16.gmra.mxu0 %v2255
        %v2398 = vpop.f32.mrf.mxu0
        %v2399 = vadd.f32 %v2291, %v2398
        %v2400 = vpop.f32.mrf.mxu0
        %v2401 = vadd.f32 %v2291, %v2400
        %2402 = vdwg.mxu0
        %2403 = vmatpush.bf16.msra.mxu0 %v2372
        %2404 = vmatpush.bf16.msra.mxu0 %v2371
        %2405 = vmatpush.bf16.msra.mxu0 %v2370
        %2406 = vmatpush.bf16.msra.mxu0 %v2369
        %2407 = vmatpush.bf16.msra.mxu0 %v2368
        %2408 = vmatpush.bf16.msra.mxu0 %v2367
        %2409 = vmatpush.bf16.msra.mxu0 %v2366
        %2410 = vmatpush.bf16.msra.mxu0 %v2365
        %2411 = vmatmul.bf16.gmra.mxu0 %v2256
        %v2412 = vpop.f32.mrf.mxu0
        %v2413 = vadd.f32 %v2399, %v2412
        %v2414 = vpop.f32.mrf.mxu0
        %v2415 = vadd.f32 %v2401, %v2414
        %2416 = vdwg.mxu0
        %v2417 = vadd.f32 %v2413, %v2063
        %v2418 = vadd.f32 %v2415, %v2064
        %v2419 = vadd.f32 %v2417, %v1657
        %v2420 = vadd.f32 %v2418, %v1658
        %2421 = vst.msk [vmem:[%s820] sm:$0xff] %vm828, %v2419
        %2422 = vst.msk [vmem:[%s820 + $0x8] sm:$0xff] %vm828, %v2420
        %p2423 = scmp.lt.s32.totalorder %s38, 1
        %s2424 = scalar_select %p2423, %s38, 1
        %s2425 = smul.addr %s2424, 2
        %s2426 = smul.addr %s2425, 8
        %s2427 = scalar_lea.vmem %s21, %s2426
        // Predicated region
        $region149: #{_lambda_.6} parent=103 // pred_check
          %p2428 = pneg %p502
        $region150: #{_lambda_.6} parent=103 // pred_check_branch
          %2430 = sbr.rel (%p2428) target = $region152
        $region151: #{_lambda_.6} parent=103 // pred_region
          _
        $region152: #{_lambda_.6} parent=103 // pred_fallthru
          _
      $region104: #{_lambda_.6} parent=5 // pred_fallthru
        _
      %p2431 = scmp.le.s32.totalorder 2, %s33
      // Predicated region
      $region153: #{_lambda_.6} parent=5 // pred_check
        %p2432 = pneg %p2431
      $region154: #{_lambda_.6} parent=5 // pred_check_branch
        %2434 = sbr.rel (%p2432) target = $region156
      $region155: #{_lambda_.6} parent=5 // pred_region
        %s2435 = ssub.s32 %s33, 2
        // Predicated region
        $region157: #{_lambda_.6} parent=155 // pred_check
          %p2436 = pneg %p508
        $region158: #{_lambda_.6} parent=155 // pred_check_branch
          %2438 = sbr.rel (%p2436) target = $region160
        $region159: #{_lambda_.6} parent=155 // pred_region
          %p2439 = scmp.lt.s32.totalorder %s39, 1
          %s2440 = scalar_select %p2439, %s39, 1
          %s2441 = smul.addr %s2440, 2
          %s2442 = smul.addr %s2441, 8
          %s2443 = scalar_lea.vmem %s21, %s2442
        $region160: #{_lambda_.6} parent=155 // pred_fallthru
          _
      $region156: #{_lambda_.6} parent=5 // pred_fallthru
        _
    $region6: #{_lambda_.6} parent=1 // loop_footer
      %s37 = sadd.s32 1, %s33
    $region7: #{_lambda_.6} parent=1 // loop_footer_branch
      %32 = sbr.rel target = $region3
    $region8: #{_lambda_.6} parent=1 // loop_exit
      _
    %2444 = vsyncpa [#allocation3], 1
    %s2445 = scalar_lea.sflag [#allocation3], 1
    %2446 = vsyncpa %s2445, 1
    %2447 = vsyncpa [#allocation5], 1
    %2448 = vsyncpa [#allocation8], 1
    %2449 = vsyncpa [#allocation11], 1
    %2450 = vsyncpa [#allocation14], 1
    %2451 = vsyncpa [#allocation17], 1

// kernel: _lambda_.9
$region0: #{_lambda_.9}
  #allocation0 [shape = 'u32[]', space=smem, size = 0x4, offset = 0x4, fixed_abs, tag = 'smem constant byte address 0x4 - core index']
  #allocation1 [shape = 'u32[72,128]{1,0:T(1,128)}', space=vmem, size = 0x9000, scoped, tag = 'internal scratch']
  #allocation2 [shape = 'f32[1]{0:T(128)S(6)}', space=smem, size = 0x200, scoped, tag = 'scoped memory for _lambda_.9']
  %s0 = inlined_call_operand.vmem [shape: f32[2,1,1024], index: 0, kind: input, shape index: {}]
  %s1 = inlined_call_operand.vmem [shape: f32[2,1,1024], index: 1, kind: input, shape index: {}]
  %s2 = inlined_call_operand.vmem [shape: f32[2,1], index: 2, kind: input, shape index: {}]
  %s3 = inlined_call_operand.<no memory space> [shape: f32[1], index: 3, kind: input, shape index: {}]
  %s4 = inlined_call_operand.vmem [shape: f32[2,1,1024], index: 4, kind: output, shape index: {}]
  %s5 = sld [smem:[#allocation0]]
  $region53: #{_lambda_.9} parent=0
    _
  %s7 = ssub.s32 1, %s5
  %s8 = scalar_select 0, %s7, %s5
  %9 = sst [smem:[#allocation2]] %s3
  $region1: #{_lambda_.9} parent=0
    #allocation3 [shape = 'u8[1024]{0}', space=smem, size = 0x400, scoped, tag = 'input window, operand 2, single buffered']
    #allocation4 [shape = 's32[2]{0}', space=sflag, size = 0x8, scoped, tag = 'scoped memory for _lambda_.9']
    %10 = vsyncpa [#allocation4], 0
    loop: start=0, step=1, limit=4
    $region2: #{_lambda_.9} parent=1 // loop_pre_header
      _
    $region3: #{_lambda_.9} parent=1 // loop_header
      %s12 = sphi 0, %s16
      %p13 = scmp.ge.s32.totalorder %s12, 4
      %s22 = sphi 0, %s24
      %s25 = sphi 0, %s22
      %s26 = sphi 0, %s25
      %s42 = sphi 0, %s26
      %s48 = sphi 0, %s50
      %s51 = sphi 0, %s48
      %s52 = sphi 0, %s51
      %s68 = sphi 0, %s52
      %s72 = sphi 0, %s72
      %s74 = sphi 0, %s72
      %s75 = sphi 0, %s74
      %s89 = sphi 0, %s75
      %s93 = sphi 0, %s93
      %s95 = sphi 0, %s93
      %s96 = sphi 0, %s95
      %s110 = sphi 0, %s96
      %s116 = sphi 0, %s118
      %s119 = sphi 0, %s116
      %s120 = sphi 0, %s119
      %s136 = sphi 0, %s120
    $region4: #{_lambda_.9} parent=1 // loop_header_branch
      %15 = sbr.rel (%p13) target = $region8
    $region5: #{_lambda_.9} parent=1 // loop_body
      %s17 = ssub.s32 %s12, 1
      %s18 = ssub.s32 %s12, 2
      %s19 = sadd.s32 %s12, 1
      %s20 = ssub.s32 %s12, %s19
      %p21 = scmp.eq.s32.totalorder %s20, 0
      %s23 = sadd.s32 %s22, 1
      %s24 = scalar_select %p21, %s22, %s23
      %p27 = pneg %p21
      %p28 = scmp.eq.s32.totalorder %s12, 1
      %p29 = por %p27, %p28
      %p30 = scmp.ne.s32.totalorder %s22, %s25
      %p31 = scmp.eq.s32.totalorder %s12, 0
      %p32 = por %p30, %p31
      %p33 = scmp.ne.s32.totalorder %s22, %s25
      %p34 = scmp.eq.s32.totalorder %s17, 1
      %p35 = por %p33, %p34
      %p36 = scmp.ne.s32.totalorder %s25, %s26
      %p37 = scmp.eq.s32.totalorder %s17, 0
      %p38 = por %p36, %p37
      %p39 = scmp.ne.s32.totalorder %s25, %s26
      %p40 = scmp.eq.s32.totalorder %s18, 1
      %p41 = por %p39, %p40
      %p43 = scmp.ne.s32.totalorder %s26, %s42
      %p44 = scmp.eq.s32.totalorder %s18, 0
      %p45 = por %p43, %p44
      %s46 = ssub.s32 %s12, %s19
      %p47 = scmp.eq.s32.totalorder %s46, 0
      %s49 = sadd.s32 %s48, 1
      %s50 = scalar_select %p47, %s48, %s49
      %p53 = pneg %p47
      %p54 = scmp.eq.s32.totalorder %s12, 1
      %p55 = por %p53, %p54
      %p56 = scmp.ne.s32.totalorder %s48, %s51
      %p57 = scmp.eq.s32.totalorder %s12, 0
      %p58 = por %p56, %p57
      %p59 = scmp.ne.s32.totalorder %s48, %s51
      %p60 = scmp.eq.s32.totalorder %s17, 1
      %p61 = por %p59, %p60
      %p62 = scmp.ne.s32.totalorder %s51, %s52
      %p63 = scmp.eq.s32.totalorder %s17, 0
      %p64 = por %p62, %p63
      %p65 = scmp.ne.s32.totalorder %s51, %s52
      %p66 = scmp.eq.s32.totalorder %s18, 1
      %p67 = por %p65, %p66
      %p69 = scmp.ne.s32.totalorder %s52, %s68
      %p70 = scmp.eq.s32.totalorder %s18, 0
      %p71 = por %p69, %p70
      %s73 = sadd.s32 %s72, 1
      %p76 = scmp.eq.s32.totalorder %s12, 1
      %p77 = scmp.ne.s32.totalorder %s72, %s74
      %p78 = scmp.eq.s32.totalorder %s12, 0
      %p79 = por %p77, %p78
      %p80 = scmp.ne.s32.totalorder %s72, %s74
      %p81 = scmp.eq.s32.totalorder %s17, 1
      %p82 = por %p80, %p81
      %p83 = scmp.ne.s32.totalorder %s74, %s75
      %p84 = scmp.eq.s32.totalorder %s17, 0
      %p85 = por %p83, %p84
      %p86 = scmp.ne.s32.totalorder %s74, %s75
      %p87 = scmp.eq.s32.totalorder %s18, 1
      %p88 = por %p86, %p87
      %p90 = scmp.ne.s32.totalorder %s75, %s89
      %p91 = scmp.eq.s32.totalorder %s18, 0
      %p92 = por %p90, %p91
      %s94 = sadd.s32 %s93, 1
      %p97 = scmp.eq.s32.totalorder %s12, 1
      %p98 = scmp.ne.s32.totalorder %s93, %s95
      %p99 = scmp.eq.s32.totalorder %s12, 0
      %p100 = por %p98, %p99
      %p101 = scmp.ne.s32.totalorder %s93, %s95
      %p102 = scmp.eq.s32.totalorder %s17, 1
      %p103 = por %p101, %p102
      %p104 = scmp.ne.s32.totalorder %s95, %s96
      %p105 = scmp.eq.s32.totalorder %s17, 0
      %p106 = por %p104, %p105
      %p107 = scmp.ne.s32.totalorder %s95, %s96
      %p108 = scmp.eq.s32.totalorder %s18, 1
      %p109 = por %p107, %p108
      %p111 = scmp.ne.s32.totalorder %s96, %s110
      %p112 = scmp.eq.s32.totalorder %s18, 0
      %p113 = por %p111, %p112
      %s114 = ssub.s32 %s12, %s19
      %p115 = scmp.eq.s32.totalorder %s114, 0
      %s117 = sadd.s32 %s116, 1
      %s118 = scalar_select %p115, %s116, %s117
      %p121 = pneg %p115
      %p122 = scmp.eq.s32.totalorder %s12, 1
      %p123 = por %p121, %p122
      %p124 = scmp.ne.s32.totalorder %s116, %s119
      %p125 = scmp.eq.s32.totalorder %s12, 0
      %p126 = por %p124, %p125
      %p127 = scmp.ne.s32.totalorder %s116, %s119
      %p128 = scmp.eq.s32.totalorder %s17, 1
      %p129 = por %p127, %p128
      %p130 = scmp.ne.s32.totalorder %s119, %s120
      %p131 = scmp.eq.s32.totalorder %s17, 0
      %p132 = por %p130, %p131
      %p133 = scmp.ne.s32.totalorder %s119, %s120
      %p134 = scmp.eq.s32.totalorder %s18, 1
      %p135 = por %p133, %p134
      %p137 = scmp.ne.s32.totalorder %s120, %s136
      %p138 = scmp.eq.s32.totalorder %s18, 0
      %p139 = por %p137, %p138
      %p140 = scmp.le.s32.totalorder 1, %s12
      %p141 = scmp.lt.s32.totalorder %s12, 3
      %p142 = pnand %p140, %p141
      %p143 = pneg %p142
      // Predicated region
      $region9: #{_lambda_.9} parent=5 // pred_check
        _
      $region10: #{_lambda_.9} parent=5 // pred_check_branch
        %145 = sbr.rel (%p142) target = $region12
      $region11: #{_lambda_.9} parent=5 // pred_region
        %s146 = ssub.s32 %s12, 1
        // Predicated region
        $region13: #{_lambda_.9} parent=11 // pred_check
          %p147 = pneg %p85
        $region14: #{_lambda_.9} parent=11 // pred_check_branch
          %149 = sbr.rel (%p147) target = $region16
        $region15: #{_lambda_.9} parent=11 // pred_region
          %151 = vsyncadd [#allocation4], 0
          %s153 = sshll.u32 %s2, 4
          %s154 = int_to_ptr.vmem [resolvable:$true] %s153
          %156 = dma.vmem_to_smem %s154, 32, [#allocation3], [#allocation4]
        $region16: #{_lambda_.9} parent=11 // pred_fallthru
          _
        // Predicated region
        $region17: #{_lambda_.9} parent=11 // pred_check
          %p157 = pneg %p106
        $region18: #{_lambda_.9} parent=11 // pred_check_branch
          %159 = sbr.rel (%p157) target = $region20
        $region19: #{_lambda_.9} parent=11 // pred_region
          _
        $region20: #{_lambda_.9} parent=11 // pred_fallthru
          _
      $region12: #{_lambda_.9} parent=5 // pred_fallthru
        _
      %p160 = scmp.lt.s32.totalorder %s12, 2
      // Predicated region
      $region21: #{_lambda_.9} parent=5 // pred_check
        %p161 = pneg %p160
      $region22: #{_lambda_.9} parent=5 // pred_check_branch
        %163 = sbr.rel (%p161) target = $region24
      $region23: #{_lambda_.9} parent=5 // pred_region
        // Predicated region
        $region25: #{_lambda_.9} parent=23 // pred_check
          %p164 = pneg %p32
        $region26: #{_lambda_.9} parent=23 // pred_check_branch
          %166 = sbr.rel (%p164) target = $region28
        $region27: #{_lambda_.9} parent=23 // pred_region
          %p167 = scmp.lt.s32.totalorder %s12, 1
          %s168 = scalar_select %p167, %s12, 1
          %s169 = smul.addr %s168, 8
          %s170 = scalar_lea.vmem %s0, %s169
        $region28: #{_lambda_.9} parent=23 // pred_fallthru
          _
        // Predicated region
        $region29: #{_lambda_.9} parent=23 // pred_check
          %p171 = pneg %p58
        $region30: #{_lambda_.9} parent=23 // pred_check_branch
          %173 = sbr.rel (%p171) target = $region32
        $region31: #{_lambda_.9} parent=23 // pred_region
          %p174 = scmp.lt.s32.totalorder %s12, 1
          %s175 = scalar_select %p174, %s12, 1
          %s176 = smul.addr %s175, 8
          %s177 = scalar_lea.vmem %s1, %s176
        $region32: #{_lambda_.9} parent=23 // pred_fallthru
          _
      $region24: #{_lambda_.9} parent=5 // pred_fallthru
        _
      %p178 = scmp.le.s32.totalorder 1, %s12
      %p179 = scmp.lt.s32.totalorder %s12, 3
      %p180 = pnand %p178, %p179
      %p181 = pneg %p180
      // Predicated region
      $region33: #{_lambda_.9} parent=5 // pred_check
        _
      $region34: #{_lambda_.9} parent=5 // pred_check_branch
        %183 = sbr.rel (%p180) target = $region36
      $region35: #{_lambda_.9} parent=5 // pred_region
        %s184 = ssub.s32 %s12, 1
        // Predicated region
        $region37: #{_lambda_.9} parent=35 // pred_check
          %p185 = pneg %p85
        $region38: #{_lambda_.9} parent=35 // pred_check_branch
          %187 = sbr.rel (%p185) target = $region40
        $region39: #{_lambda_.9} parent=35 // pred_region
          %189 = dma.done [#allocation4], 32
        $region40: #{_lambda_.9} parent=35 // pred_fallthru
          _
        %190 = sfence
        %p191 = scmp.lt.s32.totalorder %s17, 1
        %s192 = scalar_select %p191, %s17, 1
        %s193 = smul.addr %s192, 8
        %s194 = scalar_lea.vmem %s0, %s193
        %p195 = pneg %p38
        %p196 = pneg %p35
        %p197 = scmp.lt.s32.totalorder %s17, 1
        %s198 = scalar_select %p197, %s17, 1
        %s199 = smul.addr %s198, 8
        %s200 = scalar_lea.vmem %s1, %s199
        %p201 = pneg %p64
        %p202 = pneg %p61
        %p203 = pneg %p85
        %p204 = pneg %p82
        %p205 = pneg %p106
        %p206 = pneg %p103
        %p207 = pneg %p132
        %p208 = pneg %p129
        %p209 = scmp.lt.s32.totalorder %s17, 1
        %s210 = scalar_select %p209, %s17, 1
        %s211 = smul.addr %s210, 8
        %s212 = scalar_lea.vmem %s4, %s211
        %p213 = scmp.lt.s32.totalorder %s17, 1
        %s214 = scalar_select %p213, %s17, 1
        %s215 = smul.addr %s214, 8
        %s216 = scalar_lea.vmem %s0, %s215
        %p217 = scmp.lt.s32.totalorder %s17, 1
        %s218 = scalar_select %p217, %s17, 1
        %s219 = smul.addr %s218, 8
        %s220 = scalar_lea.vmem %s1, %s219
        %p221 = scmp.lt.s32.totalorder %s17, 1
        %s222 = scalar_select %p221, %s17, 1
        %s223 = smul.addr %s222, 8
        %s224 = scalar_lea.vmem %s4, %s223
        %v225 = vld [vmem:[%s216] sm:$0xff]
        %v226 = vsub.f32 0.0, %v225
        %v227 = vmul.f32 %v226, 1.442695
        %v228 = vpow.pop %v227
        %v229 = vadd.f32 %v228, 1.0
        %v230 = vrcp.pop %v229
        %v231 = vmul.f32 %v229, %v230
        %v232 = vsub.f32 1.0, %v231
        %v233 = vmul.f32 %v230, %v232
        %v234 = vadd.f32 %v230, %v233
        %vm235 = vweird.f32 %v229
        %vm236 = vweird.f32 %v230
        %vm237 = vmor %vm235, %vm236
        %v238 = vsel %vm237, %v230, %v234
        %v239 = vand.u32 2147483647, %v229
        %vm240 = vcmp.eq.f32.partialorder %v239, 8.507059e+37
        %v241 = vand.u32 %v229, 2147483648
        %v242 = vor.u32 1.1754944e-38, %v241
        %v243 = vsel %vm240, %v242, %v238
        %v244 = vmul.f32 1.0, %v243
        %v245 = vld [vmem:[%s220] sm:$0xff]
        %s246 = sld [smem:[#allocation3]]
        %v247 = vstv %s246
        %v248 = vmul.f32 %v247, %v244
        %v249 = vadd.f32 %v248, 0.0
        %s250 = sld [smem:[#allocation3 + $0x80]]
        %v251 = vstv %s250
        %v252 = vmul.f32 %v251, %v245
        %v253 = vadd.f32 %v249, %v252
        %s254 = sld [smem:[#allocation2]]
        %v255 = vstv %s254
        %v256 = vadd.f32 %v253, %v255
        %v257 = vsub.f32 0.0, %v256
        %v258 = vmul.f32 %v257, 1.442695
        %v259 = vpow.pop %v258
        %v260 = vadd.f32 %v259, 1.0
        %v261 = vrcp.pop %v260
        %v262 = vmul.f32 %v260, %v261
        %v263 = vsub.f32 1.0, %v262
        %v264 = vmul.f32 %v261, %v263
        %v265 = vadd.f32 %v261, %v264
        %vm266 = vweird.f32 %v260
        %vm267 = vweird.f32 %v261
        %vm268 = vmor %vm266, %vm267
        %v269 = vsel %vm268, %v261, %v265
        %v270 = vand.u32 2147483647, %v260
        %vm271 = vcmp.eq.f32.partialorder %v270, 8.507059e+37
        %v272 = vand.u32 %v260, 2147483648
        %v273 = vor.u32 1.1754944e-38, %v272
        %v274 = vsel %vm271, %v273, %v269
        %v275 = vmul.f32 1.0, %v274
        %276 = vst [vmem:[%s224] sm:$0xff] %v275
        %p277 = scmp.lt.s32.totalorder %s17, 1
        %s278 = scalar_select %p277, %s17, 1
        %s279 = smul.addr %s278, 8
        %s280 = scalar_lea.vmem %s4, %s279
        // Predicated region
        $region41: #{_lambda_.9} parent=35 // pred_check
          %p281 = pneg %p129
        $region42: #{_lambda_.9} parent=35 // pred_check_branch
          %283 = sbr.rel (%p281) target = $region44
        $region43: #{_lambda_.9} parent=35 // pred_region
          _
        $region44: #{_lambda_.9} parent=35 // pred_fallthru
          _
      $region36: #{_lambda_.9} parent=5 // pred_fallthru
        _
      %p284 = scmp.le.s32.totalorder 2, %s12
      // Predicated region
      $region45: #{_lambda_.9} parent=5 // pred_check
        %p285 = pneg %p284
      $region46: #{_lambda_.9} parent=5 // pred_check_branch
        %287 = sbr.rel (%p285) target = $region48
      $region47: #{_lambda_.9} parent=5 // pred_region
        %s288 = ssub.s32 %s12, 2
        // Predicated region
        $region49: #{_lambda_.9} parent=47 // pred_check
          %p289 = pneg %p135
        $region50: #{_lambda_.9} parent=47 // pred_check_branch
          %291 = sbr.rel (%p289) target = $region52
        $region51: #{_lambda_.9} parent=47 // pred_region
          %p292 = scmp.lt.s32.totalorder %s18, 1
          %s293 = scalar_select %p292, %s18, 1
          %s294 = smul.addr %s293, 8
          %s295 = scalar_lea.vmem %s4, %s294
        $region52: #{_lambda_.9} parent=47 // pred_fallthru
          _
      $region48: #{_lambda_.9} parent=5 // pred_fallthru
        _
    $region6: #{_lambda_.9} parent=1 // loop_footer
      %s16 = sadd.s32 1, %s12
    $region7: #{_lambda_.9} parent=1 // loop_footer_branch
      %11 = sbr.rel target = $region3
    $region8: #{_lambda_.9} parent=1 // loop_exit
      _
    %296 = vsyncpa [#allocation4], 1
    %s297 = scalar_lea.sflag [#allocation4], 1
    %298 = vsyncpa %s297, 1

</llo_original>
